<compile_context>
chip_gen: v7x
topology: tpu7x:2x2x1
jax: 0.10.0
libtpu: 0.0.40
codegen_flags: <defaults>
</compile_context>

<pallas_src>
import functools
import math

import jax
import jax.numpy as jnp
from jax.experimental import pallas as pl
from jax.experimental.pallas import tpu as pltpu

# ------------------------- synthetic model config -------------------------
VOCAB = 128
MAX_POS = 64
HIDDEN = 128                      # bert hidden_size
HEADS = 4
HEAD_DIM = HIDDEN // HEADS        # 32
INTER = 4 * HIDDEN                # 512
REDUCTION = 16                    # Pfeiffer reduction_factor
BOTTLENECK = HIDDEN // REDUCTION  # 8
NUM_LAYERS = 2
NUM_CLASSES = 2
LN_EPS = 1e-12
HEAD_PAD = 128                    # lane-dense classifier output width


# ------------------------------ in-kernel helpers ---------------------------
def _ln(h, gamma, beta, eps):
    mu = jnp.mean(h, axis=-1, keepdims=True)
    d = h - mu
    var = jnp.mean(d * d, axis=-1, keepdims=True)
    return d * jax.lax.rsqrt(var + eps) * gamma + beta


def _gelu(y):
    # TODO(synk): HF BERT uses erf-GELU; tanh approximation used here (EUP-friendly).
    c = math.sqrt(2.0 / math.pi)
    return 0.5 * y * (1.0 + jnp.tanh(c * (y + 0.044715 * y * y * y)))


# --------------------------- the single fused kernel -------------------------
def _fused_forward_kernel(word_ref, pos_ref, type_ref, eg_ref, eb_ref, mask_ref,
                          wq_ref, bq_ref, wk_ref, bk_ref, wv_ref, bv_ref,
                          wo_ref, bo_ref, ln1g_ref, ln1b_ref,
                          wi_ref, bi_ref, wf_ref, bf_ref,
                          adw_ref, adb_ref, auw_ref, aub_ref,
                          ln2g_ref, ln2b_ref, cw_ref, cb_ref,
                          o_ref,
                          *, num_layers, heads, batch, seq, out_rows, scale, eps):
    D = word_ref.shape[-1]

    # ---- embeddings: (word + pos + type) fused with LayerNorm ----
    # TODO(synk): token_type_ids assumed all-zero (HF default when not passed).
    h = word_ref[...] + jnp.tile(pos_ref[...], (batch, 1)) + type_ref[...]
    x = _ln(h, eg_ref[...], eb_ref[...], eps)                      # (B*S, D) f32

    # ---- encoder layers (static unroll) ----
    for l in range(num_layers):
        xb = x.astype(jnp.bfloat16)

        # per-head attention; head weights pre-split -> free leading-dim ref slices
        ctx_parts = []
        for hd in range(heads):
            i = l * heads + hd
            q = jnp.dot(xb, wq_ref[i], preferred_element_type=jnp.float32) + bq_ref[i]
            k = jnp.dot(xb, wk_ref[i], preferred_element_type=jnp.float32) + bk_ref[i]
            v = jnp.dot(xb, wv_ref[i], preferred_element_type=jnp.float32) + bv_ref[i]
            rows = []
            for b in range(batch):
                qb = q[b * seq:(b + 1) * seq]                      # (S, dh)
                kb = k[b * seq:(b + 1) * seq]
                vb = v[b * seq:(b + 1) * seq]
                s = jax.lax.dot_general(qb, kb, (((1,), (1,)), ((), ())),
                                        preferred_element_type=jnp.float32) * scale
                s = s + mask_ref[b]                                # (1, S) additive mask
                s = s - jnp.max(s, axis=-1, keepdims=True)
                p = jnp.exp(s)
                p = p * pl.reciprocal(jnp.sum(p, axis=-1, keepdims=True), approx=True)
                rows.append(jnp.dot(p, vb, preferred_element_type=jnp.float32))
            ctx_parts.append(jnp.concatenate(rows, axis=0))        # (B*S, dh)
        ctx = jnp.concatenate(ctx_parts, axis=-1)                  # (B*S, D), in registers

        # attention output projection + Add & LayerNorm
        attn = (jnp.dot(ctx.astype(jnp.bfloat16), wo_ref[l],
                        preferred_element_type=jnp.float32) + bo_ref[l])
        h1 = _ln(attn + x, ln1g_ref[l], ln1b_ref[l], eps)

        # feed-forward (GELU)
        inter = _gelu(jnp.dot(h1.astype(jnp.bfloat16), wi_ref[l],
                              preferred_element_type=jnp.float32) + bi_ref[l])
        ffn = (jnp.dot(inter.astype(jnp.bfloat16), wf_ref[l],
                       preferred_element_type=jnp.float32) + bf_ref[l])

        # Pfeiffer output adapter: down -> ReLU -> up, residual around the adapter.
        # TODO(synk): adapter residual wiring follows standard Pfeiffer
        # (adapter applied to FFN output, LN over adapter_out + attention residual).
        a = jnp.maximum(jnp.dot(ffn.astype(jnp.bfloat16), adw_ref[l],
                                preferred_element_type=jnp.float32) + adb_ref[l], 0.0)
        a = (jnp.dot(a.astype(jnp.bfloat16), auw_ref[l],
                     preferred_element_type=jnp.float32) + aub_ref[l])

        x = _ln(ffn + a + h1, ln2g_ref[l], ln2b_ref[l], eps)

    # ---- CLS rows + classifier head, written as a dense (out_rows, 128) block ----
    rows = [x[b * seq:b * seq + 1] for b in range(batch)]
    if out_rows > batch:
        rows.append(jnp.zeros((out_rows - batch, D), jnp.float32))
    cls = jnp.concatenate(rows, axis=0)                            # (out_rows, D)
    o_ref[...] = (jnp.dot(cls.astype(jnp.bfloat16), cw_ref[...],
                          preferred_element_type=jnp.float32) + cb_ref[...])


# ------------------------------ pallas wrapper ------------------------------
def _fs(shape):
    nd = len(shape)
    return pl.BlockSpec(shape, lambda i, _nd=nd: (0,) * _nd)


def fused_forward(pp, word, pos, ext_mask, B, S):
    D = HIDDEN
    L = NUM_LAYERS
    out_rows = max(8, ((B + 7) // 8) * 8)

    kern = functools.partial(
        _fused_forward_kernel,
        num_layers=L, heads=HEADS, batch=B, seq=S, out_rows=out_rows,
        scale=1.0 / math.sqrt(HEAD_DIM), eps=LN_EPS)

    return pl.pallas_call(
        kern,
        out_shape=jax.ShapeDtypeStruct((out_rows, HEAD_PAD), jnp.float32),
        grid=(1,),
        in_specs=[
            _fs((B * S, D)),                                   # word embeddings (gathered)
            _fs((S, D)),                                       # positional embeddings
            _fs((1, D)), _fs((1, D)), _fs((1, D)),             # type row, emb LN gamma/beta
            _fs((B, 1, S)),                                    # additive attention mask
            _fs((L * HEADS, D, HEAD_DIM)), _fs((L * HEADS, 1, HEAD_DIM)),   # Q
            _fs((L * HEADS, D, HEAD_DIM)), _fs((L * HEADS, 1, HEAD_DIM)),   # K
            _fs((L * HEADS, D, HEAD_DIM)), _fs((L * HEADS, 1, HEAD_DIM)),   # V
            _fs((L, D, D)), _fs((L, 1, D)),                    # attn output proj
            _fs((L, 1, D)), _fs((L, 1, D)),                    # LN1
            _fs((L, D, INTER)), _fs((L, 1, INTER)),            # FFN in
            _fs((L, INTER, D)), _fs((L, 1, D)),                # FFN out
            _fs((L, D, BOTTLENECK)), _fs((L, 1, BOTTLENECK)),  # adapter down
            _fs((L, BOTTLENECK, D)), _fs((L, 1, D)),           # adapter up
            _fs((L, 1, D)), _fs((L, 1, D)),                    # LN2
            _fs((D, HEAD_PAD)), _fs((1, HEAD_PAD)),            # classifier head
        ],
        out_specs=_fs((out_rows, HEAD_PAD)),
        compiler_params=pltpu.CompilerParams(dimension_semantics=("arbitrary",)),
    )(word, pos, pp["type_row"], pp["emb_ln_g"], pp["emb_ln_b"], ext_mask,
      pp["wq"], pp["bq"], pp["wk"], pp["bk"], pp["wv"], pp["bv"],
      pp["wo"], pp["bo"], pp["ln1_g"], pp["ln1_b"],
      pp["wi"], pp["bi"], pp["wf"], pp["bf"],
      pp["ad_w"], pp["ad_b"], pp["au_w"], pp["au_b"],
      pp["ln2_g"], pp["ln2_b"],
      pp["cls_w"], pp["cls_b"])


# ------------------------------ parameters ---------------------------------
def init_params(key):
    std = 0.02

    def norm(k, shape):
        return std * jax.random.normal(k, shape, jnp.float32)

    keys = iter(jax.random.split(key, 8 + NUM_LAYERS * 16))
    p = {
        "word_emb": norm(next(keys), (VOCAB, HIDDEN)),
        "pos_emb": norm(next(keys), (MAX_POS, HIDDEN)),
        "type_emb": norm(next(keys), (2, HIDDEN)),
        "emb_ln_g": jnp.ones((HIDDEN,), jnp.float32),
        "emb_ln_b": jnp.zeros((HIDDEN,), jnp.float32),
        "layers": [],
        "cls_w": norm(next(keys), (HIDDEN, NUM_CLASSES)),
        "cls_b": jnp.zeros((NUM_CLASSES,), jnp.float32),
    }
    for _ in range(NUM_LAYERS):
        L = {
            "wq": norm(next(keys), (HIDDEN, HIDDEN)), "bq": jnp.zeros((HIDDEN,), jnp.float32),
            "wk": norm(next(keys), (HIDDEN, HIDDEN)), "bk": jnp.zeros((HIDDEN,), jnp.float32),
            "wv": norm(next(keys), (HIDDEN, HIDDEN)), "bv": jnp.zeros((HIDDEN,), jnp.float32),
            "wo": norm(next(keys), (HIDDEN, HIDDEN)), "bo": jnp.zeros((HIDDEN,), jnp.float32),
            "ln1_g": jnp.ones((HIDDEN,), jnp.float32), "ln1_b": jnp.zeros((HIDDEN,), jnp.float32),
            "wi": norm(next(keys), (HIDDEN, INTER)), "bi": jnp.zeros((INTER,), jnp.float32),
            "wf": norm(next(keys), (INTER, HIDDEN)), "bf": jnp.zeros((HIDDEN,), jnp.float32),
            "a_down_w": norm(next(keys), (HIDDEN, BOTTLENECK)),
            "a_down_b": jnp.zeros((BOTTLENECK,), jnp.float32),
            "a_up_w": norm(next(keys), (BOTTLENECK, HIDDEN)),
            "a_up_b": jnp.zeros((HIDDEN,), jnp.float32),
            "ln2_g": jnp.ones((HIDDEN,), jnp.float32), "ln2_b": jnp.zeros((HIDDEN,), jnp.float32),
        }
        p["layers"].append(L)
    return p


def pack_params(p):
    """One-time packing into kernel-friendly layouts (done OUTSIDE the jitted forward):
       layer-stacked weights, per-head-split QKV (leading-dim ref slices are free),
       bf16 matmul weights, f32 biases/LN, lane-dense padded classifier."""
    L, H, D, dh = NUM_LAYERS, HEADS, HIDDEN, HEAD_DIM

    def stack(name):
        return jnp.stack([layer[name] for layer in p["layers"]], axis=0)

    def split_w(name):   # (L, D, D) -> (L*H, D, dh), bf16
        w = stack(name).reshape(L, D, H, dh).transpose(0, 2, 1, 3).reshape(L * H, D, dh)
        return w.astype(jnp.bfloat16)

    def split_b(name):   # (L, D) -> (L*H, 1, dh), f32
        return stack(name).reshape(L * H, 1, dh).astype(jnp.float32)

    def row(name, width):  # (L, width) -> (L, 1, width), f32
        return stack(name).reshape(L, 1, width).astype(jnp.float32)

    cls_w = jnp.zeros((D, HEAD_PAD), jnp.float32).at[:, :NUM_CLASSES].set(p["cls_w"])
    cls_b = jnp.zeros((1, HEAD_PAD), jnp.float32).at[0, :NUM_CLASSES].set(p["cls_b"])

    return {
        "word_emb": p["word_emb"].astype(jnp.float32),
        "pos_emb": p["pos_emb"].astype(jnp.float32),
        "type_row": p["type_emb"][0].reshape(1, D).astype(jnp.float32),
        "emb_ln_g": p["emb_ln_g"].reshape(1, D).astype(jnp.float32),
        "emb_ln_b": p["emb_ln_b"].reshape(1, D).astype(jnp.float32),
        "wq": split_w("wq"), "bq": split_b("bq"),
        "wk": split_w("wk"), "bk": split_b("bk"),
        "wv": split_w("wv"), "bv": split_b("bv"),
        "wo": stack("wo").astype(jnp.bfloat16), "bo": row("bo", D),
        "ln1_g": row("ln1_g", D), "ln1_b": row("ln1_b", D),
        "wi": stack("wi").astype(jnp.bfloat16), "bi": row("bi", INTER),
        "wf": stack("wf").astype(jnp.bfloat16), "bf": row("bf", D),
        "ad_w": stack("a_down_w").astype(jnp.bfloat16), "ad_b": row("a_down_b", BOTTLENECK),
        "au_w": stack("a_up_w").astype(jnp.bfloat16), "au_b": row("a_up_b", D),
        "ln2_g": row("ln2_g", D), "ln2_b": row("ln2_b", D),
        "cls_w": cls_w.astype(jnp.bfloat16), "cls_b": cls_b,
    }


# ------------------------------- forward -----------------------------------
def adapter_bert_forward(pp, input_ids, attention_mask, labels=None):
    B, S = input_ids.shape
    D = HIDDEN

    # embedding-table gather stays in glue (single tiny XLA gather)
    word = jnp.take(pp["word_emb"], input_ids.reshape(-1), axis=0)     # (B*S, D) f32
    pos = pp["pos_emb"][:S]                                            # (S, D)

    # additive attention mask, HF-style: (1 - mask) * -10000, shape (B,1,S)
    ext_mask = (1.0 - attention_mask.astype(jnp.float32))[:, None, :] * (-10000.0)

    logits_pad = fused_forward(pp, word, pos, ext_mask, B, S)          # (>=8, 128)
    logits = logits_pad[:B, :NUM_CLASSES]

    if labels is not None:
        # nn.CrossEntropyLoss (mean reduction) — scalar glue
        logp = jax.nn.log_softmax(logits, axis=-1)
        loss = -jnp.mean(jnp.take_along_axis(logp, labels[:, None], axis=1))
        return {"loss": loss, "logits": logits}
    return logits


# --------------------------------- main -------------------------------------
if __name__ == "__main__":
    key = jax.random.PRNGKey(0)
    pkey, idkey, lkey = jax.random.split(key, 3)
    params = init_params(pkey)
    packed = pack_params(params)          # one-time packing, outside the jitted forward

    B, S = 2, 8
    input_ids = jax.random.randint(idkey, (B, S), 0, VOCAB, dtype=jnp.int32)
    attention_mask = jnp.ones((B, S), dtype=jnp.int32).at[1, 6:].set(0)
    labels = jax.random.randint(lkey, (B,), 0, NUM_CLASSES, dtype=jnp.int32)

    fwd = jax.jit(functools.partial(adapter_bert_forward, packed))
    logits = fwd(input_ids, attention_mask)
    jax.block_until_ready(logits)
    assert logits.shape == (B, NUM_CLASSES)

    out = adapter_bert_forward(packed, input_ids, attention_mask, labels=labels)
    jax.block_until_ready(out["loss"])
    assert out["logits"].shape == (B, NUM_CLASSES)
    assert out["loss"].shape == ()

    print("KERNEL_OK")
</pallas_src>

<mosaic_0001>
module attributes {stable_mosaic.version = 11 : i64} {
  func.func @_fused_forward_kernel(%arg0: i32, %arg1: memref<16x128xf32, #tpu.memory_space<vmem>>, %arg2: memref<8x128xf32, #tpu.memory_space<vmem>>, %arg3: memref<1x128xf32, #tpu.memory_space<vmem>>, %arg4: memref<1x128xf32, #tpu.memory_space<vmem>>, %arg5: memref<1x128xf32, #tpu.memory_space<vmem>>, %arg6: memref<2x1x8xf32, #tpu.memory_space<vmem>>, %arg7: memref<8x128x32xbf16, #tpu.memory_space<vmem>>, %arg8: memref<8x1x32xf32, #tpu.memory_space<vmem>>, %arg9: memref<8x128x32xbf16, #tpu.memory_space<vmem>>, %arg10: memref<8x1x32xf32, #tpu.memory_space<vmem>>, %arg11: memref<8x128x32xbf16, #tpu.memory_space<vmem>>, %arg12: memref<8x1x32xf32, #tpu.memory_space<vmem>>, %arg13: memref<2x128x128xbf16, #tpu.memory_space<vmem>>, %arg14: memref<2x1x128xf32, #tpu.memory_space<vmem>>, %arg15: memref<2x1x128xf32, #tpu.memory_space<vmem>>, %arg16: memref<2x1x128xf32, #tpu.memory_space<vmem>>, %arg17: memref<2x128x512xbf16, #tpu.memory_space<vmem>>, %arg18: memref<2x1x512xf32, #tpu.memory_space<vmem>>, %arg19: memref<2x512x128xbf16, #tpu.memory_space<vmem>>, %arg20: memref<2x1x128xf32, #tpu.memory_space<vmem>>, %arg21: memref<2x128x8xbf16, #tpu.memory_space<vmem>>, %arg22: memref<2x1x8xf32, #tpu.memory_space<vmem>>, %arg23: memref<2x8x128xbf16, #tpu.memory_space<vmem>>, %arg24: memref<2x1x128xf32, #tpu.memory_space<vmem>>, %arg25: memref<2x1x128xf32, #tpu.memory_space<vmem>>, %arg26: memref<2x1x128xf32, #tpu.memory_space<vmem>>, %arg27: memref<128x128xbf16, #tpu.memory_space<vmem>>, %arg28: memref<1x128xf32, #tpu.memory_space<vmem>>, %arg29: memref<8x128xf32, #tpu.memory_space<vmem>>) attributes {dimension_semantics = [#tpu.dimension_semantics<arbitrary>], iteration_bounds = array<i64: 1>, scalar_prefetch = 0 : i64, scratch_operands = 0 : i64, tpu.core_type = #tpu.core_type<tc>, window_params = [{pipeline_mode = #tpu.pipeline_mode<synchronous>, transform_indices = @transform_0, window_bounds = array<i64: 16, 128>}, {pipeline_mode = #tpu.pipeline_mode<synchronous>, transform_indices = @transform_1, window_bounds = array<i64: 8, 128>}, {pipeline_mode = #tpu.pipeline_mode<synchronous>, transform_indices = @transform_2, window_bounds = array<i64: 1, 128>}, {pipeline_mode = #tpu.pipeline_mode<synchronous>, transform_indices = @transform_3, window_bounds = array<i64: 1, 128>}, {pipeline_mode = #tpu.pipeline_mode<synchronous>, transform_indices = @transform_4, window_bounds = array<i64: 1, 128>}, {pipeline_mode = #tpu.pipeline_mode<synchronous>, transform_indices = @transform_5, window_bounds = array<i64: 2, 1, 8>}, {pipeline_mode = #tpu.pipeline_mode<synchronous>, transform_indices = @transform_6, window_bounds = array<i64: 8, 128, 32>}, {pipeline_mode = #tpu.pipeline_mode<synchronous>, transform_indices = @transform_7, window_bounds = array<i64: 8, 1, 32>}, {pipeline_mode = #tpu.pipeline_mode<synchronous>, transform_indices = @transform_8, window_bounds = array<i64: 8, 128, 32>}, {pipeline_mode = #tpu.pipeline_mode<synchronous>, transform_indices = @transform_9, window_bounds = array<i64: 8, 1, 32>}, {pipeline_mode = #tpu.pipeline_mode<synchronous>, transform_indices = @transform_10, window_bounds = array<i64: 8, 128, 32>}, {pipeline_mode = #tpu.pipeline_mode<synchronous>, transform_indices = @transform_11, window_bounds = array<i64: 8, 1, 32>}, {pipeline_mode = #tpu.pipeline_mode<synchronous>, transform_indices = @transform_12, window_bounds = array<i64: 2, 128, 128>}, {pipeline_mode = #tpu.pipeline_mode<synchronous>, transform_indices = @transform_13, window_bounds = array<i64: 2, 1, 128>}, {pipeline_mode = #tpu.pipeline_mode<synchronous>, transform_indices = @transform_14, window_bounds = array<i64: 2, 1, 128>}, {pipeline_mode = #tpu.pipeline_mode<synchronous>, transform_indices = @transform_15, window_bounds = array<i64: 2, 1, 128>}, {pipeline_mode = #tpu.pipeline_mode<synchronous>, transform_indices = @transform_16, window_bounds = array<i64: 2, 128, 512>}, {pipeline_mode = #tpu.pipeline_mode<synchronous>, transform_indices = @transform_17, window_bounds = array<i64: 2, 1, 512>}, {pipeline_mode = #tpu.pipeline_mode<synchronous>, transform_indices = @transform_18, window_bounds = array<i64: 2, 512, 128>}, {pipeline_mode = #tpu.pipeline_mode<synchronous>, transform_indices = @transform_19, window_bounds = array<i64: 2, 1, 128>}, {pipeline_mode = #tpu.pipeline_mode<synchronous>, transform_indices = @transform_20, window_bounds = array<i64: 2, 128, 8>}, {pipeline_mode = #tpu.pipeline_mode<synchronous>, transform_indices = @transform_21, window_bounds = array<i64: 2, 1, 8>}, {pipeline_mode = #tpu.pipeline_mode<synchronous>, transform_indices = @transform_22, window_bounds = array<i64: 2, 8, 128>}, {pipeline_mode = #tpu.pipeline_mode<synchronous>, transform_indices = @transform_23, window_bounds = array<i64: 2, 1, 128>}, {pipeline_mode = #tpu.pipeline_mode<synchronous>, transform_indices = @transform_24, window_bounds = array<i64: 2, 1, 128>}, {pipeline_mode = #tpu.pipeline_mode<synchronous>, transform_indices = @transform_25, window_bounds = array<i64: 2, 1, 128>}, {pipeline_mode = #tpu.pipeline_mode<synchronous>, transform_indices = @transform_26, window_bounds = array<i64: 128, 128>}, {pipeline_mode = #tpu.pipeline_mode<synchronous>, transform_indices = @transform_27, window_bounds = array<i64: 1, 128>}, {pipeline_mode = #tpu.pipeline_mode<synchronous>, transform_indices = @transform_28, window_bounds = array<i64: 8, 128>}]} {
    %c0 = arith.constant 0 : index
    %c0_0 = arith.constant 0 : index
    %0 = vector.load %arg1[%c0, %c0_0] : memref<16x128xf32, #tpu.memory_space<vmem>>, vector<16x128xf32>
    %c0_1 = arith.constant 0 : index
    %c0_2 = arith.constant 0 : index
    %1 = vector.load %arg2[%c0_1, %c0_2] : memref<8x128xf32, #tpu.memory_space<vmem>>, vector<8x128xf32>
    %2 = tpu.concatenate %1, %1 in 0 : vector<8x128xf32>, vector<8x128xf32> -> vector<16x128xf32>
    %3 = arith.addf %0, %2 : vector<16x128xf32>
    %c0_3 = arith.constant 0 : index
    %c0_4 = arith.constant 0 : index
    %4 = vector.load %arg3[%c0_3, %c0_4] : memref<1x128xf32, #tpu.memory_space<vmem>>, vector<1x128xf32>
    %5 = vector.broadcast %4 : vector<1x128xf32> to vector<16x128xf32>
    %6 = arith.addf %3, %5 : vector<16x128xf32>
    %c0_5 = arith.constant 0 : index
    %c0_6 = arith.constant 0 : index
    %7 = vector.load %arg4[%c0_5, %c0_6] : memref<1x128xf32, #tpu.memory_space<vmem>>, vector<1x128xf32>
    %c0_7 = arith.constant 0 : index
    %c0_8 = arith.constant 0 : index
    %8 = vector.load %arg5[%c0_7, %c0_8] : memref<1x128xf32, #tpu.memory_space<vmem>>, vector<1x128xf32>
    %cst = arith.constant dense<0.000000e+00> : vector<16xf32>
    %9 = vector.multi_reduction <add>, %6, %cst [1] : vector<16x128xf32> to vector<16xf32>
    %10 = vector.shape_cast %9 : vector<16xf32> to vector<16x1xf32>
    %cst_9 = arith.constant 1.280000e+02 : f32
    %11 = vector.broadcast %cst_9 : f32 to vector<16x1xf32>
    %12 = arith.divf %10, %11 : vector<16x1xf32>
    %13 = vector.broadcast %12 : vector<16x1xf32> to vector<16x128xf32>
    %14 = arith.subf %6, %13 : vector<16x128xf32>
    %15 = arith.mulf %14, %14 : vector<16x128xf32>
    %cst_10 = arith.constant dense<0.000000e+00> : vector<16xf32>
    %16 = vector.multi_reduction <add>, %15, %cst_10 [1] : vector<16x128xf32> to vector<16xf32>
    %17 = vector.shape_cast %16 : vector<16xf32> to vector<16x1xf32>
    %cst_11 = arith.constant 1.280000e+02 : f32
    %18 = vector.broadcast %cst_11 : f32 to vector<16x1xf32>
    %19 = arith.divf %17, %18 : vector<16x1xf32>
    %cst_12 = arith.constant 9.99999996E-13 : f32
    %20 = vector.broadcast %cst_12 : f32 to vector<16x1xf32>
    %21 = arith.addf %19, %20 : vector<16x1xf32>
    %22 = math.rsqrt %21 : vector<16x1xf32>
    %23 = vector.broadcast %22 : vector<16x1xf32> to vector<16x128xf32>
    %24 = arith.mulf %14, %23 : vector<16x128xf32>
    %25 = vector.broadcast %7 : vector<1x128xf32> to vector<16x128xf32>
    %26 = arith.mulf %24, %25 : vector<16x128xf32>
    %27 = vector.broadcast %8 : vector<1x128xf32> to vector<16x128xf32>
    %28 = arith.addf %26, %27 : vector<16x128xf32>
    %29 = arith.truncf %28 : vector<16x128xf32> to vector<16x128xbf16>
    %c0_13 = arith.constant 0 : index
    %c0_14 = arith.constant 0 : index
    %c0_15 = arith.constant 0 : index
    %30 = vector.load %arg7[%c0_13, %c0_14, %c0_15] : memref<8x128x32xbf16, #tpu.memory_space<vmem>>, vector<1x128x32xbf16>
    %31 = vector.shape_cast %30 : vector<1x128x32xbf16> to vector<128x32xbf16>
    %cst_16 = arith.constant dense<0.000000e+00> : vector<16x32xf32>
    %32 = tpu.matmul %29, %31, %cst_16 {dimension_numbers = #tpu.dot_dimension_numbers<[1], [0], [0], [1], [0, 0, 1, 1], [], []>} : vector<16x128xbf16>, vector<128x32xbf16>, vector<16x32xf32> -> vector<16x32xf32>
    %c0_17 = arith.constant 0 : index
    %c0_18 = arith.constant 0 : index
    %c0_19 = arith.constant 0 : index
    %33 = vector.load %arg8[%c0_17, %c0_18, %c0_19] : memref<8x1x32xf32, #tpu.memory_space<vmem>>, vector<1x1x32xf32>
    %34 = vector.shape_cast %33 : vector<1x1x32xf32> to vector<1x32xf32>
    %35 = vector.broadcast %34 : vector<1x32xf32> to vector<16x32xf32>
    %36 = arith.addf %32, %35 : vector<16x32xf32>
    %c0_20 = arith.constant 0 : index
    %c0_21 = arith.constant 0 : index
    %c0_22 = arith.constant 0 : index
    %37 = vector.load %arg9[%c0_20, %c0_21, %c0_22] : memref<8x128x32xbf16, #tpu.memory_space<vmem>>, vector<1x128x32xbf16>
    %38 = vector.shape_cast %37 : vector<1x128x32xbf16> to vector<128x32xbf16>
    %cst_23 = arith.constant dense<0.000000e+00> : vector<16x32xf32>
    %39 = tpu.matmul %29, %38, %cst_23 {dimension_numbers = #tpu.dot_dimension_numbers<[1], [0], [0], [1], [0, 0, 1, 1], [], []>} : vector<16x128xbf16>, vector<128x32xbf16>, vector<16x32xf32> -> vector<16x32xf32>
    %c0_24 = arith.constant 0 : index
    %c0_25 = arith.constant 0 : index
    %c0_26 = arith.constant 0 : index
    %40 = vector.load %arg10[%c0_24, %c0_25, %c0_26] : memref<8x1x32xf32, #tpu.memory_space<vmem>>, vector<1x1x32xf32>
    %41 = vector.shape_cast %40 : vector<1x1x32xf32> to vector<1x32xf32>
    %42 = vector.broadcast %41 : vector<1x32xf32> to vector<16x32xf32>
    %43 = arith.addf %39, %42 : vector<16x32xf32>
    %c0_27 = arith.constant 0 : index
    %c0_28 = arith.constant 0 : index
    %c0_29 = arith.constant 0 : index
    %44 = vector.load %arg11[%c0_27, %c0_28, %c0_29] : memref<8x128x32xbf16, #tpu.memory_space<vmem>>, vector<1x128x32xbf16>
    %45 = vector.shape_cast %44 : vector<1x128x32xbf16> to vector<128x32xbf16>
    %cst_30 = arith.constant dense<0.000000e+00> : vector<16x32xf32>
    %46 = tpu.matmul %29, %45, %cst_30 {dimension_numbers = #tpu.dot_dimension_numbers<[1], [0], [0], [1], [0, 0, 1, 1], [], []>} : vector<16x128xbf16>, vector<128x32xbf16>, vector<16x32xf32> -> vector<16x32xf32>
    %c0_31 = arith.constant 0 : index
    %c0_32 = arith.constant 0 : index
    %c0_33 = arith.constant 0 : index
    %47 = vector.load %arg12[%c0_31, %c0_32, %c0_33] : memref<8x1x32xf32, #tpu.memory_space<vmem>>, vector<1x1x32xf32>
    %48 = vector.shape_cast %47 : vector<1x1x32xf32> to vector<1x32xf32>
    %49 = vector.broadcast %48 : vector<1x32xf32> to vector<16x32xf32>
    %50 = arith.addf %46, %49 : vector<16x32xf32>
    %51 = vector.extract_strided_slice %36 {offsets = [0, 0], sizes = [8, 32], strides = [1, 1]} : vector<16x32xf32> to vector<8x32xf32>
    %52 = vector.extract_strided_slice %43 {offsets = [0, 0], sizes = [8, 32], strides = [1, 1]} : vector<16x32xf32> to vector<8x32xf32>
    %53 = vector.extract_strided_slice %50 {offsets = [0, 0], sizes = [8, 32], strides = [1, 1]} : vector<16x32xf32> to vector<8x32xf32>
    %cst_34 = arith.constant dense<0.000000e+00> : vector<8x8xf32>
    %54 = tpu.matmul %51, %52, %cst_34 {dimension_numbers = #tpu.dot_dimension_numbers<[1], [1], [0], [0], [0, 0, 1, 0], [], []>} : vector<8x32xf32>, vector<8x32xf32>, vector<8x8xf32> -> vector<8x8xf32>
    %cst_35 = arith.constant 0.176776692 : f32
    %55 = vector.broadcast %cst_35 : f32 to vector<8x8xf32>
    %56 = arith.mulf %54, %55 : vector<8x8xf32>
    %c0_36 = arith.constant 0 : index
    %c0_37 = arith.constant 0 : index
    %c0_38 = arith.constant 0 : index
    %57 = vector.load %arg6[%c0_36, %c0_37, %c0_38] : memref<2x1x8xf32, #tpu.memory_space<vmem>>, vector<1x1x8xf32>
    %58 = vector.shape_cast %57 : vector<1x1x8xf32> to vector<1x8xf32>
    %59 = vector.broadcast %58 : vector<1x8xf32> to vector<8x8xf32>
    %60 = arith.addf %56, %59 : vector<8x8xf32>
    %cst_39 = arith.constant dense<0xFF800000> : vector<8xf32>
    %61 = vector.multi_reduction <maximumf>, %60, %cst_39 [1] : vector<8x8xf32> to vector<8xf32>
    %62 = vector.shape_cast %61 : vector<8xf32> to vector<8x1xf32>
    %63 = vector.broadcast %62 : vector<8x1xf32> to vector<8x8xf32>
    %64 = arith.subf %60, %63 : vector<8x8xf32>
    %65 = math.exp %64 : vector<8x8xf32>
    %cst_40 = arith.constant dense<0.000000e+00> : vector<8xf32>
    %66 = vector.multi_reduction <add>, %65, %cst_40 [1] : vector<8x8xf32> to vector<8xf32>
    %67 = vector.shape_cast %66 : vector<8xf32> to vector<8x1xf32>
    %68 = tpu.reciprocal %67 {approx = true} : vector<8x1xf32> -> vector<8x1xf32>
    %69 = vector.broadcast %68 : vector<8x1xf32> to vector<8x8xf32>
    %70 = arith.mulf %65, %69 : vector<8x8xf32>
    %cst_41 = arith.constant dense<0.000000e+00> : vector<8x32xf32>
    %71 = tpu.matmul %70, %53, %cst_41 {dimension_numbers = #tpu.dot_dimension_numbers<[1], [0], [0], [1], [0, 0, 1, 1], [], []>} : vector<8x8xf32>, vector<8x32xf32>, vector<8x32xf32> -> vector<8x32xf32>
    %72 = vector.extract_strided_slice %36 {offsets = [8, 0], sizes = [8, 32], strides = [1, 1]} : vector<16x32xf32> to vector<8x32xf32>
    %73 = vector.extract_strided_slice %43 {offsets = [8, 0], sizes = [8, 32], strides = [1, 1]} : vector<16x32xf32> to vector<8x32xf32>
    %74 = vector.extract_strided_slice %50 {offsets = [8, 0], sizes = [8, 32], strides = [1, 1]} : vector<16x32xf32> to vector<8x32xf32>
    %cst_42 = arith.constant dense<0.000000e+00> : vector<8x8xf32>
    %75 = tpu.matmul %72, %73, %cst_42 {dimension_numbers = #tpu.dot_dimension_numbers<[1], [1], [0], [0], [0, 0, 1, 0], [], []>} : vector<8x32xf32>, vector<8x32xf32>, vector<8x8xf32> -> vector<8x8xf32>
    %cst_43 = arith.constant 0.176776692 : f32
    %76 = vector.broadcast %cst_43 : f32 to vector<8x8xf32>
    %77 = arith.mulf %75, %76 : vector<8x8xf32>
    %c1 = arith.constant 1 : index
    %c0_44 = arith.constant 0 : index
    %c0_45 = arith.constant 0 : index
    %78 = vector.load %arg6[%c1, %c0_44, %c0_45] : memref<2x1x8xf32, #tpu.memory_space<vmem>>, vector<1x1x8xf32>
    %79 = vector.shape_cast %78 : vector<1x1x8xf32> to vector<1x8xf32>
    %80 = vector.broadcast %79 : vector<1x8xf32> to vector<8x8xf32>
    %81 = arith.addf %77, %80 : vector<8x8xf32>
    %cst_46 = arith.constant dense<0xFF800000> : vector<8xf32>
    %82 = vector.multi_reduction <maximumf>, %81, %cst_46 [1] : vector<8x8xf32> to vector<8xf32>
    %83 = vector.shape_cast %82 : vector<8xf32> to vector<8x1xf32>
    %84 = vector.broadcast %83 : vector<8x1xf32> to vector<8x8xf32>
    %85 = arith.subf %81, %84 : vector<8x8xf32>
    %86 = math.exp %85 : vector<8x8xf32>
    %cst_47 = arith.constant dense<0.000000e+00> : vector<8xf32>
    %87 = vector.multi_reduction <add>, %86, %cst_47 [1] : vector<8x8xf32> to vector<8xf32>
    %88 = vector.shape_cast %87 : vector<8xf32> to vector<8x1xf32>
    %89 = tpu.reciprocal %88 {approx = true} : vector<8x1xf32> -> vector<8x1xf32>
    %90 = vector.broadcast %89 : vector<8x1xf32> to vector<8x8xf32>
    %91 = arith.mulf %86, %90 : vector<8x8xf32>
    %cst_48 = arith.constant dense<0.000000e+00> : vector<8x32xf32>
    %92 = tpu.matmul %91, %74, %cst_48 {dimension_numbers = #tpu.dot_dimension_numbers<[1], [0], [0], [1], [0, 0, 1, 1], [], []>} : vector<8x8xf32>, vector<8x32xf32>, vector<8x32xf32> -> vector<8x32xf32>
    %93 = tpu.concatenate %71, %92 in 0 : vector<8x32xf32>, vector<8x32xf32> -> vector<16x32xf32>
    %c1_49 = arith.constant 1 : index
    %c0_50 = arith.constant 0 : index
    %c0_51 = arith.constant 0 : index
    %94 = vector.load %arg7[%c1_49, %c0_50, %c0_51] : memref<8x128x32xbf16, #tpu.memory_space<vmem>>, vector<1x128x32xbf16>
    %95 = vector.shape_cast %94 : vector<1x128x32xbf16> to vector<128x32xbf16>
    %cst_52 = arith.constant dense<0.000000e+00> : vector<16x32xf32>
    %96 = tpu.matmul %29, %95, %cst_52 {dimension_numbers = #tpu.dot_dimension_numbers<[1], [0], [0], [1], [0, 0, 1, 1], [], []>} : vector<16x128xbf16>, vector<128x32xbf16>, vector<16x32xf32> -> vector<16x32xf32>
    %c1_53 = arith.constant 1 : index
    %c0_54 = arith.constant 0 : index
    %c0_55 = arith.constant 0 : index
    %97 = vector.load %arg8[%c1_53, %c0_54, %c0_55] : memref<8x1x32xf32, #tpu.memory_space<vmem>>, vector<1x1x32xf32>
    %98 = vector.shape_cast %97 : vector<1x1x32xf32> to vector<1x32xf32>
    %99 = vector.broadcast %98 : vector<1x32xf32> to vector<16x32xf32>
    %100 = arith.addf %96, %99 : vector<16x32xf32>
    %c1_56 = arith.constant 1 : index
    %c0_57 = arith.constant 0 : index
    %c0_58 = arith.constant 0 : index
    %101 = vector.load %arg9[%c1_56, %c0_57, %c0_58] : memref<8x128x32xbf16, #tpu.memory_space<vmem>>, vector<1x128x32xbf16>
    %102 = vector.shape_cast %101 : vector<1x128x32xbf16> to vector<128x32xbf16>
    %cst_59 = arith.constant dense<0.000000e+00> : vector<16x32xf32>
    %103 = tpu.matmul %29, %102, %cst_59 {dimension_numbers = #tpu.dot_dimension_numbers<[1], [0], [0], [1], [0, 0, 1, 1], [], []>} : vector<16x128xbf16>, vector<128x32xbf16>, vector<16x32xf32> -> vector<16x32xf32>
    %c1_60 = arith.constant 1 : index
    %c0_61 = arith.constant 0 : index
    %c0_62 = arith.constant 0 : index
    %104 = vector.load %arg10[%c1_60, %c0_61, %c0_62] : memref<8x1x32xf32, #tpu.memory_space<vmem>>, vector<1x1x32xf32>
    %105 = vector.shape_cast %104 : vector<1x1x32xf32> to vector<1x32xf32>
    %106 = vector.broadcast %105 : vector<1x32xf32> to vector<16x32xf32>
    %107 = arith.addf %103, %106 : vector<16x32xf32>
    %c1_63 = arith.constant 1 : index
    %c0_64 = arith.constant 0 : index
    %c0_65 = arith.constant 0 : index
    %108 = vector.load %arg11[%c1_63, %c0_64, %c0_65] : memref<8x128x32xbf16, #tpu.memory_space<vmem>>, vector<1x128x32xbf16>
    %109 = vector.shape_cast %108 : vector<1x128x32xbf16> to vector<128x32xbf16>
    %cst_66 = arith.constant dense<0.000000e+00> : vector<16x32xf32>
    %110 = tpu.matmul %29, %109, %cst_66 {dimension_numbers = #tpu.dot_dimension_numbers<[1], [0], [0], [1], [0, 0, 1, 1], [], []>} : vector<16x128xbf16>, vector<128x32xbf16>, vector<16x32xf32> -> vector<16x32xf32>
    %c1_67 = arith.constant 1 : index
    %c0_68 = arith.constant 0 : index
    %c0_69 = arith.constant 0 : index
    %111 = vector.load %arg12[%c1_67, %c0_68, %c0_69] : memref<8x1x32xf32, #tpu.memory_space<vmem>>, vector<1x1x32xf32>
    %112 = vector.shape_cast %111 : vector<1x1x32xf32> to vector<1x32xf32>
    %113 = vector.broadcast %112 : vector<1x32xf32> to vector<16x32xf32>
    %114 = arith.addf %110, %113 : vector<16x32xf32>
    %115 = vector.extract_strided_slice %100 {offsets = [0, 0], sizes = [8, 32], strides = [1, 1]} : vector<16x32xf32> to vector<8x32xf32>
    %116 = vector.extract_strided_slice %107 {offsets = [0, 0], sizes = [8, 32], strides = [1, 1]} : vector<16x32xf32> to vector<8x32xf32>
    %117 = vector.extract_strided_slice %114 {offsets = [0, 0], sizes = [8, 32], strides = [1, 1]} : vector<16x32xf32> to vector<8x32xf32>
    %cst_70 = arith.constant dense<0.000000e+00> : vector<8x8xf32>
    %118 = tpu.matmul %115, %116, %cst_70 {dimension_numbers = #tpu.dot_dimension_numbers<[1], [1], [0], [0], [0, 0, 1, 0], [], []>} : vector<8x32xf32>, vector<8x32xf32>, vector<8x8xf32> -> vector<8x8xf32>
    %cst_71 = arith.constant 0.176776692 : f32
    %119 = vector.broadcast %cst_71 : f32 to vector<8x8xf32>
    %120 = arith.mulf %118, %119 : vector<8x8xf32>
    %c0_72 = arith.constant 0 : index
    %c0_73 = arith.constant 0 : index
    %c0_74 = arith.constant 0 : index
    %121 = vector.load %arg6[%c0_72, %c0_73, %c0_74] : memref<2x1x8xf32, #tpu.memory_space<vmem>>, vector<1x1x8xf32>
    %122 = vector.shape_cast %121 : vector<1x1x8xf32> to vector<1x8xf32>
    %123 = vector.broadcast %122 : vector<1x8xf32> to vector<8x8xf32>
    %124 = arith.addf %120, %123 : vector<8x8xf32>
    %cst_75 = arith.constant dense<0xFF800000> : vector<8xf32>
    %125 = vector.multi_reduction <maximumf>, %124, %cst_75 [1] : vector<8x8xf32> to vector<8xf32>
    %126 = vector.shape_cast %125 : vector<8xf32> to vector<8x1xf32>
    %127 = vector.broadcast %126 : vector<8x1xf32> to vector<8x8xf32>
    %128 = arith.subf %124, %127 : vector<8x8xf32>
    %129 = math.exp %128 : vector<8x8xf32>
    %cst_76 = arith.constant dense<0.000000e+00> : vector<8xf32>
    %130 = vector.multi_reduction <add>, %129, %cst_76 [1] : vector<8x8xf32> to vector<8xf32>
    %131 = vector.shape_cast %130 : vector<8xf32> to vector<8x1xf32>
    %132 = tpu.reciprocal %131 {approx = true} : vector<8x1xf32> -> vector<8x1xf32>
    %133 = vector.broadcast %132 : vector<8x1xf32> to vector<8x8xf32>
    %134 = arith.mulf %129, %133 : vector<8x8xf32>
    %cst_77 = arith.constant dense<0.000000e+00> : vector<8x32xf32>
    %135 = tpu.matmul %134, %117, %cst_77 {dimension_numbers = #tpu.dot_dimension_numbers<[1], [0], [0], [1], [0, 0, 1, 1], [], []>} : vector<8x8xf32>, vector<8x32xf32>, vector<8x32xf32> -> vector<8x32xf32>
    %136 = vector.extract_strided_slice %100 {offsets = [8, 0], sizes = [8, 32], strides = [1, 1]} : vector<16x32xf32> to vector<8x32xf32>
    %137 = vector.extract_strided_slice %107 {offsets = [8, 0], sizes = [8, 32], strides = [1, 1]} : vector<16x32xf32> to vector<8x32xf32>
    %138 = vector.extract_strided_slice %114 {offsets = [8, 0], sizes = [8, 32], strides = [1, 1]} : vector<16x32xf32> to vector<8x32xf32>
    %cst_78 = arith.constant dense<0.000000e+00> : vector<8x8xf32>
    %139 = tpu.matmul %136, %137, %cst_78 {dimension_numbers = #tpu.dot_dimension_numbers<[1], [1], [0], [0], [0, 0, 1, 0], [], []>} : vector<8x32xf32>, vector<8x32xf32>, vector<8x8xf32> -> vector<8x8xf32>
    %cst_79 = arith.constant 0.176776692 : f32
    %140 = vector.broadcast %cst_79 : f32 to vector<8x8xf32>
    %141 = arith.mulf %139, %140 : vector<8x8xf32>
    %c1_80 = arith.constant 1 : index
    %c0_81 = arith.constant 0 : index
    %c0_82 = arith.constant 0 : index
    %142 = vector.load %arg6[%c1_80, %c0_81, %c0_82] : memref<2x1x8xf32, #tpu.memory_space<vmem>>, vector<1x1x8xf32>
    %143 = vector.shape_cast %142 : vector<1x1x8xf32> to vector<1x8xf32>
    %144 = vector.broadcast %143 : vector<1x8xf32> to vector<8x8xf32>
    %145 = arith.addf %141, %144 : vector<8x8xf32>
    %cst_83 = arith.constant dense<0xFF800000> : vector<8xf32>
    %146 = vector.multi_reduction <maximumf>, %145, %cst_83 [1] : vector<8x8xf32> to vector<8xf32>
    %147 = vector.shape_cast %146 : vector<8xf32> to vector<8x1xf32>
    %148 = vector.broadcast %147 : vector<8x1xf32> to vector<8x8xf32>
    %149 = arith.subf %145, %148 : vector<8x8xf32>
    %150 = math.exp %149 : vector<8x8xf32>
    %cst_84 = arith.constant dense<0.000000e+00> : vector<8xf32>
    %151 = vector.multi_reduction <add>, %150, %cst_84 [1] : vector<8x8xf32> to vector<8xf32>
    %152 = vector.shape_cast %151 : vector<8xf32> to vector<8x1xf32>
    %153 = tpu.reciprocal %152 {approx = true} : vector<8x1xf32> -> vector<8x1xf32>
    %154 = vector.broadcast %153 : vector<8x1xf32> to vector<8x8xf32>
    %155 = arith.mulf %150, %154 : vector<8x8xf32>
    %cst_85 = arith.constant dense<0.000000e+00> : vector<8x32xf32>
    %156 = tpu.matmul %155, %138, %cst_85 {dimension_numbers = #tpu.dot_dimension_numbers<[1], [0], [0], [1], [0, 0, 1, 1], [], []>} : vector<8x8xf32>, vector<8x32xf32>, vector<8x32xf32> -> vector<8x32xf32>
    %157 = tpu.concatenate %135, %156 in 0 : vector<8x32xf32>, vector<8x32xf32> -> vector<16x32xf32>
    %c2 = arith.constant 2 : index
    %c0_86 = arith.constant 0 : index
    %c0_87 = arith.constant 0 : index
    %158 = vector.load %arg7[%c2, %c0_86, %c0_87] : memref<8x128x32xbf16, #tpu.memory_space<vmem>>, vector<1x128x32xbf16>
    %159 = vector.shape_cast %158 : vector<1x128x32xbf16> to vector<128x32xbf16>
    %cst_88 = arith.constant dense<0.000000e+00> : vector<16x32xf32>
    %160 = tpu.matmul %29, %159, %cst_88 {dimension_numbers = #tpu.dot_dimension_numbers<[1], [0], [0], [1], [0, 0, 1, 1], [], []>} : vector<16x128xbf16>, vector<128x32xbf16>, vector<16x32xf32> -> vector<16x32xf32>
    %c2_89 = arith.constant 2 : index
    %c0_90 = arith.constant 0 : index
    %c0_91 = arith.constant 0 : index
    %161 = vector.load %arg8[%c2_89, %c0_90, %c0_91] : memref<8x1x32xf32, #tpu.memory_space<vmem>>, vector<1x1x32xf32>
    %162 = vector.shape_cast %161 : vector<1x1x32xf32> to vector<1x32xf32>
    %163 = vector.broadcast %162 : vector<1x32xf32> to vector<16x32xf32>
    %164 = arith.addf %160, %163 : vector<16x32xf32>
    %c2_92 = arith.constant 2 : index
    %c0_93 = arith.constant 0 : index
    %c0_94 = arith.constant 0 : index
    %165 = vector.load %arg9[%c2_92, %c0_93, %c0_94] : memref<8x128x32xbf16, #tpu.memory_space<vmem>>, vector<1x128x32xbf16>
    %166 = vector.shape_cast %165 : vector<1x128x32xbf16> to vector<128x32xbf16>
    %cst_95 = arith.constant dense<0.000000e+00> : vector<16x32xf32>
    %167 = tpu.matmul %29, %166, %cst_95 {dimension_numbers = #tpu.dot_dimension_numbers<[1], [0], [0], [1], [0, 0, 1, 1], [], []>} : vector<16x128xbf16>, vector<128x32xbf16>, vector<16x32xf32> -> vector<16x32xf32>
    %c2_96 = arith.constant 2 : index
    %c0_97 = arith.constant 0 : index
    %c0_98 = arith.constant 0 : index
    %168 = vector.load %arg10[%c2_96, %c0_97, %c0_98] : memref<8x1x32xf32, #tpu.memory_space<vmem>>, vector<1x1x32xf32>
    %169 = vector.shape_cast %168 : vector<1x1x32xf32> to vector<1x32xf32>
    %170 = vector.broadcast %169 : vector<1x32xf32> to vector<16x32xf32>
    %171 = arith.addf %167, %170 : vector<16x32xf32>
    %c2_99 = arith.constant 2 : index
    %c0_100 = arith.constant 0 : index
    %c0_101 = arith.constant 0 : index
    %172 = vector.load %arg11[%c2_99, %c0_100, %c0_101] : memref<8x128x32xbf16, #tpu.memory_space<vmem>>, vector<1x128x32xbf16>
    %173 = vector.shape_cast %172 : vector<1x128x32xbf16> to vector<128x32xbf16>
    %cst_102 = arith.constant dense<0.000000e+00> : vector<16x32xf32>
    %174 = tpu.matmul %29, %173, %cst_102 {dimension_numbers = #tpu.dot_dimension_numbers<[1], [0], [0], [1], [0, 0, 1, 1], [], []>} : vector<16x128xbf16>, vector<128x32xbf16>, vector<16x32xf32> -> vector<16x32xf32>
    %c2_103 = arith.constant 2 : index
    %c0_104 = arith.constant 0 : index
    %c0_105 = arith.constant 0 : index
    %175 = vector.load %arg12[%c2_103, %c0_104, %c0_105] : memref<8x1x32xf32, #tpu.memory_space<vmem>>, vector<1x1x32xf32>
    %176 = vector.shape_cast %175 : vector<1x1x32xf32> to vector<1x32xf32>
    %177 = vector.broadcast %176 : vector<1x32xf32> to vector<16x32xf32>
    %178 = arith.addf %174, %177 : vector<16x32xf32>
    %179 = vector.extract_strided_slice %164 {offsets = [0, 0], sizes = [8, 32], strides = [1, 1]} : vector<16x32xf32> to vector<8x32xf32>
    %180 = vector.extract_strided_slice %171 {offsets = [0, 0], sizes = [8, 32], strides = [1, 1]} : vector<16x32xf32> to vector<8x32xf32>
    %181 = vector.extract_strided_slice %178 {offsets = [0, 0], sizes = [8, 32], strides = [1, 1]} : vector<16x32xf32> to vector<8x32xf32>
    %cst_106 = arith.constant dense<0.000000e+00> : vector<8x8xf32>
    %182 = tpu.matmul %179, %180, %cst_106 {dimension_numbers = #tpu.dot_dimension_numbers<[1], [1], [0], [0], [0, 0, 1, 0], [], []>} : vector<8x32xf32>, vector<8x32xf32>, vector<8x8xf32> -> vector<8x8xf32>
    %cst_107 = arith.constant 0.176776692 : f32
    %183 = vector.broadcast %cst_107 : f32 to vector<8x8xf32>
    %184 = arith.mulf %182, %183 : vector<8x8xf32>
    %c0_108 = arith.constant 0 : index
    %c0_109 = arith.constant 0 : index
    %c0_110 = arith.constant 0 : index
    %185 = vector.load %arg6[%c0_108, %c0_109, %c0_110] : memref<2x1x8xf32, #tpu.memory_space<vmem>>, vector<1x1x8xf32>
    %186 = vector.shape_cast %185 : vector<1x1x8xf32> to vector<1x8xf32>
    %187 = vector.broadcast %186 : vector<1x8xf32> to vector<8x8xf32>
    %188 = arith.addf %184, %187 : vector<8x8xf32>
    %cst_111 = arith.constant dense<0xFF800000> : vector<8xf32>
    %189 = vector.multi_reduction <maximumf>, %188, %cst_111 [1] : vector<8x8xf32> to vector<8xf32>
    %190 = vector.shape_cast %189 : vector<8xf32> to vector<8x1xf32>
    %191 = vector.broadcast %190 : vector<8x1xf32> to vector<8x8xf32>
    %192 = arith.subf %188, %191 : vector<8x8xf32>
    %193 = math.exp %192 : vector<8x8xf32>
    %cst_112 = arith.constant dense<0.000000e+00> : vector<8xf32>
    %194 = vector.multi_reduction <add>, %193, %cst_112 [1] : vector<8x8xf32> to vector<8xf32>
    %195 = vector.shape_cast %194 : vector<8xf32> to vector<8x1xf32>
    %196 = tpu.reciprocal %195 {approx = true} : vector<8x1xf32> -> vector<8x1xf32>
    %197 = vector.broadcast %196 : vector<8x1xf32> to vector<8x8xf32>
    %198 = arith.mulf %193, %197 : vector<8x8xf32>
    %cst_113 = arith.constant dense<0.000000e+00> : vector<8x32xf32>
    %199 = tpu.matmul %198, %181, %cst_113 {dimension_numbers = #tpu.dot_dimension_numbers<[1], [0], [0], [1], [0, 0, 1, 1], [], []>} : vector<8x8xf32>, vector<8x32xf32>, vector<8x32xf32> -> vector<8x32xf32>
    %200 = vector.extract_strided_slice %164 {offsets = [8, 0], sizes = [8, 32], strides = [1, 1]} : vector<16x32xf32> to vector<8x32xf32>
    %201 = vector.extract_strided_slice %171 {offsets = [8, 0], sizes = [8, 32], strides = [1, 1]} : vector<16x32xf32> to vector<8x32xf32>
    %202 = vector.extract_strided_slice %178 {offsets = [8, 0], sizes = [8, 32], strides = [1, 1]} : vector<16x32xf32> to vector<8x32xf32>
    %cst_114 = arith.constant dense<0.000000e+00> : vector<8x8xf32>
    %203 = tpu.matmul %200, %201, %cst_114 {dimension_numbers = #tpu.dot_dimension_numbers<[1], [1], [0], [0], [0, 0, 1, 0], [], []>} : vector<8x32xf32>, vector<8x32xf32>, vector<8x8xf32> -> vector<8x8xf32>
    %cst_115 = arith.constant 0.176776692 : f32
    %204 = vector.broadcast %cst_115 : f32 to vector<8x8xf32>
    %205 = arith.mulf %203, %204 : vector<8x8xf32>
    %c1_116 = arith.constant 1 : index
    %c0_117 = arith.constant 0 : index
    %c0_118 = arith.constant 0 : index
    %206 = vector.load %arg6[%c1_116, %c0_117, %c0_118] : memref<2x1x8xf32, #tpu.memory_space<vmem>>, vector<1x1x8xf32>
    %207 = vector.shape_cast %206 : vector<1x1x8xf32> to vector<1x8xf32>
    %208 = vector.broadcast %207 : vector<1x8xf32> to vector<8x8xf32>
    %209 = arith.addf %205, %208 : vector<8x8xf32>
    %cst_119 = arith.constant dense<0xFF800000> : vector<8xf32>
    %210 = vector.multi_reduction <maximumf>, %209, %cst_119 [1] : vector<8x8xf32> to vector<8xf32>
    %211 = vector.shape_cast %210 : vector<8xf32> to vector<8x1xf32>
    %212 = vector.broadcast %211 : vector<8x1xf32> to vector<8x8xf32>
    %213 = arith.subf %209, %212 : vector<8x8xf32>
    %214 = math.exp %213 : vector<8x8xf32>
    %cst_120 = arith.constant dense<0.000000e+00> : vector<8xf32>
    %215 = vector.multi_reduction <add>, %214, %cst_120 [1] : vector<8x8xf32> to vector<8xf32>
    %216 = vector.shape_cast %215 : vector<8xf32> to vector<8x1xf32>
    %217 = tpu.reciprocal %216 {approx = true} : vector<8x1xf32> -> vector<8x1xf32>
    %218 = vector.broadcast %217 : vector<8x1xf32> to vector<8x8xf32>
    %219 = arith.mulf %214, %218 : vector<8x8xf32>
    %cst_121 = arith.constant dense<0.000000e+00> : vector<8x32xf32>
    %220 = tpu.matmul %219, %202, %cst_121 {dimension_numbers = #tpu.dot_dimension_numbers<[1], [0], [0], [1], [0, 0, 1, 1], [], []>} : vector<8x8xf32>, vector<8x32xf32>, vector<8x32xf32> -> vector<8x32xf32>
    %221 = tpu.concatenate %199, %220 in 0 : vector<8x32xf32>, vector<8x32xf32> -> vector<16x32xf32>
    %c3 = arith.constant 3 : index
    %c0_122 = arith.constant 0 : index
    %c0_123 = arith.constant 0 : index
    %222 = vector.load %arg7[%c3, %c0_122, %c0_123] : memref<8x128x32xbf16, #tpu.memory_space<vmem>>, vector<1x128x32xbf16>
    %223 = vector.shape_cast %222 : vector<1x128x32xbf16> to vector<128x32xbf16>
    %cst_124 = arith.constant dense<0.000000e+00> : vector<16x32xf32>
    %224 = tpu.matmul %29, %223, %cst_124 {dimension_numbers = #tpu.dot_dimension_numbers<[1], [0], [0], [1], [0, 0, 1, 1], [], []>} : vector<16x128xbf16>, vector<128x32xbf16>, vector<16x32xf32> -> vector<16x32xf32>
    %c3_125 = arith.constant 3 : index
    %c0_126 = arith.constant 0 : index
    %c0_127 = arith.constant 0 : index
    %225 = vector.load %arg8[%c3_125, %c0_126, %c0_127] : memref<8x1x32xf32, #tpu.memory_space<vmem>>, vector<1x1x32xf32>
    %226 = vector.shape_cast %225 : vector<1x1x32xf32> to vector<1x32xf32>
    %227 = vector.broadcast %226 : vector<1x32xf32> to vector<16x32xf32>
    %228 = arith.addf %224, %227 : vector<16x32xf32>
    %c3_128 = arith.constant 3 : index
    %c0_129 = arith.constant 0 : index
    %c0_130 = arith.constant 0 : index
    %229 = vector.load %arg9[%c3_128, %c0_129, %c0_130] : memref<8x128x32xbf16, #tpu.memory_space<vmem>>, vector<1x128x32xbf16>
    %230 = vector.shape_cast %229 : vector<1x128x32xbf16> to vector<128x32xbf16>
    %cst_131 = arith.constant dense<0.000000e+00> : vector<16x32xf32>
    %231 = tpu.matmul %29, %230, %cst_131 {dimension_numbers = #tpu.dot_dimension_numbers<[1], [0], [0], [1], [0, 0, 1, 1], [], []>} : vector<16x128xbf16>, vector<128x32xbf16>, vector<16x32xf32> -> vector<16x32xf32>
    %c3_132 = arith.constant 3 : index
    %c0_133 = arith.constant 0 : index
    %c0_134 = arith.constant 0 : index
    %232 = vector.load %arg10[%c3_132, %c0_133, %c0_134] : memref<8x1x32xf32, #tpu.memory_space<vmem>>, vector<1x1x32xf32>
    %233 = vector.shape_cast %232 : vector<1x1x32xf32> to vector<1x32xf32>
    %234 = vector.broadcast %233 : vector<1x32xf32> to vector<16x32xf32>
    %235 = arith.addf %231, %234 : vector<16x32xf32>
    %c3_135 = arith.constant 3 : index
    %c0_136 = arith.constant 0 : index
    %c0_137 = arith.constant 0 : index
    %236 = vector.load %arg11[%c3_135, %c0_136, %c0_137] : memref<8x128x32xbf16, #tpu.memory_space<vmem>>, vector<1x128x32xbf16>
    %237 = vector.shape_cast %236 : vector<1x128x32xbf16> to vector<128x32xbf16>
    %cst_138 = arith.constant dense<0.000000e+00> : vector<16x32xf32>
    %238 = tpu.matmul %29, %237, %cst_138 {dimension_numbers = #tpu.dot_dimension_numbers<[1], [0], [0], [1], [0, 0, 1, 1], [], []>} : vector<16x128xbf16>, vector<128x32xbf16>, vector<16x32xf32> -> vector<16x32xf32>
    %c3_139 = arith.constant 3 : index
    %c0_140 = arith.constant 0 : index
    %c0_141 = arith.constant 0 : index
    %239 = vector.load %arg12[%c3_139, %c0_140, %c0_141] : memref<8x1x32xf32, #tpu.memory_space<vmem>>, vector<1x1x32xf32>
    %240 = vector.shape_cast %239 : vector<1x1x32xf32> to vector<1x32xf32>
    %241 = vector.broadcast %240 : vector<1x32xf32> to vector<16x32xf32>
    %242 = arith.addf %238, %241 : vector<16x32xf32>
    %243 = vector.extract_strided_slice %228 {offsets = [0, 0], sizes = [8, 32], strides = [1, 1]} : vector<16x32xf32> to vector<8x32xf32>
    %244 = vector.extract_strided_slice %235 {offsets = [0, 0], sizes = [8, 32], strides = [1, 1]} : vector<16x32xf32> to vector<8x32xf32>
    %245 = vector.extract_strided_slice %242 {offsets = [0, 0], sizes = [8, 32], strides = [1, 1]} : vector<16x32xf32> to vector<8x32xf32>
    %cst_142 = arith.constant dense<0.000000e+00> : vector<8x8xf32>
    %246 = tpu.matmul %243, %244, %cst_142 {dimension_numbers = #tpu.dot_dimension_numbers<[1], [1], [0], [0], [0, 0, 1, 0], [], []>} : vector<8x32xf32>, vector<8x32xf32>, vector<8x8xf32> -> vector<8x8xf32>
    %cst_143 = arith.constant 0.176776692 : f32
    %247 = vector.broadcast %cst_143 : f32 to vector<8x8xf32>
    %248 = arith.mulf %246, %247 : vector<8x8xf32>
    %c0_144 = arith.constant 0 : index
    %c0_145 = arith.constant 0 : index
    %c0_146 = arith.constant 0 : index
    %249 = vector.load %arg6[%c0_144, %c0_145, %c0_146] : memref<2x1x8xf32, #tpu.memory_space<vmem>>, vector<1x1x8xf32>
    %250 = vector.shape_cast %249 : vector<1x1x8xf32> to vector<1x8xf32>
    %251 = vector.broadcast %250 : vector<1x8xf32> to vector<8x8xf32>
    %252 = arith.addf %248, %251 : vector<8x8xf32>
    %cst_147 = arith.constant dense<0xFF800000> : vector<8xf32>
    %253 = vector.multi_reduction <maximumf>, %252, %cst_147 [1] : vector<8x8xf32> to vector<8xf32>
    %254 = vector.shape_cast %253 : vector<8xf32> to vector<8x1xf32>
    %255 = vector.broadcast %254 : vector<8x1xf32> to vector<8x8xf32>
    %256 = arith.subf %252, %255 : vector<8x8xf32>
    %257 = math.exp %256 : vector<8x8xf32>
    %cst_148 = arith.constant dense<0.000000e+00> : vector<8xf32>
    %258 = vector.multi_reduction <add>, %257, %cst_148 [1] : vector<8x8xf32> to vector<8xf32>
    %259 = vector.shape_cast %258 : vector<8xf32> to vector<8x1xf32>
    %260 = tpu.reciprocal %259 {approx = true} : vector<8x1xf32> -> vector<8x1xf32>
    %261 = vector.broadcast %260 : vector<8x1xf32> to vector<8x8xf32>
    %262 = arith.mulf %257, %261 : vector<8x8xf32>
    %cst_149 = arith.constant dense<0.000000e+00> : vector<8x32xf32>
    %263 = tpu.matmul %262, %245, %cst_149 {dimension_numbers = #tpu.dot_dimension_numbers<[1], [0], [0], [1], [0, 0, 1, 1], [], []>} : vector<8x8xf32>, vector<8x32xf32>, vector<8x32xf32> -> vector<8x32xf32>
    %264 = vector.extract_strided_slice %228 {offsets = [8, 0], sizes = [8, 32], strides = [1, 1]} : vector<16x32xf32> to vector<8x32xf32>
    %265 = vector.extract_strided_slice %235 {offsets = [8, 0], sizes = [8, 32], strides = [1, 1]} : vector<16x32xf32> to vector<8x32xf32>
    %266 = vector.extract_strided_slice %242 {offsets = [8, 0], sizes = [8, 32], strides = [1, 1]} : vector<16x32xf32> to vector<8x32xf32>
    %cst_150 = arith.constant dense<0.000000e+00> : vector<8x8xf32>
    %267 = tpu.matmul %264, %265, %cst_150 {dimension_numbers = #tpu.dot_dimension_numbers<[1], [1], [0], [0], [0, 0, 1, 0], [], []>} : vector<8x32xf32>, vector<8x32xf32>, vector<8x8xf32> -> vector<8x8xf32>
    %cst_151 = arith.constant 0.176776692 : f32
    %268 = vector.broadcast %cst_151 : f32 to vector<8x8xf32>
    %269 = arith.mulf %267, %268 : vector<8x8xf32>
    %c1_152 = arith.constant 1 : index
    %c0_153 = arith.constant 0 : index
    %c0_154 = arith.constant 0 : index
    %270 = vector.load %arg6[%c1_152, %c0_153, %c0_154] : memref<2x1x8xf32, #tpu.memory_space<vmem>>, vector<1x1x8xf32>
    %271 = vector.shape_cast %270 : vector<1x1x8xf32> to vector<1x8xf32>
    %272 = vector.broadcast %271 : vector<1x8xf32> to vector<8x8xf32>
    %273 = arith.addf %269, %272 : vector<8x8xf32>
    %cst_155 = arith.constant dense<0xFF800000> : vector<8xf32>
    %274 = vector.multi_reduction <maximumf>, %273, %cst_155 [1] : vector<8x8xf32> to vector<8xf32>
    %275 = vector.shape_cast %274 : vector<8xf32> to vector<8x1xf32>
    %276 = vector.broadcast %275 : vector<8x1xf32> to vector<8x8xf32>
    %277 = arith.subf %273, %276 : vector<8x8xf32>
    %278 = math.exp %277 : vector<8x8xf32>
    %cst_156 = arith.constant dense<0.000000e+00> : vector<8xf32>
    %279 = vector.multi_reduction <add>, %278, %cst_156 [1] : vector<8x8xf32> to vector<8xf32>
    %280 = vector.shape_cast %279 : vector<8xf32> to vector<8x1xf32>
    %281 = tpu.reciprocal %280 {approx = true} : vector<8x1xf32> -> vector<8x1xf32>
    %282 = vector.broadcast %281 : vector<8x1xf32> to vector<8x8xf32>
    %283 = arith.mulf %278, %282 : vector<8x8xf32>
    %cst_157 = arith.constant dense<0.000000e+00> : vector<8x32xf32>
    %284 = tpu.matmul %283, %266, %cst_157 {dimension_numbers = #tpu.dot_dimension_numbers<[1], [0], [0], [1], [0, 0, 1, 1], [], []>} : vector<8x8xf32>, vector<8x32xf32>, vector<8x32xf32> -> vector<8x32xf32>
    %285 = tpu.concatenate %263, %284 in 0 : vector<8x32xf32>, vector<8x32xf32> -> vector<16x32xf32>
    %286 = tpu.concatenate %93, %157, %221, %285 in 1 : vector<16x32xf32>, vector<16x32xf32>, vector<16x32xf32>, vector<16x32xf32> -> vector<16x128xf32>
    %287 = arith.truncf %286 : vector<16x128xf32> to vector<16x128xbf16>
    %c0_158 = arith.constant 0 : index
    %c0_159 = arith.constant 0 : index
    %c0_160 = arith.constant 0 : index
    %288 = vector.load %arg13[%c0_158, %c0_159, %c0_160] : memref<2x128x128xbf16, #tpu.memory_space<vmem>>, vector<1x128x128xbf16>
    %289 = vector.shape_cast %288 : vector<1x128x128xbf16> to vector<128x128xbf16>
    %cst_161 = arith.constant dense<0.000000e+00> : vector<16x128xf32>
    %290 = tpu.matmul %287, %289, %cst_161 {dimension_numbers = #tpu.dot_dimension_numbers<[1], [0], [0], [1], [0, 0, 1, 1], [], []>} : vector<16x128xbf16>, vector<128x128xbf16>, vector<16x128xf32> -> vector<16x128xf32>
    %c0_162 = arith.constant 0 : index
    %c0_163 = arith.constant 0 : index
    %c0_164 = arith.constant 0 : index
    %291 = vector.load %arg14[%c0_162, %c0_163, %c0_164] : memref<2x1x128xf32, #tpu.memory_space<vmem>>, vector<1x1x128xf32>
    %292 = vector.shape_cast %291 : vector<1x1x128xf32> to vector<1x128xf32>
    %293 = vector.broadcast %292 : vector<1x128xf32> to vector<16x128xf32>
    %294 = arith.addf %290, %293 : vector<16x128xf32>
    %295 = arith.addf %294, %28 : vector<16x128xf32>
    %c0_165 = arith.constant 0 : index
    %c0_166 = arith.constant 0 : index
    %c0_167 = arith.constant 0 : index
    %296 = vector.load %arg15[%c0_165, %c0_166, %c0_167] : memref<2x1x128xf32, #tpu.memory_space<vmem>>, vector<1x1x128xf32>
    %297 = vector.shape_cast %296 : vector<1x1x128xf32> to vector<1x128xf32>
    %c0_168 = arith.constant 0 : index
    %c0_169 = arith.constant 0 : index
    %c0_170 = arith.constant 0 : index
    %298 = vector.load %arg16[%c0_168, %c0_169, %c0_170] : memref<2x1x128xf32, #tpu.memory_space<vmem>>, vector<1x1x128xf32>
    %299 = vector.shape_cast %298 : vector<1x1x128xf32> to vector<1x128xf32>
    %cst_171 = arith.constant dense<0.000000e+00> : vector<16xf32>
    %300 = vector.multi_reduction <add>, %295, %cst_171 [1] : vector<16x128xf32> to vector<16xf32>
    %301 = vector.shape_cast %300 : vector<16xf32> to vector<16x1xf32>
    %cst_172 = arith.constant 1.280000e+02 : f32
    %302 = vector.broadcast %cst_172 : f32 to vector<16x1xf32>
    %303 = arith.divf %301, %302 : vector<16x1xf32>
    %304 = vector.broadcast %303 : vector<16x1xf32> to vector<16x128xf32>
    %305 = arith.subf %295, %304 : vector<16x128xf32>
    %306 = arith.mulf %305, %305 : vector<16x128xf32>
    %cst_173 = arith.constant dense<0.000000e+00> : vector<16xf32>
    %307 = vector.multi_reduction <add>, %306, %cst_173 [1] : vector<16x128xf32> to vector<16xf32>
    %308 = vector.shape_cast %307 : vector<16xf32> to vector<16x1xf32>
    %cst_174 = arith.constant 1.280000e+02 : f32
    %309 = vector.broadcast %cst_174 : f32 to vector<16x1xf32>
    %310 = arith.divf %308, %309 : vector<16x1xf32>
    %cst_175 = arith.constant 9.99999996E-13 : f32
    %311 = vector.broadcast %cst_175 : f32 to vector<16x1xf32>
    %312 = arith.addf %310, %311 : vector<16x1xf32>
    %313 = math.rsqrt %312 : vector<16x1xf32>
    %314 = vector.broadcast %313 : vector<16x1xf32> to vector<16x128xf32>
    %315 = arith.mulf %305, %314 : vector<16x128xf32>
    %316 = vector.broadcast %297 : vector<1x128xf32> to vector<16x128xf32>
    %317 = arith.mulf %315, %316 : vector<16x128xf32>
    %318 = vector.broadcast %299 : vector<1x128xf32> to vector<16x128xf32>
    %319 = arith.addf %317, %318 : vector<16x128xf32>
    %320 = arith.truncf %319 : vector<16x128xf32> to vector<16x128xbf16>
    %c0_176 = arith.constant 0 : index
    %c0_177 = arith.constant 0 : index
    %c0_178 = arith.constant 0 : index
    %321 = vector.load %arg17[%c0_176, %c0_177, %c0_178] : memref<2x128x512xbf16, #tpu.memory_space<vmem>>, vector<1x128x512xbf16>
    %322 = vector.shape_cast %321 : vector<1x128x512xbf16> to vector<128x512xbf16>
    %cst_179 = arith.constant dense<0.000000e+00> : vector<16x512xf32>
    %323 = tpu.matmul %320, %322, %cst_179 {dimension_numbers = #tpu.dot_dimension_numbers<[1], [0], [0], [1], [0, 0, 1, 1], [], []>} : vector<16x128xbf16>, vector<128x512xbf16>, vector<16x512xf32> -> vector<16x512xf32>
    %c0_180 = arith.constant 0 : index
    %c0_181 = arith.constant 0 : index
    %c0_182 = arith.constant 0 : index
    %324 = vector.load %arg18[%c0_180, %c0_181, %c0_182] : memref<2x1x512xf32, #tpu.memory_space<vmem>>, vector<1x1x512xf32>
    %325 = vector.shape_cast %324 : vector<1x1x512xf32> to vector<1x512xf32>
    %326 = vector.broadcast %325 : vector<1x512xf32> to vector<16x512xf32>
    %327 = arith.addf %323, %326 : vector<16x512xf32>
    %cst_183 = arith.constant 5.000000e-01 : f32
    %328 = vector.broadcast %cst_183 : f32 to vector<16x512xf32>
    %329 = arith.mulf %328, %327 : vector<16x512xf32>
    %cst_184 = arith.constant 4.471500e-02 : f32
    %330 = vector.broadcast %cst_184 : f32 to vector<16x512xf32>
    %331 = arith.mulf %330, %327 : vector<16x512xf32>
    %332 = arith.mulf %331, %327 : vector<16x512xf32>
    %333 = arith.mulf %332, %327 : vector<16x512xf32>
    %334 = arith.addf %327, %333 : vector<16x512xf32>
    %cst_185 = arith.constant 0.797884583 : f32
    %335 = vector.broadcast %cst_185 : f32 to vector<16x512xf32>
    %336 = arith.mulf %335, %334 : vector<16x512xf32>
    %337 = math.tanh %336 : vector<16x512xf32>
    %cst_186 = arith.constant 1.000000e+00 : f32
    %338 = vector.broadcast %cst_186 : f32 to vector<16x512xf32>
    %339 = arith.addf %338, %337 : vector<16x512xf32>
    %340 = arith.mulf %329, %339 : vector<16x512xf32>
    %341 = arith.truncf %340 : vector<16x512xf32> to vector<16x512xbf16>
    %c0_187 = arith.constant 0 : index
    %c0_188 = arith.constant 0 : index
    %c0_189 = arith.constant 0 : index
    %342 = vector.load %arg19[%c0_187, %c0_188, %c0_189] : memref<2x512x128xbf16, #tpu.memory_space<vmem>>, vector<1x512x128xbf16>
    %343 = vector.shape_cast %342 : vector<1x512x128xbf16> to vector<512x128xbf16>
    %cst_190 = arith.constant dense<0.000000e+00> : vector<16x128xf32>
    %344 = tpu.matmul %341, %343, %cst_190 {dimension_numbers = #tpu.dot_dimension_numbers<[1], [0], [0], [1], [0, 0, 1, 1], [], []>} : vector<16x512xbf16>, vector<512x128xbf16>, vector<16x128xf32> -> vector<16x128xf32>
    %c0_191 = arith.constant 0 : index
    %c0_192 = arith.constant 0 : index
    %c0_193 = arith.constant 0 : index
    %345 = vector.load %arg20[%c0_191, %c0_192, %c0_193] : memref<2x1x128xf32, #tpu.memory_space<vmem>>, vector<1x1x128xf32>
    %346 = vector.shape_cast %345 : vector<1x1x128xf32> to vector<1x128xf32>
    %347 = vector.broadcast %346 : vector<1x128xf32> to vector<16x128xf32>
    %348 = arith.addf %344, %347 : vector<16x128xf32>
    %349 = arith.truncf %348 : vector<16x128xf32> to vector<16x128xbf16>
    %c0_194 = arith.constant 0 : index
    %c0_195 = arith.constant 0 : index
    %c0_196 = arith.constant 0 : index
    %350 = vector.load %arg21[%c0_194, %c0_195, %c0_196] : memref<2x128x8xbf16, #tpu.memory_space<vmem>>, vector<1x128x8xbf16>
    %351 = vector.shape_cast %350 : vector<1x128x8xbf16> to vector<128x8xbf16>
    %cst_197 = arith.constant dense<0.000000e+00> : vector<16x8xf32>
    %352 = tpu.matmul %349, %351, %cst_197 {dimension_numbers = #tpu.dot_dimension_numbers<[1], [0], [0], [1], [0, 0, 1, 1], [], []>} : vector<16x128xbf16>, vector<128x8xbf16>, vector<16x8xf32> -> vector<16x8xf32>
    %c0_198 = arith.constant 0 : index
    %c0_199 = arith.constant 0 : index
    %c0_200 = arith.constant 0 : index
    %353 = vector.load %arg22[%c0_198, %c0_199, %c0_200] : memref<2x1x8xf32, #tpu.memory_space<vmem>>, vector<1x1x8xf32>
    %354 = vector.shape_cast %353 : vector<1x1x8xf32> to vector<1x8xf32>
    %355 = vector.broadcast %354 : vector<1x8xf32> to vector<16x8xf32>
    %356 = arith.addf %352, %355 : vector<16x8xf32>
    %cst_201 = arith.constant 0.000000e+00 : f32
    %357 = vector.broadcast %cst_201 : f32 to vector<16x8xf32>
    %358 = arith.maximumf %356, %357 : vector<16x8xf32>
    %359 = arith.truncf %358 : vector<16x8xf32> to vector<16x8xbf16>
    %c0_202 = arith.constant 0 : index
    %c0_203 = arith.constant 0 : index
    %c0_204 = arith.constant 0 : index
    %360 = vector.load %arg23[%c0_202, %c0_203, %c0_204] : memref<2x8x128xbf16, #tpu.memory_space<vmem>>, vector<1x8x128xbf16>
    %361 = vector.shape_cast %360 : vector<1x8x128xbf16> to vector<8x128xbf16>
    %cst_205 = arith.constant dense<0.000000e+00> : vector<16x128xf32>
    %362 = tpu.matmul %359, %361, %cst_205 {dimension_numbers = #tpu.dot_dimension_numbers<[1], [0], [0], [1], [0, 0, 1, 1], [], []>} : vector<16x8xbf16>, vector<8x128xbf16>, vector<16x128xf32> -> vector<16x128xf32>
    %c0_206 = arith.constant 0 : index
    %c0_207 = arith.constant 0 : index
    %c0_208 = arith.constant 0 : index
    %363 = vector.load %arg24[%c0_206, %c0_207, %c0_208] : memref<2x1x128xf32, #tpu.memory_space<vmem>>, vector<1x1x128xf32>
    %364 = vector.shape_cast %363 : vector<1x1x128xf32> to vector<1x128xf32>
    %365 = vector.broadcast %364 : vector<1x128xf32> to vector<16x128xf32>
    %366 = arith.addf %362, %365 : vector<16x128xf32>
    %367 = arith.addf %348, %366 : vector<16x128xf32>
    %368 = arith.addf %367, %319 : vector<16x128xf32>
    %c0_209 = arith.constant 0 : index
    %c0_210 = arith.constant 0 : index
    %c0_211 = arith.constant 0 : index
    %369 = vector.load %arg25[%c0_209, %c0_210, %c0_211] : memref<2x1x128xf32, #tpu.memory_space<vmem>>, vector<1x1x128xf32>
    %370 = vector.shape_cast %369 : vector<1x1x128xf32> to vector<1x128xf32>
    %c0_212 = arith.constant 0 : index
    %c0_213 = arith.constant 0 : index
    %c0_214 = arith.constant 0 : index
    %371 = vector.load %arg26[%c0_212, %c0_213, %c0_214] : memref<2x1x128xf32, #tpu.memory_space<vmem>>, vector<1x1x128xf32>
    %372 = vector.shape_cast %371 : vector<1x1x128xf32> to vector<1x128xf32>
    %cst_215 = arith.constant dense<0.000000e+00> : vector<16xf32>
    %373 = vector.multi_reduction <add>, %368, %cst_215 [1] : vector<16x128xf32> to vector<16xf32>
    %374 = vector.shape_cast %373 : vector<16xf32> to vector<16x1xf32>
    %cst_216 = arith.constant 1.280000e+02 : f32
    %375 = vector.broadcast %cst_216 : f32 to vector<16x1xf32>
    %376 = arith.divf %374, %375 : vector<16x1xf32>
    %377 = vector.broadcast %376 : vector<16x1xf32> to vector<16x128xf32>
    %378 = arith.subf %368, %377 : vector<16x128xf32>
    %379 = arith.mulf %378, %378 : vector<16x128xf32>
    %cst_217 = arith.constant dense<0.000000e+00> : vector<16xf32>
    %380 = vector.multi_reduction <add>, %379, %cst_217 [1] : vector<16x128xf32> to vector<16xf32>
    %381 = vector.shape_cast %380 : vector<16xf32> to vector<16x1xf32>
    %cst_218 = arith.constant 1.280000e+02 : f32
    %382 = vector.broadcast %cst_218 : f32 to vector<16x1xf32>
    %383 = arith.divf %381, %382 : vector<16x1xf32>
    %cst_219 = arith.constant 9.99999996E-13 : f32
    %384 = vector.broadcast %cst_219 : f32 to vector<16x1xf32>
    %385 = arith.addf %383, %384 : vector<16x1xf32>
    %386 = math.rsqrt %385 : vector<16x1xf32>
    %387 = vector.broadcast %386 : vector<16x1xf32> to vector<16x128xf32>
    %388 = arith.mulf %378, %387 : vector<16x128xf32>
    %389 = vector.broadcast %370 : vector<1x128xf32> to vector<16x128xf32>
    %390 = arith.mulf %388, %389 : vector<16x128xf32>
    %391 = vector.broadcast %372 : vector<1x128xf32> to vector<16x128xf32>
    %392 = arith.addf %390, %391 : vector<16x128xf32>
    %393 = arith.truncf %392 : vector<16x128xf32> to vector<16x128xbf16>
    %c4 = arith.constant 4 : index
    %c0_220 = arith.constant 0 : index
    %c0_221 = arith.constant 0 : index
    %394 = vector.load %arg7[%c4, %c0_220, %c0_221] : memref<8x128x32xbf16, #tpu.memory_space<vmem>>, vector<1x128x32xbf16>
    %395 = vector.shape_cast %394 : vector<1x128x32xbf16> to vector<128x32xbf16>
    %cst_222 = arith.constant dense<0.000000e+00> : vector<16x32xf32>
    %396 = tpu.matmul %393, %395, %cst_222 {dimension_numbers = #tpu.dot_dimension_numbers<[1], [0], [0], [1], [0, 0, 1, 1], [], []>} : vector<16x128xbf16>, vector<128x32xbf16>, vector<16x32xf32> -> vector<16x32xf32>
    %c4_223 = arith.constant 4 : index
    %c0_224 = arith.constant 0 : index
    %c0_225 = arith.constant 0 : index
    %397 = vector.load %arg8[%c4_223, %c0_224, %c0_225] : memref<8x1x32xf32, #tpu.memory_space<vmem>>, vector<1x1x32xf32>
    %398 = vector.shape_cast %397 : vector<1x1x32xf32> to vector<1x32xf32>
    %399 = vector.broadcast %398 : vector<1x32xf32> to vector<16x32xf32>
    %400 = arith.addf %396, %399 : vector<16x32xf32>
    %c4_226 = arith.constant 4 : index
    %c0_227 = arith.constant 0 : index
    %c0_228 = arith.constant 0 : index
    %401 = vector.load %arg9[%c4_226, %c0_227, %c0_228] : memref<8x128x32xbf16, #tpu.memory_space<vmem>>, vector<1x128x32xbf16>
    %402 = vector.shape_cast %401 : vector<1x128x32xbf16> to vector<128x32xbf16>
    %cst_229 = arith.constant dense<0.000000e+00> : vector<16x32xf32>
    %403 = tpu.matmul %393, %402, %cst_229 {dimension_numbers = #tpu.dot_dimension_numbers<[1], [0], [0], [1], [0, 0, 1, 1], [], []>} : vector<16x128xbf16>, vector<128x32xbf16>, vector<16x32xf32> -> vector<16x32xf32>
    %c4_230 = arith.constant 4 : index
    %c0_231 = arith.constant 0 : index
    %c0_232 = arith.constant 0 : index
    %404 = vector.load %arg10[%c4_230, %c0_231, %c0_232] : memref<8x1x32xf32, #tpu.memory_space<vmem>>, vector<1x1x32xf32>
    %405 = vector.shape_cast %404 : vector<1x1x32xf32> to vector<1x32xf32>
    %406 = vector.broadcast %405 : vector<1x32xf32> to vector<16x32xf32>
    %407 = arith.addf %403, %406 : vector<16x32xf32>
    %c4_233 = arith.constant 4 : index
    %c0_234 = arith.constant 0 : index
    %c0_235 = arith.constant 0 : index
    %408 = vector.load %arg11[%c4_233, %c0_234, %c0_235] : memref<8x128x32xbf16, #tpu.memory_space<vmem>>, vector<1x128x32xbf16>
    %409 = vector.shape_cast %408 : vector<1x128x32xbf16> to vector<128x32xbf16>
    %cst_236 = arith.constant dense<0.000000e+00> : vector<16x32xf32>
    %410 = tpu.matmul %393, %409, %cst_236 {dimension_numbers = #tpu.dot_dimension_numbers<[1], [0], [0], [1], [0, 0, 1, 1], [], []>} : vector<16x128xbf16>, vector<128x32xbf16>, vector<16x32xf32> -> vector<16x32xf32>
    %c4_237 = arith.constant 4 : index
    %c0_238 = arith.constant 0 : index
    %c0_239 = arith.constant 0 : index
    %411 = vector.load %arg12[%c4_237, %c0_238, %c0_239] : memref<8x1x32xf32, #tpu.memory_space<vmem>>, vector<1x1x32xf32>
    %412 = vector.shape_cast %411 : vector<1x1x32xf32> to vector<1x32xf32>
    %413 = vector.broadcast %412 : vector<1x32xf32> to vector<16x32xf32>
    %414 = arith.addf %410, %413 : vector<16x32xf32>
    %415 = vector.extract_strided_slice %400 {offsets = [0, 0], sizes = [8, 32], strides = [1, 1]} : vector<16x32xf32> to vector<8x32xf32>
    %416 = vector.extract_strided_slice %407 {offsets = [0, 0], sizes = [8, 32], strides = [1, 1]} : vector<16x32xf32> to vector<8x32xf32>
    %417 = vector.extract_strided_slice %414 {offsets = [0, 0], sizes = [8, 32], strides = [1, 1]} : vector<16x32xf32> to vector<8x32xf32>
    %cst_240 = arith.constant dense<0.000000e+00> : vector<8x8xf32>
    %418 = tpu.matmul %415, %416, %cst_240 {dimension_numbers = #tpu.dot_dimension_numbers<[1], [1], [0], [0], [0, 0, 1, 0], [], []>} : vector<8x32xf32>, vector<8x32xf32>, vector<8x8xf32> -> vector<8x8xf32>
    %cst_241 = arith.constant 0.176776692 : f32
    %419 = vector.broadcast %cst_241 : f32 to vector<8x8xf32>
    %420 = arith.mulf %418, %419 : vector<8x8xf32>
    %c0_242 = arith.constant 0 : index
    %c0_243 = arith.constant 0 : index
    %c0_244 = arith.constant 0 : index
    %421 = vector.load %arg6[%c0_242, %c0_243, %c0_244] : memref<2x1x8xf32, #tpu.memory_space<vmem>>, vector<1x1x8xf32>
    %422 = vector.shape_cast %421 : vector<1x1x8xf32> to vector<1x8xf32>
    %423 = vector.broadcast %422 : vector<1x8xf32> to vector<8x8xf32>
    %424 = arith.addf %420, %423 : vector<8x8xf32>
    %cst_245 = arith.constant dense<0xFF800000> : vector<8xf32>
    %425 = vector.multi_reduction <maximumf>, %424, %cst_245 [1] : vector<8x8xf32> to vector<8xf32>
    %426 = vector.shape_cast %425 : vector<8xf32> to vector<8x1xf32>
    %427 = vector.broadcast %426 : vector<8x1xf32> to vector<8x8xf32>
    %428 = arith.subf %424, %427 : vector<8x8xf32>
    %429 = math.exp %428 : vector<8x8xf32>
    %cst_246 = arith.constant dense<0.000000e+00> : vector<8xf32>
    %430 = vector.multi_reduction <add>, %429, %cst_246 [1] : vector<8x8xf32> to vector<8xf32>
    %431 = vector.shape_cast %430 : vector<8xf32> to vector<8x1xf32>
    %432 = tpu.reciprocal %431 {approx = true} : vector<8x1xf32> -> vector<8x1xf32>
    %433 = vector.broadcast %432 : vector<8x1xf32> to vector<8x8xf32>
    %434 = arith.mulf %429, %433 : vector<8x8xf32>
    %cst_247 = arith.constant dense<0.000000e+00> : vector<8x32xf32>
    %435 = tpu.matmul %434, %417, %cst_247 {dimension_numbers = #tpu.dot_dimension_numbers<[1], [0], [0], [1], [0, 0, 1, 1], [], []>} : vector<8x8xf32>, vector<8x32xf32>, vector<8x32xf32> -> vector<8x32xf32>
    %436 = vector.extract_strided_slice %400 {offsets = [8, 0], sizes = [8, 32], strides = [1, 1]} : vector<16x32xf32> to vector<8x32xf32>
    %437 = vector.extract_strided_slice %407 {offsets = [8, 0], sizes = [8, 32], strides = [1, 1]} : vector<16x32xf32> to vector<8x32xf32>
    %438 = vector.extract_strided_slice %414 {offsets = [8, 0], sizes = [8, 32], strides = [1, 1]} : vector<16x32xf32> to vector<8x32xf32>
    %cst_248 = arith.constant dense<0.000000e+00> : vector<8x8xf32>
    %439 = tpu.matmul %436, %437, %cst_248 {dimension_numbers = #tpu.dot_dimension_numbers<[1], [1], [0], [0], [0, 0, 1, 0], [], []>} : vector<8x32xf32>, vector<8x32xf32>, vector<8x8xf32> -> vector<8x8xf32>
    %cst_249 = arith.constant 0.176776692 : f32
    %440 = vector.broadcast %cst_249 : f32 to vector<8x8xf32>
    %441 = arith.mulf %439, %440 : vector<8x8xf32>
    %c1_250 = arith.constant 1 : index
    %c0_251 = arith.constant 0 : index
    %c0_252 = arith.constant 0 : index
    %442 = vector.load %arg6[%c1_250, %c0_251, %c0_252] : memref<2x1x8xf32, #tpu.memory_space<vmem>>, vector<1x1x8xf32>
    %443 = vector.shape_cast %442 : vector<1x1x8xf32> to vector<1x8xf32>
    %444 = vector.broadcast %443 : vector<1x8xf32> to vector<8x8xf32>
    %445 = arith.addf %441, %444 : vector<8x8xf32>
    %cst_253 = arith.constant dense<0xFF800000> : vector<8xf32>
    %446 = vector.multi_reduction <maximumf>, %445, %cst_253 [1] : vector<8x8xf32> to vector<8xf32>
    %447 = vector.shape_cast %446 : vector<8xf32> to vector<8x1xf32>
    %448 = vector.broadcast %447 : vector<8x1xf32> to vector<8x8xf32>
    %449 = arith.subf %445, %448 : vector<8x8xf32>
    %450 = math.exp %449 : vector<8x8xf32>
    %cst_254 = arith.constant dense<0.000000e+00> : vector<8xf32>
    %451 = vector.multi_reduction <add>, %450, %cst_254 [1] : vector<8x8xf32> to vector<8xf32>
    %452 = vector.shape_cast %451 : vector<8xf32> to vector<8x1xf32>
    %453 = tpu.reciprocal %452 {approx = true} : vector<8x1xf32> -> vector<8x1xf32>
    %454 = vector.broadcast %453 : vector<8x1xf32> to vector<8x8xf32>
    %455 = arith.mulf %450, %454 : vector<8x8xf32>
    %cst_255 = arith.constant dense<0.000000e+00> : vector<8x32xf32>
    %456 = tpu.matmul %455, %438, %cst_255 {dimension_numbers = #tpu.dot_dimension_numbers<[1], [0], [0], [1], [0, 0, 1, 1], [], []>} : vector<8x8xf32>, vector<8x32xf32>, vector<8x32xf32> -> vector<8x32xf32>
    %457 = tpu.concatenate %435, %456 in 0 : vector<8x32xf32>, vector<8x32xf32> -> vector<16x32xf32>
    %c5 = arith.constant 5 : index
    %c0_256 = arith.constant 0 : index
    %c0_257 = arith.constant 0 : index
    %458 = vector.load %arg7[%c5, %c0_256, %c0_257] : memref<8x128x32xbf16, #tpu.memory_space<vmem>>, vector<1x128x32xbf16>
    %459 = vector.shape_cast %458 : vector<1x128x32xbf16> to vector<128x32xbf16>
    %cst_258 = arith.constant dense<0.000000e+00> : vector<16x32xf32>
    %460 = tpu.matmul %393, %459, %cst_258 {dimension_numbers = #tpu.dot_dimension_numbers<[1], [0], [0], [1], [0, 0, 1, 1], [], []>} : vector<16x128xbf16>, vector<128x32xbf16>, vector<16x32xf32> -> vector<16x32xf32>
    %c5_259 = arith.constant 5 : index
    %c0_260 = arith.constant 0 : index
    %c0_261 = arith.constant 0 : index
    %461 = vector.load %arg8[%c5_259, %c0_260, %c0_261] : memref<8x1x32xf32, #tpu.memory_space<vmem>>, vector<1x1x32xf32>
    %462 = vector.shape_cast %461 : vector<1x1x32xf32> to vector<1x32xf32>
    %463 = vector.broadcast %462 : vector<1x32xf32> to vector<16x32xf32>
    %464 = arith.addf %460, %463 : vector<16x32xf32>
    %c5_262 = arith.constant 5 : index
    %c0_263 = arith.constant 0 : index
    %c0_264 = arith.constant 0 : index
    %465 = vector.load %arg9[%c5_262, %c0_263, %c0_264] : memref<8x128x32xbf16, #tpu.memory_space<vmem>>, vector<1x128x32xbf16>
    %466 = vector.shape_cast %465 : vector<1x128x32xbf16> to vector<128x32xbf16>
    %cst_265 = arith.constant dense<0.000000e+00> : vector<16x32xf32>
    %467 = tpu.matmul %393, %466, %cst_265 {dimension_numbers = #tpu.dot_dimension_numbers<[1], [0], [0], [1], [0, 0, 1, 1], [], []>} : vector<16x128xbf16>, vector<128x32xbf16>, vector<16x32xf32> -> vector<16x32xf32>
    %c5_266 = arith.constant 5 : index
    %c0_267 = arith.constant 0 : index
    %c0_268 = arith.constant 0 : index
    %468 = vector.load %arg10[%c5_266, %c0_267, %c0_268] : memref<8x1x32xf32, #tpu.memory_space<vmem>>, vector<1x1x32xf32>
    %469 = vector.shape_cast %468 : vector<1x1x32xf32> to vector<1x32xf32>
    %470 = vector.broadcast %469 : vector<1x32xf32> to vector<16x32xf32>
    %471 = arith.addf %467, %470 : vector<16x32xf32>
    %c5_269 = arith.constant 5 : index
    %c0_270 = arith.constant 0 : index
    %c0_271 = arith.constant 0 : index
    %472 = vector.load %arg11[%c5_269, %c0_270, %c0_271] : memref<8x128x32xbf16, #tpu.memory_space<vmem>>, vector<1x128x32xbf16>
    %473 = vector.shape_cast %472 : vector<1x128x32xbf16> to vector<128x32xbf16>
    %cst_272 = arith.constant dense<0.000000e+00> : vector<16x32xf32>
    %474 = tpu.matmul %393, %473, %cst_272 {dimension_numbers = #tpu.dot_dimension_numbers<[1], [0], [0], [1], [0, 0, 1, 1], [], []>} : vector<16x128xbf16>, vector<128x32xbf16>, vector<16x32xf32> -> vector<16x32xf32>
    %c5_273 = arith.constant 5 : index
    %c0_274 = arith.constant 0 : index
    %c0_275 = arith.constant 0 : index
    %475 = vector.load %arg12[%c5_273, %c0_274, %c0_275] : memref<8x1x32xf32, #tpu.memory_space<vmem>>, vector<1x1x32xf32>
    %476 = vector.shape_cast %475 : vector<1x1x32xf32> to vector<1x32xf32>
    %477 = vector.broadcast %476 : vector<1x32xf32> to vector<16x32xf32>
    %478 = arith.addf %474, %477 : vector<16x32xf32>
    %479 = vector.extract_strided_slice %464 {offsets = [0, 0], sizes = [8, 32], strides = [1, 1]} : vector<16x32xf32> to vector<8x32xf32>
    %480 = vector.extract_strided_slice %471 {offsets = [0, 0], sizes = [8, 32], strides = [1, 1]} : vector<16x32xf32> to vector<8x32xf32>
    %481 = vector.extract_strided_slice %478 {offsets = [0, 0], sizes = [8, 32], strides = [1, 1]} : vector<16x32xf32> to vector<8x32xf32>
    %cst_276 = arith.constant dense<0.000000e+00> : vector<8x8xf32>
    %482 = tpu.matmul %479, %480, %cst_276 {dimension_numbers = #tpu.dot_dimension_numbers<[1], [1], [0], [0], [0, 0, 1, 0], [], []>} : vector<8x32xf32>, vector<8x32xf32>, vector<8x8xf32> -> vector<8x8xf32>
    %cst_277 = arith.constant 0.176776692 : f32
    %483 = vector.broadcast %cst_277 : f32 to vector<8x8xf32>
    %484 = arith.mulf %482, %483 : vector<8x8xf32>
    %c0_278 = arith.constant 0 : index
    %c0_279 = arith.constant 0 : index
    %c0_280 = arith.constant 0 : index
    %485 = vector.load %arg6[%c0_278, %c0_279, %c0_280] : memref<2x1x8xf32, #tpu.memory_space<vmem>>, vector<1x1x8xf32>
    %486 = vector.shape_cast %485 : vector<1x1x8xf32> to vector<1x8xf32>
    %487 = vector.broadcast %486 : vector<1x8xf32> to vector<8x8xf32>
    %488 = arith.addf %484, %487 : vector<8x8xf32>
    %cst_281 = arith.constant dense<0xFF800000> : vector<8xf32>
    %489 = vector.multi_reduction <maximumf>, %488, %cst_281 [1] : vector<8x8xf32> to vector<8xf32>
    %490 = vector.shape_cast %489 : vector<8xf32> to vector<8x1xf32>
    %491 = vector.broadcast %490 : vector<8x1xf32> to vector<8x8xf32>
    %492 = arith.subf %488, %491 : vector<8x8xf32>
    %493 = math.exp %492 : vector<8x8xf32>
    %cst_282 = arith.constant dense<0.000000e+00> : vector<8xf32>
    %494 = vector.multi_reduction <add>, %493, %cst_282 [1] : vector<8x8xf32> to vector<8xf32>
    %495 = vector.shape_cast %494 : vector<8xf32> to vector<8x1xf32>
    %496 = tpu.reciprocal %495 {approx = true} : vector<8x1xf32> -> vector<8x1xf32>
    %497 = vector.broadcast %496 : vector<8x1xf32> to vector<8x8xf32>
    %498 = arith.mulf %493, %497 : vector<8x8xf32>
    %cst_283 = arith.constant dense<0.000000e+00> : vector<8x32xf32>
    %499 = tpu.matmul %498, %481, %cst_283 {dimension_numbers = #tpu.dot_dimension_numbers<[1], [0], [0], [1], [0, 0, 1, 1], [], []>} : vector<8x8xf32>, vector<8x32xf32>, vector<8x32xf32> -> vector<8x32xf32>
    %500 = vector.extract_strided_slice %464 {offsets = [8, 0], sizes = [8, 32], strides = [1, 1]} : vector<16x32xf32> to vector<8x32xf32>
    %501 = vector.extract_strided_slice %471 {offsets = [8, 0], sizes = [8, 32], strides = [1, 1]} : vector<16x32xf32> to vector<8x32xf32>
    %502 = vector.extract_strided_slice %478 {offsets = [8, 0], sizes = [8, 32], strides = [1, 1]} : vector<16x32xf32> to vector<8x32xf32>
    %cst_284 = arith.constant dense<0.000000e+00> : vector<8x8xf32>
    %503 = tpu.matmul %500, %501, %cst_284 {dimension_numbers = #tpu.dot_dimension_numbers<[1], [1], [0], [0], [0, 0, 1, 0], [], []>} : vector<8x32xf32>, vector<8x32xf32>, vector<8x8xf32> -> vector<8x8xf32>
    %cst_285 = arith.constant 0.176776692 : f32
    %504 = vector.broadcast %cst_285 : f32 to vector<8x8xf32>
    %505 = arith.mulf %503, %504 : vector<8x8xf32>
    %c1_286 = arith.constant 1 : index
    %c0_287 = arith.constant 0 : index
    %c0_288 = arith.constant 0 : index
    %506 = vector.load %arg6[%c1_286, %c0_287, %c0_288] : memref<2x1x8xf32, #tpu.memory_space<vmem>>, vector<1x1x8xf32>
    %507 = vector.shape_cast %506 : vector<1x1x8xf32> to vector<1x8xf32>
    %508 = vector.broadcast %507 : vector<1x8xf32> to vector<8x8xf32>
    %509 = arith.addf %505, %508 : vector<8x8xf32>
    %cst_289 = arith.constant dense<0xFF800000> : vector<8xf32>
    %510 = vector.multi_reduction <maximumf>, %509, %cst_289 [1] : vector<8x8xf32> to vector<8xf32>
    %511 = vector.shape_cast %510 : vector<8xf32> to vector<8x1xf32>
    %512 = vector.broadcast %511 : vector<8x1xf32> to vector<8x8xf32>
    %513 = arith.subf %509, %512 : vector<8x8xf32>
    %514 = math.exp %513 : vector<8x8xf32>
    %cst_290 = arith.constant dense<0.000000e+00> : vector<8xf32>
    %515 = vector.multi_reduction <add>, %514, %cst_290 [1] : vector<8x8xf32> to vector<8xf32>
    %516 = vector.shape_cast %515 : vector<8xf32> to vector<8x1xf32>
    %517 = tpu.reciprocal %516 {approx = true} : vector<8x1xf32> -> vector<8x1xf32>
    %518 = vector.broadcast %517 : vector<8x1xf32> to vector<8x8xf32>
    %519 = arith.mulf %514, %518 : vector<8x8xf32>
    %cst_291 = arith.constant dense<0.000000e+00> : vector<8x32xf32>
    %520 = tpu.matmul %519, %502, %cst_291 {dimension_numbers = #tpu.dot_dimension_numbers<[1], [0], [0], [1], [0, 0, 1, 1], [], []>} : vector<8x8xf32>, vector<8x32xf32>, vector<8x32xf32> -> vector<8x32xf32>
    %521 = tpu.concatenate %499, %520 in 0 : vector<8x32xf32>, vector<8x32xf32> -> vector<16x32xf32>
    %c6 = arith.constant 6 : index
    %c0_292 = arith.constant 0 : index
    %c0_293 = arith.constant 0 : index
    %522 = vector.load %arg7[%c6, %c0_292, %c0_293] : memref<8x128x32xbf16, #tpu.memory_space<vmem>>, vector<1x128x32xbf16>
    %523 = vector.shape_cast %522 : vector<1x128x32xbf16> to vector<128x32xbf16>
    %cst_294 = arith.constant dense<0.000000e+00> : vector<16x32xf32>
    %524 = tpu.matmul %393, %523, %cst_294 {dimension_numbers = #tpu.dot_dimension_numbers<[1], [0], [0], [1], [0, 0, 1, 1], [], []>} : vector<16x128xbf16>, vector<128x32xbf16>, vector<16x32xf32> -> vector<16x32xf32>
    %c6_295 = arith.constant 6 : index
    %c0_296 = arith.constant 0 : index
    %c0_297 = arith.constant 0 : index
    %525 = vector.load %arg8[%c6_295, %c0_296, %c0_297] : memref<8x1x32xf32, #tpu.memory_space<vmem>>, vector<1x1x32xf32>
    %526 = vector.shape_cast %525 : vector<1x1x32xf32> to vector<1x32xf32>
    %527 = vector.broadcast %526 : vector<1x32xf32> to vector<16x32xf32>
    %528 = arith.addf %524, %527 : vector<16x32xf32>
    %c6_298 = arith.constant 6 : index
    %c0_299 = arith.constant 0 : index
    %c0_300 = arith.constant 0 : index
    %529 = vector.load %arg9[%c6_298, %c0_299, %c0_300] : memref<8x128x32xbf16, #tpu.memory_space<vmem>>, vector<1x128x32xbf16>
    %530 = vector.shape_cast %529 : vector<1x128x32xbf16> to vector<128x32xbf16>
    %cst_301 = arith.constant dense<0.000000e+00> : vector<16x32xf32>
    %531 = tpu.matmul %393, %530, %cst_301 {dimension_numbers = #tpu.dot_dimension_numbers<[1], [0], [0], [1], [0, 0, 1, 1], [], []>} : vector<16x128xbf16>, vector<128x32xbf16>, vector<16x32xf32> -> vector<16x32xf32>
    %c6_302 = arith.constant 6 : index
    %c0_303 = arith.constant 0 : index
    %c0_304 = arith.constant 0 : index
    %532 = vector.load %arg10[%c6_302, %c0_303, %c0_304] : memref<8x1x32xf32, #tpu.memory_space<vmem>>, vector<1x1x32xf32>
    %533 = vector.shape_cast %532 : vector<1x1x32xf32> to vector<1x32xf32>
    %534 = vector.broadcast %533 : vector<1x32xf32> to vector<16x32xf32>
    %535 = arith.addf %531, %534 : vector<16x32xf32>
    %c6_305 = arith.constant 6 : index
    %c0_306 = arith.constant 0 : index
    %c0_307 = arith.constant 0 : index
    %536 = vector.load %arg11[%c6_305, %c0_306, %c0_307] : memref<8x128x32xbf16, #tpu.memory_space<vmem>>, vector<1x128x32xbf16>
    %537 = vector.shape_cast %536 : vector<1x128x32xbf16> to vector<128x32xbf16>
    %cst_308 = arith.constant dense<0.000000e+00> : vector<16x32xf32>
    %538 = tpu.matmul %393, %537, %cst_308 {dimension_numbers = #tpu.dot_dimension_numbers<[1], [0], [0], [1], [0, 0, 1, 1], [], []>} : vector<16x128xbf16>, vector<128x32xbf16>, vector<16x32xf32> -> vector<16x32xf32>
    %c6_309 = arith.constant 6 : index
    %c0_310 = arith.constant 0 : index
    %c0_311 = arith.constant 0 : index
    %539 = vector.load %arg12[%c6_309, %c0_310, %c0_311] : memref<8x1x32xf32, #tpu.memory_space<vmem>>, vector<1x1x32xf32>
    %540 = vector.shape_cast %539 : vector<1x1x32xf32> to vector<1x32xf32>
    %541 = vector.broadcast %540 : vector<1x32xf32> to vector<16x32xf32>
    %542 = arith.addf %538, %541 : vector<16x32xf32>
    %543 = vector.extract_strided_slice %528 {offsets = [0, 0], sizes = [8, 32], strides = [1, 1]} : vector<16x32xf32> to vector<8x32xf32>
    %544 = vector.extract_strided_slice %535 {offsets = [0, 0], sizes = [8, 32], strides = [1, 1]} : vector<16x32xf32> to vector<8x32xf32>
    %545 = vector.extract_strided_slice %542 {offsets = [0, 0], sizes = [8, 32], strides = [1, 1]} : vector<16x32xf32> to vector<8x32xf32>
    %cst_312 = arith.constant dense<0.000000e+00> : vector<8x8xf32>
    %546 = tpu.matmul %543, %544, %cst_312 {dimension_numbers = #tpu.dot_dimension_numbers<[1], [1], [0], [0], [0, 0, 1, 0], [], []>} : vector<8x32xf32>, vector<8x32xf32>, vector<8x8xf32> -> vector<8x8xf32>
    %cst_313 = arith.constant 0.176776692 : f32
    %547 = vector.broadcast %cst_313 : f32 to vector<8x8xf32>
    %548 = arith.mulf %546, %547 : vector<8x8xf32>
    %c0_314 = arith.constant 0 : index
    %c0_315 = arith.constant 0 : index
    %c0_316 = arith.constant 0 : index
    %549 = vector.load %arg6[%c0_314, %c0_315, %c0_316] : memref<2x1x8xf32, #tpu.memory_space<vmem>>, vector<1x1x8xf32>
    %550 = vector.shape_cast %549 : vector<1x1x8xf32> to vector<1x8xf32>
    %551 = vector.broadcast %550 : vector<1x8xf32> to vector<8x8xf32>
    %552 = arith.addf %548, %551 : vector<8x8xf32>
    %cst_317 = arith.constant dense<0xFF800000> : vector<8xf32>
    %553 = vector.multi_reduction <maximumf>, %552, %cst_317 [1] : vector<8x8xf32> to vector<8xf32>
    %554 = vector.shape_cast %553 : vector<8xf32> to vector<8x1xf32>
    %555 = vector.broadcast %554 : vector<8x1xf32> to vector<8x8xf32>
    %556 = arith.subf %552, %555 : vector<8x8xf32>
    %557 = math.exp %556 : vector<8x8xf32>
    %cst_318 = arith.constant dense<0.000000e+00> : vector<8xf32>
    %558 = vector.multi_reduction <add>, %557, %cst_318 [1] : vector<8x8xf32> to vector<8xf32>
    %559 = vector.shape_cast %558 : vector<8xf32> to vector<8x1xf32>
    %560 = tpu.reciprocal %559 {approx = true} : vector<8x1xf32> -> vector<8x1xf32>
    %561 = vector.broadcast %560 : vector<8x1xf32> to vector<8x8xf32>
    %562 = arith.mulf %557, %561 : vector<8x8xf32>
    %cst_319 = arith.constant dense<0.000000e+00> : vector<8x32xf32>
    %563 = tpu.matmul %562, %545, %cst_319 {dimension_numbers = #tpu.dot_dimension_numbers<[1], [0], [0], [1], [0, 0, 1, 1], [], []>} : vector<8x8xf32>, vector<8x32xf32>, vector<8x32xf32> -> vector<8x32xf32>
    %564 = vector.extract_strided_slice %528 {offsets = [8, 0], sizes = [8, 32], strides = [1, 1]} : vector<16x32xf32> to vector<8x32xf32>
    %565 = vector.extract_strided_slice %535 {offsets = [8, 0], sizes = [8, 32], strides = [1, 1]} : vector<16x32xf32> to vector<8x32xf32>
    %566 = vector.extract_strided_slice %542 {offsets = [8, 0], sizes = [8, 32], strides = [1, 1]} : vector<16x32xf32> to vector<8x32xf32>
    %cst_320 = arith.constant dense<0.000000e+00> : vector<8x8xf32>
    %567 = tpu.matmul %564, %565, %cst_320 {dimension_numbers = #tpu.dot_dimension_numbers<[1], [1], [0], [0], [0, 0, 1, 0], [], []>} : vector<8x32xf32>, vector<8x32xf32>, vector<8x8xf32> -> vector<8x8xf32>
    %cst_321 = arith.constant 0.176776692 : f32
    %568 = vector.broadcast %cst_321 : f32 to vector<8x8xf32>
    %569 = arith.mulf %567, %568 : vector<8x8xf32>
    %c1_322 = arith.constant 1 : index
    %c0_323 = arith.constant 0 : index
    %c0_324 = arith.constant 0 : index
    %570 = vector.load %arg6[%c1_322, %c0_323, %c0_324] : memref<2x1x8xf32, #tpu.memory_space<vmem>>, vector<1x1x8xf32>
    %571 = vector.shape_cast %570 : vector<1x1x8xf32> to vector<1x8xf32>
    %572 = vector.broadcast %571 : vector<1x8xf32> to vector<8x8xf32>
    %573 = arith.addf %569, %572 : vector<8x8xf32>
    %cst_325 = arith.constant dense<0xFF800000> : vector<8xf32>
    %574 = vector.multi_reduction <maximumf>, %573, %cst_325 [1] : vector<8x8xf32> to vector<8xf32>
    %575 = vector.shape_cast %574 : vector<8xf32> to vector<8x1xf32>
    %576 = vector.broadcast %575 : vector<8x1xf32> to vector<8x8xf32>
    %577 = arith.subf %573, %576 : vector<8x8xf32>
    %578 = math.exp %577 : vector<8x8xf32>
    %cst_326 = arith.constant dense<0.000000e+00> : vector<8xf32>
    %579 = vector.multi_reduction <add>, %578, %cst_326 [1] : vector<8x8xf32> to vector<8xf32>
    %580 = vector.shape_cast %579 : vector<8xf32> to vector<8x1xf32>
    %581 = tpu.reciprocal %580 {approx = true} : vector<8x1xf32> -> vector<8x1xf32>
    %582 = vector.broadcast %581 : vector<8x1xf32> to vector<8x8xf32>
    %583 = arith.mulf %578, %582 : vector<8x8xf32>
    %cst_327 = arith.constant dense<0.000000e+00> : vector<8x32xf32>
    %584 = tpu.matmul %583, %566, %cst_327 {dimension_numbers = #tpu.dot_dimension_numbers<[1], [0], [0], [1], [0, 0, 1, 1], [], []>} : vector<8x8xf32>, vector<8x32xf32>, vector<8x32xf32> -> vector<8x32xf32>
    %585 = tpu.concatenate %563, %584 in 0 : vector<8x32xf32>, vector<8x32xf32> -> vector<16x32xf32>
    %c7 = arith.constant 7 : index
    %c0_328 = arith.constant 0 : index
    %c0_329 = arith.constant 0 : index
    %586 = vector.load %arg7[%c7, %c0_328, %c0_329] : memref<8x128x32xbf16, #tpu.memory_space<vmem>>, vector<1x128x32xbf16>
    %587 = vector.shape_cast %586 : vector<1x128x32xbf16> to vector<128x32xbf16>
    %cst_330 = arith.constant dense<0.000000e+00> : vector<16x32xf32>
    %588 = tpu.matmul %393, %587, %cst_330 {dimension_numbers = #tpu.dot_dimension_numbers<[1], [0], [0], [1], [0, 0, 1, 1], [], []>} : vector<16x128xbf16>, vector<128x32xbf16>, vector<16x32xf32> -> vector<16x32xf32>
    %c7_331 = arith.constant 7 : index
    %c0_332 = arith.constant 0 : index
    %c0_333 = arith.constant 0 : index
    %589 = vector.load %arg8[%c7_331, %c0_332, %c0_333] : memref<8x1x32xf32, #tpu.memory_space<vmem>>, vector<1x1x32xf32>
    %590 = vector.shape_cast %589 : vector<1x1x32xf32> to vector<1x32xf32>
    %591 = vector.broadcast %590 : vector<1x32xf32> to vector<16x32xf32>
    %592 = arith.addf %588, %591 : vector<16x32xf32>
    %c7_334 = arith.constant 7 : index
    %c0_335 = arith.constant 0 : index
    %c0_336 = arith.constant 0 : index
    %593 = vector.load %arg9[%c7_334, %c0_335, %c0_336] : memref<8x128x32xbf16, #tpu.memory_space<vmem>>, vector<1x128x32xbf16>
    %594 = vector.shape_cast %593 : vector<1x128x32xbf16> to vector<128x32xbf16>
    %cst_337 = arith.constant dense<0.000000e+00> : vector<16x32xf32>
    %595 = tpu.matmul %393, %594, %cst_337 {dimension_numbers = #tpu.dot_dimension_numbers<[1], [0], [0], [1], [0, 0, 1, 1], [], []>} : vector<16x128xbf16>, vector<128x32xbf16>, vector<16x32xf32> -> vector<16x32xf32>
    %c7_338 = arith.constant 7 : index
    %c0_339 = arith.constant 0 : index
    %c0_340 = arith.constant 0 : index
    %596 = vector.load %arg10[%c7_338, %c0_339, %c0_340] : memref<8x1x32xf32, #tpu.memory_space<vmem>>, vector<1x1x32xf32>
    %597 = vector.shape_cast %596 : vector<1x1x32xf32> to vector<1x32xf32>
    %598 = vector.broadcast %597 : vector<1x32xf32> to vector<16x32xf32>
    %599 = arith.addf %595, %598 : vector<16x32xf32>
    %c7_341 = arith.constant 7 : index
    %c0_342 = arith.constant 0 : index
    %c0_343 = arith.constant 0 : index
    %600 = vector.load %arg11[%c7_341, %c0_342, %c0_343] : memref<8x128x32xbf16, #tpu.memory_space<vmem>>, vector<1x128x32xbf16>
    %601 = vector.shape_cast %600 : vector<1x128x32xbf16> to vector<128x32xbf16>
    %cst_344 = arith.constant dense<0.000000e+00> : vector<16x32xf32>
    %602 = tpu.matmul %393, %601, %cst_344 {dimension_numbers = #tpu.dot_dimension_numbers<[1], [0], [0], [1], [0, 0, 1, 1], [], []>} : vector<16x128xbf16>, vector<128x32xbf16>, vector<16x32xf32> -> vector<16x32xf32>
    %c7_345 = arith.constant 7 : index
    %c0_346 = arith.constant 0 : index
    %c0_347 = arith.constant 0 : index
    %603 = vector.load %arg12[%c7_345, %c0_346, %c0_347] : memref<8x1x32xf32, #tpu.memory_space<vmem>>, vector<1x1x32xf32>
    %604 = vector.shape_cast %603 : vector<1x1x32xf32> to vector<1x32xf32>
    %605 = vector.broadcast %604 : vector<1x32xf32> to vector<16x32xf32>
    %606 = arith.addf %602, %605 : vector<16x32xf32>
    %607 = vector.extract_strided_slice %592 {offsets = [0, 0], sizes = [8, 32], strides = [1, 1]} : vector<16x32xf32> to vector<8x32xf32>
    %608 = vector.extract_strided_slice %599 {offsets = [0, 0], sizes = [8, 32], strides = [1, 1]} : vector<16x32xf32> to vector<8x32xf32>
    %609 = vector.extract_strided_slice %606 {offsets = [0, 0], sizes = [8, 32], strides = [1, 1]} : vector<16x32xf32> to vector<8x32xf32>
    %cst_348 = arith.constant dense<0.000000e+00> : vector<8x8xf32>
    %610 = tpu.matmul %607, %608, %cst_348 {dimension_numbers = #tpu.dot_dimension_numbers<[1], [1], [0], [0], [0, 0, 1, 0], [], []>} : vector<8x32xf32>, vector<8x32xf32>, vector<8x8xf32> -> vector<8x8xf32>
    %cst_349 = arith.constant 0.176776692 : f32
    %611 = vector.broadcast %cst_349 : f32 to vector<8x8xf32>
    %612 = arith.mulf %610, %611 : vector<8x8xf32>
    %c0_350 = arith.constant 0 : index
    %c0_351 = arith.constant 0 : index
    %c0_352 = arith.constant 0 : index
    %613 = vector.load %arg6[%c0_350, %c0_351, %c0_352] : memref<2x1x8xf32, #tpu.memory_space<vmem>>, vector<1x1x8xf32>
    %614 = vector.shape_cast %613 : vector<1x1x8xf32> to vector<1x8xf32>
    %615 = vector.broadcast %614 : vector<1x8xf32> to vector<8x8xf32>
    %616 = arith.addf %612, %615 : vector<8x8xf32>
    %cst_353 = arith.constant dense<0xFF800000> : vector<8xf32>
    %617 = vector.multi_reduction <maximumf>, %616, %cst_353 [1] : vector<8x8xf32> to vector<8xf32>
    %618 = vector.shape_cast %617 : vector<8xf32> to vector<8x1xf32>
    %619 = vector.broadcast %618 : vector<8x1xf32> to vector<8x8xf32>
    %620 = arith.subf %616, %619 : vector<8x8xf32>
    %621 = math.exp %620 : vector<8x8xf32>
    %cst_354 = arith.constant dense<0.000000e+00> : vector<8xf32>
    %622 = vector.multi_reduction <add>, %621, %cst_354 [1] : vector<8x8xf32> to vector<8xf32>
    %623 = vector.shape_cast %622 : vector<8xf32> to vector<8x1xf32>
    %624 = tpu.reciprocal %623 {approx = true} : vector<8x1xf32> -> vector<8x1xf32>
    %625 = vector.broadcast %624 : vector<8x1xf32> to vector<8x8xf32>
    %626 = arith.mulf %621, %625 : vector<8x8xf32>
    %cst_355 = arith.constant dense<0.000000e+00> : vector<8x32xf32>
    %627 = tpu.matmul %626, %609, %cst_355 {dimension_numbers = #tpu.dot_dimension_numbers<[1], [0], [0], [1], [0, 0, 1, 1], [], []>} : vector<8x8xf32>, vector<8x32xf32>, vector<8x32xf32> -> vector<8x32xf32>
    %628 = vector.extract_strided_slice %592 {offsets = [8, 0], sizes = [8, 32], strides = [1, 1]} : vector<16x32xf32> to vector<8x32xf32>
    %629 = vector.extract_strided_slice %599 {offsets = [8, 0], sizes = [8, 32], strides = [1, 1]} : vector<16x32xf32> to vector<8x32xf32>
    %630 = vector.extract_strided_slice %606 {offsets = [8, 0], sizes = [8, 32], strides = [1, 1]} : vector<16x32xf32> to vector<8x32xf32>
    %cst_356 = arith.constant dense<0.000000e+00> : vector<8x8xf32>
    %631 = tpu.matmul %628, %629, %cst_356 {dimension_numbers = #tpu.dot_dimension_numbers<[1], [1], [0], [0], [0, 0, 1, 0], [], []>} : vector<8x32xf32>, vector<8x32xf32>, vector<8x8xf32> -> vector<8x8xf32>
    %cst_357 = arith.constant 0.176776692 : f32
    %632 = vector.broadcast %cst_357 : f32 to vector<8x8xf32>
    %633 = arith.mulf %631, %632 : vector<8x8xf32>
    %c1_358 = arith.constant 1 : index
    %c0_359 = arith.constant 0 : index
    %c0_360 = arith.constant 0 : index
    %634 = vector.load %arg6[%c1_358, %c0_359, %c0_360] : memref<2x1x8xf32, #tpu.memory_space<vmem>>, vector<1x1x8xf32>
    %635 = vector.shape_cast %634 : vector<1x1x8xf32> to vector<1x8xf32>
    %636 = vector.broadcast %635 : vector<1x8xf32> to vector<8x8xf32>
    %637 = arith.addf %633, %636 : vector<8x8xf32>
    %cst_361 = arith.constant dense<0xFF800000> : vector<8xf32>
    %638 = vector.multi_reduction <maximumf>, %637, %cst_361 [1] : vector<8x8xf32> to vector<8xf32>
    %639 = vector.shape_cast %638 : vector<8xf32> to vector<8x1xf32>
    %640 = vector.broadcast %639 : vector<8x1xf32> to vector<8x8xf32>
    %641 = arith.subf %637, %640 : vector<8x8xf32>
    %642 = math.exp %641 : vector<8x8xf32>
    %cst_362 = arith.constant dense<0.000000e+00> : vector<8xf32>
    %643 = vector.multi_reduction <add>, %642, %cst_362 [1] : vector<8x8xf32> to vector<8xf32>
    %644 = vector.shape_cast %643 : vector<8xf32> to vector<8x1xf32>
    %645 = tpu.reciprocal %644 {approx = true} : vector<8x1xf32> -> vector<8x1xf32>
    %646 = vector.broadcast %645 : vector<8x1xf32> to vector<8x8xf32>
    %647 = arith.mulf %642, %646 : vector<8x8xf32>
    %cst_363 = arith.constant dense<0.000000e+00> : vector<8x32xf32>
    %648 = tpu.matmul %647, %630, %cst_363 {dimension_numbers = #tpu.dot_dimension_numbers<[1], [0], [0], [1], [0, 0, 1, 1], [], []>} : vector<8x8xf32>, vector<8x32xf32>, vector<8x32xf32> -> vector<8x32xf32>
    %649 = tpu.concatenate %627, %648 in 0 : vector<8x32xf32>, vector<8x32xf32> -> vector<16x32xf32>
    %650 = tpu.concatenate %457, %521, %585, %649 in 1 : vector<16x32xf32>, vector<16x32xf32>, vector<16x32xf32>, vector<16x32xf32> -> vector<16x128xf32>
    %651 = arith.truncf %650 : vector<16x128xf32> to vector<16x128xbf16>
    %c1_364 = arith.constant 1 : index
    %c0_365 = arith.constant 0 : index
    %c0_366 = arith.constant 0 : index
    %652 = vector.load %arg13[%c1_364, %c0_365, %c0_366] : memref<2x128x128xbf16, #tpu.memory_space<vmem>>, vector<1x128x128xbf16>
    %653 = vector.shape_cast %652 : vector<1x128x128xbf16> to vector<128x128xbf16>
    %cst_367 = arith.constant dense<0.000000e+00> : vector<16x128xf32>
    %654 = tpu.matmul %651, %653, %cst_367 {dimension_numbers = #tpu.dot_dimension_numbers<[1], [0], [0], [1], [0, 0, 1, 1], [], []>} : vector<16x128xbf16>, vector<128x128xbf16>, vector<16x128xf32> -> vector<16x128xf32>
    %c1_368 = arith.constant 1 : index
    %c0_369 = arith.constant 0 : index
    %c0_370 = arith.constant 0 : index
    %655 = vector.load %arg14[%c1_368, %c0_369, %c0_370] : memref<2x1x128xf32, #tpu.memory_space<vmem>>, vector<1x1x128xf32>
    %656 = vector.shape_cast %655 : vector<1x1x128xf32> to vector<1x128xf32>
    %657 = vector.broadcast %656 : vector<1x128xf32> to vector<16x128xf32>
    %658 = arith.addf %654, %657 : vector<16x128xf32>
    %659 = arith.addf %658, %392 : vector<16x128xf32>
    %c1_371 = arith.constant 1 : index
    %c0_372 = arith.constant 0 : index
    %c0_373 = arith.constant 0 : index
    %660 = vector.load %arg15[%c1_371, %c0_372, %c0_373] : memref<2x1x128xf32, #tpu.memory_space<vmem>>, vector<1x1x128xf32>
    %661 = vector.shape_cast %660 : vector<1x1x128xf32> to vector<1x128xf32>
    %c1_374 = arith.constant 1 : index
    %c0_375 = arith.constant 0 : index
    %c0_376 = arith.constant 0 : index
    %662 = vector.load %arg16[%c1_374, %c0_375, %c0_376] : memref<2x1x128xf32, #tpu.memory_space<vmem>>, vector<1x1x128xf32>
    %663 = vector.shape_cast %662 : vector<1x1x128xf32> to vector<1x128xf32>
    %cst_377 = arith.constant dense<0.000000e+00> : vector<16xf32>
    %664 = vector.multi_reduction <add>, %659, %cst_377 [1] : vector<16x128xf32> to vector<16xf32>
    %665 = vector.shape_cast %664 : vector<16xf32> to vector<16x1xf32>
    %cst_378 = arith.constant 1.280000e+02 : f32
    %666 = vector.broadcast %cst_378 : f32 to vector<16x1xf32>
    %667 = arith.divf %665, %666 : vector<16x1xf32>
    %668 = vector.broadcast %667 : vector<16x1xf32> to vector<16x128xf32>
    %669 = arith.subf %659, %668 : vector<16x128xf32>
    %670 = arith.mulf %669, %669 : vector<16x128xf32>
    %cst_379 = arith.constant dense<0.000000e+00> : vector<16xf32>
    %671 = vector.multi_reduction <add>, %670, %cst_379 [1] : vector<16x128xf32> to vector<16xf32>
    %672 = vector.shape_cast %671 : vector<16xf32> to vector<16x1xf32>
    %cst_380 = arith.constant 1.280000e+02 : f32
    %673 = vector.broadcast %cst_380 : f32 to vector<16x1xf32>
    %674 = arith.divf %672, %673 : vector<16x1xf32>
    %cst_381 = arith.constant 9.99999996E-13 : f32
    %675 = vector.broadcast %cst_381 : f32 to vector<16x1xf32>
    %676 = arith.addf %674, %675 : vector<16x1xf32>
    %677 = math.rsqrt %676 : vector<16x1xf32>
    %678 = vector.broadcast %677 : vector<16x1xf32> to vector<16x128xf32>
    %679 = arith.mulf %669, %678 : vector<16x128xf32>
    %680 = vector.broadcast %661 : vector<1x128xf32> to vector<16x128xf32>
    %681 = arith.mulf %679, %680 : vector<16x128xf32>
    %682 = vector.broadcast %663 : vector<1x128xf32> to vector<16x128xf32>
    %683 = arith.addf %681, %682 : vector<16x128xf32>
    %684 = arith.truncf %683 : vector<16x128xf32> to vector<16x128xbf16>
    %c1_382 = arith.constant 1 : index
    %c0_383 = arith.constant 0 : index
    %c0_384 = arith.constant 0 : index
    %685 = vector.load %arg17[%c1_382, %c0_383, %c0_384] : memref<2x128x512xbf16, #tpu.memory_space<vmem>>, vector<1x128x512xbf16>
    %686 = vector.shape_cast %685 : vector<1x128x512xbf16> to vector<128x512xbf16>
    %cst_385 = arith.constant dense<0.000000e+00> : vector<16x512xf32>
    %687 = tpu.matmul %684, %686, %cst_385 {dimension_numbers = #tpu.dot_dimension_numbers<[1], [0], [0], [1], [0, 0, 1, 1], [], []>} : vector<16x128xbf16>, vector<128x512xbf16>, vector<16x512xf32> -> vector<16x512xf32>
    %c1_386 = arith.constant 1 : index
    %c0_387 = arith.constant 0 : index
    %c0_388 = arith.constant 0 : index
    %688 = vector.load %arg18[%c1_386, %c0_387, %c0_388] : memref<2x1x512xf32, #tpu.memory_space<vmem>>, vector<1x1x512xf32>
    %689 = vector.shape_cast %688 : vector<1x1x512xf32> to vector<1x512xf32>
    %690 = vector.broadcast %689 : vector<1x512xf32> to vector<16x512xf32>
    %691 = arith.addf %687, %690 : vector<16x512xf32>
    %cst_389 = arith.constant 5.000000e-01 : f32
    %692 = vector.broadcast %cst_389 : f32 to vector<16x512xf32>
    %693 = arith.mulf %692, %691 : vector<16x512xf32>
    %cst_390 = arith.constant 4.471500e-02 : f32
    %694 = vector.broadcast %cst_390 : f32 to vector<16x512xf32>
    %695 = arith.mulf %694, %691 : vector<16x512xf32>
    %696 = arith.mulf %695, %691 : vector<16x512xf32>
    %697 = arith.mulf %696, %691 : vector<16x512xf32>
    %698 = arith.addf %691, %697 : vector<16x512xf32>
    %cst_391 = arith.constant 0.797884583 : f32
    %699 = vector.broadcast %cst_391 : f32 to vector<16x512xf32>
    %700 = arith.mulf %699, %698 : vector<16x512xf32>
    %701 = math.tanh %700 : vector<16x512xf32>
    %cst_392 = arith.constant 1.000000e+00 : f32
    %702 = vector.broadcast %cst_392 : f32 to vector<16x512xf32>
    %703 = arith.addf %702, %701 : vector<16x512xf32>
    %704 = arith.mulf %693, %703 : vector<16x512xf32>
    %705 = arith.truncf %704 : vector<16x512xf32> to vector<16x512xbf16>
    %c1_393 = arith.constant 1 : index
    %c0_394 = arith.constant 0 : index
    %c0_395 = arith.constant 0 : index
    %706 = vector.load %arg19[%c1_393, %c0_394, %c0_395] : memref<2x512x128xbf16, #tpu.memory_space<vmem>>, vector<1x512x128xbf16>
    %707 = vector.shape_cast %706 : vector<1x512x128xbf16> to vector<512x128xbf16>
    %cst_396 = arith.constant dense<0.000000e+00> : vector<16x128xf32>
    %708 = tpu.matmul %705, %707, %cst_396 {dimension_numbers = #tpu.dot_dimension_numbers<[1], [0], [0], [1], [0, 0, 1, 1], [], []>} : vector<16x512xbf16>, vector<512x128xbf16>, vector<16x128xf32> -> vector<16x128xf32>
    %c1_397 = arith.constant 1 : index
    %c0_398 = arith.constant 0 : index
    %c0_399 = arith.constant 0 : index
    %709 = vector.load %arg20[%c1_397, %c0_398, %c0_399] : memref<2x1x128xf32, #tpu.memory_space<vmem>>, vector<1x1x128xf32>
    %710 = vector.shape_cast %709 : vector<1x1x128xf32> to vector<1x128xf32>
    %711 = vector.broadcast %710 : vector<1x128xf32> to vector<16x128xf32>
    %712 = arith.addf %708, %711 : vector<16x128xf32>
    %713 = arith.truncf %712 : vector<16x128xf32> to vector<16x128xbf16>
    %c1_400 = arith.constant 1 : index
    %c0_401 = arith.constant 0 : index
    %c0_402 = arith.constant 0 : index
    %714 = vector.load %arg21[%c1_400, %c0_401, %c0_402] : memref<2x128x8xbf16, #tpu.memory_space<vmem>>, vector<1x128x8xbf16>
    %715 = vector.shape_cast %714 : vector<1x128x8xbf16> to vector<128x8xbf16>
    %cst_403 = arith.constant dense<0.000000e+00> : vector<16x8xf32>
    %716 = tpu.matmul %713, %715, %cst_403 {dimension_numbers = #tpu.dot_dimension_numbers<[1], [0], [0], [1], [0, 0, 1, 1], [], []>} : vector<16x128xbf16>, vector<128x8xbf16>, vector<16x8xf32> -> vector<16x8xf32>
    %c1_404 = arith.constant 1 : index
    %c0_405 = arith.constant 0 : index
    %c0_406 = arith.constant 0 : index
    %717 = vector.load %arg22[%c1_404, %c0_405, %c0_406] : memref<2x1x8xf32, #tpu.memory_space<vmem>>, vector<1x1x8xf32>
    %718 = vector.shape_cast %717 : vector<1x1x8xf32> to vector<1x8xf32>
    %719 = vector.broadcast %718 : vector<1x8xf32> to vector<16x8xf32>
    %720 = arith.addf %716, %719 : vector<16x8xf32>
    %cst_407 = arith.constant 0.000000e+00 : f32
    %721 = vector.broadcast %cst_407 : f32 to vector<16x8xf32>
    %722 = arith.maximumf %720, %721 : vector<16x8xf32>
    %723 = arith.truncf %722 : vector<16x8xf32> to vector<16x8xbf16>
    %c1_408 = arith.constant 1 : index
    %c0_409 = arith.constant 0 : index
    %c0_410 = arith.constant 0 : index
    %724 = vector.load %arg23[%c1_408, %c0_409, %c0_410] : memref<2x8x128xbf16, #tpu.memory_space<vmem>>, vector<1x8x128xbf16>
    %725 = vector.shape_cast %724 : vector<1x8x128xbf16> to vector<8x128xbf16>
    %cst_411 = arith.constant dense<0.000000e+00> : vector<16x128xf32>
    %726 = tpu.matmul %723, %725, %cst_411 {dimension_numbers = #tpu.dot_dimension_numbers<[1], [0], [0], [1], [0, 0, 1, 1], [], []>} : vector<16x8xbf16>, vector<8x128xbf16>, vector<16x128xf32> -> vector<16x128xf32>
    %c1_412 = arith.constant 1 : index
    %c0_413 = arith.constant 0 : index
    %c0_414 = arith.constant 0 : index
    %727 = vector.load %arg24[%c1_412, %c0_413, %c0_414] : memref<2x1x128xf32, #tpu.memory_space<vmem>>, vector<1x1x128xf32>
    %728 = vector.shape_cast %727 : vector<1x1x128xf32> to vector<1x128xf32>
    %729 = vector.broadcast %728 : vector<1x128xf32> to vector<16x128xf32>
    %730 = arith.addf %726, %729 : vector<16x128xf32>
    %731 = arith.addf %712, %730 : vector<16x128xf32>
    %732 = arith.addf %731, %683 : vector<16x128xf32>
    %c1_415 = arith.constant 1 : index
    %c0_416 = arith.constant 0 : index
    %c0_417 = arith.constant 0 : index
    %733 = vector.load %arg25[%c1_415, %c0_416, %c0_417] : memref<2x1x128xf32, #tpu.memory_space<vmem>>, vector<1x1x128xf32>
    %734 = vector.shape_cast %733 : vector<1x1x128xf32> to vector<1x128xf32>
    %c1_418 = arith.constant 1 : index
    %c0_419 = arith.constant 0 : index
    %c0_420 = arith.constant 0 : index
    %735 = vector.load %arg26[%c1_418, %c0_419, %c0_420] : memref<2x1x128xf32, #tpu.memory_space<vmem>>, vector<1x1x128xf32>
    %736 = vector.shape_cast %735 : vector<1x1x128xf32> to vector<1x128xf32>
    %cst_421 = arith.constant dense<0.000000e+00> : vector<16xf32>
    %737 = vector.multi_reduction <add>, %732, %cst_421 [1] : vector<16x128xf32> to vector<16xf32>
    %738 = vector.shape_cast %737 : vector<16xf32> to vector<16x1xf32>
    %cst_422 = arith.constant 1.280000e+02 : f32
    %739 = vector.broadcast %cst_422 : f32 to vector<16x1xf32>
    %740 = arith.divf %738, %739 : vector<16x1xf32>
    %741 = vector.broadcast %740 : vector<16x1xf32> to vector<16x128xf32>
    %742 = arith.subf %732, %741 : vector<16x128xf32>
    %743 = arith.mulf %742, %742 : vector<16x128xf32>
    %cst_423 = arith.constant dense<0.000000e+00> : vector<16xf32>
    %744 = vector.multi_reduction <add>, %743, %cst_423 [1] : vector<16x128xf32> to vector<16xf32>
    %745 = vector.shape_cast %744 : vector<16xf32> to vector<16x1xf32>
    %cst_424 = arith.constant 1.280000e+02 : f32
    %746 = vector.broadcast %cst_424 : f32 to vector<16x1xf32>
    %747 = arith.divf %745, %746 : vector<16x1xf32>
    %cst_425 = arith.constant 9.99999996E-13 : f32
    %748 = vector.broadcast %cst_425 : f32 to vector<16x1xf32>
    %749 = arith.addf %747, %748 : vector<16x1xf32>
    %750 = math.rsqrt %749 : vector<16x1xf32>
    %751 = vector.broadcast %750 : vector<16x1xf32> to vector<16x128xf32>
    %752 = arith.mulf %742, %751 : vector<16x128xf32>
    %753 = vector.broadcast %734 : vector<1x128xf32> to vector<16x128xf32>
    %754 = arith.mulf %752, %753 : vector<16x128xf32>
    %755 = vector.broadcast %736 : vector<1x128xf32> to vector<16x128xf32>
    %756 = arith.addf %754, %755 : vector<16x128xf32>
    %757 = vector.extract_strided_slice %756 {offsets = [0, 0], sizes = [1, 128], strides = [1, 1]} : vector<16x128xf32> to vector<1x128xf32>
    %758 = vector.extract_strided_slice %756 {offsets = [8, 0], sizes = [1, 128], strides = [1, 1]} : vector<16x128xf32> to vector<1x128xf32>
    %cst_426 = arith.constant 0.000000e+00 : f32
    %759 = vector.broadcast %cst_426 : f32 to vector<6x128xf32>
    %760 = tpu.concatenate %757, %758, %759 in 0 : vector<1x128xf32>, vector<1x128xf32>, vector<6x128xf32> -> vector<8x128xf32>
    %761 = arith.truncf %760 : vector<8x128xf32> to vector<8x128xbf16>
    %c0_427 = arith.constant 0 : index
    %c0_428 = arith.constant 0 : index
    %762 = vector.load %arg27[%c0_427, %c0_428] : memref<128x128xbf16, #tpu.memory_space<vmem>>, vector<128x128xbf16>
    %cst_429 = arith.constant dense<0.000000e+00> : vector<8x128xf32>
    %763 = tpu.matmul %761, %762, %cst_429 {dimension_numbers = #tpu.dot_dimension_numbers<[1], [0], [0], [1], [0, 0, 1, 1], [], []>} : vector<8x128xbf16>, vector<128x128xbf16>, vector<8x128xf32> -> vector<8x128xf32>
    %c0_430 = arith.constant 0 : index
    %c0_431 = arith.constant 0 : index
    %764 = vector.load %arg28[%c0_430, %c0_431] : memref<1x128xf32, #tpu.memory_space<vmem>>, vector<1x128xf32>
    %765 = vector.broadcast %764 : vector<1x128xf32> to vector<8x128xf32>
    %766 = arith.addf %763, %765 : vector<8x128xf32>
    %c0_432 = arith.constant 0 : index
    %c0_433 = arith.constant 0 : index
    %767 = vector.load %arg29[%c0_432, %c0_433] : memref<8x128xf32, #tpu.memory_space<vmem>>, vector<8x128xf32>
    tpu.vector_store %arg29[%c0_432, %c0_433], %766 {strides = array<i32>} : memref<8x128xf32, #tpu.memory_space<vmem>>, vector<8x128xf32>,
    return
  }
  func.func @transform_0(%arg0: i32) -> (i32, i32) {
    %c0_i32 = arith.constant 0 : i32
    %c0_i32_0 = arith.constant 0 : i32
    %c0_i32_1 = arith.constant 0 : i32
    return %c0_i32, %c0_i32_0 : i32, i32
  }
  func.func @transform_1(%arg0: i32) -> (i32, i32) {
    %c0_i32 = arith.constant 0 : i32
    %c0_i32_0 = arith.constant 0 : i32
    %c0_i32_1 = arith.constant 0 : i32
    return %c0_i32, %c0_i32_0 : i32, i32
  }
  func.func @transform_2(%arg0: i32) -> (i32, i32) {
    %c0_i32 = arith.constant 0 : i32
    %c0_i32_0 = arith.constant 0 : i32
    %c0_i32_1 = arith.constant 0 : i32
    return %c0_i32, %c0_i32_0 : i32, i32
  }
  func.func @transform_3(%arg0: i32) -> (i32, i32) {
    %c0_i32 = arith.constant 0 : i32
    %c0_i32_0 = arith.constant 0 : i32
    %c0_i32_1 = arith.constant 0 : i32
    return %c0_i32, %c0_i32_0 : i32, i32
  }
  func.func @transform_4(%arg0: i32) -> (i32, i32) {
    %c0_i32 = arith.constant 0 : i32
    %c0_i32_0 = arith.constant 0 : i32
    %c0_i32_1 = arith.constant 0 : i32
    return %c0_i32, %c0_i32_0 : i32, i32
  }
  func.func @transform_5(%arg0: i32) -> (i32, i32, i32) {
    %c0_i32 = arith.constant 0 : i32
    %c0_i32_0 = arith.constant 0 : i32
    %c0_i32_1 = arith.constant 0 : i32
    %c0_i32_2 = arith.constant 0 : i32
    return %c0_i32, %c0_i32_0, %c0_i32_1 : i32, i32, i32
  }
  func.func @transform_6(%arg0: i32) -> (i32, i32, i32) {
    %c0_i32 = arith.constant 0 : i32
    %c0_i32_0 = arith.constant 0 : i32
    %c0_i32_1 = arith.constant 0 : i32
    %c0_i32_2 = arith.constant 0 : i32
    return %c0_i32, %c0_i32_0, %c0_i32_1 : i32, i32, i32
  }
  func.func @transform_7(%arg0: i32) -> (i32, i32, i32) {
    %c0_i32 = arith.constant 0 : i32
    %c0_i32_0 = arith.constant 0 : i32
    %c0_i32_1 = arith.constant 0 : i32
    %c0_i32_2 = arith.constant 0 : i32
    return %c0_i32, %c0_i32_0, %c0_i32_1 : i32, i32, i32
  }
  func.func @transform_8(%arg0: i32) -> (i32, i32, i32) {
    %c0_i32 = arith.constant 0 : i32
    %c0_i32_0 = arith.constant 0 : i32
    %c0_i32_1 = arith.constant 0 : i32
    %c0_i32_2 = arith.constant 0 : i32
    return %c0_i32, %c0_i32_0, %c0_i32_1 : i32, i32, i32
  }
  func.func @transform_9(%arg0: i32) -> (i32, i32, i32) {
    %c0_i32 = arith.constant 0 : i32
    %c0_i32_0 = arith.constant 0 : i32
    %c0_i32_1 = arith.constant 0 : i32
    %c0_i32_2 = arith.constant 0 : i32
    return %c0_i32, %c0_i32_0, %c0_i32_1 : i32, i32, i32
  }
  func.func @transform_10(%arg0: i32) -> (i32, i32, i32) {
    %c0_i32 = arith.constant 0 : i32
    %c0_i32_0 = arith.constant 0 : i32
    %c0_i32_1 = arith.constant 0 : i32
    %c0_i32_2 = arith.constant 0 : i32
    return %c0_i32, %c0_i32_0, %c0_i32_1 : i32, i32, i32
  }
  func.func @transform_11(%arg0: i32) -> (i32, i32, i32) {
    %c0_i32 = arith.constant 0 : i32
    %c0_i32_0 = arith.constant 0 : i32
    %c0_i32_1 = arith.constant 0 : i32
    %c0_i32_2 = arith.constant 0 : i32
    return %c0_i32, %c0_i32_0, %c0_i32_1 : i32, i32, i32
  }
  func.func @transform_12(%arg0: i32) -> (i32, i32, i32) {
    %c0_i32 = arith.constant 0 : i32
    %c0_i32_0 = arith.constant 0 : i32
    %c0_i32_1 = arith.constant 0 : i32
    %c0_i32_2 = arith.constant 0 : i32
    return %c0_i32, %c0_i32_0, %c0_i32_1 : i32, i32, i32
  }
  func.func @transform_13(%arg0: i32) -> (i32, i32, i32) {
    %c0_i32 = arith.constant 0 : i32
    %c0_i32_0 = arith.constant 0 : i32
    %c0_i32_1 = arith.constant 0 : i32
    %c0_i32_2 = arith.constant 0 : i32
    return %c0_i32, %c0_i32_0, %c0_i32_1 : i32, i32, i32
  }
  func.func @transform_14(%arg0: i32) -> (i32, i32, i32) {
    %c0_i32 = arith.constant 0 : i32
    %c0_i32_0 = arith.constant 0 : i32
    %c0_i32_1 = arith.constant 0 : i32
    %c0_i32_2 = arith.constant 0 : i32
    return %c0_i32, %c0_i32_0, %c0_i32_1 : i32, i32, i32
  }
  func.func @transform_15(%arg0: i32) -> (i32, i32, i32) {
    %c0_i32 = arith.constant 0 : i32
    %c0_i32_0 = arith.constant 0 : i32
    %c0_i32_1 = arith.constant 0 : i32
    %c0_i32_2 = arith.constant 0 : i32
    return %c0_i32, %c0_i32_0, %c0_i32_1 : i32, i32, i32
  }
  func.func @transform_16(%arg0: i32) -> (i32, i32, i32) {
    %c0_i32 = arith.constant 0 : i32
    %c0_i32_0 = arith.constant 0 : i32
    %c0_i32_1 = arith.constant 0 : i32
    %c0_i32_2 = arith.constant 0 : i32
    return %c0_i32, %c0_i32_0, %c0_i32_1 : i32, i32, i32
  }
  func.func @transform_17(%arg0: i32) -> (i32, i32, i32) {
    %c0_i32 = arith.constant 0 : i32
    %c0_i32_0 = arith.constant 0 : i32
    %c0_i32_1 = arith.constant 0 : i32
    %c0_i32_2 = arith.constant 0 : i32
    return %c0_i32, %c0_i32_0, %c0_i32_1 : i32, i32, i32
  }
  func.func @transform_18(%arg0: i32) -> (i32, i32, i32) {
    %c0_i32 = arith.constant 0 : i32
    %c0_i32_0 = arith.constant 0 : i32
    %c0_i32_1 = arith.constant 0 : i32
    %c0_i32_2 = arith.constant 0 : i32
    return %c0_i32, %c0_i32_0, %c0_i32_1 : i32, i32, i32
  }
  func.func @transform_19(%arg0: i32) -> (i32, i32, i32) {
    %c0_i32 = arith.constant 0 : i32
    %c0_i32_0 = arith.constant 0 : i32
    %c0_i32_1 = arith.constant 0 : i32
    %c0_i32_2 = arith.constant 0 : i32
    return %c0_i32, %c0_i32_0, %c0_i32_1 : i32, i32, i32
  }
  func.func @transform_20(%arg0: i32) -> (i32, i32, i32) {
    %c0_i32 = arith.constant 0 : i32
    %c0_i32_0 = arith.constant 0 : i32
    %c0_i32_1 = arith.constant 0 : i32
    %c0_i32_2 = arith.constant 0 : i32
    return %c0_i32, %c0_i32_0, %c0_i32_1 : i32, i32, i32
  }
  func.func @transform_21(%arg0: i32) -> (i32, i32, i32) {
    %c0_i32 = arith.constant 0 : i32
    %c0_i32_0 = arith.constant 0 : i32
    %c0_i32_1 = arith.constant 0 : i32
    %c0_i32_2 = arith.constant 0 : i32
    return %c0_i32, %c0_i32_0, %c0_i32_1 : i32, i32, i32
  }
  func.func @transform_22(%arg0: i32) -> (i32, i32, i32) {
    %c0_i32 = arith.constant 0 : i32
    %c0_i32_0 = arith.constant 0 : i32
    %c0_i32_1 = arith.constant 0 : i32
    %c0_i32_2 = arith.constant 0 : i32
    return %c0_i32, %c0_i32_0, %c0_i32_1 : i32, i32, i32
  }
  func.func @transform_23(%arg0: i32) -> (i32, i32, i32) {
    %c0_i32 = arith.constant 0 : i32
    %c0_i32_0 = arith.constant 0 : i32
    %c0_i32_1 = arith.constant 0 : i32
    %c0_i32_2 = arith.constant 0 : i32
    return %c0_i32, %c0_i32_0, %c0_i32_1 : i32, i32, i32
  }
  func.func @transform_24(%arg0: i32) -> (i32, i32, i32) {
    %c0_i32 = arith.constant 0 : i32
    %c0_i32_0 = arith.constant 0 : i32
    %c0_i32_1 = arith.constant 0 : i32
    %c0_i32_2 = arith.constant 0 : i32
    return %c0_i32, %c0_i32_0, %c0_i32_1 : i32, i32, i32
  }
  func.func @transform_25(%arg0: i32) -> (i32, i32, i32) {
    %c0_i32 = arith.constant 0 : i32
    %c0_i32_0 = arith.constant 0 : i32
    %c0_i32_1 = arith.constant 0 : i32
    %c0_i32_2 = arith.constant 0 : i32
    return %c0_i32, %c0_i32_0, %c0_i32_1 : i32, i32, i32
  }
  func.func @transform_26(%arg0: i32) -> (i32, i32) {
    %c0_i32 = arith.constant 0 : i32
    %c0_i32_0 = arith.constant 0 : i32
    %c0_i32_1 = arith.constant 0 : i32
    return %c0_i32, %c0_i32_0 : i32, i32
  }
  func.func @transform_27(%arg0: i32) -> (i32, i32) {
    %c0_i32 = arith.constant 0 : i32
    %c0_i32_0 = arith.constant 0 : i32
    %c0_i32_1 = arith.constant 0 : i32
    return %c0_i32, %c0_i32_0 : i32, i32
  }
  func.func @transform_28(%arg0: i32) -> (i32, i32) {
    %c0_i32 = arith.constant 0 : i32
    %c0_i32_0 = arith.constant 0 : i32
    %c0_i32_1 = arith.constant 0 : i32
    return %c0_i32, %c0_i32_0 : i32, i32
  }
}

</mosaic_0001>

<llo_original>
// kernel: adapter_bert_forward.1
$region0: #{adapter_bert_forward.1}
  #allocation0 [shape = 'u32[]', space=smem, size = 0x4, offset = 0x4, fixed_abs, tag = 'smem constant byte address 0x4 - core index']
  #allocation1 [shape = 'u32[144,128]{1,0:T(1,128)}', space=vmem, size = 0x12000, scoped, tag = 'internal scratch']
  %s0 = inlined_call_operand.vmem [shape: f32[16,128], index: 0, kind: input, shape index: {}]
  %s1 = inlined_call_operand.hbm [shape: f32[8,128], index: 1, kind: input, shape index: {}]
  %s2 = inlined_call_operand.hbm [shape: f32[1,128], index: 2, kind: input, shape index: {}]
  %s3 = inlined_call_operand.vmem [shape: f32[1,128], index: 3, kind: input, shape index: {}]
  %s4 = inlined_call_operand.vmem [shape: f32[1,128], index: 4, kind: input, shape index: {}, may-alias: {4,27}]
  %s5 = inlined_call_operand.vmem [shape: f32[2,1,8], index: 5, kind: input, shape index: {}]
  %s6 = inlined_call_operand.hbm [shape: bf16[8,128,32], index: 6, kind: input, shape index: {}]
  %s7 = inlined_call_operand.vmem [shape: f32[8,1,32], index: 7, kind: input, shape index: {}, may-alias: {7,9,11}]
  %s8 = inlined_call_operand.hbm [shape: bf16[8,128,32], index: 8, kind: input, shape index: {}]
  %s9 = inlined_call_operand.vmem [shape: f32[8,1,32], index: 9, kind: input, shape index: {}, may-alias: {7,9,11}]
  %s10 = inlined_call_operand.vmem [shape: bf16[8,128,32], index: 10, kind: input, shape index: {}]
  %s11 = inlined_call_operand.vmem [shape: f32[8,1,32], index: 11, kind: input, shape index: {}, may-alias: {7,9,11}]
  %s12 = inlined_call_operand.vmem [shape: bf16[2,128,128], index: 12, kind: input, shape index: {}]
  %s13 = inlined_call_operand.vmem [shape: f32[2,1,128], index: 13, kind: input, shape index: {}, may-alias: {13,15,19,23,25}]
  %s14 = inlined_call_operand.vmem [shape: f32[2,1,128], index: 14, kind: input, shape index: {}, may-alias: {14,24}]
  %s15 = inlined_call_operand.vmem [shape: f32[2,1,128], index: 15, kind: input, shape index: {}, may-alias: {13,15,19,23,25}]
  %s16 = inlined_call_operand.vmem [shape: bf16[2,128,512], index: 16, kind: input, shape index: {}]
  %s17 = inlined_call_operand.vmem [shape: f32[2,1,512], index: 17, kind: input, shape index: {}]
  %s18 = inlined_call_operand.vmem [shape: bf16[2,512,128], index: 18, kind: input, shape index: {}]
  %s19 = inlined_call_operand.vmem [shape: f32[2,1,128], index: 19, kind: input, shape index: {}, may-alias: {13,15,19,23,25}]
  %s20 = inlined_call_operand.vmem [shape: bf16[2,128,8], index: 20, kind: input, shape index: {}]
  %s21 = inlined_call_operand.vmem [shape: f32[2,1,8], index: 21, kind: input, shape index: {}]
  %s22 = inlined_call_operand.vmem [shape: bf16[2,8,128], index: 22, kind: input, shape index: {}]
  %s23 = inlined_call_operand.vmem [shape: f32[2,1,128], index: 23, kind: input, shape index: {}, may-alias: {13,15,19,23,25}]
  %s24 = inlined_call_operand.vmem [shape: f32[2,1,128], index: 24, kind: input, shape index: {}, may-alias: {14,24}]
  %s25 = inlined_call_operand.vmem [shape: f32[2,1,128], index: 25, kind: input, shape index: {}, may-alias: {13,15,19,23,25}]
  %s26 = inlined_call_operand.vmem [shape: bf16[128,128], index: 26, kind: input, shape index: {}]
  %s27 = inlined_call_operand.vmem [shape: f32[1,128], index: 27, kind: input, shape index: {}, may-alias: {4,27}]
  %s28 = inlined_call_operand.vmem [shape: f32[8,128], index: 28, kind: output, shape index: {}]
  %s29 = sld [smem:[#allocation0]]
  $region138: #{adapter_bert_forward.1} parent=0
    _
  %s31 = ssub.s32 1, %s29
  %s32 = scalar_select 0, %s31, %s29
  $region1: #{adapter_bert_forward.1} parent=0
    #allocation2 [shape = 'u8[4096]{0}', space=vmem, size = 0x1000, scoped, tag = 'input window, operand 1, single buffered']
    #allocation3 [shape = 's32[1]{0}', space=sflag, size = 0x4, scoped, tag = 'scoped memory for adapter_bert_forward.1']
    #allocation4 [shape = 'u8[512]{0}', space=vmem, size = 0x400, scoped, tag = 'input window, operand 2, single buffered']
    #allocation5 [shape = 's32[1]{0}', space=sflag, size = 0x4, scoped, tag = 'scoped memory for adapter_bert_forward.1']
    #allocation6 [shape = 'u8[262144]{0}', space=vmem, size = 0x40000, scoped, tag = 'input window, operand 6, single buffered']
    #allocation7 [shape = 'u8[262144]{0}', space=vmem, size = 0x40000, scoped, tag = 'input window, operand 8, single buffered']
    #allocation8 [shape = 's32[1]{0}', space=sflag, size = 0x4, scoped, tag = 'scoped memory for adapter_bert_forward.1']
    %33 = vsyncpa [#allocation3], 0
    %34 = vsyncpa [#allocation5], 0
    %35 = vsyncpa [#allocation8], 0
    // Predicated region
    $region2: #{adapter_bert_forward.1} parent=1 // pred_check
      _
    $region3: #{adapter_bert_forward.1} parent=1 // pred_check_branch
      %37 = sbr.rel (0) target = $region5
    $region4: #{adapter_bert_forward.1} parent=1 // pred_region
      _
    $region5: #{adapter_bert_forward.1} parent=1 // pred_fallthru
      _
    // Predicated region
    $region6: #{adapter_bert_forward.1} parent=1 // pred_check
      _
    $region7: #{adapter_bert_forward.1} parent=1 // pred_check_branch
      %39 = sbr.rel (0) target = $region9
    $region8: #{adapter_bert_forward.1} parent=1 // pred_region
      %s41 = ssub.s32 128, 128
      %42 = vsyncadd [#allocation3], %s41
      %s44 = sshll.u32 [#allocation2], 4
      %s45 = int_to_ptr.vmem [resolvable:$true] %s44
      %47 = dma.hbm_to_vmem [thread:$0]  %s1, 128, %s45, [#allocation3]
    $region9: #{adapter_bert_forward.1} parent=1 // pred_fallthru
      _
    // Predicated region
    $region10: #{adapter_bert_forward.1} parent=1 // pred_check
      _
    $region11: #{adapter_bert_forward.1} parent=1 // pred_check_branch
      %49 = sbr.rel (0) target = $region13
    $region12: #{adapter_bert_forward.1} parent=1 // pred_region
      %s51 = ssub.s32 16, 16
      %52 = vsyncadd [#allocation5], %s51
      %s54 = sshll.u32 [#allocation4], 4
      %s55 = int_to_ptr.vmem [resolvable:$true] %s54
      %57 = dma.hbm_to_vmem [thread:$0]  %s2, 16, %s55, [#allocation5]
    $region13: #{adapter_bert_forward.1} parent=1 // pred_fallthru
      _
    // Predicated region
    $region14: #{adapter_bert_forward.1} parent=1 // pred_check
      _
    $region15: #{adapter_bert_forward.1} parent=1 // pred_check_branch
      %59 = sbr.rel (0) target = $region17
    $region16: #{adapter_bert_forward.1} parent=1 // pred_region
      _
    $region17: #{adapter_bert_forward.1} parent=1 // pred_fallthru
      _
    // Predicated region
    $region18: #{adapter_bert_forward.1} parent=1 // pred_check
      _
    $region19: #{adapter_bert_forward.1} parent=1 // pred_check_branch
      %61 = sbr.rel (0) target = $region21
    $region20: #{adapter_bert_forward.1} parent=1 // pred_region
      _
    $region21: #{adapter_bert_forward.1} parent=1 // pred_fallthru
      _
    // Predicated region
    $region22: #{adapter_bert_forward.1} parent=1 // pred_check
      _
    $region23: #{adapter_bert_forward.1} parent=1 // pred_check_branch
      %63 = sbr.rel (0) target = $region25
    $region24: #{adapter_bert_forward.1} parent=1 // pred_region
      _
    $region25: #{adapter_bert_forward.1} parent=1 // pred_fallthru
      _
    // Predicated region
    $region26: #{adapter_bert_forward.1} parent=1 // pred_check
      _
    $region27: #{adapter_bert_forward.1} parent=1 // pred_check_branch
      %65 = sbr.rel (0) target = $region29
    $region28: #{adapter_bert_forward.1} parent=1 // pred_region
      %s67 = ssub.s32 8192, 8192
      %68 = vsyncadd [#allocation5], %s67
      %s69 = sshll.u32 [#allocation6], 4
      %s70 = int_to_ptr.vmem [resolvable:$true] %s69
      %75 = dma.hbm_to_vmem [thread:$0]  %s6, 8192, %s70, [#allocation5], 64, 64, 4
    $region29: #{adapter_bert_forward.1} parent=1 // pred_fallthru
      _
    // Predicated region
    $region30: #{adapter_bert_forward.1} parent=1 // pred_check
      _
    $region31: #{adapter_bert_forward.1} parent=1 // pred_check_branch
      %77 = sbr.rel (0) target = $region33
    $region32: #{adapter_bert_forward.1} parent=1 // pred_region
      _
    $region33: #{adapter_bert_forward.1} parent=1 // pred_fallthru
      _
    // Predicated region
    $region34: #{adapter_bert_forward.1} parent=1 // pred_check
      _
    $region35: #{adapter_bert_forward.1} parent=1 // pred_check_branch
      %79 = sbr.rel (0) target = $region37
    $region36: #{adapter_bert_forward.1} parent=1 // pred_region
      %s81 = ssub.s32 8192, 8192
      %82 = vsyncadd [#allocation8], %s81
      %s83 = sshll.u32 [#allocation7], 4
      %s84 = int_to_ptr.vmem [resolvable:$true] %s83
      %89 = dma.hbm_to_vmem [thread:$0]  %s8, 8192, %s84, [#allocation8], 64, 64, 4
    $region37: #{adapter_bert_forward.1} parent=1 // pred_fallthru
      _
    // Predicated region
    $region38: #{adapter_bert_forward.1} parent=1 // pred_check
      _
    $region39: #{adapter_bert_forward.1} parent=1 // pred_check_branch
      %91 = sbr.rel (0) target = $region41
    $region40: #{adapter_bert_forward.1} parent=1 // pred_region
      _
    $region41: #{adapter_bert_forward.1} parent=1 // pred_fallthru
      _
    // Predicated region
    $region42: #{adapter_bert_forward.1} parent=1 // pred_check
      _
    $region43: #{adapter_bert_forward.1} parent=1 // pred_check_branch
      %93 = sbr.rel (0) target = $region45
    $region44: #{adapter_bert_forward.1} parent=1 // pred_region
      _
    $region45: #{adapter_bert_forward.1} parent=1 // pred_fallthru
      _
    // Predicated region
    $region46: #{adapter_bert_forward.1} parent=1 // pred_check
      _
    $region47: #{adapter_bert_forward.1} parent=1 // pred_check_branch
      %95 = sbr.rel (0) target = $region49
    $region48: #{adapter_bert_forward.1} parent=1 // pred_region
      _
    $region49: #{adapter_bert_forward.1} parent=1 // pred_fallthru
      _
    // Predicated region
    $region50: #{adapter_bert_forward.1} parent=1 // pred_check
      _
    $region51: #{adapter_bert_forward.1} parent=1 // pred_check_branch
      %97 = sbr.rel (0) target = $region53
    $region52: #{adapter_bert_forward.1} parent=1 // pred_region
      _
    $region53: #{adapter_bert_forward.1} parent=1 // pred_fallthru
      _
    // Predicated region
    $region54: #{adapter_bert_forward.1} parent=1 // pred_check
      _
    $region55: #{adapter_bert_forward.1} parent=1 // pred_check_branch
      %99 = sbr.rel (0) target = $region57
    $region56: #{adapter_bert_forward.1} parent=1 // pred_region
      _
    $region57: #{adapter_bert_forward.1} parent=1 // pred_fallthru
      _
    // Predicated region
    $region58: #{adapter_bert_forward.1} parent=1 // pred_check
      _
    $region59: #{adapter_bert_forward.1} parent=1 // pred_check_branch
      %101 = sbr.rel (0) target = $region61
    $region60: #{adapter_bert_forward.1} parent=1 // pred_region
      _
    $region61: #{adapter_bert_forward.1} parent=1 // pred_fallthru
      _
    // Predicated region
    $region62: #{adapter_bert_forward.1} parent=1 // pred_check
      _
    $region63: #{adapter_bert_forward.1} parent=1 // pred_check_branch
      %103 = sbr.rel (0) target = $region65
    $region64: #{adapter_bert_forward.1} parent=1 // pred_region
      _
    $region65: #{adapter_bert_forward.1} parent=1 // pred_fallthru
      _
    // Predicated region
    $region66: #{adapter_bert_forward.1} parent=1 // pred_check
      _
    $region67: #{adapter_bert_forward.1} parent=1 // pred_check_branch
      %105 = sbr.rel (0) target = $region69
    $region68: #{adapter_bert_forward.1} parent=1 // pred_region
      _
    $region69: #{adapter_bert_forward.1} parent=1 // pred_fallthru
      _
    // Predicated region
    $region70: #{adapter_bert_forward.1} parent=1 // pred_check
      _
    $region71: #{adapter_bert_forward.1} parent=1 // pred_check_branch
      %107 = sbr.rel (0) target = $region73
    $region72: #{adapter_bert_forward.1} parent=1 // pred_region
      _
    $region73: #{adapter_bert_forward.1} parent=1 // pred_fallthru
      _
    // Predicated region
    $region74: #{adapter_bert_forward.1} parent=1 // pred_check
      _
    $region75: #{adapter_bert_forward.1} parent=1 // pred_check_branch
      %109 = sbr.rel (0) target = $region77
    $region76: #{adapter_bert_forward.1} parent=1 // pred_region
      _
    $region77: #{adapter_bert_forward.1} parent=1 // pred_fallthru
      _
    // Predicated region
    $region78: #{adapter_bert_forward.1} parent=1 // pred_check
      _
    $region79: #{adapter_bert_forward.1} parent=1 // pred_check_branch
      %111 = sbr.rel (0) target = $region81
    $region80: #{adapter_bert_forward.1} parent=1 // pred_region
      _
    $region81: #{adapter_bert_forward.1} parent=1 // pred_fallthru
      _
    // Predicated region
    $region82: #{adapter_bert_forward.1} parent=1 // pred_check
      _
    $region83: #{adapter_bert_forward.1} parent=1 // pred_check_branch
      %113 = sbr.rel (0) target = $region85
    $region84: #{adapter_bert_forward.1} parent=1 // pred_region
      _
    $region85: #{adapter_bert_forward.1} parent=1 // pred_fallthru
      _
    // Predicated region
    $region86: #{adapter_bert_forward.1} parent=1 // pred_check
      _
    $region87: #{adapter_bert_forward.1} parent=1 // pred_check_branch
      %115 = sbr.rel (0) target = $region89
    $region88: #{adapter_bert_forward.1} parent=1 // pred_region
      _
    $region89: #{adapter_bert_forward.1} parent=1 // pred_fallthru
      _
    // Predicated region
    $region90: #{adapter_bert_forward.1} parent=1 // pred_check
      _
    $region91: #{adapter_bert_forward.1} parent=1 // pred_check_branch
      %117 = sbr.rel (0) target = $region93
    $region92: #{adapter_bert_forward.1} parent=1 // pred_region
      _
    $region93: #{adapter_bert_forward.1} parent=1 // pred_fallthru
      _
    // Predicated region
    $region94: #{adapter_bert_forward.1} parent=1 // pred_check
      _
    $region95: #{adapter_bert_forward.1} parent=1 // pred_check_branch
      %119 = sbr.rel (0) target = $region97
    $region96: #{adapter_bert_forward.1} parent=1 // pred_region
      _
    $region97: #{adapter_bert_forward.1} parent=1 // pred_fallthru
      _
    // Predicated region
    $region98: #{adapter_bert_forward.1} parent=1 // pred_check
      _
    $region99: #{adapter_bert_forward.1} parent=1 // pred_check_branch
      %121 = sbr.rel (0) target = $region101
    $region100: #{adapter_bert_forward.1} parent=1 // pred_region
      _
    $region101: #{adapter_bert_forward.1} parent=1 // pred_fallthru
      _
    // Predicated region
    $region102: #{adapter_bert_forward.1} parent=1 // pred_check
      _
    $region103: #{adapter_bert_forward.1} parent=1 // pred_check_branch
      %123 = sbr.rel (0) target = $region105
    $region104: #{adapter_bert_forward.1} parent=1 // pred_region
      _
    $region105: #{adapter_bert_forward.1} parent=1 // pred_fallthru
      _
    // Predicated region
    $region106: #{adapter_bert_forward.1} parent=1 // pred_check
      _
    $region107: #{adapter_bert_forward.1} parent=1 // pred_check_branch
      %125 = sbr.rel (0) target = $region109
    $region108: #{adapter_bert_forward.1} parent=1 // pred_region
      _
    $region109: #{adapter_bert_forward.1} parent=1 // pred_fallthru
      _
    // Predicated region
    $region110: #{adapter_bert_forward.1} parent=1 // pred_check
      _
    $region111: #{adapter_bert_forward.1} parent=1 // pred_check_branch
      %127 = sbr.rel (0) target = $region113
    $region112: #{adapter_bert_forward.1} parent=1 // pred_region
      _
    $region113: #{adapter_bert_forward.1} parent=1 // pred_fallthru
      _
    // Predicated region
    $region114: #{adapter_bert_forward.1} parent=1 // pred_check
      _
    $region115: #{adapter_bert_forward.1} parent=1 // pred_check_branch
      %129 = sbr.rel (0) target = $region117
    $region116: #{adapter_bert_forward.1} parent=1 // pred_region
      %130 = dma.done [#allocation3], 128
    $region117: #{adapter_bert_forward.1} parent=1 // pred_fallthru
      _
    // Predicated region
    $region118: #{adapter_bert_forward.1} parent=1 // pred_check
      _
    $region119: #{adapter_bert_forward.1} parent=1 // pred_check_branch
      %132 = sbr.rel (0) target = $region121
    $region120: #{adapter_bert_forward.1} parent=1 // pred_region
      %133 = dma.done [#allocation5], 16
    $region121: #{adapter_bert_forward.1} parent=1 // pred_fallthru
      _
    // Predicated region
    $region122: #{adapter_bert_forward.1} parent=1 // pred_check
      _
    $region123: #{adapter_bert_forward.1} parent=1 // pred_check_branch
      %135 = sbr.rel (0) target = $region125
    $region124: #{adapter_bert_forward.1} parent=1 // pred_region
      %136 = dma.done [#allocation5], 8192
    $region125: #{adapter_bert_forward.1} parent=1 // pred_fallthru
      _
    // Predicated region
    $region126: #{adapter_bert_forward.1} parent=1 // pred_check
      _
    $region127: #{adapter_bert_forward.1} parent=1 // pred_check_branch
      %138 = sbr.rel (0) target = $region129
    $region128: #{adapter_bert_forward.1} parent=1 // pred_region
      %139 = dma.done [#allocation8], 8192
    $region129: #{adapter_bert_forward.1} parent=1 // pred_fallthru
      _
    %v141 = vld [vmem:[%s0] sm:$0xff]
    %v142 = vld [vmem:[%s0 + $0x8] sm:$0xff]
    %v143 = vld [vmem:[#allocation2] sm:$0xff]
    %v144 = vadd.f32 %v141, %v143
    %v145 = vadd.f32 %v142, %v143
    %v146 = vld [vmem:[#allocation4] sm:$0x1]
    %v148 = vlaneseq
    %v149 = vshrl.u32 %v148, 7
    %v150 = vsub.s32 0, %v149
    %v151 = vrot.slane %v146, %v150
    %v153 = vadd.f32 %v144, %v151
    %v154 = vadd.f32 %v145, %v151
    %v155 = vld [vmem:[%s3] sm:$0x1]
    %v156 = vld [vmem:[%s4] sm:$0x1]
    %157 = vadd.xlane.f32.xlu0 %v153
    %v158 = vpop.xlane.xlu0 %157
    %159 = vadd.xlane.f32.xlu0 %v154
    %v160 = vpop.xlane.xlu0 %159
    %v161 = vrcp.pop 128.0
    %v162 = vmul.f32 %v158, %v161
    %v163 = vmul.f32 %v160, %v161
    %v164 = vsub.f32 %v153, %v162
    %v165 = vsub.f32 %v154, %v163
    %v166 = vmul.f32 %v164, %v164
    %v167 = vmul.f32 %v165, %v165
    %168 = vadd.xlane.f32.xlu0 %v166
    %v169 = vpop.xlane.xlu0 %168
    %170 = vadd.xlane.f32.xlu0 %v167
    %v171 = vpop.xlane.xlu0 %170
    %v172 = vmul.f32 %v169, %v161
    %v173 = vmul.f32 %v171, %v161
    %v174 = vadd.f32 %v172, 1e-12
    %v175 = vadd.f32 %v173, 1e-12
    %v176 = vrsqrt.pop %v174
    %v177 = vrsqrt.pop %v175
    %v178 = vmul.f32 %v164, %v176
    %v179 = vmul.f32 %v165, %v177
    %v181 = vlaneseq
    %v182 = vshrl.u32 %v181, 7
    %v183 = vsub.s32 0, %v182
    %v184 = vrot.slane %v155, %v183
    %v186 = vmul.f32 %v178, %v184
    %v187 = vmul.f32 %v179, %v184
    %v189 = vlaneseq
    %v190 = vshrl.u32 %v189, 7
    %v191 = vsub.s32 0, %v190
    %v192 = vrot.slane %v156, %v191
    %v194 = vadd.f32 %v186, %v192
    %v195 = vadd.f32 %v187, %v192
    %v196 = vpack.c.bf16 %v195, %v194
    %v197 = vld [vmem:[#allocation6] sm:$0xf]
    %v198 = vld [vmem:[#allocation6 + $0x4] sm:$0xf]
    %v199 = vld [vmem:[#allocation6 + $0x8] sm:$0xf]
    %v200 = vld [vmem:[#allocation6 + $0xc] sm:$0xf]
    %v201 = vld [vmem:[#allocation6 + $0x10] sm:$0xf]
    %v202 = vld [vmem:[#allocation6 + $0x14] sm:$0xf]
    %v203 = vld [vmem:[#allocation6 + $0x18] sm:$0xf]
    %v204 = vld [vmem:[#allocation6 + $0x1c] sm:$0xf]
    %v205 = vld [vmem:[#allocation6 + $0x20] sm:$0xf]
    %v206 = vld [vmem:[#allocation6 + $0x24] sm:$0xf]
    %v207 = vld [vmem:[#allocation6 + $0x28] sm:$0xf]
    %v208 = vld [vmem:[#allocation6 + $0x2c] sm:$0xf]
    %v209 = vld [vmem:[#allocation6 + $0x30] sm:$0xf]
    %v210 = vld [vmem:[#allocation6 + $0x34] sm:$0xf]
    %v211 = vld [vmem:[#allocation6 + $0x38] sm:$0xf]
    %v212 = vld [vmem:[#allocation6 + $0x3c] sm:$0xf]
    %v213 = vld [vmem:[%s7] sm:$0x1]
    %v215 = vlaneseq
    %v216 = vshrl.u32 %v215, 7
    %v217 = vsub.s32 0, %v216
    %v218 = vrot.slane %v213, %v217
    %v236 = vunpack.c.l.b16 %v197
    %v237 = vunpack.c.l.b16 %v198
    %v238 = vunpack.c.l.b16 %v199
    %v239 = vunpack.c.l.b16 %v200
    %v240 = vunpack.c.l.b16 %v201
    %v241 = vunpack.c.l.b16 %v202
    %v242 = vunpack.c.l.b16 %v203
    %v243 = vunpack.c.l.b16 %v204
    %v244 = vunpack.c.l.b16 %v205
    %v245 = vunpack.c.l.b16 %v206
    %v246 = vunpack.c.l.b16 %v207
    %v247 = vunpack.c.l.b16 %v208
    %v248 = vunpack.c.l.b16 %v209
    %v249 = vunpack.c.l.b16 %v210
    %v250 = vunpack.c.l.b16 %v211
    %v251 = vunpack.c.l.b16 %v212
    %v252 = vpack.c.b16 %v237, %v236
    %v253 = vpack.c.b16 %v239, %v238
    %v254 = vpack.c.b16 %v241, %v240
    %v255 = vpack.c.b16 %v243, %v242
    %v256 = vpack.c.b16 %v245, %v244
    %v257 = vpack.c.b16 %v247, %v246
    %v258 = vpack.c.b16 %v249, %v248
    %v259 = vpack.c.b16 %v251, %v250
    %268 = vmatprep.subr.bf16.mxu0 0
    %269 = vmatpush1.bf16.msra.mxu0 %v252
    %270 = vmatprep.subr.bf16.mxu0 0
    %271 = vmatpush1.bf16.msra.mxu0 %v253
    %272 = vmatprep.subr.bf16.mxu0 0
    %273 = vmatpush1.bf16.msra.mxu0 %v254
    %274 = vmatprep.subr.bf16.mxu0 0
    %275 = vmatpush1.bf16.msra.mxu0 %v255
    %276 = vmatprep.subr.bf16.mxu0 0
    %277 = vmatpush1.bf16.msra.mxu0 %v256
    %278 = vmatprep.subr.bf16.mxu0 0
    %279 = vmatpush1.bf16.msra.mxu0 %v257
    %280 = vmatprep.subr.bf16.mxu0 0
    %281 = vmatpush1.bf16.msra.mxu0 %v258
    %282 = vmatprep.subr.bf16.mxu0 0
    %283 = vmatpush1.bf16.msra.mxu0 %v259
    %284 = vmatprep.subr.bf16.mxu0 0
    %285 = vmatpush1.bf16.msra.mxu0 0
    %286 = vmatprep.subr.bf16.mxu0 0
    %287 = vmatpush1.bf16.msra.mxu0 0
    %288 = vmatprep.subr.bf16.mxu0 0
    %289 = vmatpush1.bf16.msra.mxu0 0
    %290 = vmatprep.subr.bf16.mxu0 0
    %291 = vmatpush1.bf16.msra.mxu0 0
    %292 = vmatprep.subr.bf16.mxu0 0
    %293 = vmatpush1.bf16.msra.mxu0 0
    %294 = vmatprep.subr.bf16.mxu0 0
    %295 = vmatpush1.bf16.msra.mxu0 0
    %296 = vmatprep.subr.bf16.mxu0 0
    %297 = vmatpush1.bf16.msra.mxu0 0
    %298 = vmatprep.subr.bf16.mxu0 0
    %299 = vmatpush1.bf16.msra.mxu0 0
    %300 = vmatprep.mubr.bf16.mxu0 0
    %301 = vmatmul.mubr.bf16.gmra.mrb[0].mxu0 %v196
    %v302 = vpop.f32.mrb[0].mxu0
    %v303 = vadd.f32 %v218, %v302
    %v304 = vpop.f32.mrb[0].mxu0
    %v305 = vpop.f32.mrb[0].mxu0
    %v306 = vadd.f32 %v218, %v305
    %v307 = vpop.f32.mrb[0].mxu0
    %308 = vdwg.mxu0
    %v309 = vld [vmem:[#allocation7] sm:$0xf]
    %v310 = vld [vmem:[#allocation7 + $0x4] sm:$0xf]
    %v311 = vld [vmem:[#allocation7 + $0x8] sm:$0xf]
    %v312 = vld [vmem:[#allocation7 + $0xc] sm:$0xf]
    %v313 = vld [vmem:[#allocation7 + $0x10] sm:$0xf]
    %v314 = vld [vmem:[#allocation7 + $0x14] sm:$0xf]
    %v315 = vld [vmem:[#allocation7 + $0x18] sm:$0xf]
    %v316 = vld [vmem:[#allocation7 + $0x1c] sm:$0xf]
    %v317 = vld [vmem:[#allocation7 + $0x20] sm:$0xf]
    %v318 = vld [vmem:[#allocation7 + $0x24] sm:$0xf]
    %v319 = vld [vmem:[#allocation7 + $0x28] sm:$0xf]
    %v320 = vld [vmem:[#allocation7 + $0x2c] sm:$0xf]
    %v321 = vld [vmem:[#allocation7 + $0x30] sm:$0xf]
    %v322 = vld [vmem:[#allocation7 + $0x34] sm:$0xf]
    %v323 = vld [vmem:[#allocation7 + $0x38] sm:$0xf]
    %v324 = vld [vmem:[#allocation7 + $0x3c] sm:$0xf]
    %v325 = vld [vmem:[%s9] sm:$0x1]
    %v327 = vlaneseq
    %v328 = vshrl.u32 %v327, 7
    %v329 = vsub.s32 0, %v328
    %v330 = vrot.slane %v325, %v329
    %v348 = vunpack.c.l.b16 %v309
    %v349 = vunpack.c.l.b16 %v310
    %v350 = vunpack.c.l.b16 %v311
    %v351 = vunpack.c.l.b16 %v312
    %v352 = vunpack.c.l.b16 %v313
    %v353 = vunpack.c.l.b16 %v314
    %v354 = vunpack.c.l.b16 %v315
    %v355 = vunpack.c.l.b16 %v316
    %v356 = vunpack.c.l.b16 %v317
    %v357 = vunpack.c.l.b16 %v318
    %v358 = vunpack.c.l.b16 %v319
    %v359 = vunpack.c.l.b16 %v320
    %v360 = vunpack.c.l.b16 %v321
    %v361 = vunpack.c.l.b16 %v322
    %v362 = vunpack.c.l.b16 %v323
    %v363 = vunpack.c.l.b16 %v324
    %v364 = vpack.c.b16 %v349, %v348
    %v365 = vpack.c.b16 %v351, %v350
    %v366 = vpack.c.b16 %v353, %v352
    %v367 = vpack.c.b16 %v355, %v354
    %v368 = vpack.c.b16 %v357, %v356
    %v369 = vpack.c.b16 %v359, %v358
    %v370 = vpack.c.b16 %v361, %v360
    %v371 = vpack.c.b16 %v363, %v362
    %380 = vmatprep.subr.bf16.mxu0 0
    %381 = vmatpush1.bf16.msra.mxu0 %v364
    %382 = vmatprep.subr.bf16.mxu0 0
    %383 = vmatpush1.bf16.msra.mxu0 %v365
    %384 = vmatprep.subr.bf16.mxu0 0
    %385 = vmatpush1.bf16.msra.mxu0 %v366
    %386 = vmatprep.subr.bf16.mxu0 0
    %387 = vmatpush1.bf16.msra.mxu0 %v367
    %388 = vmatprep.subr.bf16.mxu0 0
    %389 = vmatpush1.bf16.msra.mxu0 %v368
    %390 = vmatprep.subr.bf16.mxu0 0
    %391 = vmatpush1.bf16.msra.mxu0 %v369
    %392 = vmatprep.subr.bf16.mxu0 0
    %393 = vmatpush1.bf16.msra.mxu0 %v370
    %394 = vmatprep.subr.bf16.mxu0 0
    %395 = vmatpush1.bf16.msra.mxu0 %v371
    %396 = vmatprep.subr.bf16.mxu0 0
    %397 = vmatpush1.bf16.msra.mxu0 0
    %398 = vmatprep.subr.bf16.mxu0 0
    %399 = vmatpush1.bf16.msra.mxu0 0
    %400 = vmatprep.subr.bf16.mxu0 0
    %401 = vmatpush1.bf16.msra.mxu0 0
    %402 = vmatprep.subr.bf16.mxu0 0
    %403 = vmatpush1.bf16.msra.mxu0 0
    %404 = vmatprep.subr.bf16.mxu0 0
    %405 = vmatpush1.bf16.msra.mxu0 0
    %406 = vmatprep.subr.bf16.mxu0 0
    %407 = vmatpush1.bf16.msra.mxu0 0
    %408 = vmatprep.subr.bf16.mxu0 0
    %409 = vmatpush1.bf16.msra.mxu0 0
    %410 = vmatprep.subr.bf16.mxu0 0
    %411 = vmatpush1.bf16.msra.mxu0 0
    %412 = vmatprep.mubr.bf16.mxu0 0
    %413 = vmatmul.mubr.bf16.gmra.mrb[0].mxu0 %v196
    %v414 = vpop.f32.mrb[0].mxu0
    %v415 = vadd.f32 %v330, %v414
    %v416 = vpop.f32.mrb[0].mxu0
    %v417 = vpop.f32.mrb[0].mxu0
    %v418 = vadd.f32 %v330, %v417
    %v419 = vpop.f32.mrb[0].mxu0
    %420 = vdwg.mxu0
    %v421 = vld [vmem:[%s10] sm:$0xf]
    %v422 = vld [vmem:[%s10 + $0x4] sm:$0xf]
    %v423 = vld [vmem:[%s10 + $0x8] sm:$0xf]
    %v424 = vld [vmem:[%s10 + $0xc] sm:$0xf]
    %v425 = vld [vmem:[%s10 + $0x10] sm:$0xf]
    %v426 = vld [vmem:[%s10 + $0x14] sm:$0xf]
    %v427 = vld [vmem:[%s10 + $0x18] sm:$0xf]
    %v428 = vld [vmem:[%s10 + $0x1c] sm:$0xf]
    %v429 = vld [vmem:[%s10 + $0x20] sm:$0xf]
    %v430 = vld [vmem:[%s10 + $0x24] sm:$0xf]
    %v431 = vld [vmem:[%s10 + $0x28] sm:$0xf]
    %v432 = vld [vmem:[%s10 + $0x2c] sm:$0xf]
    %v433 = vld [vmem:[%s10 + $0x30] sm:$0xf]
    %v434 = vld [vmem:[%s10 + $0x34] sm:$0xf]
    %v435 = vld [vmem:[%s10 + $0x38] sm:$0xf]
    %v436 = vld [vmem:[%s10 + $0x3c] sm:$0xf]
    %v437 = vld [vmem:[%s11] sm:$0x1]
    %v439 = vlaneseq
    %v440 = vshrl.u32 %v439, 7
    %v441 = vsub.s32 0, %v440
    %v442 = vrot.slane %v437, %v441
    %v460 = vunpack.c.l.b16 %v421
    %v461 = vunpack.c.l.b16 %v422
    %v462 = vunpack.c.l.b16 %v423
    %v463 = vunpack.c.l.b16 %v424
    %v464 = vunpack.c.l.b16 %v425
    %v465 = vunpack.c.l.b16 %v426
    %v466 = vunpack.c.l.b16 %v427
    %v467 = vunpack.c.l.b16 %v428
    %v468 = vunpack.c.l.b16 %v429
    %v469 = vunpack.c.l.b16 %v430
    %v470 = vunpack.c.l.b16 %v431
    %v471 = vunpack.c.l.b16 %v432
    %v472 = vunpack.c.l.b16 %v433
    %v473 = vunpack.c.l.b16 %v434
    %v474 = vunpack.c.l.b16 %v435
    %v475 = vunpack.c.l.b16 %v436
    %v476 = vpack.c.b16 %v461, %v460
    %v477 = vpack.c.b16 %v463, %v462
    %v478 = vpack.c.b16 %v465, %v464
    %v479 = vpack.c.b16 %v467, %v466
    %v480 = vpack.c.b16 %v469, %v468
    %v481 = vpack.c.b16 %v471, %v470
    %v482 = vpack.c.b16 %v473, %v472
    %v483 = vpack.c.b16 %v475, %v474
    %492 = vmatprep.subr.bf16.mxu0 0
    %493 = vmatpush1.bf16.msra.mxu0 %v476
    %494 = vmatprep.subr.bf16.mxu0 0
    %495 = vmatpush1.bf16.msra.mxu0 %v477
    %496 = vmatprep.subr.bf16.mxu0 0
    %497 = vmatpush1.bf16.msra.mxu0 %v478
    %498 = vmatprep.subr.bf16.mxu0 0
    %499 = vmatpush1.bf16.msra.mxu0 %v479
    %500 = vmatprep.subr.bf16.mxu0 0
    %501 = vmatpush1.bf16.msra.mxu0 %v480
    %502 = vmatprep.subr.bf16.mxu0 0
    %503 = vmatpush1.bf16.msra.mxu0 %v481
    %504 = vmatprep.subr.bf16.mxu0 0
    %505 = vmatpush1.bf16.msra.mxu0 %v482
    %506 = vmatprep.subr.bf16.mxu0 0
    %507 = vmatpush1.bf16.msra.mxu0 %v483
    %508 = vmatprep.subr.bf16.mxu0 0
    %509 = vmatpush1.bf16.msra.mxu0 0
    %510 = vmatprep.subr.bf16.mxu0 0
    %511 = vmatpush1.bf16.msra.mxu0 0
    %512 = vmatprep.subr.bf16.mxu0 0
    %513 = vmatpush1.bf16.msra.mxu0 0
    %514 = vmatprep.subr.bf16.mxu0 0
    %515 = vmatpush1.bf16.msra.mxu0 0
    %516 = vmatprep.subr.bf16.mxu0 0
    %517 = vmatpush1.bf16.msra.mxu0 0
    %518 = vmatprep.subr.bf16.mxu0 0
    %519 = vmatpush1.bf16.msra.mxu0 0
    %520 = vmatprep.subr.bf16.mxu0 0
    %521 = vmatpush1.bf16.msra.mxu0 0
    %522 = vmatprep.subr.bf16.mxu0 0
    %523 = vmatpush1.bf16.msra.mxu0 0
    %524 = vmatprep.mubr.bf16.mxu0 0
    %525 = vmatmul.mubr.bf16.gmra.mrb[0].mxu0 %v196
    %v526 = vpop.f32.mrb[0].mxu0
    %v527 = vadd.f32 %v442, %v526
    %v528 = vpop.f32.mrb[0].mxu0
    %v529 = vpop.f32.mrb[0].mxu0
    %v530 = vadd.f32 %v442, %v529
    %v531 = vpop.f32.mrb[0].mxu0
    %532 = vdwg.mxu0
    %vm533 = vcmask 261120
    %v535 = vsel %vm533, %v303, 0
    %v538 = vsel %vm533, %v415, 0
    %540 = vmatprep.subr.mxu0 0.0
    %541 = vmatpush1.xpose.msra.mxu0 %v538
    %542 = vmatprep.subr.mxu0 0.0
    %543 = vmatpush1.xpose.msra.mxu0 0.0
    %544 = vmatprep.subr.mxu0 0.0
    %545 = vmatpush1.xpose.msra.mxu0 0.0
    %546 = vmatprep.subr.mxu0 0.0
    %547 = vmatpush1.xpose.msra.mxu0 0.0
    %548 = vmatprep.subr.mxu0 0.0
    %549 = vmatpush1.xpose.msra.mxu0 0.0
    %550 = vmatprep.subr.mxu0 0.0
    %551 = vmatpush1.xpose.msra.mxu0 0.0
    %552 = vmatprep.subr.mxu0 0.0
    %553 = vmatpush1.xpose.msra.mxu0 0.0
    %554 = vmatprep.subr.mxu0 0.0
    %555 = vmatpush1.xpose.msra.mxu0 0.0
    %556 = vmatprep.subr.mxu0 0.0
    %557 = vmatpush1.xpose.msra.mxu0 0.0
    %558 = vmatprep.subr.mxu0 0.0
    %559 = vmatpush1.xpose.msra.mxu0 0.0
    %560 = vmatprep.subr.mxu0 0.0
    %561 = vmatpush1.xpose.msra.mxu0 0.0
    %562 = vmatprep.subr.mxu0 0.0
    %563 = vmatpush1.xpose.msra.mxu0 0.0
    %564 = vmatprep.subr.mxu0 0.0
    %565 = vmatpush1.xpose.msra.mxu0 0.0
    %566 = vmatprep.subr.mxu0 0.0
    %567 = vmatpush1.xpose.msra.mxu0 0.0
    %568 = vmatprep.subr.mxu0 0.0
    %569 = vmatpush1.xpose.msra.mxu0 0.0
    %570 = vmatprep.subr.mxu0 0.0
    %571 = vmatpush1.xpose.msra.mxu0 0.0
    %572 = vmatprep.subr.mxu0 0.0
    %573 = vmatpush1.xpose.msra.mxu0 0.0
    %574 = vmatprep.subr.mxu0 0.0
    %575 = vmatpush1.xpose.msra.mxu0 0.0
    %576 = vmatprep.subr.mxu0 0.0
    %577 = vmatpush1.xpose.msra.mxu0 0.0
    %578 = vmatprep.subr.mxu0 0.0
    %579 = vmatpush1.xpose.msra.mxu0 0.0
    %580 = vmatprep.subr.mxu0 0.0
    %581 = vmatpush1.xpose.msra.mxu0 0.0
    %582 = vmatprep.subr.mxu0 0.0
    %583 = vmatpush1.xpose.msra.mxu0 0.0
    %584 = vmatprep.subr.mxu0 0.0
    %585 = vmatpush1.xpose.msra.mxu0 0.0
    %586 = vmatprep.subr.mxu0 0.0
    %587 = vmatpush1.xpose.msra.mxu0 0.0
    %588 = vmatprep.subr.mxu0 0.0
    %589 = vmatpush1.xpose.msra.mxu0 0.0
    %590 = vmatprep.subr.mxu0 0.0
    %591 = vmatpush1.xpose.msra.mxu0 0.0
    %592 = vmatprep.subr.mxu0 0.0
    %593 = vmatpush1.xpose.msra.mxu0 0.0
    %594 = vmatprep.subr.mxu0 0.0
    %595 = vmatpush1.xpose.msra.mxu0 0.0
    %596 = vmatprep.subr.mxu0 0.0
    %597 = vmatpush1.xpose.msra.mxu0 0.0
    %598 = vmatprep.subr.mxu0 0.0
    %599 = vmatpush1.xpose.msra.mxu0 0.0
    %600 = vmatprep.subr.mxu0 0.0
    %601 = vmatpush1.xpose.msra.mxu0 0.0
    %602 = vmatprep.subr.mxu0 0.0
    %603 = vmatpush1.xpose.msra.mxu0 0.0
    %604 = vmatprep.mubr.f32.mxu0 0.0
    %605 = vmatmul.mubr.f32.gmra.mrb[0].mxu0 %v535
    %v606 = vpop.f32.mrb[0].mxu0
    %v607 = vadd.f32 0.0, %v606
    %v608 = vpop.f32.mrb[0].mxu0
    %609 = vdwg.mxu0
    %v610 = vmul.f32 %v607, 0.17677669
    %v611 = vld [vmem:[%s5] sm:$0x1]
    %v613 = vlaneseq
    %v614 = vshrl.u32 %v613, 7
    %v615 = vsub.s32 0, %v614
    %v616 = vrot.slane %v611, %v615
    %v618 = vadd.f32 %v610, %v616
    %vm619 = vcmask 64512
    %v620 = vsel %vm619, %v618, -inf
    %621 = vmax.xlane.f32.xlu0 %v620
    %v622 = vpop.xlane.xlu0 %621
    %v623 = vsub.f32 %v618, %v622
    %v624 = vmul.f32 %v623, 1.442695
    %v625 = vpow.pop %v624
    %v626 = vsel %vm619, %v625, 0.0
    %627 = vadd.xlane.f32.xlu0 %v626
    %v628 = vpop.xlane.xlu0 %627
    %v629 = vrcp.pop %v628
    %v630 = vmul.f32 %v625, %v629
    %v632 = vsel %vm619, %v630, 0
    %634 = vmatprep.subr.mxu0 0.0
    %635 = vmatpush1.msra.mxu0 %v527
    %636 = vmatprep.subr.mxu0 0.0
    %637 = vmatpush1.msra.mxu0 0.0
    %638 = vmatprep.subr.mxu0 0.0
    %639 = vmatpush1.msra.mxu0 0.0
    %640 = vmatprep.subr.mxu0 0.0
    %641 = vmatpush1.msra.mxu0 0.0
    %642 = vmatprep.subr.mxu0 0.0
    %643 = vmatpush1.msra.mxu0 0.0
    %644 = vmatprep.subr.mxu0 0.0
    %645 = vmatpush1.msra.mxu0 0.0
    %646 = vmatprep.subr.mxu0 0.0
    %647 = vmatpush1.msra.mxu0 0.0
    %648 = vmatprep.subr.mxu0 0.0
    %649 = vmatpush1.msra.mxu0 0.0
    %650 = vmatprep.subr.mxu0 0.0
    %651 = vmatpush1.msra.mxu0 0.0
    %652 = vmatprep.subr.mxu0 0.0
    %653 = vmatpush1.msra.mxu0 0.0
    %654 = vmatprep.subr.mxu0 0.0
    %655 = vmatpush1.msra.mxu0 0.0
    %656 = vmatprep.subr.mxu0 0.0
    %657 = vmatpush1.msra.mxu0 0.0
    %658 = vmatprep.subr.mxu0 0.0
    %659 = vmatpush1.msra.mxu0 0.0
    %660 = vmatprep.subr.mxu0 0.0
    %661 = vmatpush1.msra.mxu0 0.0
    %662 = vmatprep.subr.mxu0 0.0
    %663 = vmatpush1.msra.mxu0 0.0
    %664 = vmatprep.subr.mxu0 0.0
    %665 = vmatpush1.msra.mxu0 0.0
    %666 = vmatprep.subr.mxu0 0.0
    %667 = vmatpush1.msra.mxu0 0.0
    %668 = vmatprep.subr.mxu0 0.0
    %669 = vmatpush1.msra.mxu0 0.0
    %670 = vmatprep.subr.mxu0 0.0
    %671 = vmatpush1.msra.mxu0 0.0
    %672 = vmatprep.subr.mxu0 0.0
    %673 = vmatpush1.msra.mxu0 0.0
    %674 = vmatprep.subr.mxu0 0.0
    %675 = vmatpush1.msra.mxu0 0.0
    %676 = vmatprep.subr.mxu0 0.0
    %677 = vmatpush1.msra.mxu0 0.0
    %678 = vmatprep.subr.mxu0 0.0
    %679 = vmatpush1.msra.mxu0 0.0
    %680 = vmatprep.subr.mxu0 0.0
    %681 = vmatpush1.msra.mxu0 0.0
    %682 = vmatprep.subr.mxu0 0.0
    %683 = vmatpush1.msra.mxu0 0.0
    %684 = vmatprep.subr.mxu0 0.0
    %685 = vmatpush1.msra.mxu0 0.0
    %686 = vmatprep.subr.mxu0 0.0
    %687 = vmatpush1.msra.mxu0 0.0
    %688 = vmatprep.subr.mxu0 0.0
    %689 = vmatpush1.msra.mxu0 0.0
    %690 = vmatprep.subr.mxu0 0.0
    %691 = vmatpush1.msra.mxu0 0.0
    %692 = vmatprep.subr.mxu0 0.0
    %693 = vmatpush1.msra.mxu0 0.0
    %694 = vmatprep.subr.mxu0 0.0
    %695 = vmatpush1.msra.mxu0 0.0
    %696 = vmatprep.subr.mxu0 0.0
    %697 = vmatpush1.msra.mxu0 0.0
    %698 = vmatprep.mubr.f32.mxu0 0.0
    %699 = vmatmul.mubr.f32.gmra.mrb[0].mxu0 %v632
    %v700 = vpop.f32.mrb[0].mxu0
    %v701 = vadd.f32 0.0, %v700
    %v702 = vpop.f32.mrb[0].mxu0
    %703 = vdwg.mxu0
    %v705 = vsel %vm533, %v306, 0
    %v708 = vsel %vm533, %v418, 0
    %710 = vmatprep.subr.mxu0 0.0
    %711 = vmatpush1.xpose.msra.mxu0 %v708
    %712 = vmatprep.subr.mxu0 0.0
    %713 = vmatpush1.xpose.msra.mxu0 0.0
    %714 = vmatprep.subr.mxu0 0.0
    %715 = vmatpush1.xpose.msra.mxu0 0.0
    %716 = vmatprep.subr.mxu0 0.0
    %717 = vmatpush1.xpose.msra.mxu0 0.0
    %718 = vmatprep.subr.mxu0 0.0
    %719 = vmatpush1.xpose.msra.mxu0 0.0
    %720 = vmatprep.subr.mxu0 0.0
    %721 = vmatpush1.xpose.msra.mxu0 0.0
    %722 = vmatprep.subr.mxu0 0.0
    %723 = vmatpush1.xpose.msra.mxu0 0.0
    %724 = vmatprep.subr.mxu0 0.0
    %725 = vmatpush1.xpose.msra.mxu0 0.0
    %726 = vmatprep.subr.mxu0 0.0
    %727 = vmatpush1.xpose.msra.mxu0 0.0
    %728 = vmatprep.subr.mxu0 0.0
    %729 = vmatpush1.xpose.msra.mxu0 0.0
    %730 = vmatprep.subr.mxu0 0.0
    %731 = vmatpush1.xpose.msra.mxu0 0.0
    %732 = vmatprep.subr.mxu0 0.0
    %733 = vmatpush1.xpose.msra.mxu0 0.0
    %734 = vmatprep.subr.mxu0 0.0
    %735 = vmatpush1.xpose.msra.mxu0 0.0
    %736 = vmatprep.subr.mxu0 0.0
    %737 = vmatpush1.xpose.msra.mxu0 0.0
    %738 = vmatprep.subr.mxu0 0.0
    %739 = vmatpush1.xpose.msra.mxu0 0.0
    %740 = vmatprep.subr.mxu0 0.0
    %741 = vmatpush1.xpose.msra.mxu0 0.0
    %742 = vmatprep.subr.mxu0 0.0
    %743 = vmatpush1.xpose.msra.mxu0 0.0
    %744 = vmatprep.subr.mxu0 0.0
    %745 = vmatpush1.xpose.msra.mxu0 0.0
    %746 = vmatprep.subr.mxu0 0.0
    %747 = vmatpush1.xpose.msra.mxu0 0.0
    %748 = vmatprep.subr.mxu0 0.0
    %749 = vmatpush1.xpose.msra.mxu0 0.0
    %750 = vmatprep.subr.mxu0 0.0
    %751 = vmatpush1.xpose.msra.mxu0 0.0
    %752 = vmatprep.subr.mxu0 0.0
    %753 = vmatpush1.xpose.msra.mxu0 0.0
    %754 = vmatprep.subr.mxu0 0.0
    %755 = vmatpush1.xpose.msra.mxu0 0.0
    %756 = vmatprep.subr.mxu0 0.0
    %757 = vmatpush1.xpose.msra.mxu0 0.0
    %758 = vmatprep.subr.mxu0 0.0
    %759 = vmatpush1.xpose.msra.mxu0 0.0
    %760 = vmatprep.subr.mxu0 0.0
    %761 = vmatpush1.xpose.msra.mxu0 0.0
    %762 = vmatprep.subr.mxu0 0.0
    %763 = vmatpush1.xpose.msra.mxu0 0.0
    %764 = vmatprep.subr.mxu0 0.0
    %765 = vmatpush1.xpose.msra.mxu0 0.0
    %766 = vmatprep.subr.mxu0 0.0
    %767 = vmatpush1.xpose.msra.mxu0 0.0
    %768 = vmatprep.subr.mxu0 0.0
    %769 = vmatpush1.xpose.msra.mxu0 0.0
    %770 = vmatprep.subr.mxu0 0.0
    %771 = vmatpush1.xpose.msra.mxu0 0.0
    %772 = vmatprep.subr.mxu0 0.0
    %773 = vmatpush1.xpose.msra.mxu0 0.0
    %774 = vmatprep.mubr.f32.mxu0 0.0
    %775 = vmatmul.mubr.f32.gmra.mrb[0].mxu0 %v705
    %v776 = vpop.f32.mrb[0].mxu0
    %v777 = vadd.f32 0.0, %v776
    %v778 = vpop.f32.mrb[0].mxu0
    %779 = vdwg.mxu0
    %v780 = vmul.f32 %v777, 0.17677669
    %s781 = scalar_lea.vmem %s5, 1
    %v782 = vld [vmem:[%s781] sm:$0x1]
    %v784 = vlaneseq
    %v785 = vshrl.u32 %v784, 7
    %v786 = vsub.s32 0, %v785
    %v787 = vrot.slane %v782, %v786
    %v789 = vadd.f32 %v780, %v787
    %v790 = vsel %vm619, %v789, -inf
    %791 = vmax.xlane.f32.xlu0 %v790
    %v792 = vpop.xlane.xlu0 %791
    %v793 = vsub.f32 %v789, %v792
    %v794 = vmul.f32 %v793, 1.442695
    %v795 = vpow.pop %v794
    %v796 = vsel %vm619, %v795, 0.0
    %797 = vadd.xlane.f32.xlu0 %v796
    %v798 = vpop.xlane.xlu0 %797
    %v799 = vrcp.pop %v798
    %v800 = vmul.f32 %v795, %v799
    %v802 = vsel %vm619, %v800, 0
    %804 = vmatprep.subr.mxu0 0.0
    %805 = vmatpush1.msra.mxu0 %v530
    %806 = vmatprep.subr.mxu0 0.0
    %807 = vmatpush1.msra.mxu0 0.0
    %808 = vmatprep.subr.mxu0 0.0
    %809 = vmatpush1.msra.mxu0 0.0
    %810 = vmatprep.subr.mxu0 0.0
    %811 = vmatpush1.msra.mxu0 0.0
    %812 = vmatprep.subr.mxu0 0.0
    %813 = vmatpush1.msra.mxu0 0.0
    %814 = vmatprep.subr.mxu0 0.0
    %815 = vmatpush1.msra.mxu0 0.0
    %816 = vmatprep.subr.mxu0 0.0
    %817 = vmatpush1.msra.mxu0 0.0
    %818 = vmatprep.subr.mxu0 0.0
    %819 = vmatpush1.msra.mxu0 0.0
    %820 = vmatprep.subr.mxu0 0.0
    %821 = vmatpush1.msra.mxu0 0.0
    %822 = vmatprep.subr.mxu0 0.0
    %823 = vmatpush1.msra.mxu0 0.0
    %824 = vmatprep.subr.mxu0 0.0
    %825 = vmatpush1.msra.mxu0 0.0
    %826 = vmatprep.subr.mxu0 0.0
    %827 = vmatpush1.msra.mxu0 0.0
    %828 = vmatprep.subr.mxu0 0.0
    %829 = vmatpush1.msra.mxu0 0.0
    %830 = vmatprep.subr.mxu0 0.0
    %831 = vmatpush1.msra.mxu0 0.0
    %832 = vmatprep.subr.mxu0 0.0
    %833 = vmatpush1.msra.mxu0 0.0
    %834 = vmatprep.subr.mxu0 0.0
    %835 = vmatpush1.msra.mxu0 0.0
    %836 = vmatprep.subr.mxu0 0.0
    %837 = vmatpush1.msra.mxu0 0.0
    %838 = vmatprep.subr.mxu0 0.0
    %839 = vmatpush1.msra.mxu0 0.0
    %840 = vmatprep.subr.mxu0 0.0
    %841 = vmatpush1.msra.mxu0 0.0
    %842 = vmatprep.subr.mxu0 0.0
    %843 = vmatpush1.msra.mxu0 0.0
    %844 = vmatprep.subr.mxu0 0.0
    %845 = vmatpush1.msra.mxu0 0.0
    %846 = vmatprep.subr.mxu0 0.0
    %847 = vmatpush1.msra.mxu0 0.0
    %848 = vmatprep.subr.mxu0 0.0
    %849 = vmatpush1.msra.mxu0 0.0
    %850 = vmatprep.subr.mxu0 0.0
    %851 = vmatpush1.msra.mxu0 0.0
    %852 = vmatprep.subr.mxu0 0.0
    %853 = vmatpush1.msra.mxu0 0.0
    %854 = vmatprep.subr.mxu0 0.0
    %855 = vmatpush1.msra.mxu0 0.0
    %856 = vmatprep.subr.mxu0 0.0
    %857 = vmatpush1.msra.mxu0 0.0
    %858 = vmatprep.subr.mxu0 0.0
    %859 = vmatpush1.msra.mxu0 0.0
    %860 = vmatprep.subr.mxu0 0.0
    %861 = vmatpush1.msra.mxu0 0.0
    %862 = vmatprep.subr.mxu0 0.0
    %863 = vmatpush1.msra.mxu0 0.0
    %864 = vmatprep.subr.mxu0 0.0
    %865 = vmatpush1.msra.mxu0 0.0
    %866 = vmatprep.subr.mxu0 0.0
    %867 = vmatpush1.msra.mxu0 0.0
    %868 = vmatprep.mubr.f32.mxu0 0.0
    %869 = vmatmul.mubr.f32.gmra.mrb[0].mxu0 %v802
    %v870 = vpop.f32.mrb[0].mxu0
    %v871 = vadd.f32 0.0, %v870
    %v872 = vpop.f32.mrb[0].mxu0
    %873 = vdwg.mxu0
    %s874 = scalar_lea.vmem [#allocation6], 64
    %v875 = vld [vmem:[%s874] sm:$0xf]
    %v876 = vld [vmem:[%s874 + $0x4] sm:$0xf]
    %v877 = vld [vmem:[%s874 + $0x8] sm:$0xf]
    %v878 = vld [vmem:[%s874 + $0xc] sm:$0xf]
    %v879 = vld [vmem:[%s874 + $0x10] sm:$0xf]
    %v880 = vld [vmem:[%s874 + $0x14] sm:$0xf]
    %v881 = vld [vmem:[%s874 + $0x18] sm:$0xf]
    %v882 = vld [vmem:[%s874 + $0x1c] sm:$0xf]
    %v883 = vld [vmem:[%s874 + $0x20] sm:$0xf]
    %v884 = vld [vmem:[%s874 + $0x24] sm:$0xf]
    %v885 = vld [vmem:[%s874 + $0x28] sm:$0xf]
    %v886 = vld [vmem:[%s874 + $0x2c] sm:$0xf]
    %v887 = vld [vmem:[%s874 + $0x30] sm:$0xf]
    %v888 = vld [vmem:[%s874 + $0x34] sm:$0xf]
    %v889 = vld [vmem:[%s874 + $0x38] sm:$0xf]
    %v890 = vld [vmem:[%s874 + $0x3c] sm:$0xf]
    %s891 = scalar_lea.vmem %s7, 1
    %v892 = vld [vmem:[%s891] sm:$0x1]
    %v894 = vlaneseq
    %v895 = vshrl.u32 %v894, 7
    %v896 = vsub.s32 0, %v895
    %v897 = vrot.slane %v892, %v896
    %v915 = vunpack.c.l.b16 %v875
    %v916 = vunpack.c.l.b16 %v876
    %v917 = vunpack.c.l.b16 %v877
    %v918 = vunpack.c.l.b16 %v878
    %v919 = vunpack.c.l.b16 %v879
    %v920 = vunpack.c.l.b16 %v880
    %v921 = vunpack.c.l.b16 %v881
    %v922 = vunpack.c.l.b16 %v882
    %v923 = vunpack.c.l.b16 %v883
    %v924 = vunpack.c.l.b16 %v884
    %v925 = vunpack.c.l.b16 %v885
    %v926 = vunpack.c.l.b16 %v886
    %v927 = vunpack.c.l.b16 %v887
    %v928 = vunpack.c.l.b16 %v888
    %v929 = vunpack.c.l.b16 %v889
    %v930 = vunpack.c.l.b16 %v890
    %v931 = vpack.c.b16 %v916, %v915
    %v932 = vpack.c.b16 %v918, %v917
    %v933 = vpack.c.b16 %v920, %v919
    %v934 = vpack.c.b16 %v922, %v921
    %v935 = vpack.c.b16 %v924, %v923
    %v936 = vpack.c.b16 %v926, %v925
    %v937 = vpack.c.b16 %v928, %v927
    %v938 = vpack.c.b16 %v930, %v929
    %947 = vmatprep.subr.bf16.mxu0 0
    %948 = vmatpush1.bf16.msra.mxu0 %v931
    %949 = vmatprep.subr.bf16.mxu0 0
    %950 = vmatpush1.bf16.msra.mxu0 %v932
    %951 = vmatprep.subr.bf16.mxu0 0
    %952 = vmatpush1.bf16.msra.mxu0 %v933
    %953 = vmatprep.subr.bf16.mxu0 0
    %954 = vmatpush1.bf16.msra.mxu0 %v934
    %955 = vmatprep.subr.bf16.mxu0 0
    %956 = vmatpush1.bf16.msra.mxu0 %v935
    %957 = vmatprep.subr.bf16.mxu0 0
    %958 = vmatpush1.bf16.msra.mxu0 %v936
    %959 = vmatprep.subr.bf16.mxu0 0
    %960 = vmatpush1.bf16.msra.mxu0 %v937
    %961 = vmatprep.subr.bf16.mxu0 0
    %962 = vmatpush1.bf16.msra.mxu0 %v938
    %963 = vmatprep.subr.bf16.mxu0 0
    %964 = vmatpush1.bf16.msra.mxu0 0
    %965 = vmatprep.subr.bf16.mxu0 0
    %966 = vmatpush1.bf16.msra.mxu0 0
    %967 = vmatprep.subr.bf16.mxu0 0
    %968 = vmatpush1.bf16.msra.mxu0 0
    %969 = vmatprep.subr.bf16.mxu0 0
    %970 = vmatpush1.bf16.msra.mxu0 0
    %971 = vmatprep.subr.bf16.mxu0 0
    %972 = vmatpush1.bf16.msra.mxu0 0
    %973 = vmatprep.subr.bf16.mxu0 0
    %974 = vmatpush1.bf16.msra.mxu0 0
    %975 = vmatprep.subr.bf16.mxu0 0
    %976 = vmatpush1.bf16.msra.mxu0 0
    %977 = vmatprep.subr.bf16.mxu0 0
    %978 = vmatpush1.bf16.msra.mxu0 0
    %979 = vmatprep.mubr.bf16.mxu0 0
    %980 = vmatmul.mubr.bf16.gmra.mrb[0].mxu0 %v196
    %v981 = vpop.f32.mrb[0].mxu0
    %v982 = vadd.f32 %v897, %v981
    %v983 = vpop.f32.mrb[0].mxu0
    %v984 = vpop.f32.mrb[0].mxu0
    %v985 = vadd.f32 %v897, %v984
    %v986 = vpop.f32.mrb[0].mxu0
    %987 = vdwg.mxu0
    %s988 = scalar_lea.vmem [#allocation7], 64
    %v989 = vld [vmem:[%s988] sm:$0xf]
    %v990 = vld [vmem:[%s988 + $0x4] sm:$0xf]
    %v991 = vld [vmem:[%s988 + $0x8] sm:$0xf]
    %v992 = vld [vmem:[%s988 + $0xc] sm:$0xf]
    %v993 = vld [vmem:[%s988 + $0x10] sm:$0xf]
    %v994 = vld [vmem:[%s988 + $0x14] sm:$0xf]
    %v995 = vld [vmem:[%s988 + $0x18] sm:$0xf]
    %v996 = vld [vmem:[%s988 + $0x1c] sm:$0xf]
    %v997 = vld [vmem:[%s988 + $0x20] sm:$0xf]
    %v998 = vld [vmem:[%s988 + $0x24] sm:$0xf]
    %v999 = vld [vmem:[%s988 + $0x28] sm:$0xf]
    %v1000 = vld [vmem:[%s988 + $0x2c] sm:$0xf]
    %v1001 = vld [vmem:[%s988 + $0x30] sm:$0xf]
    %v1002 = vld [vmem:[%s988 + $0x34] sm:$0xf]
    %v1003 = vld [vmem:[%s988 + $0x38] sm:$0xf]
    %v1004 = vld [vmem:[%s988 + $0x3c] sm:$0xf]
    %s1005 = scalar_lea.vmem %s9, 1
    %v1006 = vld [vmem:[%s1005] sm:$0x1]
    %v1008 = vlaneseq
    %v1009 = vshrl.u32 %v1008, 7
    %v1010 = vsub.s32 0, %v1009
    %v1011 = vrot.slane %v1006, %v1010
    %v1029 = vunpack.c.l.b16 %v989
    %v1030 = vunpack.c.l.b16 %v990
    %v1031 = vunpack.c.l.b16 %v991
    %v1032 = vunpack.c.l.b16 %v992
    %v1033 = vunpack.c.l.b16 %v993
    %v1034 = vunpack.c.l.b16 %v994
    %v1035 = vunpack.c.l.b16 %v995
    %v1036 = vunpack.c.l.b16 %v996
    %v1037 = vunpack.c.l.b16 %v997
    %v1038 = vunpack.c.l.b16 %v998
    %v1039 = vunpack.c.l.b16 %v999
    %v1040 = vunpack.c.l.b16 %v1000
    %v1041 = vunpack.c.l.b16 %v1001
    %v1042 = vunpack.c.l.b16 %v1002
    %v1043 = vunpack.c.l.b16 %v1003
    %v1044 = vunpack.c.l.b16 %v1004
    %v1045 = vpack.c.b16 %v1030, %v1029
    %v1046 = vpack.c.b16 %v1032, %v1031
    %v1047 = vpack.c.b16 %v1034, %v1033
    %v1048 = vpack.c.b16 %v1036, %v1035
    %v1049 = vpack.c.b16 %v1038, %v1037
    %v1050 = vpack.c.b16 %v1040, %v1039
    %v1051 = vpack.c.b16 %v1042, %v1041
    %v1052 = vpack.c.b16 %v1044, %v1043
    %1061 = vmatprep.subr.bf16.mxu0 0
    %1062 = vmatpush1.bf16.msra.mxu0 %v1045
    %1063 = vmatprep.subr.bf16.mxu0 0
    %1064 = vmatpush1.bf16.msra.mxu0 %v1046
    %1065 = vmatprep.subr.bf16.mxu0 0
    %1066 = vmatpush1.bf16.msra.mxu0 %v1047
    %1067 = vmatprep.subr.bf16.mxu0 0
    %1068 = vmatpush1.bf16.msra.mxu0 %v1048
    %1069 = vmatprep.subr.bf16.mxu0 0
    %1070 = vmatpush1.bf16.msra.mxu0 %v1049
    %1071 = vmatprep.subr.bf16.mxu0 0
    %1072 = vmatpush1.bf16.msra.mxu0 %v1050
    %1073 = vmatprep.subr.bf16.mxu0 0
    %1074 = vmatpush1.bf16.msra.mxu0 %v1051
    %1075 = vmatprep.subr.bf16.mxu0 0
    %1076 = vmatpush1.bf16.msra.mxu0 %v1052
    %1077 = vmatprep.subr.bf16.mxu0 0
    %1078 = vmatpush1.bf16.msra.mxu0 0
    %1079 = vmatprep.subr.bf16.mxu0 0
    %1080 = vmatpush1.bf16.msra.mxu0 0
    %1081 = vmatprep.subr.bf16.mxu0 0
    %1082 = vmatpush1.bf16.msra.mxu0 0
    %1083 = vmatprep.subr.bf16.mxu0 0
    %1084 = vmatpush1.bf16.msra.mxu0 0
    %1085 = vmatprep.subr.bf16.mxu0 0
    %1086 = vmatpush1.bf16.msra.mxu0 0
    %1087 = vmatprep.subr.bf16.mxu0 0
    %1088 = vmatpush1.bf16.msra.mxu0 0
    %1089 = vmatprep.subr.bf16.mxu0 0
    %1090 = vmatpush1.bf16.msra.mxu0 0
    %1091 = vmatprep.subr.bf16.mxu0 0
    %1092 = vmatpush1.bf16.msra.mxu0 0
    %1093 = vmatprep.mubr.bf16.mxu0 0
    %1094 = vmatmul.mubr.bf16.gmra.mrb[0].mxu0 %v196
    %v1095 = vpop.f32.mrb[0].mxu0
    %v1096 = vadd.f32 %v1011, %v1095
    %v1097 = vpop.f32.mrb[0].mxu0
    %v1098 = vpop.f32.mrb[0].mxu0
    %v1099 = vadd.f32 %v1011, %v1098
    %v1100 = vpop.f32.mrb[0].mxu0
    %1101 = vdwg.mxu0
    %s1102 = scalar_lea.vmem %s10, 64
    %v1103 = vld [vmem:[%s1102] sm:$0xf]
    %v1104 = vld [vmem:[%s1102 + $0x4] sm:$0xf]
    %v1105 = vld [vmem:[%s1102 + $0x8] sm:$0xf]
    %v1106 = vld [vmem:[%s1102 + $0xc] sm:$0xf]
    %v1107 = vld [vmem:[%s1102 + $0x10] sm:$0xf]
    %v1108 = vld [vmem:[%s1102 + $0x14] sm:$0xf]
    %v1109 = vld [vmem:[%s1102 + $0x18] sm:$0xf]
    %v1110 = vld [vmem:[%s1102 + $0x1c] sm:$0xf]
    %v1111 = vld [vmem:[%s1102 + $0x20] sm:$0xf]
    %v1112 = vld [vmem:[%s1102 + $0x24] sm:$0xf]
    %v1113 = vld [vmem:[%s1102 + $0x28] sm:$0xf]
    %v1114 = vld [vmem:[%s1102 + $0x2c] sm:$0xf]
    %v1115 = vld [vmem:[%s1102 + $0x30] sm:$0xf]
    %v1116 = vld [vmem:[%s1102 + $0x34] sm:$0xf]
    %v1117 = vld [vmem:[%s1102 + $0x38] sm:$0xf]
    %v1118 = vld [vmem:[%s1102 + $0x3c] sm:$0xf]
    %s1119 = scalar_lea.vmem %s11, 1
    %v1120 = vld [vmem:[%s1119] sm:$0x1]
    %v1122 = vlaneseq
    %v1123 = vshrl.u32 %v1122, 7
    %v1124 = vsub.s32 0, %v1123
    %v1125 = vrot.slane %v1120, %v1124
    %v1143 = vunpack.c.l.b16 %v1103
    %v1144 = vunpack.c.l.b16 %v1104
    %v1145 = vunpack.c.l.b16 %v1105
    %v1146 = vunpack.c.l.b16 %v1106
    %v1147 = vunpack.c.l.b16 %v1107
    %v1148 = vunpack.c.l.b16 %v1108
    %v1149 = vunpack.c.l.b16 %v1109
    %v1150 = vunpack.c.l.b16 %v1110
    %v1151 = vunpack.c.l.b16 %v1111
    %v1152 = vunpack.c.l.b16 %v1112
    %v1153 = vunpack.c.l.b16 %v1113
    %v1154 = vunpack.c.l.b16 %v1114
    %v1155 = vunpack.c.l.b16 %v1115
    %v1156 = vunpack.c.l.b16 %v1116
    %v1157 = vunpack.c.l.b16 %v1117
    %v1158 = vunpack.c.l.b16 %v1118
    %v1159 = vpack.c.b16 %v1144, %v1143
    %v1160 = vpack.c.b16 %v1146, %v1145
    %v1161 = vpack.c.b16 %v1148, %v1147
    %v1162 = vpack.c.b16 %v1150, %v1149
    %v1163 = vpack.c.b16 %v1152, %v1151
    %v1164 = vpack.c.b16 %v1154, %v1153
    %v1165 = vpack.c.b16 %v1156, %v1155
    %v1166 = vpack.c.b16 %v1158, %v1157
    %1175 = vmatprep.subr.bf16.mxu0 0
    %1176 = vmatpush1.bf16.msra.mxu0 %v1159
    %1177 = vmatprep.subr.bf16.mxu0 0
    %1178 = vmatpush1.bf16.msra.mxu0 %v1160
    %1179 = vmatprep.subr.bf16.mxu0 0
    %1180 = vmatpush1.bf16.msra.mxu0 %v1161
    %1181 = vmatprep.subr.bf16.mxu0 0
    %1182 = vmatpush1.bf16.msra.mxu0 %v1162
    %1183 = vmatprep.subr.bf16.mxu0 0
    %1184 = vmatpush1.bf16.msra.mxu0 %v1163
    %1185 = vmatprep.subr.bf16.mxu0 0
    %1186 = vmatpush1.bf16.msra.mxu0 %v1164
    %1187 = vmatprep.subr.bf16.mxu0 0
    %1188 = vmatpush1.bf16.msra.mxu0 %v1165
    %1189 = vmatprep.subr.bf16.mxu0 0
    %1190 = vmatpush1.bf16.msra.mxu0 %v1166
    %1191 = vmatprep.subr.bf16.mxu0 0
    %1192 = vmatpush1.bf16.msra.mxu0 0
    %1193 = vmatprep.subr.bf16.mxu0 0
    %1194 = vmatpush1.bf16.msra.mxu0 0
    %1195 = vmatprep.subr.bf16.mxu0 0
    %1196 = vmatpush1.bf16.msra.mxu0 0
    %1197 = vmatprep.subr.bf16.mxu0 0
    %1198 = vmatpush1.bf16.msra.mxu0 0
    %1199 = vmatprep.subr.bf16.mxu0 0
    %1200 = vmatpush1.bf16.msra.mxu0 0
    %1201 = vmatprep.subr.bf16.mxu0 0
    %1202 = vmatpush1.bf16.msra.mxu0 0
    %1203 = vmatprep.subr.bf16.mxu0 0
    %1204 = vmatpush1.bf16.msra.mxu0 0
    %1205 = vmatprep.subr.bf16.mxu0 0
    %1206 = vmatpush1.bf16.msra.mxu0 0
    %1207 = vmatprep.mubr.bf16.mxu0 0
    %1208 = vmatmul.mubr.bf16.gmra.mrb[0].mxu0 %v196
    %v1209 = vpop.f32.mrb[0].mxu0
    %v1210 = vadd.f32 %v1125, %v1209
    %v1211 = vpop.f32.mrb[0].mxu0
    %v1212 = vpop.f32.mrb[0].mxu0
    %v1213 = vadd.f32 %v1125, %v1212
    %v1214 = vpop.f32.mrb[0].mxu0
    %1215 = vdwg.mxu0
    %v1217 = vsel %vm533, %v982, 0
    %v1220 = vsel %vm533, %v1096, 0
    %1222 = vmatprep.subr.mxu0 0.0
    %1223 = vmatpush1.xpose.msra.mxu0 %v1220
    %1224 = vmatprep.subr.mxu0 0.0
    %1225 = vmatpush1.xpose.msra.mxu0 0.0
    %1226 = vmatprep.subr.mxu0 0.0
    %1227 = vmatpush1.xpose.msra.mxu0 0.0
    %1228 = vmatprep.subr.mxu0 0.0
    %1229 = vmatpush1.xpose.msra.mxu0 0.0
    %1230 = vmatprep.subr.mxu0 0.0
    %1231 = vmatpush1.xpose.msra.mxu0 0.0
    %1232 = vmatprep.subr.mxu0 0.0
    %1233 = vmatpush1.xpose.msra.mxu0 0.0
    %1234 = vmatprep.subr.mxu0 0.0
    %1235 = vmatpush1.xpose.msra.mxu0 0.0
    %1236 = vmatprep.subr.mxu0 0.0
    %1237 = vmatpush1.xpose.msra.mxu0 0.0
    %1238 = vmatprep.subr.mxu0 0.0
    %1239 = vmatpush1.xpose.msra.mxu0 0.0
    %1240 = vmatprep.subr.mxu0 0.0
    %1241 = vmatpush1.xpose.msra.mxu0 0.0
    %1242 = vmatprep.subr.mxu0 0.0
    %1243 = vmatpush1.xpose.msra.mxu0 0.0
    %1244 = vmatprep.subr.mxu0 0.0
    %1245 = vmatpush1.xpose.msra.mxu0 0.0
    %1246 = vmatprep.subr.mxu0 0.0
    %1247 = vmatpush1.xpose.msra.mxu0 0.0
    %1248 = vmatprep.subr.mxu0 0.0
    %1249 = vmatpush1.xpose.msra.mxu0 0.0
    %1250 = vmatprep.subr.mxu0 0.0
    %1251 = vmatpush1.xpose.msra.mxu0 0.0
    %1252 = vmatprep.subr.mxu0 0.0
    %1253 = vmatpush1.xpose.msra.mxu0 0.0
    %1254 = vmatprep.subr.mxu0 0.0
    %1255 = vmatpush1.xpose.msra.mxu0 0.0
    %1256 = vmatprep.subr.mxu0 0.0
    %1257 = vmatpush1.xpose.msra.mxu0 0.0
    %1258 = vmatprep.subr.mxu0 0.0
    %1259 = vmatpush1.xpose.msra.mxu0 0.0
    %1260 = vmatprep.subr.mxu0 0.0
    %1261 = vmatpush1.xpose.msra.mxu0 0.0
    %1262 = vmatprep.subr.mxu0 0.0
    %1263 = vmatpush1.xpose.msra.mxu0 0.0
    %1264 = vmatprep.subr.mxu0 0.0
    %1265 = vmatpush1.xpose.msra.mxu0 0.0
    %1266 = vmatprep.subr.mxu0 0.0
    %1267 = vmatpush1.xpose.msra.mxu0 0.0
    %1268 = vmatprep.subr.mxu0 0.0
    %1269 = vmatpush1.xpose.msra.mxu0 0.0
    %1270 = vmatprep.subr.mxu0 0.0
    %1271 = vmatpush1.xpose.msra.mxu0 0.0
    %1272 = vmatprep.subr.mxu0 0.0
    %1273 = vmatpush1.xpose.msra.mxu0 0.0
    %1274 = vmatprep.subr.mxu0 0.0
    %1275 = vmatpush1.xpose.msra.mxu0 0.0
    %1276 = vmatprep.subr.mxu0 0.0
    %1277 = vmatpush1.xpose.msra.mxu0 0.0
    %1278 = vmatprep.subr.mxu0 0.0
    %1279 = vmatpush1.xpose.msra.mxu0 0.0
    %1280 = vmatprep.subr.mxu0 0.0
    %1281 = vmatpush1.xpose.msra.mxu0 0.0
    %1282 = vmatprep.subr.mxu0 0.0
    %1283 = vmatpush1.xpose.msra.mxu0 0.0
    %1284 = vmatprep.subr.mxu0 0.0
    %1285 = vmatpush1.xpose.msra.mxu0 0.0
    %1286 = vmatprep.mubr.f32.mxu0 0.0
    %1287 = vmatmul.mubr.f32.gmra.mrb[0].mxu0 %v1217
    %v1288 = vpop.f32.mrb[0].mxu0
    %v1289 = vadd.f32 0.0, %v1288
    %v1290 = vpop.f32.mrb[0].mxu0
    %1291 = vdwg.mxu0
    %v1292 = vmul.f32 %v1289, 0.17677669
    %v1293 = vadd.f32 %v1292, %v616
    %v1294 = vsel %vm619, %v1293, -inf
    %1295 = vmax.xlane.f32.xlu0 %v1294
    %v1296 = vpop.xlane.xlu0 %1295
    %v1297 = vsub.f32 %v1293, %v1296
    %v1298 = vmul.f32 %v1297, 1.442695
    %v1299 = vpow.pop %v1298
    %v1300 = vsel %vm619, %v1299, 0.0
    %1301 = vadd.xlane.f32.xlu0 %v1300
    %v1302 = vpop.xlane.xlu0 %1301
    %v1303 = vrcp.pop %v1302
    %v1304 = vmul.f32 %v1299, %v1303
    %v1306 = vsel %vm619, %v1304, 0
    %1308 = vmatprep.subr.mxu0 0.0
    %1309 = vmatpush1.msra.mxu0 %v1210
    %1310 = vmatprep.subr.mxu0 0.0
    %1311 = vmatpush1.msra.mxu0 0.0
    %1312 = vmatprep.subr.mxu0 0.0
    %1313 = vmatpush1.msra.mxu0 0.0
    %1314 = vmatprep.subr.mxu0 0.0
    %1315 = vmatpush1.msra.mxu0 0.0
    %1316 = vmatprep.subr.mxu0 0.0
    %1317 = vmatpush1.msra.mxu0 0.0
    %1318 = vmatprep.subr.mxu0 0.0
    %1319 = vmatpush1.msra.mxu0 0.0
    %1320 = vmatprep.subr.mxu0 0.0
    %1321 = vmatpush1.msra.mxu0 0.0
    %1322 = vmatprep.subr.mxu0 0.0
    %1323 = vmatpush1.msra.mxu0 0.0
    %1324 = vmatprep.subr.mxu0 0.0
    %1325 = vmatpush1.msra.mxu0 0.0
    %1326 = vmatprep.subr.mxu0 0.0
    %1327 = vmatpush1.msra.mxu0 0.0
    %1328 = vmatprep.subr.mxu0 0.0
    %1329 = vmatpush1.msra.mxu0 0.0
    %1330 = vmatprep.subr.mxu0 0.0
    %1331 = vmatpush1.msra.mxu0 0.0
    %1332 = vmatprep.subr.mxu0 0.0
    %1333 = vmatpush1.msra.mxu0 0.0
    %1334 = vmatprep.subr.mxu0 0.0
    %1335 = vmatpush1.msra.mxu0 0.0
    %1336 = vmatprep.subr.mxu0 0.0
    %1337 = vmatpush1.msra.mxu0 0.0
    %1338 = vmatprep.subr.mxu0 0.0
    %1339 = vmatpush1.msra.mxu0 0.0
    %1340 = vmatprep.subr.mxu0 0.0
    %1341 = vmatpush1.msra.mxu0 0.0
    %1342 = vmatprep.subr.mxu0 0.0
    %1343 = vmatpush1.msra.mxu0 0.0
    %1344 = vmatprep.subr.mxu0 0.0
    %1345 = vmatpush1.msra.mxu0 0.0
    %1346 = vmatprep.subr.mxu0 0.0
    %1347 = vmatpush1.msra.mxu0 0.0
    %1348 = vmatprep.subr.mxu0 0.0
    %1349 = vmatpush1.msra.mxu0 0.0
    %1350 = vmatprep.subr.mxu0 0.0
    %1351 = vmatpush1.msra.mxu0 0.0
    %1352 = vmatprep.subr.mxu0 0.0
    %1353 = vmatpush1.msra.mxu0 0.0
    %1354 = vmatprep.subr.mxu0 0.0
    %1355 = vmatpush1.msra.mxu0 0.0
    %1356 = vmatprep.subr.mxu0 0.0
    %1357 = vmatpush1.msra.mxu0 0.0
    %1358 = vmatprep.subr.mxu0 0.0
    %1359 = vmatpush1.msra.mxu0 0.0
    %1360 = vmatprep.subr.mxu0 0.0
    %1361 = vmatpush1.msra.mxu0 0.0
    %1362 = vmatprep.subr.mxu0 0.0
    %1363 = vmatpush1.msra.mxu0 0.0
    %1364 = vmatprep.subr.mxu0 0.0
    %1365 = vmatpush1.msra.mxu0 0.0
    %1366 = vmatprep.subr.mxu0 0.0
    %1367 = vmatpush1.msra.mxu0 0.0
    %1368 = vmatprep.subr.mxu0 0.0
    %1369 = vmatpush1.msra.mxu0 0.0
    %1370 = vmatprep.subr.mxu0 0.0
    %1371 = vmatpush1.msra.mxu0 0.0
    %1372 = vmatprep.mubr.f32.mxu0 0.0
    %1373 = vmatmul.mubr.f32.gmra.mrb[0].mxu0 %v1306
    %v1374 = vpop.f32.mrb[0].mxu0
    %v1375 = vadd.f32 0.0, %v1374
    %v1376 = vpop.f32.mrb[0].mxu0
    %1377 = vdwg.mxu0
    %v1379 = vsel %vm533, %v985, 0
    %v1382 = vsel %vm533, %v1099, 0
    %1384 = vmatprep.subr.mxu0 0.0
    %1385 = vmatpush1.xpose.msra.mxu0 %v1382
    %1386 = vmatprep.subr.mxu0 0.0
    %1387 = vmatpush1.xpose.msra.mxu0 0.0
    %1388 = vmatprep.subr.mxu0 0.0
    %1389 = vmatpush1.xpose.msra.mxu0 0.0
    %1390 = vmatprep.subr.mxu0 0.0
    %1391 = vmatpush1.xpose.msra.mxu0 0.0
    %1392 = vmatprep.subr.mxu0 0.0
    %1393 = vmatpush1.xpose.msra.mxu0 0.0
    %1394 = vmatprep.subr.mxu0 0.0
    %1395 = vmatpush1.xpose.msra.mxu0 0.0
    %1396 = vmatprep.subr.mxu0 0.0
    %1397 = vmatpush1.xpose.msra.mxu0 0.0
    %1398 = vmatprep.subr.mxu0 0.0
    %1399 = vmatpush1.xpose.msra.mxu0 0.0
    %1400 = vmatprep.subr.mxu0 0.0
    %1401 = vmatpush1.xpose.msra.mxu0 0.0
    %1402 = vmatprep.subr.mxu0 0.0
    %1403 = vmatpush1.xpose.msra.mxu0 0.0
    %1404 = vmatprep.subr.mxu0 0.0
    %1405 = vmatpush1.xpose.msra.mxu0 0.0
    %1406 = vmatprep.subr.mxu0 0.0
    %1407 = vmatpush1.xpose.msra.mxu0 0.0
    %1408 = vmatprep.subr.mxu0 0.0
    %1409 = vmatpush1.xpose.msra.mxu0 0.0
    %1410 = vmatprep.subr.mxu0 0.0
    %1411 = vmatpush1.xpose.msra.mxu0 0.0
    %1412 = vmatprep.subr.mxu0 0.0
    %1413 = vmatpush1.xpose.msra.mxu0 0.0
    %1414 = vmatprep.subr.mxu0 0.0
    %1415 = vmatpush1.xpose.msra.mxu0 0.0
    %1416 = vmatprep.subr.mxu0 0.0
    %1417 = vmatpush1.xpose.msra.mxu0 0.0
    %1418 = vmatprep.subr.mxu0 0.0
    %1419 = vmatpush1.xpose.msra.mxu0 0.0
    %1420 = vmatprep.subr.mxu0 0.0
    %1421 = vmatpush1.xpose.msra.mxu0 0.0
    %1422 = vmatprep.subr.mxu0 0.0
    %1423 = vmatpush1.xpose.msra.mxu0 0.0
    %1424 = vmatprep.subr.mxu0 0.0
    %1425 = vmatpush1.xpose.msra.mxu0 0.0
    %1426 = vmatprep.subr.mxu0 0.0
    %1427 = vmatpush1.xpose.msra.mxu0 0.0
    %1428 = vmatprep.subr.mxu0 0.0
    %1429 = vmatpush1.xpose.msra.mxu0 0.0
    %1430 = vmatprep.subr.mxu0 0.0
    %1431 = vmatpush1.xpose.msra.mxu0 0.0
    %1432 = vmatprep.subr.mxu0 0.0
    %1433 = vmatpush1.xpose.msra.mxu0 0.0
    %1434 = vmatprep.subr.mxu0 0.0
    %1435 = vmatpush1.xpose.msra.mxu0 0.0
    %1436 = vmatprep.subr.mxu0 0.0
    %1437 = vmatpush1.xpose.msra.mxu0 0.0
    %1438 = vmatprep.subr.mxu0 0.0
    %1439 = vmatpush1.xpose.msra.mxu0 0.0
    %1440 = vmatprep.subr.mxu0 0.0
    %1441 = vmatpush1.xpose.msra.mxu0 0.0
    %1442 = vmatprep.subr.mxu0 0.0
    %1443 = vmatpush1.xpose.msra.mxu0 0.0
    %1444 = vmatprep.subr.mxu0 0.0
    %1445 = vmatpush1.xpose.msra.mxu0 0.0
    %1446 = vmatprep.subr.mxu0 0.0
    %1447 = vmatpush1.xpose.msra.mxu0 0.0
    %1448 = vmatprep.mubr.f32.mxu0 0.0
    %1449 = vmatmul.mubr.f32.gmra.mrb[0].mxu0 %v1379
    %v1450 = vpop.f32.mrb[0].mxu0
    %v1451 = vadd.f32 0.0, %v1450
    %v1452 = vpop.f32.mrb[0].mxu0
    %1453 = vdwg.mxu0
    %v1454 = vmul.f32 %v1451, 0.17677669
    %v1455 = vadd.f32 %v1454, %v787
    %v1456 = vsel %vm619, %v1455, -inf
    %1457 = vmax.xlane.f32.xlu0 %v1456
    %v1458 = vpop.xlane.xlu0 %1457
    %v1459 = vsub.f32 %v1455, %v1458
    %v1460 = vmul.f32 %v1459, 1.442695
    %v1461 = vpow.pop %v1460
    %v1462 = vsel %vm619, %v1461, 0.0
    %1463 = vadd.xlane.f32.xlu0 %v1462
    %v1464 = vpop.xlane.xlu0 %1463
    %v1465 = vrcp.pop %v1464
    %v1466 = vmul.f32 %v1461, %v1465
    %v1468 = vsel %vm619, %v1466, 0
    %1470 = vmatprep.subr.mxu0 0.0
    %1471 = vmatpush1.msra.mxu0 %v1213
    %1472 = vmatprep.subr.mxu0 0.0
    %1473 = vmatpush1.msra.mxu0 0.0
    %1474 = vmatprep.subr.mxu0 0.0
    %1475 = vmatpush1.msra.mxu0 0.0
    %1476 = vmatprep.subr.mxu0 0.0
    %1477 = vmatpush1.msra.mxu0 0.0
    %1478 = vmatprep.subr.mxu0 0.0
    %1479 = vmatpush1.msra.mxu0 0.0
    %1480 = vmatprep.subr.mxu0 0.0
    %1481 = vmatpush1.msra.mxu0 0.0
    %1482 = vmatprep.subr.mxu0 0.0
    %1483 = vmatpush1.msra.mxu0 0.0
    %1484 = vmatprep.subr.mxu0 0.0
    %1485 = vmatpush1.msra.mxu0 0.0
    %1486 = vmatprep.subr.mxu0 0.0
    %1487 = vmatpush1.msra.mxu0 0.0
    %1488 = vmatprep.subr.mxu0 0.0
    %1489 = vmatpush1.msra.mxu0 0.0
    %1490 = vmatprep.subr.mxu0 0.0
    %1491 = vmatpush1.msra.mxu0 0.0
    %1492 = vmatprep.subr.mxu0 0.0
    %1493 = vmatpush1.msra.mxu0 0.0
    %1494 = vmatprep.subr.mxu0 0.0
    %1495 = vmatpush1.msra.mxu0 0.0
    %1496 = vmatprep.subr.mxu0 0.0
    %1497 = vmatpush1.msra.mxu0 0.0
    %1498 = vmatprep.subr.mxu0 0.0
    %1499 = vmatpush1.msra.mxu0 0.0
    %1500 = vmatprep.subr.mxu0 0.0
    %1501 = vmatpush1.msra.mxu0 0.0
    %1502 = vmatprep.subr.mxu0 0.0
    %1503 = vmatpush1.msra.mxu0 0.0
    %1504 = vmatprep.subr.mxu0 0.0
    %1505 = vmatpush1.msra.mxu0 0.0
    %1506 = vmatprep.subr.mxu0 0.0
    %1507 = vmatpush1.msra.mxu0 0.0
    %1508 = vmatprep.subr.mxu0 0.0
    %1509 = vmatpush1.msra.mxu0 0.0
    %1510 = vmatprep.subr.mxu0 0.0
    %1511 = vmatpush1.msra.mxu0 0.0
    %1512 = vmatprep.subr.mxu0 0.0
    %1513 = vmatpush1.msra.mxu0 0.0
    %1514 = vmatprep.subr.mxu0 0.0
    %1515 = vmatpush1.msra.mxu0 0.0
    %1516 = vmatprep.subr.mxu0 0.0
    %1517 = vmatpush1.msra.mxu0 0.0
    %1518 = vmatprep.subr.mxu0 0.0
    %1519 = vmatpush1.msra.mxu0 0.0
    %1520 = vmatprep.subr.mxu0 0.0
    %1521 = vmatpush1.msra.mxu0 0.0
    %1522 = vmatprep.subr.mxu0 0.0
    %1523 = vmatpush1.msra.mxu0 0.0
    %1524 = vmatprep.subr.mxu0 0.0
    %1525 = vmatpush1.msra.mxu0 0.0
    %1526 = vmatprep.subr.mxu0 0.0
    %1527 = vmatpush1.msra.mxu0 0.0
    %1528 = vmatprep.subr.mxu0 0.0
    %1529 = vmatpush1.msra.mxu0 0.0
    %1530 = vmatprep.subr.mxu0 0.0
    %1531 = vmatpush1.msra.mxu0 0.0
    %1532 = vmatprep.subr.mxu0 0.0
    %1533 = vmatpush1.msra.mxu0 0.0
    %1534 = vmatprep.mubr.f32.mxu0 0.0
    %1535 = vmatmul.mubr.f32.gmra.mrb[0].mxu0 %v1468
    %v1536 = vpop.f32.mrb[0].mxu0
    %v1537 = vadd.f32 0.0, %v1536
    %v1538 = vpop.f32.mrb[0].mxu0
    %1539 = vdwg.mxu0
    %s1540 = scalar_lea.vmem [#allocation6], 128
    %v1541 = vld [vmem:[%s1540] sm:$0xf]
    %v1542 = vld [vmem:[%s1540 + $0x4] sm:$0xf]
    %v1543 = vld [vmem:[%s1540 + $0x8] sm:$0xf]
    %v1544 = vld [vmem:[%s1540 + $0xc] sm:$0xf]
    %v1545 = vld [vmem:[%s1540 + $0x10] sm:$0xf]
    %v1546 = vld [vmem:[%s1540 + $0x14] sm:$0xf]
    %v1547 = vld [vmem:[%s1540 + $0x18] sm:$0xf]
    %v1548 = vld [vmem:[%s1540 + $0x1c] sm:$0xf]
    %v1549 = vld [vmem:[%s1540 + $0x20] sm:$0xf]
    %v1550 = vld [vmem:[%s1540 + $0x24] sm:$0xf]
    %v1551 = vld [vmem:[%s1540 + $0x28] sm:$0xf]
    %v1552 = vld [vmem:[%s1540 + $0x2c] sm:$0xf]
    %v1553 = vld [vmem:[%s1540 + $0x30] sm:$0xf]
    %v1554 = vld [vmem:[%s1540 + $0x34] sm:$0xf]
    %v1555 = vld [vmem:[%s1540 + $0x38] sm:$0xf]
    %v1556 = vld [vmem:[%s1540 + $0x3c] sm:$0xf]
    %s1557 = scalar_lea.vmem %s7, 2
    %v1558 = vld [vmem:[%s1557] sm:$0x1]
    %v1560 = vlaneseq
    %v1561 = vshrl.u32 %v1560, 7
    %v1562 = vsub.s32 0, %v1561
    %v1563 = vrot.slane %v1558, %v1562
    %v1581 = vunpack.c.l.b16 %v1541
    %v1582 = vunpack.c.l.b16 %v1542
    %v1583 = vunpack.c.l.b16 %v1543
    %v1584 = vunpack.c.l.b16 %v1544
    %v1585 = vunpack.c.l.b16 %v1545
    %v1586 = vunpack.c.l.b16 %v1546
    %v1587 = vunpack.c.l.b16 %v1547
    %v1588 = vunpack.c.l.b16 %v1548
    %v1589 = vunpack.c.l.b16 %v1549
    %v1590 = vunpack.c.l.b16 %v1550
    %v1591 = vunpack.c.l.b16 %v1551
    %v1592 = vunpack.c.l.b16 %v1552
    %v1593 = vunpack.c.l.b16 %v1553
    %v1594 = vunpack.c.l.b16 %v1554
    %v1595 = vunpack.c.l.b16 %v1555
    %v1596 = vunpack.c.l.b16 %v1556
    %v1597 = vpack.c.b16 %v1582, %v1581
    %v1598 = vpack.c.b16 %v1584, %v1583
    %v1599 = vpack.c.b16 %v1586, %v1585
    %v1600 = vpack.c.b16 %v1588, %v1587
    %v1601 = vpack.c.b16 %v1590, %v1589
    %v1602 = vpack.c.b16 %v1592, %v1591
    %v1603 = vpack.c.b16 %v1594, %v1593
    %v1604 = vpack.c.b16 %v1596, %v1595
    %1613 = vmatprep.subr.bf16.mxu0 0
    %1614 = vmatpush1.bf16.msra.mxu0 %v1597
    %1615 = vmatprep.subr.bf16.mxu0 0
    %1616 = vmatpush1.bf16.msra.mxu0 %v1598
    %1617 = vmatprep.subr.bf16.mxu0 0
    %1618 = vmatpush1.bf16.msra.mxu0 %v1599
    %1619 = vmatprep.subr.bf16.mxu0 0
    %1620 = vmatpush1.bf16.msra.mxu0 %v1600
    %1621 = vmatprep.subr.bf16.mxu0 0
    %1622 = vmatpush1.bf16.msra.mxu0 %v1601
    %1623 = vmatprep.subr.bf16.mxu0 0
    %1624 = vmatpush1.bf16.msra.mxu0 %v1602
    %1625 = vmatprep.subr.bf16.mxu0 0
    %1626 = vmatpush1.bf16.msra.mxu0 %v1603
    %1627 = vmatprep.subr.bf16.mxu0 0
    %1628 = vmatpush1.bf16.msra.mxu0 %v1604
    %1629 = vmatprep.subr.bf16.mxu0 0
    %1630 = vmatpush1.bf16.msra.mxu0 0
    %1631 = vmatprep.subr.bf16.mxu0 0
    %1632 = vmatpush1.bf16.msra.mxu0 0
    %1633 = vmatprep.subr.bf16.mxu0 0
    %1634 = vmatpush1.bf16.msra.mxu0 0
    %1635 = vmatprep.subr.bf16.mxu0 0
    %1636 = vmatpush1.bf16.msra.mxu0 0
    %1637 = vmatprep.subr.bf16.mxu0 0
    %1638 = vmatpush1.bf16.msra.mxu0 0
    %1639 = vmatprep.subr.bf16.mxu0 0
    %1640 = vmatpush1.bf16.msra.mxu0 0
    %1641 = vmatprep.subr.bf16.mxu0 0
    %1642 = vmatpush1.bf16.msra.mxu0 0
    %1643 = vmatprep.subr.bf16.mxu0 0
    %1644 = vmatpush1.bf16.msra.mxu0 0
    %1645 = vmatprep.mubr.bf16.mxu0 0
    %1646 = vmatmul.mubr.bf16.gmra.mrb[0].mxu0 %v196
    %v1647 = vpop.f32.mrb[0].mxu0
    %v1648 = vadd.f32 %v1563, %v1647
    %v1649 = vpop.f32.mrb[0].mxu0
    %v1650 = vpop.f32.mrb[0].mxu0
    %v1651 = vadd.f32 %v1563, %v1650
    %v1652 = vpop.f32.mrb[0].mxu0
    %1653 = vdwg.mxu0
    %s1654 = scalar_lea.vmem [#allocation7], 128
    %v1655 = vld [vmem:[%s1654] sm:$0xf]
    %v1656 = vld [vmem:[%s1654 + $0x4] sm:$0xf]
    %v1657 = vld [vmem:[%s1654 + $0x8] sm:$0xf]
    %v1658 = vld [vmem:[%s1654 + $0xc] sm:$0xf]
    %v1659 = vld [vmem:[%s1654 + $0x10] sm:$0xf]
    %v1660 = vld [vmem:[%s1654 + $0x14] sm:$0xf]
    %v1661 = vld [vmem:[%s1654 + $0x18] sm:$0xf]
    %v1662 = vld [vmem:[%s1654 + $0x1c] sm:$0xf]
    %v1663 = vld [vmem:[%s1654 + $0x20] sm:$0xf]
    %v1664 = vld [vmem:[%s1654 + $0x24] sm:$0xf]
    %v1665 = vld [vmem:[%s1654 + $0x28] sm:$0xf]
    %v1666 = vld [vmem:[%s1654 + $0x2c] sm:$0xf]
    %v1667 = vld [vmem:[%s1654 + $0x30] sm:$0xf]
    %v1668 = vld [vmem:[%s1654 + $0x34] sm:$0xf]
    %v1669 = vld [vmem:[%s1654 + $0x38] sm:$0xf]
    %v1670 = vld [vmem:[%s1654 + $0x3c] sm:$0xf]
    %s1671 = scalar_lea.vmem %s9, 2
    %v1672 = vld [vmem:[%s1671] sm:$0x1]
    %v1674 = vlaneseq
    %v1675 = vshrl.u32 %v1674, 7
    %v1676 = vsub.s32 0, %v1675
    %v1677 = vrot.slane %v1672, %v1676
    %v1695 = vunpack.c.l.b16 %v1655
    %v1696 = vunpack.c.l.b16 %v1656
    %v1697 = vunpack.c.l.b16 %v1657
    %v1698 = vunpack.c.l.b16 %v1658
    %v1699 = vunpack.c.l.b16 %v1659
    %v1700 = vunpack.c.l.b16 %v1660
    %v1701 = vunpack.c.l.b16 %v1661
    %v1702 = vunpack.c.l.b16 %v1662
    %v1703 = vunpack.c.l.b16 %v1663
    %v1704 = vunpack.c.l.b16 %v1664
    %v1705 = vunpack.c.l.b16 %v1665
    %v1706 = vunpack.c.l.b16 %v1666
    %v1707 = vunpack.c.l.b16 %v1667
    %v1708 = vunpack.c.l.b16 %v1668
    %v1709 = vunpack.c.l.b16 %v1669
    %v1710 = vunpack.c.l.b16 %v1670
    %v1711 = vpack.c.b16 %v1696, %v1695
    %v1712 = vpack.c.b16 %v1698, %v1697
    %v1713 = vpack.c.b16 %v1700, %v1699
    %v1714 = vpack.c.b16 %v1702, %v1701
    %v1715 = vpack.c.b16 %v1704, %v1703
    %v1716 = vpack.c.b16 %v1706, %v1705
    %v1717 = vpack.c.b16 %v1708, %v1707
    %v1718 = vpack.c.b16 %v1710, %v1709
    %1727 = vmatprep.subr.bf16.mxu0 0
    %1728 = vmatpush1.bf16.msra.mxu0 %v1711
    %1729 = vmatprep.subr.bf16.mxu0 0
    %1730 = vmatpush1.bf16.msra.mxu0 %v1712
    %1731 = vmatprep.subr.bf16.mxu0 0
    %1732 = vmatpush1.bf16.msra.mxu0 %v1713
    %1733 = vmatprep.subr.bf16.mxu0 0
    %1734 = vmatpush1.bf16.msra.mxu0 %v1714
    %1735 = vmatprep.subr.bf16.mxu0 0
    %1736 = vmatpush1.bf16.msra.mxu0 %v1715
    %1737 = vmatprep.subr.bf16.mxu0 0
    %1738 = vmatpush1.bf16.msra.mxu0 %v1716
    %1739 = vmatprep.subr.bf16.mxu0 0
    %1740 = vmatpush1.bf16.msra.mxu0 %v1717
    %1741 = vmatprep.subr.bf16.mxu0 0
    %1742 = vmatpush1.bf16.msra.mxu0 %v1718
    %1743 = vmatprep.subr.bf16.mxu0 0
    %1744 = vmatpush1.bf16.msra.mxu0 0
    %1745 = vmatprep.subr.bf16.mxu0 0
    %1746 = vmatpush1.bf16.msra.mxu0 0
    %1747 = vmatprep.subr.bf16.mxu0 0
    %1748 = vmatpush1.bf16.msra.mxu0 0
    %1749 = vmatprep.subr.bf16.mxu0 0
    %1750 = vmatpush1.bf16.msra.mxu0 0
    %1751 = vmatprep.subr.bf16.mxu0 0
    %1752 = vmatpush1.bf16.msra.mxu0 0
    %1753 = vmatprep.subr.bf16.mxu0 0
    %1754 = vmatpush1.bf16.msra.mxu0 0
    %1755 = vmatprep.subr.bf16.mxu0 0
    %1756 = vmatpush1.bf16.msra.mxu0 0
    %1757 = vmatprep.subr.bf16.mxu0 0
    %1758 = vmatpush1.bf16.msra.mxu0 0
    %1759 = vmatprep.mubr.bf16.mxu0 0
    %1760 = vmatmul.mubr.bf16.gmra.mrb[0].mxu0 %v196
    %v1761 = vpop.f32.mrb[0].mxu0
    %v1762 = vadd.f32 %v1677, %v1761
    %v1763 = vpop.f32.mrb[0].mxu0
    %v1764 = vpop.f32.mrb[0].mxu0
    %v1765 = vadd.f32 %v1677, %v1764
    %v1766 = vpop.f32.mrb[0].mxu0
    %1767 = vdwg.mxu0
    %s1768 = scalar_lea.vmem %s10, 128
    %v1769 = vld [vmem:[%s1768] sm:$0xf]
    %v1770 = vld [vmem:[%s1768 + $0x4] sm:$0xf]
    %v1771 = vld [vmem:[%s1768 + $0x8] sm:$0xf]
    %v1772 = vld [vmem:[%s1768 + $0xc] sm:$0xf]
    %v1773 = vld [vmem:[%s1768 + $0x10] sm:$0xf]
    %v1774 = vld [vmem:[%s1768 + $0x14] sm:$0xf]
    %v1775 = vld [vmem:[%s1768 + $0x18] sm:$0xf]
    %v1776 = vld [vmem:[%s1768 + $0x1c] sm:$0xf]
    %v1777 = vld [vmem:[%s1768 + $0x20] sm:$0xf]
    %v1778 = vld [vmem:[%s1768 + $0x24] sm:$0xf]
    %v1779 = vld [vmem:[%s1768 + $0x28] sm:$0xf]
    %v1780 = vld [vmem:[%s1768 + $0x2c] sm:$0xf]
    %v1781 = vld [vmem:[%s1768 + $0x30] sm:$0xf]
    %v1782 = vld [vmem:[%s1768 + $0x34] sm:$0xf]
    %v1783 = vld [vmem:[%s1768 + $0x38] sm:$0xf]
    %v1784 = vld [vmem:[%s1768 + $0x3c] sm:$0xf]
    %s1785 = scalar_lea.vmem %s11, 2
    %v1786 = vld [vmem:[%s1785] sm:$0x1]
    %v1788 = vlaneseq
    %v1789 = vshrl.u32 %v1788, 7
    %v1790 = vsub.s32 0, %v1789
    %v1791 = vrot.slane %v1786, %v1790
    %v1809 = vunpack.c.l.b16 %v1769
    %v1810 = vunpack.c.l.b16 %v1770
    %v1811 = vunpack.c.l.b16 %v1771
    %v1812 = vunpack.c.l.b16 %v1772
    %v1813 = vunpack.c.l.b16 %v1773
    %v1814 = vunpack.c.l.b16 %v1774
    %v1815 = vunpack.c.l.b16 %v1775
    %v1816 = vunpack.c.l.b16 %v1776
    %v1817 = vunpack.c.l.b16 %v1777
    %v1818 = vunpack.c.l.b16 %v1778
    %v1819 = vunpack.c.l.b16 %v1779
    %v1820 = vunpack.c.l.b16 %v1780
    %v1821 = vunpack.c.l.b16 %v1781
    %v1822 = vunpack.c.l.b16 %v1782
    %v1823 = vunpack.c.l.b16 %v1783
    %v1824 = vunpack.c.l.b16 %v1784
    %v1825 = vpack.c.b16 %v1810, %v1809
    %v1826 = vpack.c.b16 %v1812, %v1811
    %v1827 = vpack.c.b16 %v1814, %v1813
    %v1828 = vpack.c.b16 %v1816, %v1815
    %v1829 = vpack.c.b16 %v1818, %v1817
    %v1830 = vpack.c.b16 %v1820, %v1819
    %v1831 = vpack.c.b16 %v1822, %v1821
    %v1832 = vpack.c.b16 %v1824, %v1823
    %1841 = vmatprep.subr.bf16.mxu0 0
    %1842 = vmatpush1.bf16.msra.mxu0 %v1825
    %1843 = vmatprep.subr.bf16.mxu0 0
    %1844 = vmatpush1.bf16.msra.mxu0 %v1826
    %1845 = vmatprep.subr.bf16.mxu0 0
    %1846 = vmatpush1.bf16.msra.mxu0 %v1827
    %1847 = vmatprep.subr.bf16.mxu0 0
    %1848 = vmatpush1.bf16.msra.mxu0 %v1828
    %1849 = vmatprep.subr.bf16.mxu0 0
    %1850 = vmatpush1.bf16.msra.mxu0 %v1829
    %1851 = vmatprep.subr.bf16.mxu0 0
    %1852 = vmatpush1.bf16.msra.mxu0 %v1830
    %1853 = vmatprep.subr.bf16.mxu0 0
    %1854 = vmatpush1.bf16.msra.mxu0 %v1831
    %1855 = vmatprep.subr.bf16.mxu0 0
    %1856 = vmatpush1.bf16.msra.mxu0 %v1832
    %1857 = vmatprep.subr.bf16.mxu0 0
    %1858 = vmatpush1.bf16.msra.mxu0 0
    %1859 = vmatprep.subr.bf16.mxu0 0
    %1860 = vmatpush1.bf16.msra.mxu0 0
    %1861 = vmatprep.subr.bf16.mxu0 0
    %1862 = vmatpush1.bf16.msra.mxu0 0
    %1863 = vmatprep.subr.bf16.mxu0 0
    %1864 = vmatpush1.bf16.msra.mxu0 0
    %1865 = vmatprep.subr.bf16.mxu0 0
    %1866 = vmatpush1.bf16.msra.mxu0 0
    %1867 = vmatprep.subr.bf16.mxu0 0
    %1868 = vmatpush1.bf16.msra.mxu0 0
    %1869 = vmatprep.subr.bf16.mxu0 0
    %1870 = vmatpush1.bf16.msra.mxu0 0
    %1871 = vmatprep.subr.bf16.mxu0 0
    %1872 = vmatpush1.bf16.msra.mxu0 0
    %1873 = vmatprep.mubr.bf16.mxu0 0
    %1874 = vmatmul.mubr.bf16.gmra.mrb[0].mxu0 %v196
    %v1875 = vpop.f32.mrb[0].mxu0
    %v1876 = vadd.f32 %v1791, %v1875
    %v1877 = vpop.f32.mrb[0].mxu0
    %v1878 = vpop.f32.mrb[0].mxu0
    %v1879 = vadd.f32 %v1791, %v1878
    %v1880 = vpop.f32.mrb[0].mxu0
    %1881 = vdwg.mxu0
    %v1883 = vsel %vm533, %v1648, 0
    %v1886 = vsel %vm533, %v1762, 0
    %1888 = vmatprep.subr.mxu0 0.0
    %1889 = vmatpush1.xpose.msra.mxu0 %v1886
    %1890 = vmatprep.subr.mxu0 0.0
    %1891 = vmatpush1.xpose.msra.mxu0 0.0
    %1892 = vmatprep.subr.mxu0 0.0
    %1893 = vmatpush1.xpose.msra.mxu0 0.0
    %1894 = vmatprep.subr.mxu0 0.0
    %1895 = vmatpush1.xpose.msra.mxu0 0.0
    %1896 = vmatprep.subr.mxu0 0.0
    %1897 = vmatpush1.xpose.msra.mxu0 0.0
    %1898 = vmatprep.subr.mxu0 0.0
    %1899 = vmatpush1.xpose.msra.mxu0 0.0
    %1900 = vmatprep.subr.mxu0 0.0
    %1901 = vmatpush1.xpose.msra.mxu0 0.0
    %1902 = vmatprep.subr.mxu0 0.0
    %1903 = vmatpush1.xpose.msra.mxu0 0.0
    %1904 = vmatprep.subr.mxu0 0.0
    %1905 = vmatpush1.xpose.msra.mxu0 0.0
    %1906 = vmatprep.subr.mxu0 0.0
    %1907 = vmatpush1.xpose.msra.mxu0 0.0
    %1908 = vmatprep.subr.mxu0 0.0
    %1909 = vmatpush1.xpose.msra.mxu0 0.0
    %1910 = vmatprep.subr.mxu0 0.0
    %1911 = vmatpush1.xpose.msra.mxu0 0.0
    %1912 = vmatprep.subr.mxu0 0.0
    %1913 = vmatpush1.xpose.msra.mxu0 0.0
    %1914 = vmatprep.subr.mxu0 0.0
    %1915 = vmatpush1.xpose.msra.mxu0 0.0
    %1916 = vmatprep.subr.mxu0 0.0
    %1917 = vmatpush1.xpose.msra.mxu0 0.0
    %1918 = vmatprep.subr.mxu0 0.0
    %1919 = vmatpush1.xpose.msra.mxu0 0.0
    %1920 = vmatprep.subr.mxu0 0.0
    %1921 = vmatpush1.xpose.msra.mxu0 0.0
    %1922 = vmatprep.subr.mxu0 0.0
    %1923 = vmatpush1.xpose.msra.mxu0 0.0
    %1924 = vmatprep.subr.mxu0 0.0
    %1925 = vmatpush1.xpose.msra.mxu0 0.0
    %1926 = vmatprep.subr.mxu0 0.0
    %1927 = vmatpush1.xpose.msra.mxu0 0.0
    %1928 = vmatprep.subr.mxu0 0.0
    %1929 = vmatpush1.xpose.msra.mxu0 0.0
    %1930 = vmatprep.subr.mxu0 0.0
    %1931 = vmatpush1.xpose.msra.mxu0 0.0
    %1932 = vmatprep.subr.mxu0 0.0
    %1933 = vmatpush1.xpose.msra.mxu0 0.0
    %1934 = vmatprep.subr.mxu0 0.0
    %1935 = vmatpush1.xpose.msra.mxu0 0.0
    %1936 = vmatprep.subr.mxu0 0.0
    %1937 = vmatpush1.xpose.msra.mxu0 0.0
    %1938 = vmatprep.subr.mxu0 0.0
    %1939 = vmatpush1.xpose.msra.mxu0 0.0
    %1940 = vmatprep.subr.mxu0 0.0
    %1941 = vmatpush1.xpose.msra.mxu0 0.0
    %1942 = vmatprep.subr.mxu0 0.0
    %1943 = vmatpush1.xpose.msra.mxu0 0.0
    %1944 = vmatprep.subr.mxu0 0.0
    %1945 = vmatpush1.xpose.msra.mxu0 0.0
    %1946 = vmatprep.subr.mxu0 0.0
    %1947 = vmatpush1.xpose.msra.mxu0 0.0
    %1948 = vmatprep.subr.mxu0 0.0
    %1949 = vmatpush1.xpose.msra.mxu0 0.0
    %1950 = vmatprep.subr.mxu0 0.0
    %1951 = vmatpush1.xpose.msra.mxu0 0.0
    %1952 = vmatprep.mubr.f32.mxu0 0.0
    %1953 = vmatmul.mubr.f32.gmra.mrb[0].mxu0 %v1883
    %v1954 = vpop.f32.mrb[0].mxu0
    %v1955 = vadd.f32 0.0, %v1954
    %v1956 = vpop.f32.mrb[0].mxu0
    %1957 = vdwg.mxu0
    %v1958 = vmul.f32 %v1955, 0.17677669
    %v1959 = vadd.f32 %v1958, %v616
    %v1960 = vsel %vm619, %v1959, -inf
    %1961 = vmax.xlane.f32.xlu0 %v1960
    %v1962 = vpop.xlane.xlu0 %1961
    %v1963 = vsub.f32 %v1959, %v1962
    %v1964 = vmul.f32 %v1963, 1.442695
    %v1965 = vpow.pop %v1964
    %v1966 = vsel %vm619, %v1965, 0.0
    %1967 = vadd.xlane.f32.xlu0 %v1966
    %v1968 = vpop.xlane.xlu0 %1967
    %v1969 = vrcp.pop %v1968
    %v1970 = vmul.f32 %v1965, %v1969
    %v1972 = vsel %vm619, %v1970, 0
    %1974 = vmatprep.subr.mxu0 0.0
    %1975 = vmatpush1.msra.mxu0 %v1876
    %1976 = vmatprep.subr.mxu0 0.0
    %1977 = vmatpush1.msra.mxu0 0.0
    %1978 = vmatprep.subr.mxu0 0.0
    %1979 = vmatpush1.msra.mxu0 0.0
    %1980 = vmatprep.subr.mxu0 0.0
    %1981 = vmatpush1.msra.mxu0 0.0
    %1982 = vmatprep.subr.mxu0 0.0
    %1983 = vmatpush1.msra.mxu0 0.0
    %1984 = vmatprep.subr.mxu0 0.0
    %1985 = vmatpush1.msra.mxu0 0.0
    %1986 = vmatprep.subr.mxu0 0.0
    %1987 = vmatpush1.msra.mxu0 0.0
    %1988 = vmatprep.subr.mxu0 0.0
    %1989 = vmatpush1.msra.mxu0 0.0
    %1990 = vmatprep.subr.mxu0 0.0
    %1991 = vmatpush1.msra.mxu0 0.0
    %1992 = vmatprep.subr.mxu0 0.0
    %1993 = vmatpush1.msra.mxu0 0.0
    %1994 = vmatprep.subr.mxu0 0.0
    %1995 = vmatpush1.msra.mxu0 0.0
    %1996 = vmatprep.subr.mxu0 0.0
    %1997 = vmatpush1.msra.mxu0 0.0
    %1998 = vmatprep.subr.mxu0 0.0
    %1999 = vmatpush1.msra.mxu0 0.0
    %2000 = vmatprep.subr.mxu0 0.0
    %2001 = vmatpush1.msra.mxu0 0.0
    %2002 = vmatprep.subr.mxu0 0.0
    %2003 = vmatpush1.msra.mxu0 0.0
    %2004 = vmatprep.subr.mxu0 0.0
    %2005 = vmatpush1.msra.mxu0 0.0
    %2006 = vmatprep.subr.mxu0 0.0
    %2007 = vmatpush1.msra.mxu0 0.0
    %2008 = vmatprep.subr.mxu0 0.0
    %2009 = vmatpush1.msra.mxu0 0.0
    %2010 = vmatprep.subr.mxu0 0.0
    %2011 = vmatpush1.msra.mxu0 0.0
    %2012 = vmatprep.subr.mxu0 0.0
    %2013 = vmatpush1.msra.mxu0 0.0
    %2014 = vmatprep.subr.mxu0 0.0
    %2015 = vmatpush1.msra.mxu0 0.0
    %2016 = vmatprep.subr.mxu0 0.0
    %2017 = vmatpush1.msra.mxu0 0.0
    %2018 = vmatprep.subr.mxu0 0.0
    %2019 = vmatpush1.msra.mxu0 0.0
    %2020 = vmatprep.subr.mxu0 0.0
    %2021 = vmatpush1.msra.mxu0 0.0
    %2022 = vmatprep.subr.mxu0 0.0
    %2023 = vmatpush1.msra.mxu0 0.0
    %2024 = vmatprep.subr.mxu0 0.0
    %2025 = vmatpush1.msra.mxu0 0.0
    %2026 = vmatprep.subr.mxu0 0.0
    %2027 = vmatpush1.msra.mxu0 0.0
    %2028 = vmatprep.subr.mxu0 0.0
    %2029 = vmatpush1.msra.mxu0 0.0
    %2030 = vmatprep.subr.mxu0 0.0
    %2031 = vmatpush1.msra.mxu0 0.0
    %2032 = vmatprep.subr.mxu0 0.0
    %2033 = vmatpush1.msra.mxu0 0.0
    %2034 = vmatprep.subr.mxu0 0.0
    %2035 = vmatpush1.msra.mxu0 0.0
    %2036 = vmatprep.subr.mxu0 0.0
    %2037 = vmatpush1.msra.mxu0 0.0
    %2038 = vmatprep.mubr.f32.mxu0 0.0
    %2039 = vmatmul.mubr.f32.gmra.mrb[0].mxu0 %v1972
    %v2040 = vpop.f32.mrb[0].mxu0
    %v2041 = vadd.f32 0.0, %v2040
    %v2042 = vpop.f32.mrb[0].mxu0
    %2043 = vdwg.mxu0
    %v2045 = vsel %vm533, %v1651, 0
    %v2048 = vsel %vm533, %v1765, 0
    %2050 = vmatprep.subr.mxu0 0.0
    %2051 = vmatpush1.xpose.msra.mxu0 %v2048
    %2052 = vmatprep.subr.mxu0 0.0
    %2053 = vmatpush1.xpose.msra.mxu0 0.0
    %2054 = vmatprep.subr.mxu0 0.0
    %2055 = vmatpush1.xpose.msra.mxu0 0.0
    %2056 = vmatprep.subr.mxu0 0.0
    %2057 = vmatpush1.xpose.msra.mxu0 0.0
    %2058 = vmatprep.subr.mxu0 0.0
    %2059 = vmatpush1.xpose.msra.mxu0 0.0
    %2060 = vmatprep.subr.mxu0 0.0
    %2061 = vmatpush1.xpose.msra.mxu0 0.0
    %2062 = vmatprep.subr.mxu0 0.0
    %2063 = vmatpush1.xpose.msra.mxu0 0.0
    %2064 = vmatprep.subr.mxu0 0.0
    %2065 = vmatpush1.xpose.msra.mxu0 0.0
    %2066 = vmatprep.subr.mxu0 0.0
    %2067 = vmatpush1.xpose.msra.mxu0 0.0
    %2068 = vmatprep.subr.mxu0 0.0
    %2069 = vmatpush1.xpose.msra.mxu0 0.0
    %2070 = vmatprep.subr.mxu0 0.0
    %2071 = vmatpush1.xpose.msra.mxu0 0.0
    %2072 = vmatprep.subr.mxu0 0.0
    %2073 = vmatpush1.xpose.msra.mxu0 0.0
    %2074 = vmatprep.subr.mxu0 0.0
    %2075 = vmatpush1.xpose.msra.mxu0 0.0
    %2076 = vmatprep.subr.mxu0 0.0
    %2077 = vmatpush1.xpose.msra.mxu0 0.0
    %2078 = vmatprep.subr.mxu0 0.0
    %2079 = vmatpush1.xpose.msra.mxu0 0.0
    %2080 = vmatprep.subr.mxu0 0.0
    %2081 = vmatpush1.xpose.msra.mxu0 0.0
    %2082 = vmatprep.subr.mxu0 0.0
    %2083 = vmatpush1.xpose.msra.mxu0 0.0
    %2084 = vmatprep.subr.mxu0 0.0
    %2085 = vmatpush1.xpose.msra.mxu0 0.0
    %2086 = vmatprep.subr.mxu0 0.0
    %2087 = vmatpush1.xpose.msra.mxu0 0.0
    %2088 = vmatprep.subr.mxu0 0.0
    %2089 = vmatpush1.xpose.msra.mxu0 0.0
    %2090 = vmatprep.subr.mxu0 0.0
    %2091 = vmatpush1.xpose.msra.mxu0 0.0
    %2092 = vmatprep.subr.mxu0 0.0
    %2093 = vmatpush1.xpose.msra.mxu0 0.0
    %2094 = vmatprep.subr.mxu0 0.0
    %2095 = vmatpush1.xpose.msra.mxu0 0.0
    %2096 = vmatprep.subr.mxu0 0.0
    %2097 = vmatpush1.xpose.msra.mxu0 0.0
    %2098 = vmatprep.subr.mxu0 0.0
    %2099 = vmatpush1.xpose.msra.mxu0 0.0
    %2100 = vmatprep.subr.mxu0 0.0
    %2101 = vmatpush1.xpose.msra.mxu0 0.0
    %2102 = vmatprep.subr.mxu0 0.0
    %2103 = vmatpush1.xpose.msra.mxu0 0.0
    %2104 = vmatprep.subr.mxu0 0.0
    %2105 = vmatpush1.xpose.msra.mxu0 0.0
    %2106 = vmatprep.subr.mxu0 0.0
    %2107 = vmatpush1.xpose.msra.mxu0 0.0
    %2108 = vmatprep.subr.mxu0 0.0
    %2109 = vmatpush1.xpose.msra.mxu0 0.0
    %2110 = vmatprep.subr.mxu0 0.0
    %2111 = vmatpush1.xpose.msra.mxu0 0.0
    %2112 = vmatprep.subr.mxu0 0.0
    %2113 = vmatpush1.xpose.msra.mxu0 0.0
    %2114 = vmatprep.mubr.f32.mxu0 0.0
    %2115 = vmatmul.mubr.f32.gmra.mrb[0].mxu0 %v2045
    %v2116 = vpop.f32.mrb[0].mxu0
    %v2117 = vadd.f32 0.0, %v2116
    %v2118 = vpop.f32.mrb[0].mxu0
    %2119 = vdwg.mxu0
    %v2120 = vmul.f32 %v2117, 0.17677669
    %v2121 = vadd.f32 %v2120, %v787
    %v2122 = vsel %vm619, %v2121, -inf
    %2123 = vmax.xlane.f32.xlu0 %v2122
    %v2124 = vpop.xlane.xlu0 %2123
    %v2125 = vsub.f32 %v2121, %v2124
    %v2126 = vmul.f32 %v2125, 1.442695
    %v2127 = vpow.pop %v2126
    %v2128 = vsel %vm619, %v2127, 0.0
    %2129 = vadd.xlane.f32.xlu0 %v2128
    %v2130 = vpop.xlane.xlu0 %2129
    %v2131 = vrcp.pop %v2130
    %v2132 = vmul.f32 %v2127, %v2131
    %v2134 = vsel %vm619, %v2132, 0
    %2136 = vmatprep.subr.mxu0 0.0
    %2137 = vmatpush1.msra.mxu0 %v1879
    %2138 = vmatprep.subr.mxu0 0.0
    %2139 = vmatpush1.msra.mxu0 0.0
    %2140 = vmatprep.subr.mxu0 0.0
    %2141 = vmatpush1.msra.mxu0 0.0
    %2142 = vmatprep.subr.mxu0 0.0
    %2143 = vmatpush1.msra.mxu0 0.0
    %2144 = vmatprep.subr.mxu0 0.0
    %2145 = vmatpush1.msra.mxu0 0.0
    %2146 = vmatprep.subr.mxu0 0.0
    %2147 = vmatpush1.msra.mxu0 0.0
    %2148 = vmatprep.subr.mxu0 0.0
    %2149 = vmatpush1.msra.mxu0 0.0
    %2150 = vmatprep.subr.mxu0 0.0
    %2151 = vmatpush1.msra.mxu0 0.0
    %2152 = vmatprep.subr.mxu0 0.0
    %2153 = vmatpush1.msra.mxu0 0.0
    %2154 = vmatprep.subr.mxu0 0.0
    %2155 = vmatpush1.msra.mxu0 0.0
    %2156 = vmatprep.subr.mxu0 0.0
    %2157 = vmatpush1.msra.mxu0 0.0
    %2158 = vmatprep.subr.mxu0 0.0
    %2159 = vmatpush1.msra.mxu0 0.0
    %2160 = vmatprep.subr.mxu0 0.0
    %2161 = vmatpush1.msra.mxu0 0.0
    %2162 = vmatprep.subr.mxu0 0.0
    %2163 = vmatpush1.msra.mxu0 0.0
    %2164 = vmatprep.subr.mxu0 0.0
    %2165 = vmatpush1.msra.mxu0 0.0
    %2166 = vmatprep.subr.mxu0 0.0
    %2167 = vmatpush1.msra.mxu0 0.0
    %2168 = vmatprep.subr.mxu0 0.0
    %2169 = vmatpush1.msra.mxu0 0.0
    %2170 = vmatprep.subr.mxu0 0.0
    %2171 = vmatpush1.msra.mxu0 0.0
    %2172 = vmatprep.subr.mxu0 0.0
    %2173 = vmatpush1.msra.mxu0 0.0
    %2174 = vmatprep.subr.mxu0 0.0
    %2175 = vmatpush1.msra.mxu0 0.0
    %2176 = vmatprep.subr.mxu0 0.0
    %2177 = vmatpush1.msra.mxu0 0.0
    %2178 = vmatprep.subr.mxu0 0.0
    %2179 = vmatpush1.msra.mxu0 0.0
    %2180 = vmatprep.subr.mxu0 0.0
    %2181 = vmatpush1.msra.mxu0 0.0
    %2182 = vmatprep.subr.mxu0 0.0
    %2183 = vmatpush1.msra.mxu0 0.0
    %2184 = vmatprep.subr.mxu0 0.0
    %2185 = vmatpush1.msra.mxu0 0.0
    %2186 = vmatprep.subr.mxu0 0.0
    %2187 = vmatpush1.msra.mxu0 0.0
    %2188 = vmatprep.subr.mxu0 0.0
    %2189 = vmatpush1.msra.mxu0 0.0
    %2190 = vmatprep.subr.mxu0 0.0
    %2191 = vmatpush1.msra.mxu0 0.0
    %2192 = vmatprep.subr.mxu0 0.0
    %2193 = vmatpush1.msra.mxu0 0.0
    %2194 = vmatprep.subr.mxu0 0.0
    %2195 = vmatpush1.msra.mxu0 0.0
    %2196 = vmatprep.subr.mxu0 0.0
    %2197 = vmatpush1.msra.mxu0 0.0
    %2198 = vmatprep.subr.mxu0 0.0
    %2199 = vmatpush1.msra.mxu0 0.0
    %2200 = vmatprep.mubr.f32.mxu0 0.0
    %2201 = vmatmul.mubr.f32.gmra.mrb[0].mxu0 %v2134
    %v2202 = vpop.f32.mrb[0].mxu0
    %v2203 = vadd.f32 0.0, %v2202
    %v2204 = vpop.f32.mrb[0].mxu0
    %2205 = vdwg.mxu0
    %s2206 = scalar_lea.vmem [#allocation6], 192
    %v2207 = vld [vmem:[%s2206] sm:$0xf]
    %v2208 = vld [vmem:[%s2206 + $0x4] sm:$0xf]
    %v2209 = vld [vmem:[%s2206 + $0x8] sm:$0xf]
    %v2210 = vld [vmem:[%s2206 + $0xc] sm:$0xf]
    %v2211 = vld [vmem:[%s2206 + $0x10] sm:$0xf]
    %v2212 = vld [vmem:[%s2206 + $0x14] sm:$0xf]
    %v2213 = vld [vmem:[%s2206 + $0x18] sm:$0xf]
    %v2214 = vld [vmem:[%s2206 + $0x1c] sm:$0xf]
    %v2215 = vld [vmem:[%s2206 + $0x20] sm:$0xf]
    %v2216 = vld [vmem:[%s2206 + $0x24] sm:$0xf]
    %v2217 = vld [vmem:[%s2206 + $0x28] sm:$0xf]
    %v2218 = vld [vmem:[%s2206 + $0x2c] sm:$0xf]
    %v2219 = vld [vmem:[%s2206 + $0x30] sm:$0xf]
    %v2220 = vld [vmem:[%s2206 + $0x34] sm:$0xf]
    %v2221 = vld [vmem:[%s2206 + $0x38] sm:$0xf]
    %v2222 = vld [vmem:[%s2206 + $0x3c] sm:$0xf]
    %s2223 = scalar_lea.vmem %s7, 3
    %v2224 = vld [vmem:[%s2223] sm:$0x1]
    %v2226 = vlaneseq
    %v2227 = vshrl.u32 %v2226, 7
    %v2228 = vsub.s32 0, %v2227
    %v2229 = vrot.slane %v2224, %v2228
    %v2247 = vunpack.c.l.b16 %v2207
    %v2248 = vunpack.c.l.b16 %v2208
    %v2249 = vunpack.c.l.b16 %v2209
    %v2250 = vunpack.c.l.b16 %v2210
    %v2251 = vunpack.c.l.b16 %v2211
    %v2252 = vunpack.c.l.b16 %v2212
    %v2253 = vunpack.c.l.b16 %v2213
    %v2254 = vunpack.c.l.b16 %v2214
    %v2255 = vunpack.c.l.b16 %v2215
    %v2256 = vunpack.c.l.b16 %v2216
    %v2257 = vunpack.c.l.b16 %v2217
    %v2258 = vunpack.c.l.b16 %v2218
    %v2259 = vunpack.c.l.b16 %v2219
    %v2260 = vunpack.c.l.b16 %v2220
    %v2261 = vunpack.c.l.b16 %v2221
    %v2262 = vunpack.c.l.b16 %v2222
    %v2263 = vpack.c.b16 %v2248, %v2247
    %v2264 = vpack.c.b16 %v2250, %v2249
    %v2265 = vpack.c.b16 %v2252, %v2251
    %v2266 = vpack.c.b16 %v2254, %v2253
    %v2267 = vpack.c.b16 %v2256, %v2255
    %v2268 = vpack.c.b16 %v2258, %v2257
    %v2269 = vpack.c.b16 %v2260, %v2259
    %v2270 = vpack.c.b16 %v2262, %v2261
    %2279 = vmatprep.subr.bf16.mxu0 0
    %2280 = vmatpush1.bf16.msra.mxu0 %v2263
    %2281 = vmatprep.subr.bf16.mxu0 0
    %2282 = vmatpush1.bf16.msra.mxu0 %v2264
    %2283 = vmatprep.subr.bf16.mxu0 0
    %2284 = vmatpush1.bf16.msra.mxu0 %v2265
    %2285 = vmatprep.subr.bf16.mxu0 0
    %2286 = vmatpush1.bf16.msra.mxu0 %v2266
    %2287 = vmatprep.subr.bf16.mxu0 0
    %2288 = vmatpush1.bf16.msra.mxu0 %v2267
    %2289 = vmatprep.subr.bf16.mxu0 0
    %2290 = vmatpush1.bf16.msra.mxu0 %v2268
    %2291 = vmatprep.subr.bf16.mxu0 0
    %2292 = vmatpush1.bf16.msra.mxu0 %v2269
    %2293 = vmatprep.subr.bf16.mxu0 0
    %2294 = vmatpush1.bf16.msra.mxu0 %v2270
    %2295 = vmatprep.subr.bf16.mxu0 0
    %2296 = vmatpush1.bf16.msra.mxu0 0
    %2297 = vmatprep.subr.bf16.mxu0 0
    %2298 = vmatpush1.bf16.msra.mxu0 0
    %2299 = vmatprep.subr.bf16.mxu0 0
    %2300 = vmatpush1.bf16.msra.mxu0 0
    %2301 = vmatprep.subr.bf16.mxu0 0
    %2302 = vmatpush1.bf16.msra.mxu0 0
    %2303 = vmatprep.subr.bf16.mxu0 0
    %2304 = vmatpush1.bf16.msra.mxu0 0
    %2305 = vmatprep.subr.bf16.mxu0 0
    %2306 = vmatpush1.bf16.msra.mxu0 0
    %2307 = vmatprep.subr.bf16.mxu0 0
    %2308 = vmatpush1.bf16.msra.mxu0 0
    %2309 = vmatprep.subr.bf16.mxu0 0
    %2310 = vmatpush1.bf16.msra.mxu0 0
    %2311 = vmatprep.mubr.bf16.mxu0 0
    %2312 = vmatmul.mubr.bf16.gmra.mrb[0].mxu0 %v196
    %v2313 = vpop.f32.mrb[0].mxu0
    %v2314 = vadd.f32 %v2229, %v2313
    %v2315 = vpop.f32.mrb[0].mxu0
    %v2316 = vpop.f32.mrb[0].mxu0
    %v2317 = vadd.f32 %v2229, %v2316
    %v2318 = vpop.f32.mrb[0].mxu0
    %2319 = vdwg.mxu0
    %s2320 = scalar_lea.vmem [#allocation7], 192
    %v2321 = vld [vmem:[%s2320] sm:$0xf]
    %v2322 = vld [vmem:[%s2320 + $0x4] sm:$0xf]
    %v2323 = vld [vmem:[%s2320 + $0x8] sm:$0xf]
    %v2324 = vld [vmem:[%s2320 + $0xc] sm:$0xf]
    %v2325 = vld [vmem:[%s2320 + $0x10] sm:$0xf]
    %v2326 = vld [vmem:[%s2320 + $0x14] sm:$0xf]
    %v2327 = vld [vmem:[%s2320 + $0x18] sm:$0xf]
    %v2328 = vld [vmem:[%s2320 + $0x1c] sm:$0xf]
    %v2329 = vld [vmem:[%s2320 + $0x20] sm:$0xf]
    %v2330 = vld [vmem:[%s2320 + $0x24] sm:$0xf]
    %v2331 = vld [vmem:[%s2320 + $0x28] sm:$0xf]
    %v2332 = vld [vmem:[%s2320 + $0x2c] sm:$0xf]
    %v2333 = vld [vmem:[%s2320 + $0x30] sm:$0xf]
    %v2334 = vld [vmem:[%s2320 + $0x34] sm:$0xf]
    %v2335 = vld [vmem:[%s2320 + $0x38] sm:$0xf]
    %v2336 = vld [vmem:[%s2320 + $0x3c] sm:$0xf]
    %s2337 = scalar_lea.vmem %s9, 3
    %v2338 = vld [vmem:[%s2337] sm:$0x1]
    %v2340 = vlaneseq
    %v2341 = vshrl.u32 %v2340, 7
    %v2342 = vsub.s32 0, %v2341
    %v2343 = vrot.slane %v2338, %v2342
    %v2361 = vunpack.c.l.b16 %v2321
    %v2362 = vunpack.c.l.b16 %v2322
    %v2363 = vunpack.c.l.b16 %v2323
    %v2364 = vunpack.c.l.b16 %v2324
    %v2365 = vunpack.c.l.b16 %v2325
    %v2366 = vunpack.c.l.b16 %v2326
    %v2367 = vunpack.c.l.b16 %v2327
    %v2368 = vunpack.c.l.b16 %v2328
    %v2369 = vunpack.c.l.b16 %v2329
    %v2370 = vunpack.c.l.b16 %v2330
    %v2371 = vunpack.c.l.b16 %v2331
    %v2372 = vunpack.c.l.b16 %v2332
    %v2373 = vunpack.c.l.b16 %v2333
    %v2374 = vunpack.c.l.b16 %v2334
    %v2375 = vunpack.c.l.b16 %v2335
    %v2376 = vunpack.c.l.b16 %v2336
    %v2377 = vpack.c.b16 %v2362, %v2361
    %v2378 = vpack.c.b16 %v2364, %v2363
    %v2379 = vpack.c.b16 %v2366, %v2365
    %v2380 = vpack.c.b16 %v2368, %v2367
    %v2381 = vpack.c.b16 %v2370, %v2369
    %v2382 = vpack.c.b16 %v2372, %v2371
    %v2383 = vpack.c.b16 %v2374, %v2373
    %v2384 = vpack.c.b16 %v2376, %v2375
    %2393 = vmatprep.subr.bf16.mxu0 0
    %2394 = vmatpush1.bf16.msra.mxu0 %v2377
    %2395 = vmatprep.subr.bf16.mxu0 0
    %2396 = vmatpush1.bf16.msra.mxu0 %v2378
    %2397 = vmatprep.subr.bf16.mxu0 0
    %2398 = vmatpush1.bf16.msra.mxu0 %v2379
    %2399 = vmatprep.subr.bf16.mxu0 0
    %2400 = vmatpush1.bf16.msra.mxu0 %v2380
    %2401 = vmatprep.subr.bf16.mxu0 0
    %2402 = vmatpush1.bf16.msra.mxu0 %v2381
    %2403 = vmatprep.subr.bf16.mxu0 0
    %2404 = vmatpush1.bf16.msra.mxu0 %v2382
    %2405 = vmatprep.subr.bf16.mxu0 0
    %2406 = vmatpush1.bf16.msra.mxu0 %v2383
    %2407 = vmatprep.subr.bf16.mxu0 0
    %2408 = vmatpush1.bf16.msra.mxu0 %v2384
    %2409 = vmatprep.subr.bf16.mxu0 0
    %2410 = vmatpush1.bf16.msra.mxu0 0
    %2411 = vmatprep.subr.bf16.mxu0 0
    %2412 = vmatpush1.bf16.msra.mxu0 0
    %2413 = vmatprep.subr.bf16.mxu0 0
    %2414 = vmatpush1.bf16.msra.mxu0 0
    %2415 = vmatprep.subr.bf16.mxu0 0
    %2416 = vmatpush1.bf16.msra.mxu0 0
    %2417 = vmatprep.subr.bf16.mxu0 0
    %2418 = vmatpush1.bf16.msra.mxu0 0
    %2419 = vmatprep.subr.bf16.mxu0 0
    %2420 = vmatpush1.bf16.msra.mxu0 0
    %2421 = vmatprep.subr.bf16.mxu0 0
    %2422 = vmatpush1.bf16.msra.mxu0 0
    %2423 = vmatprep.subr.bf16.mxu0 0
    %2424 = vmatpush1.bf16.msra.mxu0 0
    %2425 = vmatprep.mubr.bf16.mxu0 0
    %2426 = vmatmul.mubr.bf16.gmra.mrb[0].mxu0 %v196
    %v2427 = vpop.f32.mrb[0].mxu0
    %v2428 = vadd.f32 %v2343, %v2427
    %v2429 = vpop.f32.mrb[0].mxu0
    %v2430 = vpop.f32.mrb[0].mxu0
    %v2431 = vadd.f32 %v2343, %v2430
    %v2432 = vpop.f32.mrb[0].mxu0
    %2433 = vdwg.mxu0
    %s2434 = scalar_lea.vmem %s10, 192
    %v2435 = vld [vmem:[%s2434] sm:$0xf]
    %v2436 = vld [vmem:[%s2434 + $0x4] sm:$0xf]
    %v2437 = vld [vmem:[%s2434 + $0x8] sm:$0xf]
    %v2438 = vld [vmem:[%s2434 + $0xc] sm:$0xf]
    %v2439 = vld [vmem:[%s2434 + $0x10] sm:$0xf]
    %v2440 = vld [vmem:[%s2434 + $0x14] sm:$0xf]
    %v2441 = vld [vmem:[%s2434 + $0x18] sm:$0xf]
    %v2442 = vld [vmem:[%s2434 + $0x1c] sm:$0xf]
    %v2443 = vld [vmem:[%s2434 + $0x20] sm:$0xf]
    %v2444 = vld [vmem:[%s2434 + $0x24] sm:$0xf]
    %v2445 = vld [vmem:[%s2434 + $0x28] sm:$0xf]
    %v2446 = vld [vmem:[%s2434 + $0x2c] sm:$0xf]
    %v2447 = vld [vmem:[%s2434 + $0x30] sm:$0xf]
    %v2448 = vld [vmem:[%s2434 + $0x34] sm:$0xf]
    %v2449 = vld [vmem:[%s2434 + $0x38] sm:$0xf]
    %v2450 = vld [vmem:[%s2434 + $0x3c] sm:$0xf]
    %s2451 = scalar_lea.vmem %s11, 3
    %v2452 = vld [vmem:[%s2451] sm:$0x1]
    %v2454 = vlaneseq
    %v2455 = vshrl.u32 %v2454, 7
    %v2456 = vsub.s32 0, %v2455
    %v2457 = vrot.slane %v2452, %v2456
    %v2475 = vunpack.c.l.b16 %v2435
    %v2476 = vunpack.c.l.b16 %v2436
    %v2477 = vunpack.c.l.b16 %v2437
    %v2478 = vunpack.c.l.b16 %v2438
    %v2479 = vunpack.c.l.b16 %v2439
    %v2480 = vunpack.c.l.b16 %v2440
    %v2481 = vunpack.c.l.b16 %v2441
    %v2482 = vunpack.c.l.b16 %v2442
    %v2483 = vunpack.c.l.b16 %v2443
    %v2484 = vunpack.c.l.b16 %v2444
    %v2485 = vunpack.c.l.b16 %v2445
    %v2486 = vunpack.c.l.b16 %v2446
    %v2487 = vunpack.c.l.b16 %v2447
    %v2488 = vunpack.c.l.b16 %v2448
    %v2489 = vunpack.c.l.b16 %v2449
    %v2490 = vunpack.c.l.b16 %v2450
    %v2491 = vpack.c.b16 %v2476, %v2475
    %v2492 = vpack.c.b16 %v2478, %v2477
    %v2493 = vpack.c.b16 %v2480, %v2479
    %v2494 = vpack.c.b16 %v2482, %v2481
    %v2495 = vpack.c.b16 %v2484, %v2483
    %v2496 = vpack.c.b16 %v2486, %v2485
    %v2497 = vpack.c.b16 %v2488, %v2487
    %v2498 = vpack.c.b16 %v2490, %v2489
    %2507 = vmatprep.subr.bf16.mxu0 0
    %2508 = vmatpush1.bf16.msra.mxu0 %v2491
    %2509 = vmatprep.subr.bf16.mxu0 0
    %2510 = vmatpush1.bf16.msra.mxu0 %v2492
    %2511 = vmatprep.subr.bf16.mxu0 0
    %2512 = vmatpush1.bf16.msra.mxu0 %v2493
    %2513 = vmatprep.subr.bf16.mxu0 0
    %2514 = vmatpush1.bf16.msra.mxu0 %v2494
    %2515 = vmatprep.subr.bf16.mxu0 0
    %2516 = vmatpush1.bf16.msra.mxu0 %v2495
    %2517 = vmatprep.subr.bf16.mxu0 0
    %2518 = vmatpush1.bf16.msra.mxu0 %v2496
    %2519 = vmatprep.subr.bf16.mxu0 0
    %2520 = vmatpush1.bf16.msra.mxu0 %v2497
    %2521 = vmatprep.subr.bf16.mxu0 0
    %2522 = vmatpush1.bf16.msra.mxu0 %v2498
    %2523 = vmatprep.subr.bf16.mxu0 0
    %2524 = vmatpush1.bf16.msra.mxu0 0
    %2525 = vmatprep.subr.bf16.mxu0 0
    %2526 = vmatpush1.bf16.msra.mxu0 0
    %2527 = vmatprep.subr.bf16.mxu0 0
    %2528 = vmatpush1.bf16.msra.mxu0 0
    %2529 = vmatprep.subr.bf16.mxu0 0
    %2530 = vmatpush1.bf16.msra.mxu0 0
    %2531 = vmatprep.subr.bf16.mxu0 0
    %2532 = vmatpush1.bf16.msra.mxu0 0
    %2533 = vmatprep.subr.bf16.mxu0 0
    %2534 = vmatpush1.bf16.msra.mxu0 0
    %2535 = vmatprep.subr.bf16.mxu0 0
    %2536 = vmatpush1.bf16.msra.mxu0 0
    %2537 = vmatprep.subr.bf16.mxu0 0
    %2538 = vmatpush1.bf16.msra.mxu0 0
    %2539 = vmatprep.mubr.bf16.mxu0 0
    %2540 = vmatmul.mubr.bf16.gmra.mrb[0].mxu0 %v196
    %v2541 = vpop.f32.mrb[0].mxu0
    %v2542 = vadd.f32 %v2457, %v2541
    %v2543 = vpop.f32.mrb[0].mxu0
    %v2544 = vpop.f32.mrb[0].mxu0
    %v2545 = vadd.f32 %v2457, %v2544
    %v2546 = vpop.f32.mrb[0].mxu0
    %2547 = vdwg.mxu0
    %v2549 = vsel %vm533, %v2314, 0
    %v2552 = vsel %vm533, %v2428, 0
    %2554 = vmatprep.subr.mxu0 0.0
    %2555 = vmatpush1.xpose.msra.mxu0 %v2552
    %2556 = vmatprep.subr.mxu0 0.0
    %2557 = vmatpush1.xpose.msra.mxu0 0.0
    %2558 = vmatprep.subr.mxu0 0.0
    %2559 = vmatpush1.xpose.msra.mxu0 0.0
    %2560 = vmatprep.subr.mxu0 0.0
    %2561 = vmatpush1.xpose.msra.mxu0 0.0
    %2562 = vmatprep.subr.mxu0 0.0
    %2563 = vmatpush1.xpose.msra.mxu0 0.0
    %2564 = vmatprep.subr.mxu0 0.0
    %2565 = vmatpush1.xpose.msra.mxu0 0.0
    %2566 = vmatprep.subr.mxu0 0.0
    %2567 = vmatpush1.xpose.msra.mxu0 0.0
    %2568 = vmatprep.subr.mxu0 0.0
    %2569 = vmatpush1.xpose.msra.mxu0 0.0
    %2570 = vmatprep.subr.mxu0 0.0
    %2571 = vmatpush1.xpose.msra.mxu0 0.0
    %2572 = vmatprep.subr.mxu0 0.0
    %2573 = vmatpush1.xpose.msra.mxu0 0.0
    %2574 = vmatprep.subr.mxu0 0.0
    %2575 = vmatpush1.xpose.msra.mxu0 0.0
    %2576 = vmatprep.subr.mxu0 0.0
    %2577 = vmatpush1.xpose.msra.mxu0 0.0
    %2578 = vmatprep.subr.mxu0 0.0
    %2579 = vmatpush1.xpose.msra.mxu0 0.0
    %2580 = vmatprep.subr.mxu0 0.0
    %2581 = vmatpush1.xpose.msra.mxu0 0.0
    %2582 = vmatprep.subr.mxu0 0.0
    %2583 = vmatpush1.xpose.msra.mxu0 0.0
    %2584 = vmatprep.subr.mxu0 0.0
    %2585 = vmatpush1.xpose.msra.mxu0 0.0
    %2586 = vmatprep.subr.mxu0 0.0
    %2587 = vmatpush1.xpose.msra.mxu0 0.0
    %2588 = vmatprep.subr.mxu0 0.0
    %2589 = vmatpush1.xpose.msra.mxu0 0.0
    %2590 = vmatprep.subr.mxu0 0.0
    %2591 = vmatpush1.xpose.msra.mxu0 0.0
    %2592 = vmatprep.subr.mxu0 0.0
    %2593 = vmatpush1.xpose.msra.mxu0 0.0
    %2594 = vmatprep.subr.mxu0 0.0
    %2595 = vmatpush1.xpose.msra.mxu0 0.0
    %2596 = vmatprep.subr.mxu0 0.0
    %2597 = vmatpush1.xpose.msra.mxu0 0.0
    %2598 = vmatprep.subr.mxu0 0.0
    %2599 = vmatpush1.xpose.msra.mxu0 0.0
    %2600 = vmatprep.subr.mxu0 0.0
    %2601 = vmatpush1.xpose.msra.mxu0 0.0
    %2602 = vmatprep.subr.mxu0 0.0
    %2603 = vmatpush1.xpose.msra.mxu0 0.0
    %2604 = vmatprep.subr.mxu0 0.0
    %2605 = vmatpush1.xpose.msra.mxu0 0.0
    %2606 = vmatprep.subr.mxu0 0.0
    %2607 = vmatpush1.xpose.msra.mxu0 0.0
    %2608 = vmatprep.subr.mxu0 0.0
    %2609 = vmatpush1.xpose.msra.mxu0 0.0
    %2610 = vmatprep.subr.mxu0 0.0
    %2611 = vmatpush1.xpose.msra.mxu0 0.0
    %2612 = vmatprep.subr.mxu0 0.0
    %2613 = vmatpush1.xpose.msra.mxu0 0.0
    %2614 = vmatprep.subr.mxu0 0.0
    %2615 = vmatpush1.xpose.msra.mxu0 0.0
    %2616 = vmatprep.subr.mxu0 0.0
    %2617 = vmatpush1.xpose.msra.mxu0 0.0
    %2618 = vmatprep.mubr.f32.mxu0 0.0
    %2619 = vmatmul.mubr.f32.gmra.mrb[0].mxu0 %v2549
    %v2620 = vpop.f32.mrb[0].mxu0
    %v2621 = vadd.f32 0.0, %v2620
    %v2622 = vpop.f32.mrb[0].mxu0
    %2623 = vdwg.mxu0
    %v2624 = vmul.f32 %v2621, 0.17677669
    %v2625 = vadd.f32 %v2624, %v616
    %v2626 = vsel %vm619, %v2625, -inf
    %2627 = vmax.xlane.f32.xlu0 %v2626
    %v2628 = vpop.xlane.xlu0 %2627
    %v2629 = vsub.f32 %v2625, %v2628
    %v2630 = vmul.f32 %v2629, 1.442695
    %v2631 = vpow.pop %v2630
    %v2632 = vsel %vm619, %v2631, 0.0
    %2633 = vadd.xlane.f32.xlu0 %v2632
    %v2634 = vpop.xlane.xlu0 %2633
    %v2635 = vrcp.pop %v2634
    %v2636 = vmul.f32 %v2631, %v2635
    %v2638 = vsel %vm619, %v2636, 0
    %2640 = vmatprep.subr.mxu0 0.0
    %2641 = vmatpush1.msra.mxu0 %v2542
    %2642 = vmatprep.subr.mxu0 0.0
    %2643 = vmatpush1.msra.mxu0 0.0
    %2644 = vmatprep.subr.mxu0 0.0
    %2645 = vmatpush1.msra.mxu0 0.0
    %2646 = vmatprep.subr.mxu0 0.0
    %2647 = vmatpush1.msra.mxu0 0.0
    %2648 = vmatprep.subr.mxu0 0.0
    %2649 = vmatpush1.msra.mxu0 0.0
    %2650 = vmatprep.subr.mxu0 0.0
    %2651 = vmatpush1.msra.mxu0 0.0
    %2652 = vmatprep.subr.mxu0 0.0
    %2653 = vmatpush1.msra.mxu0 0.0
    %2654 = vmatprep.subr.mxu0 0.0
    %2655 = vmatpush1.msra.mxu0 0.0
    %2656 = vmatprep.subr.mxu0 0.0
    %2657 = vmatpush1.msra.mxu0 0.0
    %2658 = vmatprep.subr.mxu0 0.0
    %2659 = vmatpush1.msra.mxu0 0.0
    %2660 = vmatprep.subr.mxu0 0.0
    %2661 = vmatpush1.msra.mxu0 0.0
    %2662 = vmatprep.subr.mxu0 0.0
    %2663 = vmatpush1.msra.mxu0 0.0
    %2664 = vmatprep.subr.mxu0 0.0
    %2665 = vmatpush1.msra.mxu0 0.0
    %2666 = vmatprep.subr.mxu0 0.0
    %2667 = vmatpush1.msra.mxu0 0.0
    %2668 = vmatprep.subr.mxu0 0.0
    %2669 = vmatpush1.msra.mxu0 0.0
    %2670 = vmatprep.subr.mxu0 0.0
    %2671 = vmatpush1.msra.mxu0 0.0
    %2672 = vmatprep.subr.mxu0 0.0
    %2673 = vmatpush1.msra.mxu0 0.0
    %2674 = vmatprep.subr.mxu0 0.0
    %2675 = vmatpush1.msra.mxu0 0.0
    %2676 = vmatprep.subr.mxu0 0.0
    %2677 = vmatpush1.msra.mxu0 0.0
    %2678 = vmatprep.subr.mxu0 0.0
    %2679 = vmatpush1.msra.mxu0 0.0
    %2680 = vmatprep.subr.mxu0 0.0
    %2681 = vmatpush1.msra.mxu0 0.0
    %2682 = vmatprep.subr.mxu0 0.0
    %2683 = vmatpush1.msra.mxu0 0.0
    %2684 = vmatprep.subr.mxu0 0.0
    %2685 = vmatpush1.msra.mxu0 0.0
    %2686 = vmatprep.subr.mxu0 0.0
    %2687 = vmatpush1.msra.mxu0 0.0
    %2688 = vmatprep.subr.mxu0 0.0
    %2689 = vmatpush1.msra.mxu0 0.0
    %2690 = vmatprep.subr.mxu0 0.0
    %2691 = vmatpush1.msra.mxu0 0.0
    %2692 = vmatprep.subr.mxu0 0.0
    %2693 = vmatpush1.msra.mxu0 0.0
    %2694 = vmatprep.subr.mxu0 0.0
    %2695 = vmatpush1.msra.mxu0 0.0
    %2696 = vmatprep.subr.mxu0 0.0
    %2697 = vmatpush1.msra.mxu0 0.0
    %2698 = vmatprep.subr.mxu0 0.0
    %2699 = vmatpush1.msra.mxu0 0.0
    %2700 = vmatprep.subr.mxu0 0.0
    %2701 = vmatpush1.msra.mxu0 0.0
    %2702 = vmatprep.subr.mxu0 0.0
    %2703 = vmatpush1.msra.mxu0 0.0
    %2704 = vmatprep.mubr.f32.mxu0 0.0
    %2705 = vmatmul.mubr.f32.gmra.mrb[0].mxu0 %v2638
    %v2706 = vpop.f32.mrb[0].mxu0
    %v2707 = vadd.f32 0.0, %v2706
    %v2708 = vpop.f32.mrb[0].mxu0
    %2709 = vdwg.mxu0
    %v2711 = vsel %vm533, %v2317, 0
    %v2714 = vsel %vm533, %v2431, 0
    %2716 = vmatprep.subr.mxu0 0.0
    %2717 = vmatpush1.xpose.msra.mxu0 %v2714
    %2718 = vmatprep.subr.mxu0 0.0
    %2719 = vmatpush1.xpose.msra.mxu0 0.0
    %2720 = vmatprep.subr.mxu0 0.0
    %2721 = vmatpush1.xpose.msra.mxu0 0.0
    %2722 = vmatprep.subr.mxu0 0.0
    %2723 = vmatpush1.xpose.msra.mxu0 0.0
    %2724 = vmatprep.subr.mxu0 0.0
    %2725 = vmatpush1.xpose.msra.mxu0 0.0
    %2726 = vmatprep.subr.mxu0 0.0
    %2727 = vmatpush1.xpose.msra.mxu0 0.0
    %2728 = vmatprep.subr.mxu0 0.0
    %2729 = vmatpush1.xpose.msra.mxu0 0.0
    %2730 = vmatprep.subr.mxu0 0.0
    %2731 = vmatpush1.xpose.msra.mxu0 0.0
    %2732 = vmatprep.subr.mxu0 0.0
    %2733 = vmatpush1.xpose.msra.mxu0 0.0
    %2734 = vmatprep.subr.mxu0 0.0
    %2735 = vmatpush1.xpose.msra.mxu0 0.0
    %2736 = vmatprep.subr.mxu0 0.0
    %2737 = vmatpush1.xpose.msra.mxu0 0.0
    %2738 = vmatprep.subr.mxu0 0.0
    %2739 = vmatpush1.xpose.msra.mxu0 0.0
    %2740 = vmatprep.subr.mxu0 0.0
    %2741 = vmatpush1.xpose.msra.mxu0 0.0
    %2742 = vmatprep.subr.mxu0 0.0
    %2743 = vmatpush1.xpose.msra.mxu0 0.0
    %2744 = vmatprep.subr.mxu0 0.0
    %2745 = vmatpush1.xpose.msra.mxu0 0.0
    %2746 = vmatprep.subr.mxu0 0.0
    %2747 = vmatpush1.xpose.msra.mxu0 0.0
    %2748 = vmatprep.subr.mxu0 0.0
    %2749 = vmatpush1.xpose.msra.mxu0 0.0
    %2750 = vmatprep.subr.mxu0 0.0
    %2751 = vmatpush1.xpose.msra.mxu0 0.0
    %2752 = vmatprep.subr.mxu0 0.0
    %2753 = vmatpush1.xpose.msra.mxu0 0.0
    %2754 = vmatprep.subr.mxu0 0.0
    %2755 = vmatpush1.xpose.msra.mxu0 0.0
    %2756 = vmatprep.subr.mxu0 0.0
    %2757 = vmatpush1.xpose.msra.mxu0 0.0
    %2758 = vmatprep.subr.mxu0 0.0
    %2759 = vmatpush1.xpose.msra.mxu0 0.0
    %2760 = vmatprep.subr.mxu0 0.0
    %2761 = vmatpush1.xpose.msra.mxu0 0.0
    %2762 = vmatprep.subr.mxu0 0.0
    %2763 = vmatpush1.xpose.msra.mxu0 0.0
    %2764 = vmatprep.subr.mxu0 0.0
    %2765 = vmatpush1.xpose.msra.mxu0 0.0
    %2766 = vmatprep.subr.mxu0 0.0
    %2767 = vmatpush1.xpose.msra.mxu0 0.0
    %2768 = vmatprep.subr.mxu0 0.0
    %2769 = vmatpush1.xpose.msra.mxu0 0.0
    %2770 = vmatprep.subr.mxu0 0.0
    %2771 = vmatpush1.xpose.msra.mxu0 0.0
    %2772 = vmatprep.subr.mxu0 0.0
    %2773 = vmatpush1.xpose.msra.mxu0 0.0
    %2774 = vmatprep.subr.mxu0 0.0
    %2775 = vmatpush1.xpose.msra.mxu0 0.0
    %2776 = vmatprep.subr.mxu0 0.0
    %2777 = vmatpush1.xpose.msra.mxu0 0.0
    %2778 = vmatprep.subr.mxu0 0.0
    %2779 = vmatpush1.xpose.msra.mxu0 0.0
    %2780 = vmatprep.mubr.f32.mxu0 0.0
    %2781 = vmatmul.mubr.f32.gmra.mrb[0].mxu0 %v2711
    %v2782 = vpop.f32.mrb[0].mxu0
    %v2783 = vadd.f32 0.0, %v2782
    %v2784 = vpop.f32.mrb[0].mxu0
    %2785 = vdwg.mxu0
    %v2786 = vmul.f32 %v2783, 0.17677669
    %v2787 = vadd.f32 %v2786, %v787
    %v2788 = vsel %vm619, %v2787, -inf
    %2789 = vmax.xlane.f32.xlu0 %v2788
    %v2790 = vpop.xlane.xlu0 %2789
    %v2791 = vsub.f32 %v2787, %v2790
    %v2792 = vmul.f32 %v2791, 1.442695
    %v2793 = vpow.pop %v2792
    %v2794 = vsel %vm619, %v2793, 0.0
    %2795 = vadd.xlane.f32.xlu0 %v2794
    %v2796 = vpop.xlane.xlu0 %2795
    %v2797 = vrcp.pop %v2796
    %v2798 = vmul.f32 %v2793, %v2797
    %v2800 = vsel %vm619, %v2798, 0
    %2802 = vmatprep.subr.mxu0 0.0
    %2803 = vmatpush1.msra.mxu0 %v2545
    %2804 = vmatprep.subr.mxu0 0.0
    %2805 = vmatpush1.msra.mxu0 0.0
    %2806 = vmatprep.subr.mxu0 0.0
    %2807 = vmatpush1.msra.mxu0 0.0
    %2808 = vmatprep.subr.mxu0 0.0
    %2809 = vmatpush1.msra.mxu0 0.0
    %2810 = vmatprep.subr.mxu0 0.0
    %2811 = vmatpush1.msra.mxu0 0.0
    %2812 = vmatprep.subr.mxu0 0.0
    %2813 = vmatpush1.msra.mxu0 0.0
    %2814 = vmatprep.subr.mxu0 0.0
    %2815 = vmatpush1.msra.mxu0 0.0
    %2816 = vmatprep.subr.mxu0 0.0
    %2817 = vmatpush1.msra.mxu0 0.0
    %2818 = vmatprep.subr.mxu0 0.0
    %2819 = vmatpush1.msra.mxu0 0.0
    %2820 = vmatprep.subr.mxu0 0.0
    %2821 = vmatpush1.msra.mxu0 0.0
    %2822 = vmatprep.subr.mxu0 0.0
    %2823 = vmatpush1.msra.mxu0 0.0
    %2824 = vmatprep.subr.mxu0 0.0
    %2825 = vmatpush1.msra.mxu0 0.0
    %2826 = vmatprep.subr.mxu0 0.0
    %2827 = vmatpush1.msra.mxu0 0.0
    %2828 = vmatprep.subr.mxu0 0.0
    %2829 = vmatpush1.msra.mxu0 0.0
    %2830 = vmatprep.subr.mxu0 0.0
    %2831 = vmatpush1.msra.mxu0 0.0
    %2832 = vmatprep.subr.mxu0 0.0
    %2833 = vmatpush1.msra.mxu0 0.0
    %2834 = vmatprep.subr.mxu0 0.0
    %2835 = vmatpush1.msra.mxu0 0.0
    %2836 = vmatprep.subr.mxu0 0.0
    %2837 = vmatpush1.msra.mxu0 0.0
    %2838 = vmatprep.subr.mxu0 0.0
    %2839 = vmatpush1.msra.mxu0 0.0
    %2840 = vmatprep.subr.mxu0 0.0
    %2841 = vmatpush1.msra.mxu0 0.0
    %2842 = vmatprep.subr.mxu0 0.0
    %2843 = vmatpush1.msra.mxu0 0.0
    %2844 = vmatprep.subr.mxu0 0.0
    %2845 = vmatpush1.msra.mxu0 0.0
    %2846 = vmatprep.subr.mxu0 0.0
    %2847 = vmatpush1.msra.mxu0 0.0
    %2848 = vmatprep.subr.mxu0 0.0
    %2849 = vmatpush1.msra.mxu0 0.0
    %2850 = vmatprep.subr.mxu0 0.0
    %2851 = vmatpush1.msra.mxu0 0.0
    %2852 = vmatprep.subr.mxu0 0.0
    %2853 = vmatpush1.msra.mxu0 0.0
    %2854 = vmatprep.subr.mxu0 0.0
    %2855 = vmatpush1.msra.mxu0 0.0
    %2856 = vmatprep.subr.mxu0 0.0
    %2857 = vmatpush1.msra.mxu0 0.0
    %2858 = vmatprep.subr.mxu0 0.0
    %2859 = vmatpush1.msra.mxu0 0.0
    %2860 = vmatprep.subr.mxu0 0.0
    %2861 = vmatpush1.msra.mxu0 0.0
    %2862 = vmatprep.subr.mxu0 0.0
    %2863 = vmatpush1.msra.mxu0 0.0
    %2864 = vmatprep.subr.mxu0 0.0
    %2865 = vmatpush1.msra.mxu0 0.0
    %2866 = vmatprep.mubr.f32.mxu0 0.0
    %2867 = vmatmul.mubr.f32.gmra.mrb[0].mxu0 %v2800
    %v2868 = vpop.f32.mrb[0].mxu0
    %v2869 = vadd.f32 0.0, %v2868
    %v2870 = vpop.f32.mrb[0].mxu0
    %2871 = vdwg.mxu0
    %2874 = vrot.lane.b32.xlu0 %v1375, 32
    %v2875 = vpop.permute.xlu0 %2874
    %2876 = vrot.lane.b32.xlu0 %v1537, 32
    %v2877 = vpop.permute.xlu0 %2876
    %2882 = vrot.lane.b32.xlu0 %v2041, 64
    %v2883 = vpop.permute.xlu0 %2882
    %2884 = vrot.lane.b32.xlu0 %v2203, 64
    %v2885 = vpop.permute.xlu0 %2884
    %2890 = vrot.lane.b32.xlu0 %v2707, 96
    %v2891 = vpop.permute.xlu0 %2890
    %2892 = vrot.lane.b32.xlu0 %v2869, 96
    %v2893 = vpop.permute.xlu0 %2892
    %v2896 = vsel %vm533, %v701, %v2875
    %v2897 = vsel %vm533, %v871, %v2877
    %vm2898 = vcmask 523264
    %v2899 = vsel %vm2898, %v2896, %v2883
    %v2900 = vsel %vm2898, %v2897, %v2885
    %vm2901 = vcmask 785408
    %v2902 = vsel %vm2901, %v2899, %v2891
    %v2903 = vsel %vm2901, %v2900, %v2893
    %v2904 = vpack.c.bf16 %v2903, %v2902
    %v2905 = vld [vmem:[%s12] sm:$0xf]
    %v2906 = vld [vmem:[%s12 + $0x4] sm:$0xf]
    %v2907 = vld [vmem:[%s12 + $0x8] sm:$0xf]
    %v2908 = vld [vmem:[%s12 + $0xc] sm:$0xf]
    %v2909 = vld [vmem:[%s12 + $0x10] sm:$0xf]
    %v2910 = vld [vmem:[%s12 + $0x14] sm:$0xf]
    %v2911 = vld [vmem:[%s12 + $0x18] sm:$0xf]
    %v2912 = vld [vmem:[%s12 + $0x1c] sm:$0xf]
    %v2913 = vld [vmem:[%s12 + $0x20] sm:$0xf]
    %v2914 = vld [vmem:[%s12 + $0x24] sm:$0xf]
    %v2915 = vld [vmem:[%s12 + $0x28] sm:$0xf]
    %v2916 = vld [vmem:[%s12 + $0x2c] sm:$0xf]
    %v2917 = vld [vmem:[%s12 + $0x30] sm:$0xf]
    %v2918 = vld [vmem:[%s12 + $0x34] sm:$0xf]
    %v2919 = vld [vmem:[%s12 + $0x38] sm:$0xf]
    %v2920 = vld [vmem:[%s12 + $0x3c] sm:$0xf]
    %v2921 = vld [vmem:[%s13] sm:$0x1]
    %v2923 = vlaneseq
    %v2924 = vshrl.u32 %v2923, 7
    %v2925 = vsub.s32 0, %v2924
    %v2926 = vrot.slane %v2921, %v2925
    %v2944 = vunpack.c.l.b16 %v2905
    %v2945 = vunpack.c.l.b16 %v2906
    %v2946 = vunpack.c.l.b16 %v2907
    %v2947 = vunpack.c.l.b16 %v2908
    %v2948 = vunpack.c.l.b16 %v2909
    %v2949 = vunpack.c.l.b16 %v2910
    %v2950 = vunpack.c.l.b16 %v2911
    %v2951 = vunpack.c.l.b16 %v2912
    %v2952 = vunpack.c.l.b16 %v2913
    %v2953 = vunpack.c.l.b16 %v2914
    %v2954 = vunpack.c.l.b16 %v2915
    %v2955 = vunpack.c.l.b16 %v2916
    %v2956 = vunpack.c.l.b16 %v2917
    %v2957 = vunpack.c.l.b16 %v2918
    %v2958 = vunpack.c.l.b16 %v2919
    %v2959 = vunpack.c.l.b16 %v2920
    %v2960 = vpack.c.b16 %v2945, %v2944
    %v2961 = vpack.c.b16 %v2947, %v2946
    %v2962 = vpack.c.b16 %v2949, %v2948
    %v2963 = vpack.c.b16 %v2951, %v2950
    %v2964 = vpack.c.b16 %v2953, %v2952
    %v2965 = vpack.c.b16 %v2955, %v2954
    %v2966 = vpack.c.b16 %v2957, %v2956
    %v2967 = vpack.c.b16 %v2959, %v2958
    %2976 = vmatprep.subr.bf16.mxu0 0
    %2977 = vmatpush1.bf16.msra.mxu0 %v2960
    %2978 = vmatprep.subr.bf16.mxu0 0
    %2979 = vmatpush1.bf16.msra.mxu0 %v2961
    %2980 = vmatprep.subr.bf16.mxu0 0
    %2981 = vmatpush1.bf16.msra.mxu0 %v2962
    %2982 = vmatprep.subr.bf16.mxu0 0
    %2983 = vmatpush1.bf16.msra.mxu0 %v2963
    %2984 = vmatprep.subr.bf16.mxu0 0
    %2985 = vmatpush1.bf16.msra.mxu0 %v2964
    %2986 = vmatprep.subr.bf16.mxu0 0
    %2987 = vmatpush1.bf16.msra.mxu0 %v2965
    %2988 = vmatprep.subr.bf16.mxu0 0
    %2989 = vmatpush1.bf16.msra.mxu0 %v2966
    %2990 = vmatprep.subr.bf16.mxu0 0
    %2991 = vmatpush1.bf16.msra.mxu0 %v2967
    %2992 = vmatprep.subr.bf16.mxu0 0
    %2993 = vmatpush1.bf16.msra.mxu0 0
    %2994 = vmatprep.subr.bf16.mxu0 0
    %2995 = vmatpush1.bf16.msra.mxu0 0
    %2996 = vmatprep.subr.bf16.mxu0 0
    %2997 = vmatpush1.bf16.msra.mxu0 0
    %2998 = vmatprep.subr.bf16.mxu0 0
    %2999 = vmatpush1.bf16.msra.mxu0 0
    %3000 = vmatprep.subr.bf16.mxu0 0
    %3001 = vmatpush1.bf16.msra.mxu0 0
    %3002 = vmatprep.subr.bf16.mxu0 0
    %3003 = vmatpush1.bf16.msra.mxu0 0
    %3004 = vmatprep.subr.bf16.mxu0 0
    %3005 = vmatpush1.bf16.msra.mxu0 0
    %3006 = vmatprep.subr.bf16.mxu0 0
    %3007 = vmatpush1.bf16.msra.mxu0 0
    %3008 = vmatprep.mubr.bf16.mxu0 0
    %3009 = vmatmul.mubr.bf16.gmra.mrb[0].mxu0 %v2904
    %v3010 = vpop.f32.mrb[0].mxu0
    %v3011 = vadd.f32 %v2926, %v3010
    %v3012 = vpop.f32.mrb[0].mxu0
    %v3013 = vpop.f32.mrb[0].mxu0
    %v3014 = vadd.f32 %v2926, %v3013
    %v3015 = vpop.f32.mrb[0].mxu0
    %3016 = vdwg.mxu0
    %v3017 = vadd.f32 %v3011, %v194
    %v3018 = vadd.f32 %v3014, %v195
    %v3019 = vld [vmem:[%s14] sm:$0x1]
    %v3020 = vld [vmem:[%s15] sm:$0x1]
    %3021 = vadd.xlane.f32.xlu0 %v3017
    %v3022 = vpop.xlane.xlu0 %3021
    %3023 = vadd.xlane.f32.xlu0 %v3018
    %v3024 = vpop.xlane.xlu0 %3023
    %v3025 = vmul.f32 %v3022, %v161
    %v3026 = vmul.f32 %v3024, %v161
    %v3027 = vsub.f32 %v3017, %v3025
    %v3028 = vsub.f32 %v3018, %v3026
    %v3029 = vmul.f32 %v3027, %v3027
    %v3030 = vmul.f32 %v3028, %v3028
    %3031 = vadd.xlane.f32.xlu0 %v3029
    %v3032 = vpop.xlane.xlu0 %3031
    %3033 = vadd.xlane.f32.xlu0 %v3030
    %v3034 = vpop.xlane.xlu0 %3033
    %v3035 = vmul.f32 %v3032, %v161
    %v3036 = vmul.f32 %v3034, %v161
    %v3037 = vadd.f32 %v3035, 1e-12
    %v3038 = vadd.f32 %v3036, 1e-12
    %v3039 = vrsqrt.pop %v3037
    %v3040 = vrsqrt.pop %v3038
    %v3041 = vmul.f32 %v3027, %v3039
    %v3042 = vmul.f32 %v3028, %v3040
    %v3044 = vlaneseq
    %v3045 = vshrl.u32 %v3044, 7
    %v3046 = vsub.s32 0, %v3045
    %v3047 = vrot.slane %v3019, %v3046
    %v3049 = vmul.f32 %v3041, %v3047
    %v3050 = vmul.f32 %v3042, %v3047
    %v3052 = vlaneseq
    %v3053 = vshrl.u32 %v3052, 7
    %v3054 = vsub.s32 0, %v3053
    %v3055 = vrot.slane %v3020, %v3054
    %v3057 = vadd.f32 %v3049, %v3055
    %v3058 = vadd.f32 %v3050, %v3055
    %v3059 = vpack.c.bf16 %v3058, %v3057
    %v3060 = vld [vmem:[%s16] sm:$0xff]
    %v3061 = vld [vmem:[%s16 + $0x8] sm:$0xff]
    %v3062 = vld [vmem:[%s16 + $0x10] sm:$0xff]
    %v3063 = vld [vmem:[%s16 + $0x18] sm:$0xff]
    %v3064 = vld [vmem:[%s16 + $0x20] sm:$0xff]
    %v3065 = vld [vmem:[%s16 + $0x28] sm:$0xff]
    %v3066 = vld [vmem:[%s16 + $0x30] sm:$0xff]
    %v3067 = vld [vmem:[%s16 + $0x38] sm:$0xff]
    %v3068 = vld [vmem:[%s16 + $0x40] sm:$0xff]
    %v3069 = vld [vmem:[%s16 + $0x48] sm:$0xff]
    %v3070 = vld [vmem:[%s16 + $0x50] sm:$0xff]
    %v3071 = vld [vmem:[%s16 + $0x58] sm:$0xff]
    %v3072 = vld [vmem:[%s16 + $0x60] sm:$0xff]
    %v3073 = vld [vmem:[%s16 + $0x68] sm:$0xff]
    %v3074 = vld [vmem:[%s16 + $0x70] sm:$0xff]
    %v3075 = vld [vmem:[%s16 + $0x78] sm:$0xff]
    %v3076 = vld [vmem:[%s16 + $0x80] sm:$0xff]
    %v3077 = vld [vmem:[%s16 + $0x88] sm:$0xff]
    %v3078 = vld [vmem:[%s16 + $0x90] sm:$0xff]
    %v3079 = vld [vmem:[%s16 + $0x98] sm:$0xff]
    %v3080 = vld [vmem:[%s16 + $0xa0] sm:$0xff]
    %v3081 = vld [vmem:[%s16 + $0xa8] sm:$0xff]
    %v3082 = vld [vmem:[%s16 + $0xb0] sm:$0xff]
    %v3083 = vld [vmem:[%s16 + $0xb8] sm:$0xff]
    %v3084 = vld [vmem:[%s16 + $0xc0] sm:$0xff]
    %v3085 = vld [vmem:[%s16 + $0xc8] sm:$0xff]
    %v3086 = vld [vmem:[%s16 + $0xd0] sm:$0xff]
    %v3087 = vld [vmem:[%s16 + $0xd8] sm:$0xff]
    %v3088 = vld [vmem:[%s16 + $0xe0] sm:$0xff]
    %v3089 = vld [vmem:[%s16 + $0xe8] sm:$0xff]
    %v3090 = vld [vmem:[%s16 + $0xf0] sm:$0xff]
    %v3091 = vld [vmem:[%s16 + $0xf8] sm:$0xff]
    %v3092 = vld [vmem:[%s17] sm:$0xf]
    %v3094 = vlaneseq
    %v3095 = vshrl.u32 %v3094, 7
    %v3096 = vsub.s32 0, %v3095
    %v3097 = vrot.slane %v3092, %v3096
    %v3098 = vlaneseq
    %v3099 = vshrl.u32 %v3098, 7
    %v3100 = vsub.s32 1, %v3099
    %v3101 = vrot.slane %v3092, %v3100
    %v3102 = vlaneseq
    %v3103 = vshrl.u32 %v3102, 7
    %v3104 = vsub.s32 2, %v3103
    %v3105 = vrot.slane %v3092, %v3104
    %v3106 = vlaneseq
    %v3107 = vshrl.u32 %v3106, 7
    %v3108 = vsub.s32 3, %v3107
    %v3109 = vrot.slane %v3092, %v3108
    %v3146 = vunpack.c.l.b16 %v3060
    %v3147 = vunpack.c.h.b16 %v3060
    %v3148 = vunpack.c.l.b16 %v3061
    %v3149 = vunpack.c.h.b16 %v3061
    %v3150 = vunpack.c.l.b16 %v3062
    %v3151 = vunpack.c.h.b16 %v3062
    %v3152 = vunpack.c.l.b16 %v3063
    %v3153 = vunpack.c.h.b16 %v3063
    %v3154 = vunpack.c.l.b16 %v3064
    %v3155 = vunpack.c.h.b16 %v3064
    %v3156 = vunpack.c.l.b16 %v3065
    %v3157 = vunpack.c.h.b16 %v3065
    %v3158 = vunpack.c.l.b16 %v3066
    %v3159 = vunpack.c.h.b16 %v3066
    %v3160 = vunpack.c.l.b16 %v3067
    %v3161 = vunpack.c.h.b16 %v3067
    %v3162 = vunpack.c.l.b16 %v3068
    %v3163 = vunpack.c.h.b16 %v3068
    %v3164 = vunpack.c.l.b16 %v3069
    %v3165 = vunpack.c.h.b16 %v3069
    %v3166 = vunpack.c.l.b16 %v3070
    %v3167 = vunpack.c.h.b16 %v3070
    %v3168 = vunpack.c.l.b16 %v3071
    %v3169 = vunpack.c.h.b16 %v3071
    %v3170 = vunpack.c.l.b16 %v3072
    %v3171 = vunpack.c.h.b16 %v3072
    %v3172 = vunpack.c.l.b16 %v3073
    %v3173 = vunpack.c.h.b16 %v3073
    %v3174 = vunpack.c.l.b16 %v3074
    %v3175 = vunpack.c.h.b16 %v3074
    %v3176 = vunpack.c.l.b16 %v3075
    %v3177 = vunpack.c.h.b16 %v3075
    %v3178 = vunpack.c.l.b16 %v3076
    %v3179 = vunpack.c.h.b16 %v3076
    %v3180 = vunpack.c.l.b16 %v3077
    %v3181 = vunpack.c.h.b16 %v3077
    %v3182 = vunpack.c.l.b16 %v3078
    %v3183 = vunpack.c.h.b16 %v3078
    %v3184 = vunpack.c.l.b16 %v3079
    %v3185 = vunpack.c.h.b16 %v3079
    %v3186 = vunpack.c.l.b16 %v3080
    %v3187 = vunpack.c.h.b16 %v3080
    %v3188 = vunpack.c.l.b16 %v3081
    %v3189 = vunpack.c.h.b16 %v3081
    %v3190 = vunpack.c.l.b16 %v3082
    %v3191 = vunpack.c.h.b16 %v3082
    %v3192 = vunpack.c.l.b16 %v3083
    %v3193 = vunpack.c.h.b16 %v3083
    %v3194 = vunpack.c.l.b16 %v3084
    %v3195 = vunpack.c.h.b16 %v3084
    %v3196 = vunpack.c.l.b16 %v3085
    %v3197 = vunpack.c.h.b16 %v3085
    %v3198 = vunpack.c.l.b16 %v3086
    %v3199 = vunpack.c.h.b16 %v3086
    %v3200 = vunpack.c.l.b16 %v3087
    %v3201 = vunpack.c.h.b16 %v3087
    %v3202 = vunpack.c.l.b16 %v3088
    %v3203 = vunpack.c.h.b16 %v3088
    %v3204 = vunpack.c.l.b16 %v3089
    %v3205 = vunpack.c.h.b16 %v3089
    %v3206 = vunpack.c.l.b16 %v3090
    %v3207 = vunpack.c.h.b16 %v3090
    %v3208 = vunpack.c.l.b16 %v3091
    %v3209 = vunpack.c.h.b16 %v3091
    %v3210 = vpack.c.b16 %v3150, %v3146
    %v3211 = vpack.c.b16 %v3151, %v3147
    %v3212 = vpack.c.b16 %v3152, %v3148
    %v3213 = vpack.c.b16 %v3153, %v3149
    %v3214 = vpack.c.b16 %v3158, %v3154
    %v3215 = vpack.c.b16 %v3159, %v3155
    %v3216 = vpack.c.b16 %v3160, %v3156
    %v3217 = vpack.c.b16 %v3161, %v3157
    %v3218 = vpack.c.b16 %v3166, %v3162
    %v3219 = vpack.c.b16 %v3167, %v3163
    %v3220 = vpack.c.b16 %v3168, %v3164
    %v3221 = vpack.c.b16 %v3169, %v3165
    %v3222 = vpack.c.b16 %v3174, %v3170
    %v3223 = vpack.c.b16 %v3175, %v3171
    %v3224 = vpack.c.b16 %v3176, %v3172
    %v3225 = vpack.c.b16 %v3177, %v3173
    %v3226 = vpack.c.b16 %v3182, %v3178
    %v3227 = vpack.c.b16 %v3183, %v3179
    %v3228 = vpack.c.b16 %v3184, %v3180
    %v3229 = vpack.c.b16 %v3185, %v3181
    %v3230 = vpack.c.b16 %v3190, %v3186
    %v3231 = vpack.c.b16 %v3191, %v3187
    %v3232 = vpack.c.b16 %v3192, %v3188
    %v3233 = vpack.c.b16 %v3193, %v3189
    %v3234 = vpack.c.b16 %v3198, %v3194
    %v3235 = vpack.c.b16 %v3199, %v3195
    %v3236 = vpack.c.b16 %v3200, %v3196
    %v3237 = vpack.c.b16 %v3201, %v3197
    %v3238 = vpack.c.b16 %v3206, %v3202
    %v3239 = vpack.c.b16 %v3207, %v3203
    %v3240 = vpack.c.b16 %v3208, %v3204
    %v3241 = vpack.c.b16 %v3209, %v3205
    %3274 = vmatprep.subr.bf16.mxu0 %v3211
    %3275 = vmatpush1.bf16.msra.mxu0 %v3210
    %3276 = vmatprep.subr.bf16.mxu0 %v3215
    %3277 = vmatpush1.bf16.msra.mxu0 %v3214
    %3278 = vmatprep.subr.bf16.mxu0 %v3219
    %3279 = vmatpush1.bf16.msra.mxu0 %v3218
    %3280 = vmatprep.subr.bf16.mxu0 %v3223
    %3281 = vmatpush1.bf16.msra.mxu0 %v3222
    %3282 = vmatprep.subr.bf16.mxu0 %v3227
    %3283 = vmatpush1.bf16.msra.mxu0 %v3226
    %3284 = vmatprep.subr.bf16.mxu0 %v3231
    %3285 = vmatpush1.bf16.msra.mxu0 %v3230
    %3286 = vmatprep.subr.bf16.mxu0 %v3235
    %3287 = vmatpush1.bf16.msra.mxu0 %v3234
    %3288 = vmatprep.subr.bf16.mxu0 %v3239
    %3289 = vmatpush1.bf16.msra.mxu0 %v3238
    %3290 = vmatprep.subr.bf16.mxu0 0
    %3291 = vmatpush1.bf16.msra.mxu0 0
    %3292 = vmatprep.subr.bf16.mxu0 0
    %3293 = vmatpush1.bf16.msra.mxu0 0
    %3294 = vmatprep.subr.bf16.mxu0 0
    %3295 = vmatpush1.bf16.msra.mxu0 0
    %3296 = vmatprep.subr.bf16.mxu0 0
    %3297 = vmatpush1.bf16.msra.mxu0 0
    %3298 = vmatprep.subr.bf16.mxu0 0
    %3299 = vmatpush1.bf16.msra.mxu0 0
    %3300 = vmatprep.subr.bf16.mxu0 0
    %3301 = vmatpush1.bf16.msra.mxu0 0
    %3302 = vmatprep.subr.bf16.mxu0 0
    %3303 = vmatpush1.bf16.msra.mxu0 0
    %3304 = vmatprep.subr.bf16.mxu0 0
    %3305 = vmatpush1.bf16.msra.mxu0 0
    %3306 = vmatprep.mubr.bf16.mxu0 0
    %3307 = vmatmul.mubr.bf16.gmra.mrb[0].mxu0 %v3059
    %v3308 = vpop.f32.mrb[0].mxu0
    %v3309 = vadd.f32 %v3097, %v3308
    %v3310 = vpop.f32.mrb[0].mxu0
    %v3311 = vadd.f32 %v3101, %v3310
    %v3312 = vpop.f32.mrb[0].mxu0
    %v3313 = vadd.f32 %v3097, %v3312
    %v3314 = vpop.f32.mrb[0].mxu0
    %v3315 = vadd.f32 %v3101, %v3314
    %3316 = vdwg.mxu0
    %3317 = vmatprep.subr.bf16.mxu0 %v3213
    %3318 = vmatpush1.bf16.msra.mxu0 %v3212
    %3319 = vmatprep.subr.bf16.mxu0 %v3217
    %3320 = vmatpush1.bf16.msra.mxu0 %v3216
    %3321 = vmatprep.subr.bf16.mxu0 %v3221
    %3322 = vmatpush1.bf16.msra.mxu0 %v3220
    %3323 = vmatprep.subr.bf16.mxu0 %v3225
    %3324 = vmatpush1.bf16.msra.mxu0 %v3224
    %3325 = vmatprep.subr.bf16.mxu0 %v3229
    %3326 = vmatpush1.bf16.msra.mxu0 %v3228
    %3327 = vmatprep.subr.bf16.mxu0 %v3233
    %3328 = vmatpush1.bf16.msra.mxu0 %v3232
    %3329 = vmatprep.subr.bf16.mxu0 %v3237
    %3330 = vmatpush1.bf16.msra.mxu0 %v3236
    %3331 = vmatprep.subr.bf16.mxu0 %v3241
    %3332 = vmatpush1.bf16.msra.mxu0 %v3240
    %3333 = vmatprep.subr.bf16.mxu0 0
    %3334 = vmatpush1.bf16.msra.mxu0 0
    %3335 = vmatprep.subr.bf16.mxu0 0
    %3336 = vmatpush1.bf16.msra.mxu0 0
    %3337 = vmatprep.subr.bf16.mxu0 0
    %3338 = vmatpush1.bf16.msra.mxu0 0
    %3339 = vmatprep.subr.bf16.mxu0 0
    %3340 = vmatpush1.bf16.msra.mxu0 0
    %3341 = vmatprep.subr.bf16.mxu0 0
    %3342 = vmatpush1.bf16.msra.mxu0 0
    %3343 = vmatprep.subr.bf16.mxu0 0
    %3344 = vmatpush1.bf16.msra.mxu0 0
    %3345 = vmatprep.subr.bf16.mxu0 0
    %3346 = vmatpush1.bf16.msra.mxu0 0
    %3347 = vmatprep.subr.bf16.mxu0 0
    %3348 = vmatpush1.bf16.msra.mxu0 0
    %3349 = vmatprep.mubr.bf16.mxu0 0
    %3350 = vmatmul.mubr.bf16.gmra.mrb[0].mxu0 %v3059
    %v3351 = vpop.f32.mrb[0].mxu0
    %v3352 = vadd.f32 %v3105, %v3351
    %v3353 = vpop.f32.mrb[0].mxu0
    %v3354 = vadd.f32 %v3109, %v3353
    %v3355 = vpop.f32.mrb[0].mxu0
    %v3356 = vadd.f32 %v3105, %v3355
    %v3357 = vpop.f32.mrb[0].mxu0
    %v3358 = vadd.f32 %v3109, %v3357
    %3359 = vdwg.mxu0
    %v3360 = vmul.f32 %v3309, 0.5
    %v3361 = vmul.f32 %v3311, 0.5
    %v3362 = vmul.f32 %v3352, 0.5
    %v3363 = vmul.f32 %v3354, 0.5
    %v3364 = vmul.f32 %v3313, 0.5
    %v3365 = vmul.f32 %v3315, 0.5
    %v3366 = vmul.f32 %v3356, 0.5
    %v3367 = vmul.f32 %v3358, 0.5
    %v3368 = vmul.f32 %v3309, 0.044715
    %v3369 = vmul.f32 %v3311, 0.044715
    %v3370 = vmul.f32 %v3352, 0.044715
    %v3371 = vmul.f32 %v3354, 0.044715
    %v3372 = vmul.f32 %v3313, 0.044715
    %v3373 = vmul.f32 %v3315, 0.044715
    %v3374 = vmul.f32 %v3356, 0.044715
    %v3375 = vmul.f32 %v3358, 0.044715
    %v3376 = vmul.f32 %v3368, %v3309
    %v3377 = vmul.f32 %v3369, %v3311
    %v3378 = vmul.f32 %v3370, %v3352
    %v3379 = vmul.f32 %v3371, %v3354
    %v3380 = vmul.f32 %v3372, %v3313
    %v3381 = vmul.f32 %v3373, %v3315
    %v3382 = vmul.f32 %v3374, %v3356
    %v3383 = vmul.f32 %v3375, %v3358
    %v3384 = vmul.f32 %v3376, %v3309
    %v3385 = vmul.f32 %v3377, %v3311
    %v3386 = vmul.f32 %v3378, %v3352
    %v3387 = vmul.f32 %v3379, %v3354
    %v3388 = vmul.f32 %v3380, %v3313
    %v3389 = vmul.f32 %v3381, %v3315
    %v3390 = vmul.f32 %v3382, %v3356
    %v3391 = vmul.f32 %v3383, %v3358
    %v3392 = vadd.f32 %v3309, %v3384
    %v3393 = vadd.f32 %v3311, %v3385
    %v3394 = vadd.f32 %v3352, %v3386
    %v3395 = vadd.f32 %v3354, %v3387
    %v3396 = vadd.f32 %v3313, %v3388
    %v3397 = vadd.f32 %v3315, %v3389
    %v3398 = vadd.f32 %v3356, %v3390
    %v3399 = vadd.f32 %v3358, %v3391
    %v3400 = vmul.f32 %v3392, 0.7978846
    %v3401 = vmul.f32 %v3393, 0.7978846
    %v3402 = vmul.f32 %v3394, 0.7978846
    %v3403 = vmul.f32 %v3395, 0.7978846
    %v3404 = vmul.f32 %v3396, 0.7978846
    %v3405 = vmul.f32 %v3397, 0.7978846
    %v3406 = vmul.f32 %v3398, 0.7978846
    %v3407 = vmul.f32 %v3399, 0.7978846
    %v3408 = vtanh.pop %v3400
    %v3409 = vtanh.pop %v3401
    %v3410 = vtanh.pop %v3402
    %v3411 = vtanh.pop %v3403
    %v3412 = vtanh.pop %v3404
    %v3413 = vtanh.pop %v3405
    %v3414 = vtanh.pop %v3406
    %v3415 = vtanh.pop %v3407
    %v3416 = vadd.f32 %v3408, 1.0
    %v3417 = vadd.f32 %v3409, 1.0
    %v3418 = vadd.f32 %v3410, 1.0
    %v3419 = vadd.f32 %v3411, 1.0
    %v3420 = vadd.f32 %v3412, 1.0
    %v3421 = vadd.f32 %v3413, 1.0
    %v3422 = vadd.f32 %v3414, 1.0
    %v3423 = vadd.f32 %v3415, 1.0
    %v3424 = vmul.f32 %v3360, %v3416
    %v3425 = vmul.f32 %v3361, %v3417
    %v3426 = vmul.f32 %v3362, %v3418
    %v3427 = vmul.f32 %v3363, %v3419
    %v3428 = vmul.f32 %v3364, %v3420
    %v3429 = vmul.f32 %v3365, %v3421
    %v3430 = vmul.f32 %v3366, %v3422
    %v3431 = vmul.f32 %v3367, %v3423
    %v3432 = vpack.c.bf16 %v3428, %v3424
    %v3433 = vpack.c.bf16 %v3429, %v3425
    %v3434 = vpack.c.bf16 %v3430, %v3426
    %v3435 = vpack.c.bf16 %v3431, %v3427
    %v3436 = vld [vmem:[%s18] sm:$0xf]
    %v3437 = vld [vmem:[%s18 + $0x4] sm:$0xf]
    %v3438 = vld [vmem:[%s18 + $0x8] sm:$0xf]
    %v3439 = vld [vmem:[%s18 + $0xc] sm:$0xf]
    %v3440 = vld [vmem:[%s18 + $0x10] sm:$0xf]
    %v3441 = vld [vmem:[%s18 + $0x14] sm:$0xf]
    %v3442 = vld [vmem:[%s18 + $0x18] sm:$0xf]
    %v3443 = vld [vmem:[%s18 + $0x1c] sm:$0xf]
    %v3444 = vld [vmem:[%s18 + $0x20] sm:$0xf]
    %v3445 = vld [vmem:[%s18 + $0x24] sm:$0xf]
    %v3446 = vld [vmem:[%s18 + $0x28] sm:$0xf]
    %v3447 = vld [vmem:[%s18 + $0x2c] sm:$0xf]
    %v3448 = vld [vmem:[%s18 + $0x30] sm:$0xf]
    %v3449 = vld [vmem:[%s18 + $0x34] sm:$0xf]
    %v3450 = vld [vmem:[%s18 + $0x38] sm:$0xf]
    %v3451 = vld [vmem:[%s18 + $0x3c] sm:$0xf]
    %v3452 = vld [vmem:[%s18 + $0x40] sm:$0xf]
    %v3453 = vld [vmem:[%s18 + $0x44] sm:$0xf]
    %v3454 = vld [vmem:[%s18 + $0x48] sm:$0xf]
    %v3455 = vld [vmem:[%s18 + $0x4c] sm:$0xf]
    %v3456 = vld [vmem:[%s18 + $0x50] sm:$0xf]
    %v3457 = vld [vmem:[%s18 + $0x54] sm:$0xf]
    %v3458 = vld [vmem:[%s18 + $0x58] sm:$0xf]
    %v3459 = vld [vmem:[%s18 + $0x5c] sm:$0xf]
    %v3460 = vld [vmem:[%s18 + $0x60] sm:$0xf]
    %v3461 = vld [vmem:[%s18 + $0x64] sm:$0xf]
    %v3462 = vld [vmem:[%s18 + $0x68] sm:$0xf]
    %v3463 = vld [vmem:[%s18 + $0x6c] sm:$0xf]
    %v3464 = vld [vmem:[%s18 + $0x70] sm:$0xf]
    %v3465 = vld [vmem:[%s18 + $0x74] sm:$0xf]
    %v3466 = vld [vmem:[%s18 + $0x78] sm:$0xf]
    %v3467 = vld [vmem:[%s18 + $0x7c] sm:$0xf]
    %v3468 = vld [vmem:[%s18 + $0x80] sm:$0xf]
    %v3469 = vld [vmem:[%s18 + $0x84] sm:$0xf]
    %v3470 = vld [vmem:[%s18 + $0x88] sm:$0xf]
    %v3471 = vld [vmem:[%s18 + $0x8c] sm:$0xf]
    %v3472 = vld [vmem:[%s18 + $0x90] sm:$0xf]
    %v3473 = vld [vmem:[%s18 + $0x94] sm:$0xf]
    %v3474 = vld [vmem:[%s18 + $0x98] sm:$0xf]
    %v3475 = vld [vmem:[%s18 + $0x9c] sm:$0xf]
    %v3476 = vld [vmem:[%s18 + $0xa0] sm:$0xf]
    %v3477 = vld [vmem:[%s18 + $0xa4] sm:$0xf]
    %v3478 = vld [vmem:[%s18 + $0xa8] sm:$0xf]
    %v3479 = vld [vmem:[%s18 + $0xac] sm:$0xf]
    %v3480 = vld [vmem:[%s18 + $0xb0] sm:$0xf]
    %v3481 = vld [vmem:[%s18 + $0xb4] sm:$0xf]
    %v3482 = vld [vmem:[%s18 + $0xb8] sm:$0xf]
    %v3483 = vld [vmem:[%s18 + $0xbc] sm:$0xf]
    %v3484 = vld [vmem:[%s18 + $0xc0] sm:$0xf]
    %v3485 = vld [vmem:[%s18 + $0xc4] sm:$0xf]
    %v3486 = vld [vmem:[%s18 + $0xc8] sm:$0xf]
    %v3487 = vld [vmem:[%s18 + $0xcc] sm:$0xf]
    %v3488 = vld [vmem:[%s18 + $0xd0] sm:$0xf]
    %v3489 = vld [vmem:[%s18 + $0xd4] sm:$0xf]
    %v3490 = vld [vmem:[%s18 + $0xd8] sm:$0xf]
    %v3491 = vld [vmem:[%s18 + $0xdc] sm:$0xf]
    %v3492 = vld [vmem:[%s18 + $0xe0] sm:$0xf]
    %v3493 = vld [vmem:[%s18 + $0xe4] sm:$0xf]
    %v3494 = vld [vmem:[%s18 + $0xe8] sm:$0xf]
    %v3495 = vld [vmem:[%s18 + $0xec] sm:$0xf]
    %v3496 = vld [vmem:[%s18 + $0xf0] sm:$0xf]
    %v3497 = vld [vmem:[%s18 + $0xf4] sm:$0xf]
    %v3498 = vld [vmem:[%s18 + $0xf8] sm:$0xf]
    %v3499 = vld [vmem:[%s18 + $0xfc] sm:$0xf]
    %v3500 = vld [vmem:[%s19] sm:$0x1]
    %v3502 = vlaneseq
    %v3503 = vshrl.u32 %v3502, 7
    %v3504 = vsub.s32 0, %v3503
    %v3505 = vrot.slane %v3500, %v3504
    %v3571 = vunpack.c.l.b16 %v3436
    %v3572 = vunpack.c.l.b16 %v3437
    %v3573 = vunpack.c.l.b16 %v3438
    %v3574 = vunpack.c.l.b16 %v3439
    %v3575 = vunpack.c.l.b16 %v3440
    %v3576 = vunpack.c.l.b16 %v3441
    %v3577 = vunpack.c.l.b16 %v3442
    %v3578 = vunpack.c.l.b16 %v3443
    %v3579 = vunpack.c.l.b16 %v3444
    %v3580 = vunpack.c.l.b16 %v3445
    %v3581 = vunpack.c.l.b16 %v3446
    %v3582 = vunpack.c.l.b16 %v3447
    %v3583 = vunpack.c.l.b16 %v3448
    %v3584 = vunpack.c.l.b16 %v3449
    %v3585 = vunpack.c.l.b16 %v3450
    %v3586 = vunpack.c.l.b16 %v3451
    %v3587 = vunpack.c.l.b16 %v3452
    %v3588 = vunpack.c.l.b16 %v3453
    %v3589 = vunpack.c.l.b16 %v3454
    %v3590 = vunpack.c.l.b16 %v3455
    %v3591 = vunpack.c.l.b16 %v3456
    %v3592 = vunpack.c.l.b16 %v3457
    %v3593 = vunpack.c.l.b16 %v3458
    %v3594 = vunpack.c.l.b16 %v3459
    %v3595 = vunpack.c.l.b16 %v3460
    %v3596 = vunpack.c.l.b16 %v3461
    %v3597 = vunpack.c.l.b16 %v3462
    %v3598 = vunpack.c.l.b16 %v3463
    %v3599 = vunpack.c.l.b16 %v3464
    %v3600 = vunpack.c.l.b16 %v3465
    %v3601 = vunpack.c.l.b16 %v3466
    %v3602 = vunpack.c.l.b16 %v3467
    %v3603 = vunpack.c.l.b16 %v3468
    %v3604 = vunpack.c.l.b16 %v3469
    %v3605 = vunpack.c.l.b16 %v3470
    %v3606 = vunpack.c.l.b16 %v3471
    %v3607 = vunpack.c.l.b16 %v3472
    %v3608 = vunpack.c.l.b16 %v3473
    %v3609 = vunpack.c.l.b16 %v3474
    %v3610 = vunpack.c.l.b16 %v3475
    %v3611 = vunpack.c.l.b16 %v3476
    %v3612 = vunpack.c.l.b16 %v3477
    %v3613 = vunpack.c.l.b16 %v3478
    %v3614 = vunpack.c.l.b16 %v3479
    %v3615 = vunpack.c.l.b16 %v3480
    %v3616 = vunpack.c.l.b16 %v3481
    %v3617 = vunpack.c.l.b16 %v3482
    %v3618 = vunpack.c.l.b16 %v3483
    %v3619 = vunpack.c.l.b16 %v3484
    %v3620 = vunpack.c.l.b16 %v3485
    %v3621 = vunpack.c.l.b16 %v3486
    %v3622 = vunpack.c.l.b16 %v3487
    %v3623 = vunpack.c.l.b16 %v3488
    %v3624 = vunpack.c.l.b16 %v3489
    %v3625 = vunpack.c.l.b16 %v3490
    %v3626 = vunpack.c.l.b16 %v3491
    %v3627 = vunpack.c.l.b16 %v3492
    %v3628 = vunpack.c.l.b16 %v3493
    %v3629 = vunpack.c.l.b16 %v3494
    %v3630 = vunpack.c.l.b16 %v3495
    %v3631 = vunpack.c.l.b16 %v3496
    %v3632 = vunpack.c.l.b16 %v3497
    %v3633 = vunpack.c.l.b16 %v3498
    %v3634 = vunpack.c.l.b16 %v3499
    %v3635 = vpack.c.b16 %v3572, %v3571
    %v3636 = vpack.c.b16 %v3574, %v3573
    %v3637 = vpack.c.b16 %v3576, %v3575
    %v3638 = vpack.c.b16 %v3578, %v3577
    %v3639 = vpack.c.b16 %v3580, %v3579
    %v3640 = vpack.c.b16 %v3582, %v3581
    %v3641 = vpack.c.b16 %v3584, %v3583
    %v3642 = vpack.c.b16 %v3586, %v3585
    %v3643 = vpack.c.b16 %v3588, %v3587
    %v3644 = vpack.c.b16 %v3590, %v3589
    %v3645 = vpack.c.b16 %v3592, %v3591
    %v3646 = vpack.c.b16 %v3594, %v3593
    %v3647 = vpack.c.b16 %v3596, %v3595
    %v3648 = vpack.c.b16 %v3598, %v3597
    %v3649 = vpack.c.b16 %v3600, %v3599
    %v3650 = vpack.c.b16 %v3602, %v3601
    %v3651 = vpack.c.b16 %v3604, %v3603
    %v3652 = vpack.c.b16 %v3606, %v3605
    %v3653 = vpack.c.b16 %v3608, %v3607
    %v3654 = vpack.c.b16 %v3610, %v3609
    %v3655 = vpack.c.b16 %v3612, %v3611
    %v3656 = vpack.c.b16 %v3614, %v3613
    %v3657 = vpack.c.b16 %v3616, %v3615
    %v3658 = vpack.c.b16 %v3618, %v3617
    %v3659 = vpack.c.b16 %v3620, %v3619
    %v3660 = vpack.c.b16 %v3622, %v3621
    %v3661 = vpack.c.b16 %v3624, %v3623
    %v3662 = vpack.c.b16 %v3626, %v3625
    %v3663 = vpack.c.b16 %v3628, %v3627
    %v3664 = vpack.c.b16 %v3630, %v3629
    %v3665 = vpack.c.b16 %v3632, %v3631
    %v3666 = vpack.c.b16 %v3634, %v3633
    %3699 = vmatprep.subr.bf16.mxu0 0
    %3700 = vmatpush1.bf16.msra.mxu0 %v3635
    %3701 = vmatprep.subr.bf16.mxu0 0
    %3702 = vmatpush1.bf16.msra.mxu0 %v3636
    %3703 = vmatprep.subr.bf16.mxu0 0
    %3704 = vmatpush1.bf16.msra.mxu0 %v3637
    %3705 = vmatprep.subr.bf16.mxu0 0
    %3706 = vmatpush1.bf16.msra.mxu0 %v3638
    %3707 = vmatprep.subr.bf16.mxu0 0
    %3708 = vmatpush1.bf16.msra.mxu0 %v3639
    %3709 = vmatprep.subr.bf16.mxu0 0
    %3710 = vmatpush1.bf16.msra.mxu0 %v3640
    %3711 = vmatprep.subr.bf16.mxu0 0
    %3712 = vmatpush1.bf16.msra.mxu0 %v3641
    %3713 = vmatprep.subr.bf16.mxu0 0
    %3714 = vmatpush1.bf16.msra.mxu0 %v3642
    %3715 = vmatprep.subr.bf16.mxu0 0
    %3716 = vmatpush1.bf16.msra.mxu0 %v3643
    %3717 = vmatprep.subr.bf16.mxu0 0
    %3718 = vmatpush1.bf16.msra.mxu0 %v3644
    %3719 = vmatprep.subr.bf16.mxu0 0
    %3720 = vmatpush1.bf16.msra.mxu0 %v3645
    %3721 = vmatprep.subr.bf16.mxu0 0
    %3722 = vmatpush1.bf16.msra.mxu0 %v3646
    %3723 = vmatprep.subr.bf16.mxu0 0
    %3724 = vmatpush1.bf16.msra.mxu0 %v3647
    %3725 = vmatprep.subr.bf16.mxu0 0
    %3726 = vmatpush1.bf16.msra.mxu0 %v3648
    %3727 = vmatprep.subr.bf16.mxu0 0
    %3728 = vmatpush1.bf16.msra.mxu0 %v3649
    %3729 = vmatprep.subr.bf16.mxu0 0
    %3730 = vmatpush1.bf16.msra.mxu0 %v3650
    %3731 = vmatprep.mubr.bf16.mxu0 %v3433
    %3732 = vmatmul.mubr.bf16.gmra.mrb[0].mxu0 %v3432
    %v3733 = vpop.f32.mrb[0].mxu0
    %v3734 = vadd.f32 %v3505, %v3733
    %v3735 = vpop.f32.mrb[0].mxu0
    %v3736 = vpop.f32.mrb[0].mxu0
    %v3737 = vadd.f32 %v3505, %v3736
    %v3738 = vpop.f32.mrb[0].mxu0
    %3739 = vdwg.mxu0
    %3740 = vmatprep.subr.bf16.mxu0 0
    %3741 = vmatpush1.bf16.msra.mxu0 %v3651
    %3742 = vmatprep.subr.bf16.mxu0 0
    %3743 = vmatpush1.bf16.msra.mxu0 %v3652
    %3744 = vmatprep.subr.bf16.mxu0 0
    %3745 = vmatpush1.bf16.msra.mxu0 %v3653
    %3746 = vmatprep.subr.bf16.mxu0 0
    %3747 = vmatpush1.bf16.msra.mxu0 %v3654
    %3748 = vmatprep.subr.bf16.mxu0 0
    %3749 = vmatpush1.bf16.msra.mxu0 %v3655
    %3750 = vmatprep.subr.bf16.mxu0 0
    %3751 = vmatpush1.bf16.msra.mxu0 %v3656
    %3752 = vmatprep.subr.bf16.mxu0 0
    %3753 = vmatpush1.bf16.msra.mxu0 %v3657
    %3754 = vmatprep.subr.bf16.mxu0 0
    %3755 = vmatpush1.bf16.msra.mxu0 %v3658
    %3756 = vmatprep.subr.bf16.mxu0 0
    %3757 = vmatpush1.bf16.msra.mxu0 %v3659
    %3758 = vmatprep.subr.bf16.mxu0 0
    %3759 = vmatpush1.bf16.msra.mxu0 %v3660
    %3760 = vmatprep.subr.bf16.mxu0 0
    %3761 = vmatpush1.bf16.msra.mxu0 %v3661
    %3762 = vmatprep.subr.bf16.mxu0 0
    %3763 = vmatpush1.bf16.msra.mxu0 %v3662
    %3764 = vmatprep.subr.bf16.mxu0 0
    %3765 = vmatpush1.bf16.msra.mxu0 %v3663
    %3766 = vmatprep.subr.bf16.mxu0 0
    %3767 = vmatpush1.bf16.msra.mxu0 %v3664
    %3768 = vmatprep.subr.bf16.mxu0 0
    %3769 = vmatpush1.bf16.msra.mxu0 %v3665
    %3770 = vmatprep.subr.bf16.mxu0 0
    %3771 = vmatpush1.bf16.msra.mxu0 %v3666
    %3772 = vmatprep.mubr.bf16.mxu0 %v3435
    %3773 = vmatmul.mubr.bf16.gmra.mrb[0].mxu0 %v3434
    %v3774 = vpop.f32.mrb[0].mxu0
    %v3775 = vadd.f32 %v3734, %v3774
    %v3776 = vpop.f32.mrb[0].mxu0
    %v3777 = vpop.f32.mrb[0].mxu0
    %v3778 = vadd.f32 %v3737, %v3777
    %v3779 = vpop.f32.mrb[0].mxu0
    %3780 = vdwg.mxu0
    %v3781 = vpack.c.bf16 %v3778, %v3775
    %v3782 = vld [vmem:[%s20] sm:$0xf]
    %v3783 = vld [vmem:[%s20 + $0x4] sm:$0xf]
    %v3784 = vld [vmem:[%s20 + $0x8] sm:$0xf]
    %v3785 = vld [vmem:[%s20 + $0xc] sm:$0xf]
    %v3786 = vld [vmem:[%s20 + $0x10] sm:$0xf]
    %v3787 = vld [vmem:[%s20 + $0x14] sm:$0xf]
    %v3788 = vld [vmem:[%s20 + $0x18] sm:$0xf]
    %v3789 = vld [vmem:[%s20 + $0x1c] sm:$0xf]
    %v3790 = vld [vmem:[%s20 + $0x20] sm:$0xf]
    %v3791 = vld [vmem:[%s20 + $0x24] sm:$0xf]
    %v3792 = vld [vmem:[%s20 + $0x28] sm:$0xf]
    %v3793 = vld [vmem:[%s20 + $0x2c] sm:$0xf]
    %v3794 = vld [vmem:[%s20 + $0x30] sm:$0xf]
    %v3795 = vld [vmem:[%s20 + $0x34] sm:$0xf]
    %v3796 = vld [vmem:[%s20 + $0x38] sm:$0xf]
    %v3797 = vld [vmem:[%s20 + $0x3c] sm:$0xf]
    %v3798 = vld [vmem:[%s21] sm:$0x1]
    %v3800 = vlaneseq
    %v3801 = vshrl.u32 %v3800, 7
    %v3802 = vsub.s32 0, %v3801
    %v3803 = vrot.slane %v3798, %v3802
    %v3821 = vunpack.c.l.b16 %v3782
    %v3822 = vunpack.c.l.b16 %v3783
    %v3823 = vunpack.c.l.b16 %v3784
    %v3824 = vunpack.c.l.b16 %v3785
    %v3825 = vunpack.c.l.b16 %v3786
    %v3826 = vunpack.c.l.b16 %v3787
    %v3827 = vunpack.c.l.b16 %v3788
    %v3828 = vunpack.c.l.b16 %v3789
    %v3829 = vunpack.c.l.b16 %v3790
    %v3830 = vunpack.c.l.b16 %v3791
    %v3831 = vunpack.c.l.b16 %v3792
    %v3832 = vunpack.c.l.b16 %v3793
    %v3833 = vunpack.c.l.b16 %v3794
    %v3834 = vunpack.c.l.b16 %v3795
    %v3835 = vunpack.c.l.b16 %v3796
    %v3836 = vunpack.c.l.b16 %v3797
    %v3837 = vpack.c.b16 %v3822, %v3821
    %v3838 = vpack.c.b16 %v3824, %v3823
    %v3839 = vpack.c.b16 %v3826, %v3825
    %v3840 = vpack.c.b16 %v3828, %v3827
    %v3841 = vpack.c.b16 %v3830, %v3829
    %v3842 = vpack.c.b16 %v3832, %v3831
    %v3843 = vpack.c.b16 %v3834, %v3833
    %v3844 = vpack.c.b16 %v3836, %v3835
    %3853 = vmatprep.subr.bf16.mxu0 0
    %3854 = vmatpush1.bf16.msra.mxu0 %v3837
    %3855 = vmatprep.subr.bf16.mxu0 0
    %3856 = vmatpush1.bf16.msra.mxu0 %v3838
    %3857 = vmatprep.subr.bf16.mxu0 0
    %3858 = vmatpush1.bf16.msra.mxu0 %v3839
    %3859 = vmatprep.subr.bf16.mxu0 0
    %3860 = vmatpush1.bf16.msra.mxu0 %v3840
    %3861 = vmatprep.subr.bf16.mxu0 0
    %3862 = vmatpush1.bf16.msra.mxu0 %v3841
    %3863 = vmatprep.subr.bf16.mxu0 0
    %3864 = vmatpush1.bf16.msra.mxu0 %v3842
    %3865 = vmatprep.subr.bf16.mxu0 0
    %3866 = vmatpush1.bf16.msra.mxu0 %v3843
    %3867 = vmatprep.subr.bf16.mxu0 0
    %3868 = vmatpush1.bf16.msra.mxu0 %v3844
    %3869 = vmatprep.subr.bf16.mxu0 0
    %3870 = vmatpush1.bf16.msra.mxu0 0
    %3871 = vmatprep.subr.bf16.mxu0 0
    %3872 = vmatpush1.bf16.msra.mxu0 0
    %3873 = vmatprep.subr.bf16.mxu0 0
    %3874 = vmatpush1.bf16.msra.mxu0 0
    %3875 = vmatprep.subr.bf16.mxu0 0
    %3876 = vmatpush1.bf16.msra.mxu0 0
    %3877 = vmatprep.subr.bf16.mxu0 0
    %3878 = vmatpush1.bf16.msra.mxu0 0
    %3879 = vmatprep.subr.bf16.mxu0 0
    %3880 = vmatpush1.bf16.msra.mxu0 0
    %3881 = vmatprep.subr.bf16.mxu0 0
    %3882 = vmatpush1.bf16.msra.mxu0 0
    %3883 = vmatprep.subr.bf16.mxu0 0
    %3884 = vmatpush1.bf16.msra.mxu0 0
    %3885 = vmatprep.mubr.bf16.mxu0 0
    %3886 = vmatmul.mubr.bf16.gmra.mrb[0].mxu0 %v3781
    %v3887 = vpop.f32.mrb[0].mxu0
    %v3888 = vadd.f32 %v3803, %v3887
    %v3889 = vpop.f32.mrb[0].mxu0
    %v3890 = vpop.f32.mrb[0].mxu0
    %v3891 = vadd.f32 %v3803, %v3890
    %v3892 = vpop.f32.mrb[0].mxu0
    %3893 = vdwg.mxu0
    %v3894 = vmax.f32 %v3888, 0.0
    %v3895 = vmax.f32 %v3891, 0.0
    %v3896 = vpack.c.bf16 %v3895, %v3894
    %v3897 = vld [vmem:[%s22] sm:$0xf]
    %v3898 = vld [vmem:[%s23] sm:$0x1]
    %v3900 = vlaneseq
    %v3901 = vshrl.u32 %v3900, 7
    %v3902 = vsub.s32 0, %v3901
    %v3903 = vrot.slane %v3898, %v3902
    %v3906 = vsel %vm619, %v3896, 0
    %vm3908 = vcmask 1043456
    %v3910 = vsel %vm3908, %v3897, 0
    %3912 = vmatprep.subr.bf16.mxu0 0
    %3913 = vmatpush1.bf16.msra.mxu0 %v3910
    %3914 = vmatprep.subr.bf16.mxu0 0
    %3915 = vmatpush1.bf16.msra.mxu0 0
    %3916 = vmatprep.subr.bf16.mxu0 0
    %3917 = vmatpush1.bf16.msra.mxu0 0
    %3918 = vmatprep.subr.bf16.mxu0 0
    %3919 = vmatpush1.bf16.msra.mxu0 0
    %3920 = vmatprep.subr.bf16.mxu0 0
    %3921 = vmatpush1.bf16.msra.mxu0 0
    %3922 = vmatprep.subr.bf16.mxu0 0
    %3923 = vmatpush1.bf16.msra.mxu0 0
    %3924 = vmatprep.subr.bf16.mxu0 0
    %3925 = vmatpush1.bf16.msra.mxu0 0
    %3926 = vmatprep.subr.bf16.mxu0 0
    %3927 = vmatpush1.bf16.msra.mxu0 0
    %3928 = vmatprep.subr.bf16.mxu0 0
    %3929 = vmatpush1.bf16.msra.mxu0 0
    %3930 = vmatprep.subr.bf16.mxu0 0
    %3931 = vmatpush1.bf16.msra.mxu0 0
    %3932 = vmatprep.subr.bf16.mxu0 0
    %3933 = vmatpush1.bf16.msra.mxu0 0
    %3934 = vmatprep.subr.bf16.mxu0 0
    %3935 = vmatpush1.bf16.msra.mxu0 0
    %3936 = vmatprep.subr.bf16.mxu0 0
    %3937 = vmatpush1.bf16.msra.mxu0 0
    %3938 = vmatprep.subr.bf16.mxu0 0
    %3939 = vmatpush1.bf16.msra.mxu0 0
    %3940 = vmatprep.subr.bf16.mxu0 0
    %3941 = vmatpush1.bf16.msra.mxu0 0
    %3942 = vmatprep.subr.bf16.mxu0 0
    %3943 = vmatpush1.bf16.msra.mxu0 0
    %3944 = vmatprep.mubr.bf16.mxu0 0
    %3945 = vmatmul.mubr.bf16.gmra.mrb[0].mxu0 %v3906
    %v3946 = vpop.f32.mrb[0].mxu0
    %v3947 = vadd.f32 %v3903, %v3946
    %v3948 = vpop.f32.mrb[0].mxu0
    %v3949 = vpop.f32.mrb[0].mxu0
    %v3950 = vadd.f32 %v3903, %v3949
    %v3951 = vpop.f32.mrb[0].mxu0
    %3952 = vdwg.mxu0
    %v3953 = vadd.f32 %v3775, %v3947
    %v3954 = vadd.f32 %v3778, %v3950
    %v3955 = vadd.f32 %v3953, %v3057
    %v3956 = vadd.f32 %v3954, %v3058
    %v3957 = vld [vmem:[%s24] sm:$0x1]
    %v3958 = vld [vmem:[%s25] sm:$0x1]
    %3959 = vadd.xlane.f32.xlu0 %v3955
    %v3960 = vpop.xlane.xlu0 %3959
    %3961 = vadd.xlane.f32.xlu0 %v3956
    %v3962 = vpop.xlane.xlu0 %3961
    %v3963 = vmul.f32 %v3960, %v161
    %v3964 = vmul.f32 %v3962, %v161
    %v3965 = vsub.f32 %v3955, %v3963
    %v3966 = vsub.f32 %v3956, %v3964
    %v3967 = vmul.f32 %v3965, %v3965
    %v3968 = vmul.f32 %v3966, %v3966
    %3969 = vadd.xlane.f32.xlu0 %v3967
    %v3970 = vpop.xlane.xlu0 %3969
    %3971 = vadd.xlane.f32.xlu0 %v3968
    %v3972 = vpop.xlane.xlu0 %3971
    %v3973 = vmul.f32 %v3970, %v161
    %v3974 = vmul.f32 %v3972, %v161
    %v3975 = vadd.f32 %v3973, 1e-12
    %v3976 = vadd.f32 %v3974, 1e-12
    %v3977 = vrsqrt.pop %v3975
    %v3978 = vrsqrt.pop %v3976
    %v3979 = vmul.f32 %v3965, %v3977
    %v3980 = vmul.f32 %v3966, %v3978
    %v3982 = vlaneseq
    %v3983 = vshrl.u32 %v3982, 7
    %v3984 = vsub.s32 0, %v3983
    %v3985 = vrot.slane %v3957, %v3984
    %v3987 = vmul.f32 %v3979, %v3985
    %v3988 = vmul.f32 %v3980, %v3985
    %v3990 = vlaneseq
    %v3991 = vshrl.u32 %v3990, 7
    %v3992 = vsub.s32 0, %v3991
    %v3993 = vrot.slane %v3958, %v3992
    %v3995 = vadd.f32 %v3987, %v3993
    %v3996 = vadd.f32 %v3988, %v3993
    %v3997 = vpack.c.bf16 %v3996, %v3995
    %s3998 = scalar_lea.vmem [#allocation6], 256
    %v3999 = vld [vmem:[%s3998] sm:$0xf]
    %v4000 = vld [vmem:[%s3998 + $0x4] sm:$0xf]
    %v4001 = vld [vmem:[%s3998 + $0x8] sm:$0xf]
    %v4002 = vld [vmem:[%s3998 + $0xc] sm:$0xf]
    %v4003 = vld [vmem:[%s3998 + $0x10] sm:$0xf]
    %v4004 = vld [vmem:[%s3998 + $0x14] sm:$0xf]
    %v4005 = vld [vmem:[%s3998 + $0x18] sm:$0xf]
    %v4006 = vld [vmem:[%s3998 + $0x1c] sm:$0xf]
    %v4007 = vld [vmem:[%s3998 + $0x20] sm:$0xf]
    %v4008 = vld [vmem:[%s3998 + $0x24] sm:$0xf]
    %v4009 = vld [vmem:[%s3998 + $0x28] sm:$0xf]
    %v4010 = vld [vmem:[%s3998 + $0x2c] sm:$0xf]
    %v4011 = vld [vmem:[%s3998 + $0x30] sm:$0xf]
    %v4012 = vld [vmem:[%s3998 + $0x34] sm:$0xf]
    %v4013 = vld [vmem:[%s3998 + $0x38] sm:$0xf]
    %v4014 = vld [vmem:[%s3998 + $0x3c] sm:$0xf]
    %s4015 = scalar_lea.vmem %s7, 4
    %v4016 = vld [vmem:[%s4015] sm:$0x1]
    %v4018 = vlaneseq
    %v4019 = vshrl.u32 %v4018, 7
    %v4020 = vsub.s32 0, %v4019
    %v4021 = vrot.slane %v4016, %v4020
    %v4039 = vunpack.c.l.b16 %v3999
    %v4040 = vunpack.c.l.b16 %v4000
    %v4041 = vunpack.c.l.b16 %v4001
    %v4042 = vunpack.c.l.b16 %v4002
    %v4043 = vunpack.c.l.b16 %v4003
    %v4044 = vunpack.c.l.b16 %v4004
    %v4045 = vunpack.c.l.b16 %v4005
    %v4046 = vunpack.c.l.b16 %v4006
    %v4047 = vunpack.c.l.b16 %v4007
    %v4048 = vunpack.c.l.b16 %v4008
    %v4049 = vunpack.c.l.b16 %v4009
    %v4050 = vunpack.c.l.b16 %v4010
    %v4051 = vunpack.c.l.b16 %v4011
    %v4052 = vunpack.c.l.b16 %v4012
    %v4053 = vunpack.c.l.b16 %v4013
    %v4054 = vunpack.c.l.b16 %v4014
    %v4055 = vpack.c.b16 %v4040, %v4039
    %v4056 = vpack.c.b16 %v4042, %v4041
    %v4057 = vpack.c.b16 %v4044, %v4043
    %v4058 = vpack.c.b16 %v4046, %v4045
    %v4059 = vpack.c.b16 %v4048, %v4047
    %v4060 = vpack.c.b16 %v4050, %v4049
    %v4061 = vpack.c.b16 %v4052, %v4051
    %v4062 = vpack.c.b16 %v4054, %v4053
    %4071 = vmatprep.subr.bf16.mxu0 0
    %4072 = vmatpush1.bf16.msra.mxu0 %v4055
    %4073 = vmatprep.subr.bf16.mxu0 0
    %4074 = vmatpush1.bf16.msra.mxu0 %v4056
    %4075 = vmatprep.subr.bf16.mxu0 0
    %4076 = vmatpush1.bf16.msra.mxu0 %v4057
    %4077 = vmatprep.subr.bf16.mxu0 0
    %4078 = vmatpush1.bf16.msra.mxu0 %v4058
    %4079 = vmatprep.subr.bf16.mxu0 0
    %4080 = vmatpush1.bf16.msra.mxu0 %v4059
    %4081 = vmatprep.subr.bf16.mxu0 0
    %4082 = vmatpush1.bf16.msra.mxu0 %v4060
    %4083 = vmatprep.subr.bf16.mxu0 0
    %4084 = vmatpush1.bf16.msra.mxu0 %v4061
    %4085 = vmatprep.subr.bf16.mxu0 0
    %4086 = vmatpush1.bf16.msra.mxu0 %v4062
    %4087 = vmatprep.subr.bf16.mxu0 0
    %4088 = vmatpush1.bf16.msra.mxu0 0
    %4089 = vmatprep.subr.bf16.mxu0 0
    %4090 = vmatpush1.bf16.msra.mxu0 0
    %4091 = vmatprep.subr.bf16.mxu0 0
    %4092 = vmatpush1.bf16.msra.mxu0 0
    %4093 = vmatprep.subr.bf16.mxu0 0
    %4094 = vmatpush1.bf16.msra.mxu0 0
    %4095 = vmatprep.subr.bf16.mxu0 0
    %4096 = vmatpush1.bf16.msra.mxu0 0
    %4097 = vmatprep.subr.bf16.mxu0 0
    %4098 = vmatpush1.bf16.msra.mxu0 0
    %4099 = vmatprep.subr.bf16.mxu0 0
    %4100 = vmatpush1.bf16.msra.mxu0 0
    %4101 = vmatprep.subr.bf16.mxu0 0
    %4102 = vmatpush1.bf16.msra.mxu0 0
    %4103 = vmatprep.mubr.bf16.mxu0 0
    %4104 = vmatmul.mubr.bf16.gmra.mrb[0].mxu0 %v3997
    %v4105 = vpop.f32.mrb[0].mxu0
    %v4106 = vadd.f32 %v4021, %v4105
    %v4107 = vpop.f32.mrb[0].mxu0
    %v4108 = vpop.f32.mrb[0].mxu0
    %v4109 = vadd.f32 %v4021, %v4108
    %v4110 = vpop.f32.mrb[0].mxu0
    %4111 = vdwg.mxu0
    %s4112 = scalar_lea.vmem [#allocation7], 256
    %v4113 = vld [vmem:[%s4112] sm:$0xf]
    %v4114 = vld [vmem:[%s4112 + $0x4] sm:$0xf]
    %v4115 = vld [vmem:[%s4112 + $0x8] sm:$0xf]
    %v4116 = vld [vmem:[%s4112 + $0xc] sm:$0xf]
    %v4117 = vld [vmem:[%s4112 + $0x10] sm:$0xf]
    %v4118 = vld [vmem:[%s4112 + $0x14] sm:$0xf]
    %v4119 = vld [vmem:[%s4112 + $0x18] sm:$0xf]
    %v4120 = vld [vmem:[%s4112 + $0x1c] sm:$0xf]
    %v4121 = vld [vmem:[%s4112 + $0x20] sm:$0xf]
    %v4122 = vld [vmem:[%s4112 + $0x24] sm:$0xf]
    %v4123 = vld [vmem:[%s4112 + $0x28] sm:$0xf]
    %v4124 = vld [vmem:[%s4112 + $0x2c] sm:$0xf]
    %v4125 = vld [vmem:[%s4112 + $0x30] sm:$0xf]
    %v4126 = vld [vmem:[%s4112 + $0x34] sm:$0xf]
    %v4127 = vld [vmem:[%s4112 + $0x38] sm:$0xf]
    %v4128 = vld [vmem:[%s4112 + $0x3c] sm:$0xf]
    %s4129 = scalar_lea.vmem %s9, 4
    %v4130 = vld [vmem:[%s4129] sm:$0x1]
    %v4132 = vlaneseq
    %v4133 = vshrl.u32 %v4132, 7
    %v4134 = vsub.s32 0, %v4133
    %v4135 = vrot.slane %v4130, %v4134
    %v4153 = vunpack.c.l.b16 %v4113
    %v4154 = vunpack.c.l.b16 %v4114
    %v4155 = vunpack.c.l.b16 %v4115
    %v4156 = vunpack.c.l.b16 %v4116
    %v4157 = vunpack.c.l.b16 %v4117
    %v4158 = vunpack.c.l.b16 %v4118
    %v4159 = vunpack.c.l.b16 %v4119
    %v4160 = vunpack.c.l.b16 %v4120
    %v4161 = vunpack.c.l.b16 %v4121
    %v4162 = vunpack.c.l.b16 %v4122
    %v4163 = vunpack.c.l.b16 %v4123
    %v4164 = vunpack.c.l.b16 %v4124
    %v4165 = vunpack.c.l.b16 %v4125
    %v4166 = vunpack.c.l.b16 %v4126
    %v4167 = vunpack.c.l.b16 %v4127
    %v4168 = vunpack.c.l.b16 %v4128
    %v4169 = vpack.c.b16 %v4154, %v4153
    %v4170 = vpack.c.b16 %v4156, %v4155
    %v4171 = vpack.c.b16 %v4158, %v4157
    %v4172 = vpack.c.b16 %v4160, %v4159
    %v4173 = vpack.c.b16 %v4162, %v4161
    %v4174 = vpack.c.b16 %v4164, %v4163
    %v4175 = vpack.c.b16 %v4166, %v4165
    %v4176 = vpack.c.b16 %v4168, %v4167
    %4185 = vmatprep.subr.bf16.mxu0 0
    %4186 = vmatpush1.bf16.msra.mxu0 %v4169
    %4187 = vmatprep.subr.bf16.mxu0 0
    %4188 = vmatpush1.bf16.msra.mxu0 %v4170
    %4189 = vmatprep.subr.bf16.mxu0 0
    %4190 = vmatpush1.bf16.msra.mxu0 %v4171
    %4191 = vmatprep.subr.bf16.mxu0 0
    %4192 = vmatpush1.bf16.msra.mxu0 %v4172
    %4193 = vmatprep.subr.bf16.mxu0 0
    %4194 = vmatpush1.bf16.msra.mxu0 %v4173
    %4195 = vmatprep.subr.bf16.mxu0 0
    %4196 = vmatpush1.bf16.msra.mxu0 %v4174
    %4197 = vmatprep.subr.bf16.mxu0 0
    %4198 = vmatpush1.bf16.msra.mxu0 %v4175
    %4199 = vmatprep.subr.bf16.mxu0 0
    %4200 = vmatpush1.bf16.msra.mxu0 %v4176
    %4201 = vmatprep.subr.bf16.mxu0 0
    %4202 = vmatpush1.bf16.msra.mxu0 0
    %4203 = vmatprep.subr.bf16.mxu0 0
    %4204 = vmatpush1.bf16.msra.mxu0 0
    %4205 = vmatprep.subr.bf16.mxu0 0
    %4206 = vmatpush1.bf16.msra.mxu0 0
    %4207 = vmatprep.subr.bf16.mxu0 0
    %4208 = vmatpush1.bf16.msra.mxu0 0
    %4209 = vmatprep.subr.bf16.mxu0 0
    %4210 = vmatpush1.bf16.msra.mxu0 0
    %4211 = vmatprep.subr.bf16.mxu0 0
    %4212 = vmatpush1.bf16.msra.mxu0 0
    %4213 = vmatprep.subr.bf16.mxu0 0
    %4214 = vmatpush1.bf16.msra.mxu0 0
    %4215 = vmatprep.subr.bf16.mxu0 0
    %4216 = vmatpush1.bf16.msra.mxu0 0
    %4217 = vmatprep.mubr.bf16.mxu0 0
    %4218 = vmatmul.mubr.bf16.gmra.mrb[0].mxu0 %v3997
    %v4219 = vpop.f32.mrb[0].mxu0
    %v4220 = vadd.f32 %v4135, %v4219
    %v4221 = vpop.f32.mrb[0].mxu0
    %v4222 = vpop.f32.mrb[0].mxu0
    %v4223 = vadd.f32 %v4135, %v4222
    %v4224 = vpop.f32.mrb[0].mxu0
    %4225 = vdwg.mxu0
    %s4226 = scalar_lea.vmem %s10, 256
    %v4227 = vld [vmem:[%s4226] sm:$0xf]
    %v4228 = vld [vmem:[%s4226 + $0x4] sm:$0xf]
    %v4229 = vld [vmem:[%s4226 + $0x8] sm:$0xf]
    %v4230 = vld [vmem:[%s4226 + $0xc] sm:$0xf]
    %v4231 = vld [vmem:[%s4226 + $0x10] sm:$0xf]
    %v4232 = vld [vmem:[%s4226 + $0x14] sm:$0xf]
    %v4233 = vld [vmem:[%s4226 + $0x18] sm:$0xf]
    %v4234 = vld [vmem:[%s4226 + $0x1c] sm:$0xf]
    %v4235 = vld [vmem:[%s4226 + $0x20] sm:$0xf]
    %v4236 = vld [vmem:[%s4226 + $0x24] sm:$0xf]
    %v4237 = vld [vmem:[%s4226 + $0x28] sm:$0xf]
    %v4238 = vld [vmem:[%s4226 + $0x2c] sm:$0xf]
    %v4239 = vld [vmem:[%s4226 + $0x30] sm:$0xf]
    %v4240 = vld [vmem:[%s4226 + $0x34] sm:$0xf]
    %v4241 = vld [vmem:[%s4226 + $0x38] sm:$0xf]
    %v4242 = vld [vmem:[%s4226 + $0x3c] sm:$0xf]
    %s4243 = scalar_lea.vmem %s11, 4
    %v4244 = vld [vmem:[%s4243] sm:$0x1]
    %v4246 = vlaneseq
    %v4247 = vshrl.u32 %v4246, 7
    %v4248 = vsub.s32 0, %v4247
    %v4249 = vrot.slane %v4244, %v4248
    %v4267 = vunpack.c.l.b16 %v4227
    %v4268 = vunpack.c.l.b16 %v4228
    %v4269 = vunpack.c.l.b16 %v4229
    %v4270 = vunpack.c.l.b16 %v4230
    %v4271 = vunpack.c.l.b16 %v4231
    %v4272 = vunpack.c.l.b16 %v4232
    %v4273 = vunpack.c.l.b16 %v4233
    %v4274 = vunpack.c.l.b16 %v4234
    %v4275 = vunpack.c.l.b16 %v4235
    %v4276 = vunpack.c.l.b16 %v4236
    %v4277 = vunpack.c.l.b16 %v4237
    %v4278 = vunpack.c.l.b16 %v4238
    %v4279 = vunpack.c.l.b16 %v4239
    %v4280 = vunpack.c.l.b16 %v4240
    %v4281 = vunpack.c.l.b16 %v4241
    %v4282 = vunpack.c.l.b16 %v4242
    %v4283 = vpack.c.b16 %v4268, %v4267
    %v4284 = vpack.c.b16 %v4270, %v4269
    %v4285 = vpack.c.b16 %v4272, %v4271
    %v4286 = vpack.c.b16 %v4274, %v4273
    %v4287 = vpack.c.b16 %v4276, %v4275
    %v4288 = vpack.c.b16 %v4278, %v4277
    %v4289 = vpack.c.b16 %v4280, %v4279
    %v4290 = vpack.c.b16 %v4282, %v4281
    %4299 = vmatprep.subr.bf16.mxu0 0
    %4300 = vmatpush1.bf16.msra.mxu0 %v4283
    %4301 = vmatprep.subr.bf16.mxu0 0
    %4302 = vmatpush1.bf16.msra.mxu0 %v4284
    %4303 = vmatprep.subr.bf16.mxu0 0
    %4304 = vmatpush1.bf16.msra.mxu0 %v4285
    %4305 = vmatprep.subr.bf16.mxu0 0
    %4306 = vmatpush1.bf16.msra.mxu0 %v4286
    %4307 = vmatprep.subr.bf16.mxu0 0
    %4308 = vmatpush1.bf16.msra.mxu0 %v4287
    %4309 = vmatprep.subr.bf16.mxu0 0
    %4310 = vmatpush1.bf16.msra.mxu0 %v4288
    %4311 = vmatprep.subr.bf16.mxu0 0
    %4312 = vmatpush1.bf16.msra.mxu0 %v4289
    %4313 = vmatprep.subr.bf16.mxu0 0
    %4314 = vmatpush1.bf16.msra.mxu0 %v4290
    %4315 = vmatprep.subr.bf16.mxu0 0
    %4316 = vmatpush1.bf16.msra.mxu0 0
    %4317 = vmatprep.subr.bf16.mxu0 0
    %4318 = vmatpush1.bf16.msra.mxu0 0
    %4319 = vmatprep.subr.bf16.mxu0 0
    %4320 = vmatpush1.bf16.msra.mxu0 0
    %4321 = vmatprep.subr.bf16.mxu0 0
    %4322 = vmatpush1.bf16.msra.mxu0 0
    %4323 = vmatprep.subr.bf16.mxu0 0
    %4324 = vmatpush1.bf16.msra.mxu0 0
    %4325 = vmatprep.subr.bf16.mxu0 0
    %4326 = vmatpush1.bf16.msra.mxu0 0
    %4327 = vmatprep.subr.bf16.mxu0 0
    %4328 = vmatpush1.bf16.msra.mxu0 0
    %4329 = vmatprep.subr.bf16.mxu0 0
    %4330 = vmatpush1.bf16.msra.mxu0 0
    %4331 = vmatprep.mubr.bf16.mxu0 0
    %4332 = vmatmul.mubr.bf16.gmra.mrb[0].mxu0 %v3997
    %v4333 = vpop.f32.mrb[0].mxu0
    %v4334 = vadd.f32 %v4249, %v4333
    %v4335 = vpop.f32.mrb[0].mxu0
    %v4336 = vpop.f32.mrb[0].mxu0
    %v4337 = vadd.f32 %v4249, %v4336
    %v4338 = vpop.f32.mrb[0].mxu0
    %4339 = vdwg.mxu0
    %v4341 = vsel %vm533, %v4106, 0
    %v4344 = vsel %vm533, %v4220, 0
    %4346 = vmatprep.subr.mxu0 0.0
    %4347 = vmatpush1.xpose.msra.mxu0 %v4344
    %4348 = vmatprep.subr.mxu0 0.0
    %4349 = vmatpush1.xpose.msra.mxu0 0.0
    %4350 = vmatprep.subr.mxu0 0.0
    %4351 = vmatpush1.xpose.msra.mxu0 0.0
    %4352 = vmatprep.subr.mxu0 0.0
    %4353 = vmatpush1.xpose.msra.mxu0 0.0
    %4354 = vmatprep.subr.mxu0 0.0
    %4355 = vmatpush1.xpose.msra.mxu0 0.0
    %4356 = vmatprep.subr.mxu0 0.0
    %4357 = vmatpush1.xpose.msra.mxu0 0.0
    %4358 = vmatprep.subr.mxu0 0.0
    %4359 = vmatpush1.xpose.msra.mxu0 0.0
    %4360 = vmatprep.subr.mxu0 0.0
    %4361 = vmatpush1.xpose.msra.mxu0 0.0
    %4362 = vmatprep.subr.mxu0 0.0
    %4363 = vmatpush1.xpose.msra.mxu0 0.0
    %4364 = vmatprep.subr.mxu0 0.0
    %4365 = vmatpush1.xpose.msra.mxu0 0.0
    %4366 = vmatprep.subr.mxu0 0.0
    %4367 = vmatpush1.xpose.msra.mxu0 0.0
    %4368 = vmatprep.subr.mxu0 0.0
    %4369 = vmatpush1.xpose.msra.mxu0 0.0
    %4370 = vmatprep.subr.mxu0 0.0
    %4371 = vmatpush1.xpose.msra.mxu0 0.0
    %4372 = vmatprep.subr.mxu0 0.0
    %4373 = vmatpush1.xpose.msra.mxu0 0.0
    %4374 = vmatprep.subr.mxu0 0.0
    %4375 = vmatpush1.xpose.msra.mxu0 0.0
    %4376 = vmatprep.subr.mxu0 0.0
    %4377 = vmatpush1.xpose.msra.mxu0 0.0
    %4378 = vmatprep.subr.mxu0 0.0
    %4379 = vmatpush1.xpose.msra.mxu0 0.0
    %4380 = vmatprep.subr.mxu0 0.0
    %4381 = vmatpush1.xpose.msra.mxu0 0.0
    %4382 = vmatprep.subr.mxu0 0.0
    %4383 = vmatpush1.xpose.msra.mxu0 0.0
    %4384 = vmatprep.subr.mxu0 0.0
    %4385 = vmatpush1.xpose.msra.mxu0 0.0
    %4386 = vmatprep.subr.mxu0 0.0
    %4387 = vmatpush1.xpose.msra.mxu0 0.0
    %4388 = vmatprep.subr.mxu0 0.0
    %4389 = vmatpush1.xpose.msra.mxu0 0.0
    %4390 = vmatprep.subr.mxu0 0.0
    %4391 = vmatpush1.xpose.msra.mxu0 0.0
    %4392 = vmatprep.subr.mxu0 0.0
    %4393 = vmatpush1.xpose.msra.mxu0 0.0
    %4394 = vmatprep.subr.mxu0 0.0
    %4395 = vmatpush1.xpose.msra.mxu0 0.0
    %4396 = vmatprep.subr.mxu0 0.0
    %4397 = vmatpush1.xpose.msra.mxu0 0.0
    %4398 = vmatprep.subr.mxu0 0.0
    %4399 = vmatpush1.xpose.msra.mxu0 0.0
    %4400 = vmatprep.subr.mxu0 0.0
    %4401 = vmatpush1.xpose.msra.mxu0 0.0
    %4402 = vmatprep.subr.mxu0 0.0
    %4403 = vmatpush1.xpose.msra.mxu0 0.0
    %4404 = vmatprep.subr.mxu0 0.0
    %4405 = vmatpush1.xpose.msra.mxu0 0.0
    %4406 = vmatprep.subr.mxu0 0.0
    %4407 = vmatpush1.xpose.msra.mxu0 0.0
    %4408 = vmatprep.subr.mxu0 0.0
    %4409 = vmatpush1.xpose.msra.mxu0 0.0
    %4410 = vmatprep.mubr.f32.mxu0 0.0
    %4411 = vmatmul.mubr.f32.gmra.mrb[0].mxu0 %v4341
    %v4412 = vpop.f32.mrb[0].mxu0
    %v4413 = vadd.f32 0.0, %v4412
    %v4414 = vpop.f32.mrb[0].mxu0
    %4415 = vdwg.mxu0
    %v4416 = vmul.f32 %v4413, 0.17677669
    %v4417 = vadd.f32 %v4416, %v616
    %v4418 = vsel %vm619, %v4417, -inf
    %4419 = vmax.xlane.f32.xlu0 %v4418
    %v4420 = vpop.xlane.xlu0 %4419
    %v4421 = vsub.f32 %v4417, %v4420
    %v4422 = vmul.f32 %v4421, 1.442695
    %v4423 = vpow.pop %v4422
    %v4424 = vsel %vm619, %v4423, 0.0
    %4425 = vadd.xlane.f32.xlu0 %v4424
    %v4426 = vpop.xlane.xlu0 %4425
    %v4427 = vrcp.pop %v4426
    %v4428 = vmul.f32 %v4423, %v4427
    %v4430 = vsel %vm619, %v4428, 0
    %4432 = vmatprep.subr.mxu0 0.0
    %4433 = vmatpush1.msra.mxu0 %v4334
    %4434 = vmatprep.subr.mxu0 0.0
    %4435 = vmatpush1.msra.mxu0 0.0
    %4436 = vmatprep.subr.mxu0 0.0
    %4437 = vmatpush1.msra.mxu0 0.0
    %4438 = vmatprep.subr.mxu0 0.0
    %4439 = vmatpush1.msra.mxu0 0.0
    %4440 = vmatprep.subr.mxu0 0.0
    %4441 = vmatpush1.msra.mxu0 0.0
    %4442 = vmatprep.subr.mxu0 0.0
    %4443 = vmatpush1.msra.mxu0 0.0
    %4444 = vmatprep.subr.mxu0 0.0
    %4445 = vmatpush1.msra.mxu0 0.0
    %4446 = vmatprep.subr.mxu0 0.0
    %4447 = vmatpush1.msra.mxu0 0.0
    %4448 = vmatprep.subr.mxu0 0.0
    %4449 = vmatpush1.msra.mxu0 0.0
    %4450 = vmatprep.subr.mxu0 0.0
    %4451 = vmatpush1.msra.mxu0 0.0
    %4452 = vmatprep.subr.mxu0 0.0
    %4453 = vmatpush1.msra.mxu0 0.0
    %4454 = vmatprep.subr.mxu0 0.0
    %4455 = vmatpush1.msra.mxu0 0.0
    %4456 = vmatprep.subr.mxu0 0.0
    %4457 = vmatpush1.msra.mxu0 0.0
    %4458 = vmatprep.subr.mxu0 0.0
    %4459 = vmatpush1.msra.mxu0 0.0
    %4460 = vmatprep.subr.mxu0 0.0
    %4461 = vmatpush1.msra.mxu0 0.0
    %4462 = vmatprep.subr.mxu0 0.0
    %4463 = vmatpush1.msra.mxu0 0.0
    %4464 = vmatprep.subr.mxu0 0.0
    %4465 = vmatpush1.msra.mxu0 0.0
    %4466 = vmatprep.subr.mxu0 0.0
    %4467 = vmatpush1.msra.mxu0 0.0
    %4468 = vmatprep.subr.mxu0 0.0
    %4469 = vmatpush1.msra.mxu0 0.0
    %4470 = vmatprep.subr.mxu0 0.0
    %4471 = vmatpush1.msra.mxu0 0.0
    %4472 = vmatprep.subr.mxu0 0.0
    %4473 = vmatpush1.msra.mxu0 0.0
    %4474 = vmatprep.subr.mxu0 0.0
    %4475 = vmatpush1.msra.mxu0 0.0
    %4476 = vmatprep.subr.mxu0 0.0
    %4477 = vmatpush1.msra.mxu0 0.0
    %4478 = vmatprep.subr.mxu0 0.0
    %4479 = vmatpush1.msra.mxu0 0.0
    %4480 = vmatprep.subr.mxu0 0.0
    %4481 = vmatpush1.msra.mxu0 0.0
    %4482 = vmatprep.subr.mxu0 0.0
    %4483 = vmatpush1.msra.mxu0 0.0
    %4484 = vmatprep.subr.mxu0 0.0
    %4485 = vmatpush1.msra.mxu0 0.0
    %4486 = vmatprep.subr.mxu0 0.0
    %4487 = vmatpush1.msra.mxu0 0.0
    %4488 = vmatprep.subr.mxu0 0.0
    %4489 = vmatpush1.msra.mxu0 0.0
    %4490 = vmatprep.subr.mxu0 0.0
    %4491 = vmatpush1.msra.mxu0 0.0
    %4492 = vmatprep.subr.mxu0 0.0
    %4493 = vmatpush1.msra.mxu0 0.0
    %4494 = vmatprep.subr.mxu0 0.0
    %4495 = vmatpush1.msra.mxu0 0.0
    %4496 = vmatprep.mubr.f32.mxu0 0.0
    %4497 = vmatmul.mubr.f32.gmra.mrb[0].mxu0 %v4430
    %v4498 = vpop.f32.mrb[0].mxu0
    %v4499 = vadd.f32 0.0, %v4498
    %v4500 = vpop.f32.mrb[0].mxu0
    %4501 = vdwg.mxu0
    %v4503 = vsel %vm533, %v4109, 0
    %v4506 = vsel %vm533, %v4223, 0
    %4508 = vmatprep.subr.mxu0 0.0
    %4509 = vmatpush1.xpose.msra.mxu0 %v4506
    %4510 = vmatprep.subr.mxu0 0.0
    %4511 = vmatpush1.xpose.msra.mxu0 0.0
    %4512 = vmatprep.subr.mxu0 0.0
    %4513 = vmatpush1.xpose.msra.mxu0 0.0
    %4514 = vmatprep.subr.mxu0 0.0
    %4515 = vmatpush1.xpose.msra.mxu0 0.0
    %4516 = vmatprep.subr.mxu0 0.0
    %4517 = vmatpush1.xpose.msra.mxu0 0.0
    %4518 = vmatprep.subr.mxu0 0.0
    %4519 = vmatpush1.xpose.msra.mxu0 0.0
    %4520 = vmatprep.subr.mxu0 0.0
    %4521 = vmatpush1.xpose.msra.mxu0 0.0
    %4522 = vmatprep.subr.mxu0 0.0
    %4523 = vmatpush1.xpose.msra.mxu0 0.0
    %4524 = vmatprep.subr.mxu0 0.0
    %4525 = vmatpush1.xpose.msra.mxu0 0.0
    %4526 = vmatprep.subr.mxu0 0.0
    %4527 = vmatpush1.xpose.msra.mxu0 0.0
    %4528 = vmatprep.subr.mxu0 0.0
    %4529 = vmatpush1.xpose.msra.mxu0 0.0
    %4530 = vmatprep.subr.mxu0 0.0
    %4531 = vmatpush1.xpose.msra.mxu0 0.0
    %4532 = vmatprep.subr.mxu0 0.0
    %4533 = vmatpush1.xpose.msra.mxu0 0.0
    %4534 = vmatprep.subr.mxu0 0.0
    %4535 = vmatpush1.xpose.msra.mxu0 0.0
    %4536 = vmatprep.subr.mxu0 0.0
    %4537 = vmatpush1.xpose.msra.mxu0 0.0
    %4538 = vmatprep.subr.mxu0 0.0
    %4539 = vmatpush1.xpose.msra.mxu0 0.0
    %4540 = vmatprep.subr.mxu0 0.0
    %4541 = vmatpush1.xpose.msra.mxu0 0.0
    %4542 = vmatprep.subr.mxu0 0.0
    %4543 = vmatpush1.xpose.msra.mxu0 0.0
    %4544 = vmatprep.subr.mxu0 0.0
    %4545 = vmatpush1.xpose.msra.mxu0 0.0
    %4546 = vmatprep.subr.mxu0 0.0
    %4547 = vmatpush1.xpose.msra.mxu0 0.0
    %4548 = vmatprep.subr.mxu0 0.0
    %4549 = vmatpush1.xpose.msra.mxu0 0.0
    %4550 = vmatprep.subr.mxu0 0.0
    %4551 = vmatpush1.xpose.msra.mxu0 0.0
    %4552 = vmatprep.subr.mxu0 0.0
    %4553 = vmatpush1.xpose.msra.mxu0 0.0
    %4554 = vmatprep.subr.mxu0 0.0
    %4555 = vmatpush1.xpose.msra.mxu0 0.0
    %4556 = vmatprep.subr.mxu0 0.0
    %4557 = vmatpush1.xpose.msra.mxu0 0.0
    %4558 = vmatprep.subr.mxu0 0.0
    %4559 = vmatpush1.xpose.msra.mxu0 0.0
    %4560 = vmatprep.subr.mxu0 0.0
    %4561 = vmatpush1.xpose.msra.mxu0 0.0
    %4562 = vmatprep.subr.mxu0 0.0
    %4563 = vmatpush1.xpose.msra.mxu0 0.0
    %4564 = vmatprep.subr.mxu0 0.0
    %4565 = vmatpush1.xpose.msra.mxu0 0.0
    %4566 = vmatprep.subr.mxu0 0.0
    %4567 = vmatpush1.xpose.msra.mxu0 0.0
    %4568 = vmatprep.subr.mxu0 0.0
    %4569 = vmatpush1.xpose.msra.mxu0 0.0
    %4570 = vmatprep.subr.mxu0 0.0
    %4571 = vmatpush1.xpose.msra.mxu0 0.0
    %4572 = vmatprep.mubr.f32.mxu0 0.0
    %4573 = vmatmul.mubr.f32.gmra.mrb[0].mxu0 %v4503
    %v4574 = vpop.f32.mrb[0].mxu0
    %v4575 = vadd.f32 0.0, %v4574
    %v4576 = vpop.f32.mrb[0].mxu0
    %4577 = vdwg.mxu0
    %v4578 = vmul.f32 %v4575, 0.17677669
    %v4579 = vadd.f32 %v4578, %v787
    %v4580 = vsel %vm619, %v4579, -inf
    %4581 = vmax.xlane.f32.xlu0 %v4580
    %v4582 = vpop.xlane.xlu0 %4581
    %v4583 = vsub.f32 %v4579, %v4582
    %v4584 = vmul.f32 %v4583, 1.442695
    %v4585 = vpow.pop %v4584
    %v4586 = vsel %vm619, %v4585, 0.0
    %4587 = vadd.xlane.f32.xlu0 %v4586
    %v4588 = vpop.xlane.xlu0 %4587
    %v4589 = vrcp.pop %v4588
    %v4590 = vmul.f32 %v4585, %v4589
    %v4592 = vsel %vm619, %v4590, 0
    %4594 = vmatprep.subr.mxu0 0.0
    %4595 = vmatpush1.msra.mxu0 %v4337
    %4596 = vmatprep.subr.mxu0 0.0
    %4597 = vmatpush1.msra.mxu0 0.0
    %4598 = vmatprep.subr.mxu0 0.0
    %4599 = vmatpush1.msra.mxu0 0.0
    %4600 = vmatprep.subr.mxu0 0.0
    %4601 = vmatpush1.msra.mxu0 0.0
    %4602 = vmatprep.subr.mxu0 0.0
    %4603 = vmatpush1.msra.mxu0 0.0
    %4604 = vmatprep.subr.mxu0 0.0
    %4605 = vmatpush1.msra.mxu0 0.0
    %4606 = vmatprep.subr.mxu0 0.0
    %4607 = vmatpush1.msra.mxu0 0.0
    %4608 = vmatprep.subr.mxu0 0.0
    %4609 = vmatpush1.msra.mxu0 0.0
    %4610 = vmatprep.subr.mxu0 0.0
    %4611 = vmatpush1.msra.mxu0 0.0
    %4612 = vmatprep.subr.mxu0 0.0
    %4613 = vmatpush1.msra.mxu0 0.0
    %4614 = vmatprep.subr.mxu0 0.0
    %4615 = vmatpush1.msra.mxu0 0.0
    %4616 = vmatprep.subr.mxu0 0.0
    %4617 = vmatpush1.msra.mxu0 0.0
    %4618 = vmatprep.subr.mxu0 0.0
    %4619 = vmatpush1.msra.mxu0 0.0
    %4620 = vmatprep.subr.mxu0 0.0
    %4621 = vmatpush1.msra.mxu0 0.0
    %4622 = vmatprep.subr.mxu0 0.0
    %4623 = vmatpush1.msra.mxu0 0.0
    %4624 = vmatprep.subr.mxu0 0.0
    %4625 = vmatpush1.msra.mxu0 0.0
    %4626 = vmatprep.subr.mxu0 0.0
    %4627 = vmatpush1.msra.mxu0 0.0
    %4628 = vmatprep.subr.mxu0 0.0
    %4629 = vmatpush1.msra.mxu0 0.0
    %4630 = vmatprep.subr.mxu0 0.0
    %4631 = vmatpush1.msra.mxu0 0.0
    %4632 = vmatprep.subr.mxu0 0.0
    %4633 = vmatpush1.msra.mxu0 0.0
    %4634 = vmatprep.subr.mxu0 0.0
    %4635 = vmatpush1.msra.mxu0 0.0
    %4636 = vmatprep.subr.mxu0 0.0
    %4637 = vmatpush1.msra.mxu0 0.0
    %4638 = vmatprep.subr.mxu0 0.0
    %4639 = vmatpush1.msra.mxu0 0.0
    %4640 = vmatprep.subr.mxu0 0.0
    %4641 = vmatpush1.msra.mxu0 0.0
    %4642 = vmatprep.subr.mxu0 0.0
    %4643 = vmatpush1.msra.mxu0 0.0
    %4644 = vmatprep.subr.mxu0 0.0
    %4645 = vmatpush1.msra.mxu0 0.0
    %4646 = vmatprep.subr.mxu0 0.0
    %4647 = vmatpush1.msra.mxu0 0.0
    %4648 = vmatprep.subr.mxu0 0.0
    %4649 = vmatpush1.msra.mxu0 0.0
    %4650 = vmatprep.subr.mxu0 0.0
    %4651 = vmatpush1.msra.mxu0 0.0
    %4652 = vmatprep.subr.mxu0 0.0
    %4653 = vmatpush1.msra.mxu0 0.0
    %4654 = vmatprep.subr.mxu0 0.0
    %4655 = vmatpush1.msra.mxu0 0.0
    %4656 = vmatprep.subr.mxu0 0.0
    %4657 = vmatpush1.msra.mxu0 0.0
    %4658 = vmatprep.mubr.f32.mxu0 0.0
    %4659 = vmatmul.mubr.f32.gmra.mrb[0].mxu0 %v4592
    %v4660 = vpop.f32.mrb[0].mxu0
    %v4661 = vadd.f32 0.0, %v4660
    %v4662 = vpop.f32.mrb[0].mxu0
    %4663 = vdwg.mxu0
    %s4664 = scalar_lea.vmem [#allocation6], 320
    %v4665 = vld [vmem:[%s4664] sm:$0xf]
    %v4666 = vld [vmem:[%s4664 + $0x4] sm:$0xf]
    %v4667 = vld [vmem:[%s4664 + $0x8] sm:$0xf]
    %v4668 = vld [vmem:[%s4664 + $0xc] sm:$0xf]
    %v4669 = vld [vmem:[%s4664 + $0x10] sm:$0xf]
    %v4670 = vld [vmem:[%s4664 + $0x14] sm:$0xf]
    %v4671 = vld [vmem:[%s4664 + $0x18] sm:$0xf]
    %v4672 = vld [vmem:[%s4664 + $0x1c] sm:$0xf]
    %v4673 = vld [vmem:[%s4664 + $0x20] sm:$0xf]
    %v4674 = vld [vmem:[%s4664 + $0x24] sm:$0xf]
    %v4675 = vld [vmem:[%s4664 + $0x28] sm:$0xf]
    %v4676 = vld [vmem:[%s4664 + $0x2c] sm:$0xf]
    %v4677 = vld [vmem:[%s4664 + $0x30] sm:$0xf]
    %v4678 = vld [vmem:[%s4664 + $0x34] sm:$0xf]
    %v4679 = vld [vmem:[%s4664 + $0x38] sm:$0xf]
    %v4680 = vld [vmem:[%s4664 + $0x3c] sm:$0xf]
    %s4681 = scalar_lea.vmem %s7, 5
    %v4682 = vld [vmem:[%s4681] sm:$0x1]
    %v4684 = vlaneseq
    %v4685 = vshrl.u32 %v4684, 7
    %v4686 = vsub.s32 0, %v4685
    %v4687 = vrot.slane %v4682, %v4686
    %v4705 = vunpack.c.l.b16 %v4665
    %v4706 = vunpack.c.l.b16 %v4666
    %v4707 = vunpack.c.l.b16 %v4667
    %v4708 = vunpack.c.l.b16 %v4668
    %v4709 = vunpack.c.l.b16 %v4669
    %v4710 = vunpack.c.l.b16 %v4670
    %v4711 = vunpack.c.l.b16 %v4671
    %v4712 = vunpack.c.l.b16 %v4672
    %v4713 = vunpack.c.l.b16 %v4673
    %v4714 = vunpack.c.l.b16 %v4674
    %v4715 = vunpack.c.l.b16 %v4675
    %v4716 = vunpack.c.l.b16 %v4676
    %v4717 = vunpack.c.l.b16 %v4677
    %v4718 = vunpack.c.l.b16 %v4678
    %v4719 = vunpack.c.l.b16 %v4679
    %v4720 = vunpack.c.l.b16 %v4680
    %v4721 = vpack.c.b16 %v4706, %v4705
    %v4722 = vpack.c.b16 %v4708, %v4707
    %v4723 = vpack.c.b16 %v4710, %v4709
    %v4724 = vpack.c.b16 %v4712, %v4711
    %v4725 = vpack.c.b16 %v4714, %v4713
    %v4726 = vpack.c.b16 %v4716, %v4715
    %v4727 = vpack.c.b16 %v4718, %v4717
    %v4728 = vpack.c.b16 %v4720, %v4719
    %4737 = vmatprep.subr.bf16.mxu0 0
    %4738 = vmatpush1.bf16.msra.mxu0 %v4721
    %4739 = vmatprep.subr.bf16.mxu0 0
    %4740 = vmatpush1.bf16.msra.mxu0 %v4722
    %4741 = vmatprep.subr.bf16.mxu0 0
    %4742 = vmatpush1.bf16.msra.mxu0 %v4723
    %4743 = vmatprep.subr.bf16.mxu0 0
    %4744 = vmatpush1.bf16.msra.mxu0 %v4724
    %4745 = vmatprep.subr.bf16.mxu0 0
    %4746 = vmatpush1.bf16.msra.mxu0 %v4725
    %4747 = vmatprep.subr.bf16.mxu0 0
    %4748 = vmatpush1.bf16.msra.mxu0 %v4726
    %4749 = vmatprep.subr.bf16.mxu0 0
    %4750 = vmatpush1.bf16.msra.mxu0 %v4727
    %4751 = vmatprep.subr.bf16.mxu0 0
    %4752 = vmatpush1.bf16.msra.mxu0 %v4728
    %4753 = vmatprep.subr.bf16.mxu0 0
    %4754 = vmatpush1.bf16.msra.mxu0 0
    %4755 = vmatprep.subr.bf16.mxu0 0
    %4756 = vmatpush1.bf16.msra.mxu0 0
    %4757 = vmatprep.subr.bf16.mxu0 0
    %4758 = vmatpush1.bf16.msra.mxu0 0
    %4759 = vmatprep.subr.bf16.mxu0 0
    %4760 = vmatpush1.bf16.msra.mxu0 0
    %4761 = vmatprep.subr.bf16.mxu0 0
    %4762 = vmatpush1.bf16.msra.mxu0 0
    %4763 = vmatprep.subr.bf16.mxu0 0
    %4764 = vmatpush1.bf16.msra.mxu0 0
    %4765 = vmatprep.subr.bf16.mxu0 0
    %4766 = vmatpush1.bf16.msra.mxu0 0
    %4767 = vmatprep.subr.bf16.mxu0 0
    %4768 = vmatpush1.bf16.msra.mxu0 0
    %4769 = vmatprep.mubr.bf16.mxu0 0
    %4770 = vmatmul.mubr.bf16.gmra.mrb[0].mxu0 %v3997
    %v4771 = vpop.f32.mrb[0].mxu0
    %v4772 = vadd.f32 %v4687, %v4771
    %v4773 = vpop.f32.mrb[0].mxu0
    %v4774 = vpop.f32.mrb[0].mxu0
    %v4775 = vadd.f32 %v4687, %v4774
    %v4776 = vpop.f32.mrb[0].mxu0
    %4777 = vdwg.mxu0
    %s4778 = scalar_lea.vmem [#allocation7], 320
    %v4779 = vld [vmem:[%s4778] sm:$0xf]
    %v4780 = vld [vmem:[%s4778 + $0x4] sm:$0xf]
    %v4781 = vld [vmem:[%s4778 + $0x8] sm:$0xf]
    %v4782 = vld [vmem:[%s4778 + $0xc] sm:$0xf]
    %v4783 = vld [vmem:[%s4778 + $0x10] sm:$0xf]
    %v4784 = vld [vmem:[%s4778 + $0x14] sm:$0xf]
    %v4785 = vld [vmem:[%s4778 + $0x18] sm:$0xf]
    %v4786 = vld [vmem:[%s4778 + $0x1c] sm:$0xf]
    %v4787 = vld [vmem:[%s4778 + $0x20] sm:$0xf]
    %v4788 = vld [vmem:[%s4778 + $0x24] sm:$0xf]
    %v4789 = vld [vmem:[%s4778 + $0x28] sm:$0xf]
    %v4790 = vld [vmem:[%s4778 + $0x2c] sm:$0xf]
    %v4791 = vld [vmem:[%s4778 + $0x30] sm:$0xf]
    %v4792 = vld [vmem:[%s4778 + $0x34] sm:$0xf]
    %v4793 = vld [vmem:[%s4778 + $0x38] sm:$0xf]
    %v4794 = vld [vmem:[%s4778 + $0x3c] sm:$0xf]
    %s4795 = scalar_lea.vmem %s9, 5
    %v4796 = vld [vmem:[%s4795] sm:$0x1]
    %v4798 = vlaneseq
    %v4799 = vshrl.u32 %v4798, 7
    %v4800 = vsub.s32 0, %v4799
    %v4801 = vrot.slane %v4796, %v4800
    %v4819 = vunpack.c.l.b16 %v4779
    %v4820 = vunpack.c.l.b16 %v4780
    %v4821 = vunpack.c.l.b16 %v4781
    %v4822 = vunpack.c.l.b16 %v4782
    %v4823 = vunpack.c.l.b16 %v4783
    %v4824 = vunpack.c.l.b16 %v4784
    %v4825 = vunpack.c.l.b16 %v4785
    %v4826 = vunpack.c.l.b16 %v4786
    %v4827 = vunpack.c.l.b16 %v4787
    %v4828 = vunpack.c.l.b16 %v4788
    %v4829 = vunpack.c.l.b16 %v4789
    %v4830 = vunpack.c.l.b16 %v4790
    %v4831 = vunpack.c.l.b16 %v4791
    %v4832 = vunpack.c.l.b16 %v4792
    %v4833 = vunpack.c.l.b16 %v4793
    %v4834 = vunpack.c.l.b16 %v4794
    %v4835 = vpack.c.b16 %v4820, %v4819
    %v4836 = vpack.c.b16 %v4822, %v4821
    %v4837 = vpack.c.b16 %v4824, %v4823
    %v4838 = vpack.c.b16 %v4826, %v4825
    %v4839 = vpack.c.b16 %v4828, %v4827
    %v4840 = vpack.c.b16 %v4830, %v4829
    %v4841 = vpack.c.b16 %v4832, %v4831
    %v4842 = vpack.c.b16 %v4834, %v4833
    %4851 = vmatprep.subr.bf16.mxu0 0
    %4852 = vmatpush1.bf16.msra.mxu0 %v4835
    %4853 = vmatprep.subr.bf16.mxu0 0
    %4854 = vmatpush1.bf16.msra.mxu0 %v4836
    %4855 = vmatprep.subr.bf16.mxu0 0
    %4856 = vmatpush1.bf16.msra.mxu0 %v4837
    %4857 = vmatprep.subr.bf16.mxu0 0
    %4858 = vmatpush1.bf16.msra.mxu0 %v4838
    %4859 = vmatprep.subr.bf16.mxu0 0
    %4860 = vmatpush1.bf16.msra.mxu0 %v4839
    %4861 = vmatprep.subr.bf16.mxu0 0
    %4862 = vmatpush1.bf16.msra.mxu0 %v4840
    %4863 = vmatprep.subr.bf16.mxu0 0
    %4864 = vmatpush1.bf16.msra.mxu0 %v4841
    %4865 = vmatprep.subr.bf16.mxu0 0
    %4866 = vmatpush1.bf16.msra.mxu0 %v4842
    %4867 = vmatprep.subr.bf16.mxu0 0
    %4868 = vmatpush1.bf16.msra.mxu0 0
    %4869 = vmatprep.subr.bf16.mxu0 0
    %4870 = vmatpush1.bf16.msra.mxu0 0
    %4871 = vmatprep.subr.bf16.mxu0 0
    %4872 = vmatpush1.bf16.msra.mxu0 0
    %4873 = vmatprep.subr.bf16.mxu0 0
    %4874 = vmatpush1.bf16.msra.mxu0 0
    %4875 = vmatprep.subr.bf16.mxu0 0
    %4876 = vmatpush1.bf16.msra.mxu0 0
    %4877 = vmatprep.subr.bf16.mxu0 0
    %4878 = vmatpush1.bf16.msra.mxu0 0
    %4879 = vmatprep.subr.bf16.mxu0 0
    %4880 = vmatpush1.bf16.msra.mxu0 0
    %4881 = vmatprep.subr.bf16.mxu0 0
    %4882 = vmatpush1.bf16.msra.mxu0 0
    %4883 = vmatprep.mubr.bf16.mxu0 0
    %4884 = vmatmul.mubr.bf16.gmra.mrb[0].mxu0 %v3997
    %v4885 = vpop.f32.mrb[0].mxu0
    %v4886 = vadd.f32 %v4801, %v4885
    %v4887 = vpop.f32.mrb[0].mxu0
    %v4888 = vpop.f32.mrb[0].mxu0
    %v4889 = vadd.f32 %v4801, %v4888
    %v4890 = vpop.f32.mrb[0].mxu0
    %4891 = vdwg.mxu0
    %s4892 = scalar_lea.vmem %s10, 320
    %v4893 = vld [vmem:[%s4892] sm:$0xf]
    %v4894 = vld [vmem:[%s4892 + $0x4] sm:$0xf]
    %v4895 = vld [vmem:[%s4892 + $0x8] sm:$0xf]
    %v4896 = vld [vmem:[%s4892 + $0xc] sm:$0xf]
    %v4897 = vld [vmem:[%s4892 + $0x10] sm:$0xf]
    %v4898 = vld [vmem:[%s4892 + $0x14] sm:$0xf]
    %v4899 = vld [vmem:[%s4892 + $0x18] sm:$0xf]
    %v4900 = vld [vmem:[%s4892 + $0x1c] sm:$0xf]
    %v4901 = vld [vmem:[%s4892 + $0x20] sm:$0xf]
    %v4902 = vld [vmem:[%s4892 + $0x24] sm:$0xf]
    %v4903 = vld [vmem:[%s4892 + $0x28] sm:$0xf]
    %v4904 = vld [vmem:[%s4892 + $0x2c] sm:$0xf]
    %v4905 = vld [vmem:[%s4892 + $0x30] sm:$0xf]
    %v4906 = vld [vmem:[%s4892 + $0x34] sm:$0xf]
    %v4907 = vld [vmem:[%s4892 + $0x38] sm:$0xf]
    %v4908 = vld [vmem:[%s4892 + $0x3c] sm:$0xf]
    %s4909 = scalar_lea.vmem %s11, 5
    %v4910 = vld [vmem:[%s4909] sm:$0x1]
    %v4912 = vlaneseq
    %v4913 = vshrl.u32 %v4912, 7
    %v4914 = vsub.s32 0, %v4913
    %v4915 = vrot.slane %v4910, %v4914
    %v4933 = vunpack.c.l.b16 %v4893
    %v4934 = vunpack.c.l.b16 %v4894
    %v4935 = vunpack.c.l.b16 %v4895
    %v4936 = vunpack.c.l.b16 %v4896
    %v4937 = vunpack.c.l.b16 %v4897
    %v4938 = vunpack.c.l.b16 %v4898
    %v4939 = vunpack.c.l.b16 %v4899
    %v4940 = vunpack.c.l.b16 %v4900
    %v4941 = vunpack.c.l.b16 %v4901
    %v4942 = vunpack.c.l.b16 %v4902
    %v4943 = vunpack.c.l.b16 %v4903
    %v4944 = vunpack.c.l.b16 %v4904
    %v4945 = vunpack.c.l.b16 %v4905
    %v4946 = vunpack.c.l.b16 %v4906
    %v4947 = vunpack.c.l.b16 %v4907
    %v4948 = vunpack.c.l.b16 %v4908
    %v4949 = vpack.c.b16 %v4934, %v4933
    %v4950 = vpack.c.b16 %v4936, %v4935
    %v4951 = vpack.c.b16 %v4938, %v4937
    %v4952 = vpack.c.b16 %v4940, %v4939
    %v4953 = vpack.c.b16 %v4942, %v4941
    %v4954 = vpack.c.b16 %v4944, %v4943
    %v4955 = vpack.c.b16 %v4946, %v4945
    %v4956 = vpack.c.b16 %v4948, %v4947
    %4965 = vmatprep.subr.bf16.mxu0 0
    %4966 = vmatpush1.bf16.msra.mxu0 %v4949
    %4967 = vmatprep.subr.bf16.mxu0 0
    %4968 = vmatpush1.bf16.msra.mxu0 %v4950
    %4969 = vmatprep.subr.bf16.mxu0 0
    %4970 = vmatpush1.bf16.msra.mxu0 %v4951
    %4971 = vmatprep.subr.bf16.mxu0 0
    %4972 = vmatpush1.bf16.msra.mxu0 %v4952
    %4973 = vmatprep.subr.bf16.mxu0 0
    %4974 = vmatpush1.bf16.msra.mxu0 %v4953
    %4975 = vmatprep.subr.bf16.mxu0 0
    %4976 = vmatpush1.bf16.msra.mxu0 %v4954
    %4977 = vmatprep.subr.bf16.mxu0 0
    %4978 = vmatpush1.bf16.msra.mxu0 %v4955
    %4979 = vmatprep.subr.bf16.mxu0 0
    %4980 = vmatpush1.bf16.msra.mxu0 %v4956
    %4981 = vmatprep.subr.bf16.mxu0 0
    %4982 = vmatpush1.bf16.msra.mxu0 0
    %4983 = vmatprep.subr.bf16.mxu0 0
    %4984 = vmatpush1.bf16.msra.mxu0 0
    %4985 = vmatprep.subr.bf16.mxu0 0
    %4986 = vmatpush1.bf16.msra.mxu0 0
    %4987 = vmatprep.subr.bf16.mxu0 0
    %4988 = vmatpush1.bf16.msra.mxu0 0
    %4989 = vmatprep.subr.bf16.mxu0 0
    %4990 = vmatpush1.bf16.msra.mxu0 0
    %4991 = vmatprep.subr.bf16.mxu0 0
    %4992 = vmatpush1.bf16.msra.mxu0 0
    %4993 = vmatprep.subr.bf16.mxu0 0
    %4994 = vmatpush1.bf16.msra.mxu0 0
    %4995 = vmatprep.subr.bf16.mxu0 0
    %4996 = vmatpush1.bf16.msra.mxu0 0
    %4997 = vmatprep.mubr.bf16.mxu0 0
    %4998 = vmatmul.mubr.bf16.gmra.mrb[0].mxu0 %v3997
    %v4999 = vpop.f32.mrb[0].mxu0
    %v5000 = vadd.f32 %v4915, %v4999
    %v5001 = vpop.f32.mrb[0].mxu0
    %v5002 = vpop.f32.mrb[0].mxu0
    %v5003 = vadd.f32 %v4915, %v5002
    %v5004 = vpop.f32.mrb[0].mxu0
    %5005 = vdwg.mxu0
    %v5007 = vsel %vm533, %v4772, 0
    %v5010 = vsel %vm533, %v4886, 0
    %5012 = vmatprep.subr.mxu0 0.0
    %5013 = vmatpush1.xpose.msra.mxu0 %v5010
    %5014 = vmatprep.subr.mxu0 0.0
    %5015 = vmatpush1.xpose.msra.mxu0 0.0
    %5016 = vmatprep.subr.mxu0 0.0
    %5017 = vmatpush1.xpose.msra.mxu0 0.0
    %5018 = vmatprep.subr.mxu0 0.0
    %5019 = vmatpush1.xpose.msra.mxu0 0.0
    %5020 = vmatprep.subr.mxu0 0.0
    %5021 = vmatpush1.xpose.msra.mxu0 0.0
    %5022 = vmatprep.subr.mxu0 0.0
    %5023 = vmatpush1.xpose.msra.mxu0 0.0
    %5024 = vmatprep.subr.mxu0 0.0
    %5025 = vmatpush1.xpose.msra.mxu0 0.0
    %5026 = vmatprep.subr.mxu0 0.0
    %5027 = vmatpush1.xpose.msra.mxu0 0.0
    %5028 = vmatprep.subr.mxu0 0.0
    %5029 = vmatpush1.xpose.msra.mxu0 0.0
    %5030 = vmatprep.subr.mxu0 0.0
    %5031 = vmatpush1.xpose.msra.mxu0 0.0
    %5032 = vmatprep.subr.mxu0 0.0
    %5033 = vmatpush1.xpose.msra.mxu0 0.0
    %5034 = vmatprep.subr.mxu0 0.0
    %5035 = vmatpush1.xpose.msra.mxu0 0.0
    %5036 = vmatprep.subr.mxu0 0.0
    %5037 = vmatpush1.xpose.msra.mxu0 0.0
    %5038 = vmatprep.subr.mxu0 0.0
    %5039 = vmatpush1.xpose.msra.mxu0 0.0
    %5040 = vmatprep.subr.mxu0 0.0
    %5041 = vmatpush1.xpose.msra.mxu0 0.0
    %5042 = vmatprep.subr.mxu0 0.0
    %5043 = vmatpush1.xpose.msra.mxu0 0.0
    %5044 = vmatprep.subr.mxu0 0.0
    %5045 = vmatpush1.xpose.msra.mxu0 0.0
    %5046 = vmatprep.subr.mxu0 0.0
    %5047 = vmatpush1.xpose.msra.mxu0 0.0
    %5048 = vmatprep.subr.mxu0 0.0
    %5049 = vmatpush1.xpose.msra.mxu0 0.0
    %5050 = vmatprep.subr.mxu0 0.0
    %5051 = vmatpush1.xpose.msra.mxu0 0.0
    %5052 = vmatprep.subr.mxu0 0.0
    %5053 = vmatpush1.xpose.msra.mxu0 0.0
    %5054 = vmatprep.subr.mxu0 0.0
    %5055 = vmatpush1.xpose.msra.mxu0 0.0
    %5056 = vmatprep.subr.mxu0 0.0
    %5057 = vmatpush1.xpose.msra.mxu0 0.0
    %5058 = vmatprep.subr.mxu0 0.0
    %5059 = vmatpush1.xpose.msra.mxu0 0.0
    %5060 = vmatprep.subr.mxu0 0.0
    %5061 = vmatpush1.xpose.msra.mxu0 0.0
    %5062 = vmatprep.subr.mxu0 0.0
    %5063 = vmatpush1.xpose.msra.mxu0 0.0
    %5064 = vmatprep.subr.mxu0 0.0
    %5065 = vmatpush1.xpose.msra.mxu0 0.0
    %5066 = vmatprep.subr.mxu0 0.0
    %5067 = vmatpush1.xpose.msra.mxu0 0.0
    %5068 = vmatprep.subr.mxu0 0.0
    %5069 = vmatpush1.xpose.msra.mxu0 0.0
    %5070 = vmatprep.subr.mxu0 0.0
    %5071 = vmatpush1.xpose.msra.mxu0 0.0
    %5072 = vmatprep.subr.mxu0 0.0
    %5073 = vmatpush1.xpose.msra.mxu0 0.0
    %5074 = vmatprep.subr.mxu0 0.0
    %5075 = vmatpush1.xpose.msra.mxu0 0.0
    %5076 = vmatprep.mubr.f32.mxu0 0.0
    %5077 = vmatmul.mubr.f32.gmra.mrb[0].mxu0 %v5007
    %v5078 = vpop.f32.mrb[0].mxu0
    %v5079 = vadd.f32 0.0, %v5078
    %v5080 = vpop.f32.mrb[0].mxu0
    %5081 = vdwg.mxu0
    %v5082 = vmul.f32 %v5079, 0.17677669
    %v5083 = vadd.f32 %v5082, %v616
    %v5084 = vsel %vm619, %v5083, -inf
    %5085 = vmax.xlane.f32.xlu0 %v5084
    %v5086 = vpop.xlane.xlu0 %5085
    %v5087 = vsub.f32 %v5083, %v5086
    %v5088 = vmul.f32 %v5087, 1.442695
    %v5089 = vpow.pop %v5088
    %v5090 = vsel %vm619, %v5089, 0.0
    %5091 = vadd.xlane.f32.xlu0 %v5090
    %v5092 = vpop.xlane.xlu0 %5091
    %v5093 = vrcp.pop %v5092
    %v5094 = vmul.f32 %v5089, %v5093
    %v5096 = vsel %vm619, %v5094, 0
    %5098 = vmatprep.subr.mxu0 0.0
    %5099 = vmatpush1.msra.mxu0 %v5000
    %5100 = vmatprep.subr.mxu0 0.0
    %5101 = vmatpush1.msra.mxu0 0.0
    %5102 = vmatprep.subr.mxu0 0.0
    %5103 = vmatpush1.msra.mxu0 0.0
    %5104 = vmatprep.subr.mxu0 0.0
    %5105 = vmatpush1.msra.mxu0 0.0
    %5106 = vmatprep.subr.mxu0 0.0
    %5107 = vmatpush1.msra.mxu0 0.0
    %5108 = vmatprep.subr.mxu0 0.0
    %5109 = vmatpush1.msra.mxu0 0.0
    %5110 = vmatprep.subr.mxu0 0.0
    %5111 = vmatpush1.msra.mxu0 0.0
    %5112 = vmatprep.subr.mxu0 0.0
    %5113 = vmatpush1.msra.mxu0 0.0
    %5114 = vmatprep.subr.mxu0 0.0
    %5115 = vmatpush1.msra.mxu0 0.0
    %5116 = vmatprep.subr.mxu0 0.0
    %5117 = vmatpush1.msra.mxu0 0.0
    %5118 = vmatprep.subr.mxu0 0.0
    %5119 = vmatpush1.msra.mxu0 0.0
    %5120 = vmatprep.subr.mxu0 0.0
    %5121 = vmatpush1.msra.mxu0 0.0
    %5122 = vmatprep.subr.mxu0 0.0
    %5123 = vmatpush1.msra.mxu0 0.0
    %5124 = vmatprep.subr.mxu0 0.0
    %5125 = vmatpush1.msra.mxu0 0.0
    %5126 = vmatprep.subr.mxu0 0.0
    %5127 = vmatpush1.msra.mxu0 0.0
    %5128 = vmatprep.subr.mxu0 0.0
    %5129 = vmatpush1.msra.mxu0 0.0
    %5130 = vmatprep.subr.mxu0 0.0
    %5131 = vmatpush1.msra.mxu0 0.0
    %5132 = vmatprep.subr.mxu0 0.0
    %5133 = vmatpush1.msra.mxu0 0.0
    %5134 = vmatprep.subr.mxu0 0.0
    %5135 = vmatpush1.msra.mxu0 0.0
    %5136 = vmatprep.subr.mxu0 0.0
    %5137 = vmatpush1.msra.mxu0 0.0
    %5138 = vmatprep.subr.mxu0 0.0
    %5139 = vmatpush1.msra.mxu0 0.0
    %5140 = vmatprep.subr.mxu0 0.0
    %5141 = vmatpush1.msra.mxu0 0.0
    %5142 = vmatprep.subr.mxu0 0.0
    %5143 = vmatpush1.msra.mxu0 0.0
    %5144 = vmatprep.subr.mxu0 0.0
    %5145 = vmatpush1.msra.mxu0 0.0
    %5146 = vmatprep.subr.mxu0 0.0
    %5147 = vmatpush1.msra.mxu0 0.0
    %5148 = vmatprep.subr.mxu0 0.0
    %5149 = vmatpush1.msra.mxu0 0.0
    %5150 = vmatprep.subr.mxu0 0.0
    %5151 = vmatpush1.msra.mxu0 0.0
    %5152 = vmatprep.subr.mxu0 0.0
    %5153 = vmatpush1.msra.mxu0 0.0
    %5154 = vmatprep.subr.mxu0 0.0
    %5155 = vmatpush1.msra.mxu0 0.0
    %5156 = vmatprep.subr.mxu0 0.0
    %5157 = vmatpush1.msra.mxu0 0.0
    %5158 = vmatprep.subr.mxu0 0.0
    %5159 = vmatpush1.msra.mxu0 0.0
    %5160 = vmatprep.subr.mxu0 0.0
    %5161 = vmatpush1.msra.mxu0 0.0
    %5162 = vmatprep.mubr.f32.mxu0 0.0
    %5163 = vmatmul.mubr.f32.gmra.mrb[0].mxu0 %v5096
    %v5164 = vpop.f32.mrb[0].mxu0
    %v5165 = vadd.f32 0.0, %v5164
    %v5166 = vpop.f32.mrb[0].mxu0
    %5167 = vdwg.mxu0
    %v5169 = vsel %vm533, %v4775, 0
    %v5172 = vsel %vm533, %v4889, 0
    %5174 = vmatprep.subr.mxu0 0.0
    %5175 = vmatpush1.xpose.msra.mxu0 %v5172
    %5176 = vmatprep.subr.mxu0 0.0
    %5177 = vmatpush1.xpose.msra.mxu0 0.0
    %5178 = vmatprep.subr.mxu0 0.0
    %5179 = vmatpush1.xpose.msra.mxu0 0.0
    %5180 = vmatprep.subr.mxu0 0.0
    %5181 = vmatpush1.xpose.msra.mxu0 0.0
    %5182 = vmatprep.subr.mxu0 0.0
    %5183 = vmatpush1.xpose.msra.mxu0 0.0
    %5184 = vmatprep.subr.mxu0 0.0
    %5185 = vmatpush1.xpose.msra.mxu0 0.0
    %5186 = vmatprep.subr.mxu0 0.0
    %5187 = vmatpush1.xpose.msra.mxu0 0.0
    %5188 = vmatprep.subr.mxu0 0.0
    %5189 = vmatpush1.xpose.msra.mxu0 0.0
    %5190 = vmatprep.subr.mxu0 0.0
    %5191 = vmatpush1.xpose.msra.mxu0 0.0
    %5192 = vmatprep.subr.mxu0 0.0
    %5193 = vmatpush1.xpose.msra.mxu0 0.0
    %5194 = vmatprep.subr.mxu0 0.0
    %5195 = vmatpush1.xpose.msra.mxu0 0.0
    %5196 = vmatprep.subr.mxu0 0.0
    %5197 = vmatpush1.xpose.msra.mxu0 0.0
    %5198 = vmatprep.subr.mxu0 0.0
    %5199 = vmatpush1.xpose.msra.mxu0 0.0
    %5200 = vmatprep.subr.mxu0 0.0
    %5201 = vmatpush1.xpose.msra.mxu0 0.0
    %5202 = vmatprep.subr.mxu0 0.0
    %5203 = vmatpush1.xpose.msra.mxu0 0.0
    %5204 = vmatprep.subr.mxu0 0.0
    %5205 = vmatpush1.xpose.msra.mxu0 0.0
    %5206 = vmatprep.subr.mxu0 0.0
    %5207 = vmatpush1.xpose.msra.mxu0 0.0
    %5208 = vmatprep.subr.mxu0 0.0
    %5209 = vmatpush1.xpose.msra.mxu0 0.0
    %5210 = vmatprep.subr.mxu0 0.0
    %5211 = vmatpush1.xpose.msra.mxu0 0.0
    %5212 = vmatprep.subr.mxu0 0.0
    %5213 = vmatpush1.xpose.msra.mxu0 0.0
    %5214 = vmatprep.subr.mxu0 0.0
    %5215 = vmatpush1.xpose.msra.mxu0 0.0
    %5216 = vmatprep.subr.mxu0 0.0
    %5217 = vmatpush1.xpose.msra.mxu0 0.0
    %5218 = vmatprep.subr.mxu0 0.0
    %5219 = vmatpush1.xpose.msra.mxu0 0.0
    %5220 = vmatprep.subr.mxu0 0.0
    %5221 = vmatpush1.xpose.msra.mxu0 0.0
    %5222 = vmatprep.subr.mxu0 0.0
    %5223 = vmatpush1.xpose.msra.mxu0 0.0
    %5224 = vmatprep.subr.mxu0 0.0
    %5225 = vmatpush1.xpose.msra.mxu0 0.0
    %5226 = vmatprep.subr.mxu0 0.0
    %5227 = vmatpush1.xpose.msra.mxu0 0.0
    %5228 = vmatprep.subr.mxu0 0.0
    %5229 = vmatpush1.xpose.msra.mxu0 0.0
    %5230 = vmatprep.subr.mxu0 0.0
    %5231 = vmatpush1.xpose.msra.mxu0 0.0
    %5232 = vmatprep.subr.mxu0 0.0
    %5233 = vmatpush1.xpose.msra.mxu0 0.0
    %5234 = vmatprep.subr.mxu0 0.0
    %5235 = vmatpush1.xpose.msra.mxu0 0.0
    %5236 = vmatprep.subr.mxu0 0.0
    %5237 = vmatpush1.xpose.msra.mxu0 0.0
    %5238 = vmatprep.mubr.f32.mxu0 0.0
    %5239 = vmatmul.mubr.f32.gmra.mrb[0].mxu0 %v5169
    %v5240 = vpop.f32.mrb[0].mxu0
    %v5241 = vadd.f32 0.0, %v5240
    %v5242 = vpop.f32.mrb[0].mxu0
    %5243 = vdwg.mxu0
    %v5244 = vmul.f32 %v5241, 0.17677669
    %v5245 = vadd.f32 %v5244, %v787
    %v5246 = vsel %vm619, %v5245, -inf
    %5247 = vmax.xlane.f32.xlu0 %v5246
    %v5248 = vpop.xlane.xlu0 %5247
    %v5249 = vsub.f32 %v5245, %v5248
    %v5250 = vmul.f32 %v5249, 1.442695
    %v5251 = vpow.pop %v5250
    %v5252 = vsel %vm619, %v5251, 0.0
    %5253 = vadd.xlane.f32.xlu0 %v5252
    %v5254 = vpop.xlane.xlu0 %5253
    %v5255 = vrcp.pop %v5254
    %v5256 = vmul.f32 %v5251, %v5255
    %v5258 = vsel %vm619, %v5256, 0
    %5260 = vmatprep.subr.mxu0 0.0
    %5261 = vmatpush1.msra.mxu0 %v5003
    %5262 = vmatprep.subr.mxu0 0.0
    %5263 = vmatpush1.msra.mxu0 0.0
    %5264 = vmatprep.subr.mxu0 0.0
    %5265 = vmatpush1.msra.mxu0 0.0
    %5266 = vmatprep.subr.mxu0 0.0
    %5267 = vmatpush1.msra.mxu0 0.0
    %5268 = vmatprep.subr.mxu0 0.0
    %5269 = vmatpush1.msra.mxu0 0.0
    %5270 = vmatprep.subr.mxu0 0.0
    %5271 = vmatpush1.msra.mxu0 0.0
    %5272 = vmatprep.subr.mxu0 0.0
    %5273 = vmatpush1.msra.mxu0 0.0
    %5274 = vmatprep.subr.mxu0 0.0
    %5275 = vmatpush1.msra.mxu0 0.0
    %5276 = vmatprep.subr.mxu0 0.0
    %5277 = vmatpush1.msra.mxu0 0.0
    %5278 = vmatprep.subr.mxu0 0.0
    %5279 = vmatpush1.msra.mxu0 0.0
    %5280 = vmatprep.subr.mxu0 0.0
    %5281 = vmatpush1.msra.mxu0 0.0
    %5282 = vmatprep.subr.mxu0 0.0
    %5283 = vmatpush1.msra.mxu0 0.0
    %5284 = vmatprep.subr.mxu0 0.0
    %5285 = vmatpush1.msra.mxu0 0.0
    %5286 = vmatprep.subr.mxu0 0.0
    %5287 = vmatpush1.msra.mxu0 0.0
    %5288 = vmatprep.subr.mxu0 0.0
    %5289 = vmatpush1.msra.mxu0 0.0
    %5290 = vmatprep.subr.mxu0 0.0
    %5291 = vmatpush1.msra.mxu0 0.0
    %5292 = vmatprep.subr.mxu0 0.0
    %5293 = vmatpush1.msra.mxu0 0.0
    %5294 = vmatprep.subr.mxu0 0.0
    %5295 = vmatpush1.msra.mxu0 0.0
    %5296 = vmatprep.subr.mxu0 0.0
    %5297 = vmatpush1.msra.mxu0 0.0
    %5298 = vmatprep.subr.mxu0 0.0
    %5299 = vmatpush1.msra.mxu0 0.0
    %5300 = vmatprep.subr.mxu0 0.0
    %5301 = vmatpush1.msra.mxu0 0.0
    %5302 = vmatprep.subr.mxu0 0.0
    %5303 = vmatpush1.msra.mxu0 0.0
    %5304 = vmatprep.subr.mxu0 0.0
    %5305 = vmatpush1.msra.mxu0 0.0
    %5306 = vmatprep.subr.mxu0 0.0
    %5307 = vmatpush1.msra.mxu0 0.0
    %5308 = vmatprep.subr.mxu0 0.0
    %5309 = vmatpush1.msra.mxu0 0.0
    %5310 = vmatprep.subr.mxu0 0.0
    %5311 = vmatpush1.msra.mxu0 0.0
    %5312 = vmatprep.subr.mxu0 0.0
    %5313 = vmatpush1.msra.mxu0 0.0
    %5314 = vmatprep.subr.mxu0 0.0
    %5315 = vmatpush1.msra.mxu0 0.0
    %5316 = vmatprep.subr.mxu0 0.0
    %5317 = vmatpush1.msra.mxu0 0.0
    %5318 = vmatprep.subr.mxu0 0.0
    %5319 = vmatpush1.msra.mxu0 0.0
    %5320 = vmatprep.subr.mxu0 0.0
    %5321 = vmatpush1.msra.mxu0 0.0
    %5322 = vmatprep.subr.mxu0 0.0
    %5323 = vmatpush1.msra.mxu0 0.0
    %5324 = vmatprep.mubr.f32.mxu0 0.0
    %5325 = vmatmul.mubr.f32.gmra.mrb[0].mxu0 %v5258
    %v5326 = vpop.f32.mrb[0].mxu0
    %v5327 = vadd.f32 0.0, %v5326
    %v5328 = vpop.f32.mrb[0].mxu0
    %5329 = vdwg.mxu0
    %s5330 = scalar_lea.vmem [#allocation6], 384
    %v5331 = vld [vmem:[%s5330] sm:$0xf]
    %v5332 = vld [vmem:[%s5330 + $0x4] sm:$0xf]
    %v5333 = vld [vmem:[%s5330 + $0x8] sm:$0xf]
    %v5334 = vld [vmem:[%s5330 + $0xc] sm:$0xf]
    %v5335 = vld [vmem:[%s5330 + $0x10] sm:$0xf]
    %v5336 = vld [vmem:[%s5330 + $0x14] sm:$0xf]
    %v5337 = vld [vmem:[%s5330 + $0x18] sm:$0xf]
    %v5338 = vld [vmem:[%s5330 + $0x1c] sm:$0xf]
    %v5339 = vld [vmem:[%s5330 + $0x20] sm:$0xf]
    %v5340 = vld [vmem:[%s5330 + $0x24] sm:$0xf]
    %v5341 = vld [vmem:[%s5330 + $0x28] sm:$0xf]
    %v5342 = vld [vmem:[%s5330 + $0x2c] sm:$0xf]
    %v5343 = vld [vmem:[%s5330 + $0x30] sm:$0xf]
    %v5344 = vld [vmem:[%s5330 + $0x34] sm:$0xf]
    %v5345 = vld [vmem:[%s5330 + $0x38] sm:$0xf]
    %v5346 = vld [vmem:[%s5330 + $0x3c] sm:$0xf]
    %s5347 = scalar_lea.vmem %s7, 6
    %v5348 = vld [vmem:[%s5347] sm:$0x1]
    %v5350 = vlaneseq
    %v5351 = vshrl.u32 %v5350, 7
    %v5352 = vsub.s32 0, %v5351
    %v5353 = vrot.slane %v5348, %v5352
    %v5371 = vunpack.c.l.b16 %v5331
    %v5372 = vunpack.c.l.b16 %v5332
    %v5373 = vunpack.c.l.b16 %v5333
    %v5374 = vunpack.c.l.b16 %v5334
    %v5375 = vunpack.c.l.b16 %v5335
    %v5376 = vunpack.c.l.b16 %v5336
    %v5377 = vunpack.c.l.b16 %v5337
    %v5378 = vunpack.c.l.b16 %v5338
    %v5379 = vunpack.c.l.b16 %v5339
    %v5380 = vunpack.c.l.b16 %v5340
    %v5381 = vunpack.c.l.b16 %v5341
    %v5382 = vunpack.c.l.b16 %v5342
    %v5383 = vunpack.c.l.b16 %v5343
    %v5384 = vunpack.c.l.b16 %v5344
    %v5385 = vunpack.c.l.b16 %v5345
    %v5386 = vunpack.c.l.b16 %v5346
    %v5387 = vpack.c.b16 %v5372, %v5371
    %v5388 = vpack.c.b16 %v5374, %v5373
    %v5389 = vpack.c.b16 %v5376, %v5375
    %v5390 = vpack.c.b16 %v5378, %v5377
    %v5391 = vpack.c.b16 %v5380, %v5379
    %v5392 = vpack.c.b16 %v5382, %v5381
    %v5393 = vpack.c.b16 %v5384, %v5383
    %v5394 = vpack.c.b16 %v5386, %v5385
    %5403 = vmatprep.subr.bf16.mxu0 0
    %5404 = vmatpush1.bf16.msra.mxu0 %v5387
    %5405 = vmatprep.subr.bf16.mxu0 0
    %5406 = vmatpush1.bf16.msra.mxu0 %v5388
    %5407 = vmatprep.subr.bf16.mxu0 0
    %5408 = vmatpush1.bf16.msra.mxu0 %v5389
    %5409 = vmatprep.subr.bf16.mxu0 0
    %5410 = vmatpush1.bf16.msra.mxu0 %v5390
    %5411 = vmatprep.subr.bf16.mxu0 0
    %5412 = vmatpush1.bf16.msra.mxu0 %v5391
    %5413 = vmatprep.subr.bf16.mxu0 0
    %5414 = vmatpush1.bf16.msra.mxu0 %v5392
    %5415 = vmatprep.subr.bf16.mxu0 0
    %5416 = vmatpush1.bf16.msra.mxu0 %v5393
    %5417 = vmatprep.subr.bf16.mxu0 0
    %5418 = vmatpush1.bf16.msra.mxu0 %v5394
    %5419 = vmatprep.subr.bf16.mxu0 0
    %5420 = vmatpush1.bf16.msra.mxu0 0
    %5421 = vmatprep.subr.bf16.mxu0 0
    %5422 = vmatpush1.bf16.msra.mxu0 0
    %5423 = vmatprep.subr.bf16.mxu0 0
    %5424 = vmatpush1.bf16.msra.mxu0 0
    %5425 = vmatprep.subr.bf16.mxu0 0
    %5426 = vmatpush1.bf16.msra.mxu0 0
    %5427 = vmatprep.subr.bf16.mxu0 0
    %5428 = vmatpush1.bf16.msra.mxu0 0
    %5429 = vmatprep.subr.bf16.mxu0 0
    %5430 = vmatpush1.bf16.msra.mxu0 0
    %5431 = vmatprep.subr.bf16.mxu0 0
    %5432 = vmatpush1.bf16.msra.mxu0 0
    %5433 = vmatprep.subr.bf16.mxu0 0
    %5434 = vmatpush1.bf16.msra.mxu0 0
    %5435 = vmatprep.mubr.bf16.mxu0 0
    %5436 = vmatmul.mubr.bf16.gmra.mrb[0].mxu0 %v3997
    %v5437 = vpop.f32.mrb[0].mxu0
    %v5438 = vadd.f32 %v5353, %v5437
    %v5439 = vpop.f32.mrb[0].mxu0
    %v5440 = vpop.f32.mrb[0].mxu0
    %v5441 = vadd.f32 %v5353, %v5440
    %v5442 = vpop.f32.mrb[0].mxu0
    %5443 = vdwg.mxu0
    %s5444 = scalar_lea.vmem [#allocation7], 384
    %v5445 = vld [vmem:[%s5444] sm:$0xf]
    %v5446 = vld [vmem:[%s5444 + $0x4] sm:$0xf]
    %v5447 = vld [vmem:[%s5444 + $0x8] sm:$0xf]
    %v5448 = vld [vmem:[%s5444 + $0xc] sm:$0xf]
    %v5449 = vld [vmem:[%s5444 + $0x10] sm:$0xf]
    %v5450 = vld [vmem:[%s5444 + $0x14] sm:$0xf]
    %v5451 = vld [vmem:[%s5444 + $0x18] sm:$0xf]
    %v5452 = vld [vmem:[%s5444 + $0x1c] sm:$0xf]
    %v5453 = vld [vmem:[%s5444 + $0x20] sm:$0xf]
    %v5454 = vld [vmem:[%s5444 + $0x24] sm:$0xf]
    %v5455 = vld [vmem:[%s5444 + $0x28] sm:$0xf]
    %v5456 = vld [vmem:[%s5444 + $0x2c] sm:$0xf]
    %v5457 = vld [vmem:[%s5444 + $0x30] sm:$0xf]
    %v5458 = vld [vmem:[%s5444 + $0x34] sm:$0xf]
    %v5459 = vld [vmem:[%s5444 + $0x38] sm:$0xf]
    %v5460 = vld [vmem:[%s5444 + $0x3c] sm:$0xf]
    %s5461 = scalar_lea.vmem %s9, 6
    %v5462 = vld [vmem:[%s5461] sm:$0x1]
    %v5464 = vlaneseq
    %v5465 = vshrl.u32 %v5464, 7
    %v5466 = vsub.s32 0, %v5465
    %v5467 = vrot.slane %v5462, %v5466
    %v5485 = vunpack.c.l.b16 %v5445
    %v5486 = vunpack.c.l.b16 %v5446
    %v5487 = vunpack.c.l.b16 %v5447
    %v5488 = vunpack.c.l.b16 %v5448
    %v5489 = vunpack.c.l.b16 %v5449
    %v5490 = vunpack.c.l.b16 %v5450
    %v5491 = vunpack.c.l.b16 %v5451
    %v5492 = vunpack.c.l.b16 %v5452
    %v5493 = vunpack.c.l.b16 %v5453
    %v5494 = vunpack.c.l.b16 %v5454
    %v5495 = vunpack.c.l.b16 %v5455
    %v5496 = vunpack.c.l.b16 %v5456
    %v5497 = vunpack.c.l.b16 %v5457
    %v5498 = vunpack.c.l.b16 %v5458
    %v5499 = vunpack.c.l.b16 %v5459
    %v5500 = vunpack.c.l.b16 %v5460
    %v5501 = vpack.c.b16 %v5486, %v5485
    %v5502 = vpack.c.b16 %v5488, %v5487
    %v5503 = vpack.c.b16 %v5490, %v5489
    %v5504 = vpack.c.b16 %v5492, %v5491
    %v5505 = vpack.c.b16 %v5494, %v5493
    %v5506 = vpack.c.b16 %v5496, %v5495
    %v5507 = vpack.c.b16 %v5498, %v5497
    %v5508 = vpack.c.b16 %v5500, %v5499
    %5517 = vmatprep.subr.bf16.mxu0 0
    %5518 = vmatpush1.bf16.msra.mxu0 %v5501
    %5519 = vmatprep.subr.bf16.mxu0 0
    %5520 = vmatpush1.bf16.msra.mxu0 %v5502
    %5521 = vmatprep.subr.bf16.mxu0 0
    %5522 = vmatpush1.bf16.msra.mxu0 %v5503
    %5523 = vmatprep.subr.bf16.mxu0 0
    %5524 = vmatpush1.bf16.msra.mxu0 %v5504
    %5525 = vmatprep.subr.bf16.mxu0 0
    %5526 = vmatpush1.bf16.msra.mxu0 %v5505
    %5527 = vmatprep.subr.bf16.mxu0 0
    %5528 = vmatpush1.bf16.msra.mxu0 %v5506
    %5529 = vmatprep.subr.bf16.mxu0 0
    %5530 = vmatpush1.bf16.msra.mxu0 %v5507
    %5531 = vmatprep.subr.bf16.mxu0 0
    %5532 = vmatpush1.bf16.msra.mxu0 %v5508
    %5533 = vmatprep.subr.bf16.mxu0 0
    %5534 = vmatpush1.bf16.msra.mxu0 0
    %5535 = vmatprep.subr.bf16.mxu0 0
    %5536 = vmatpush1.bf16.msra.mxu0 0
    %5537 = vmatprep.subr.bf16.mxu0 0
    %5538 = vmatpush1.bf16.msra.mxu0 0
    %5539 = vmatprep.subr.bf16.mxu0 0
    %5540 = vmatpush1.bf16.msra.mxu0 0
    %5541 = vmatprep.subr.bf16.mxu0 0
    %5542 = vmatpush1.bf16.msra.mxu0 0
    %5543 = vmatprep.subr.bf16.mxu0 0
    %5544 = vmatpush1.bf16.msra.mxu0 0
    %5545 = vmatprep.subr.bf16.mxu0 0
    %5546 = vmatpush1.bf16.msra.mxu0 0
    %5547 = vmatprep.subr.bf16.mxu0 0
    %5548 = vmatpush1.bf16.msra.mxu0 0
    %5549 = vmatprep.mubr.bf16.mxu0 0
    %5550 = vmatmul.mubr.bf16.gmra.mrb[0].mxu0 %v3997
    %v5551 = vpop.f32.mrb[0].mxu0
    %v5552 = vadd.f32 %v5467, %v5551
    %v5553 = vpop.f32.mrb[0].mxu0
    %v5554 = vpop.f32.mrb[0].mxu0
    %v5555 = vadd.f32 %v5467, %v5554
    %v5556 = vpop.f32.mrb[0].mxu0
    %5557 = vdwg.mxu0
    %s5558 = scalar_lea.vmem %s10, 384
    %v5559 = vld [vmem:[%s5558] sm:$0xf]
    %v5560 = vld [vmem:[%s5558 + $0x4] sm:$0xf]
    %v5561 = vld [vmem:[%s5558 + $0x8] sm:$0xf]
    %v5562 = vld [vmem:[%s5558 + $0xc] sm:$0xf]
    %v5563 = vld [vmem:[%s5558 + $0x10] sm:$0xf]
    %v5564 = vld [vmem:[%s5558 + $0x14] sm:$0xf]
    %v5565 = vld [vmem:[%s5558 + $0x18] sm:$0xf]
    %v5566 = vld [vmem:[%s5558 + $0x1c] sm:$0xf]
    %v5567 = vld [vmem:[%s5558 + $0x20] sm:$0xf]
    %v5568 = vld [vmem:[%s5558 + $0x24] sm:$0xf]
    %v5569 = vld [vmem:[%s5558 + $0x28] sm:$0xf]
    %v5570 = vld [vmem:[%s5558 + $0x2c] sm:$0xf]
    %v5571 = vld [vmem:[%s5558 + $0x30] sm:$0xf]
    %v5572 = vld [vmem:[%s5558 + $0x34] sm:$0xf]
    %v5573 = vld [vmem:[%s5558 + $0x38] sm:$0xf]
    %v5574 = vld [vmem:[%s5558 + $0x3c] sm:$0xf]
    %s5575 = scalar_lea.vmem %s11, 6
    %v5576 = vld [vmem:[%s5575] sm:$0x1]
    %v5578 = vlaneseq
    %v5579 = vshrl.u32 %v5578, 7
    %v5580 = vsub.s32 0, %v5579
    %v5581 = vrot.slane %v5576, %v5580
    %v5599 = vunpack.c.l.b16 %v5559
    %v5600 = vunpack.c.l.b16 %v5560
    %v5601 = vunpack.c.l.b16 %v5561
    %v5602 = vunpack.c.l.b16 %v5562
    %v5603 = vunpack.c.l.b16 %v5563
    %v5604 = vunpack.c.l.b16 %v5564
    %v5605 = vunpack.c.l.b16 %v5565
    %v5606 = vunpack.c.l.b16 %v5566
    %v5607 = vunpack.c.l.b16 %v5567
    %v5608 = vunpack.c.l.b16 %v5568
    %v5609 = vunpack.c.l.b16 %v5569
    %v5610 = vunpack.c.l.b16 %v5570
    %v5611 = vunpack.c.l.b16 %v5571
    %v5612 = vunpack.c.l.b16 %v5572
    %v5613 = vunpack.c.l.b16 %v5573
    %v5614 = vunpack.c.l.b16 %v5574
    %v5615 = vpack.c.b16 %v5600, %v5599
    %v5616 = vpack.c.b16 %v5602, %v5601
    %v5617 = vpack.c.b16 %v5604, %v5603
    %v5618 = vpack.c.b16 %v5606, %v5605
    %v5619 = vpack.c.b16 %v5608, %v5607
    %v5620 = vpack.c.b16 %v5610, %v5609
    %v5621 = vpack.c.b16 %v5612, %v5611
    %v5622 = vpack.c.b16 %v5614, %v5613
    %5631 = vmatprep.subr.bf16.mxu0 0
    %5632 = vmatpush1.bf16.msra.mxu0 %v5615
    %5633 = vmatprep.subr.bf16.mxu0 0
    %5634 = vmatpush1.bf16.msra.mxu0 %v5616
    %5635 = vmatprep.subr.bf16.mxu0 0
    %5636 = vmatpush1.bf16.msra.mxu0 %v5617
    %5637 = vmatprep.subr.bf16.mxu0 0
    %5638 = vmatpush1.bf16.msra.mxu0 %v5618
    %5639 = vmatprep.subr.bf16.mxu0 0
    %5640 = vmatpush1.bf16.msra.mxu0 %v5619
    %5641 = vmatprep.subr.bf16.mxu0 0
    %5642 = vmatpush1.bf16.msra.mxu0 %v5620
    %5643 = vmatprep.subr.bf16.mxu0 0
    %5644 = vmatpush1.bf16.msra.mxu0 %v5621
    %5645 = vmatprep.subr.bf16.mxu0 0
    %5646 = vmatpush1.bf16.msra.mxu0 %v5622
    %5647 = vmatprep.subr.bf16.mxu0 0
    %5648 = vmatpush1.bf16.msra.mxu0 0
    %5649 = vmatprep.subr.bf16.mxu0 0
    %5650 = vmatpush1.bf16.msra.mxu0 0
    %5651 = vmatprep.subr.bf16.mxu0 0
    %5652 = vmatpush1.bf16.msra.mxu0 0
    %5653 = vmatprep.subr.bf16.mxu0 0
    %5654 = vmatpush1.bf16.msra.mxu0 0
    %5655 = vmatprep.subr.bf16.mxu0 0
    %5656 = vmatpush1.bf16.msra.mxu0 0
    %5657 = vmatprep.subr.bf16.mxu0 0
    %5658 = vmatpush1.bf16.msra.mxu0 0
    %5659 = vmatprep.subr.bf16.mxu0 0
    %5660 = vmatpush1.bf16.msra.mxu0 0
    %5661 = vmatprep.subr.bf16.mxu0 0
    %5662 = vmatpush1.bf16.msra.mxu0 0
    %5663 = vmatprep.mubr.bf16.mxu0 0
    %5664 = vmatmul.mubr.bf16.gmra.mrb[0].mxu0 %v3997
    %v5665 = vpop.f32.mrb[0].mxu0
    %v5666 = vadd.f32 %v5581, %v5665
    %v5667 = vpop.f32.mrb[0].mxu0
    %v5668 = vpop.f32.mrb[0].mxu0
    %v5669 = vadd.f32 %v5581, %v5668
    %v5670 = vpop.f32.mrb[0].mxu0
    %5671 = vdwg.mxu0
    %v5673 = vsel %vm533, %v5438, 0
    %v5676 = vsel %vm533, %v5552, 0
    %5678 = vmatprep.subr.mxu0 0.0
    %5679 = vmatpush1.xpose.msra.mxu0 %v5676
    %5680 = vmatprep.subr.mxu0 0.0
    %5681 = vmatpush1.xpose.msra.mxu0 0.0
    %5682 = vmatprep.subr.mxu0 0.0
    %5683 = vmatpush1.xpose.msra.mxu0 0.0
    %5684 = vmatprep.subr.mxu0 0.0
    %5685 = vmatpush1.xpose.msra.mxu0 0.0
    %5686 = vmatprep.subr.mxu0 0.0
    %5687 = vmatpush1.xpose.msra.mxu0 0.0
    %5688 = vmatprep.subr.mxu0 0.0
    %5689 = vmatpush1.xpose.msra.mxu0 0.0
    %5690 = vmatprep.subr.mxu0 0.0
    %5691 = vmatpush1.xpose.msra.mxu0 0.0
    %5692 = vmatprep.subr.mxu0 0.0
    %5693 = vmatpush1.xpose.msra.mxu0 0.0
    %5694 = vmatprep.subr.mxu0 0.0
    %5695 = vmatpush1.xpose.msra.mxu0 0.0
    %5696 = vmatprep.subr.mxu0 0.0
    %5697 = vmatpush1.xpose.msra.mxu0 0.0
    %5698 = vmatprep.subr.mxu0 0.0
    %5699 = vmatpush1.xpose.msra.mxu0 0.0
    %5700 = vmatprep.subr.mxu0 0.0
    %5701 = vmatpush1.xpose.msra.mxu0 0.0
    %5702 = vmatprep.subr.mxu0 0.0
    %5703 = vmatpush1.xpose.msra.mxu0 0.0
    %5704 = vmatprep.subr.mxu0 0.0
    %5705 = vmatpush1.xpose.msra.mxu0 0.0
    %5706 = vmatprep.subr.mxu0 0.0
    %5707 = vmatpush1.xpose.msra.mxu0 0.0
    %5708 = vmatprep.subr.mxu0 0.0
    %5709 = vmatpush1.xpose.msra.mxu0 0.0
    %5710 = vmatprep.subr.mxu0 0.0
    %5711 = vmatpush1.xpose.msra.mxu0 0.0
    %5712 = vmatprep.subr.mxu0 0.0
    %5713 = vmatpush1.xpose.msra.mxu0 0.0
    %5714 = vmatprep.subr.mxu0 0.0
    %5715 = vmatpush1.xpose.msra.mxu0 0.0
    %5716 = vmatprep.subr.mxu0 0.0
    %5717 = vmatpush1.xpose.msra.mxu0 0.0
    %5718 = vmatprep.subr.mxu0 0.0
    %5719 = vmatpush1.xpose.msra.mxu0 0.0
    %5720 = vmatprep.subr.mxu0 0.0
    %5721 = vmatpush1.xpose.msra.mxu0 0.0
    %5722 = vmatprep.subr.mxu0 0.0
    %5723 = vmatpush1.xpose.msra.mxu0 0.0
    %5724 = vmatprep.subr.mxu0 0.0
    %5725 = vmatpush1.xpose.msra.mxu0 0.0
    %5726 = vmatprep.subr.mxu0 0.0
    %5727 = vmatpush1.xpose.msra.mxu0 0.0
    %5728 = vmatprep.subr.mxu0 0.0
    %5729 = vmatpush1.xpose.msra.mxu0 0.0
    %5730 = vmatprep.subr.mxu0 0.0
    %5731 = vmatpush1.xpose.msra.mxu0 0.0
    %5732 = vmatprep.subr.mxu0 0.0
    %5733 = vmatpush1.xpose.msra.mxu0 0.0
    %5734 = vmatprep.subr.mxu0 0.0
    %5735 = vmatpush1.xpose.msra.mxu0 0.0
    %5736 = vmatprep.subr.mxu0 0.0
    %5737 = vmatpush1.xpose.msra.mxu0 0.0
    %5738 = vmatprep.subr.mxu0 0.0
    %5739 = vmatpush1.xpose.msra.mxu0 0.0
    %5740 = vmatprep.subr.mxu0 0.0
    %5741 = vmatpush1.xpose.msra.mxu0 0.0
    %5742 = vmatprep.mubr.f32.mxu0 0.0
    %5743 = vmatmul.mubr.f32.gmra.mrb[0].mxu0 %v5673
    %v5744 = vpop.f32.mrb[0].mxu0
    %v5745 = vadd.f32 0.0, %v5744
    %v5746 = vpop.f32.mrb[0].mxu0
    %5747 = vdwg.mxu0
    %v5748 = vmul.f32 %v5745, 0.17677669
    %v5749 = vadd.f32 %v5748, %v616
    %v5750 = vsel %vm619, %v5749, -inf
    %5751 = vmax.xlane.f32.xlu0 %v5750
    %v5752 = vpop.xlane.xlu0 %5751
    %v5753 = vsub.f32 %v5749, %v5752
    %v5754 = vmul.f32 %v5753, 1.442695
    %v5755 = vpow.pop %v5754
    %v5756 = vsel %vm619, %v5755, 0.0
    %5757 = vadd.xlane.f32.xlu0 %v5756
    %v5758 = vpop.xlane.xlu0 %5757
    %v5759 = vrcp.pop %v5758
    %v5760 = vmul.f32 %v5755, %v5759
    %v5762 = vsel %vm619, %v5760, 0
    %5764 = vmatprep.subr.mxu0 0.0
    %5765 = vmatpush1.msra.mxu0 %v5666
    %5766 = vmatprep.subr.mxu0 0.0
    %5767 = vmatpush1.msra.mxu0 0.0
    %5768 = vmatprep.subr.mxu0 0.0
    %5769 = vmatpush1.msra.mxu0 0.0
    %5770 = vmatprep.subr.mxu0 0.0
    %5771 = vmatpush1.msra.mxu0 0.0
    %5772 = vmatprep.subr.mxu0 0.0
    %5773 = vmatpush1.msra.mxu0 0.0
    %5774 = vmatprep.subr.mxu0 0.0
    %5775 = vmatpush1.msra.mxu0 0.0
    %5776 = vmatprep.subr.mxu0 0.0
    %5777 = vmatpush1.msra.mxu0 0.0
    %5778 = vmatprep.subr.mxu0 0.0
    %5779 = vmatpush1.msra.mxu0 0.0
    %5780 = vmatprep.subr.mxu0 0.0
    %5781 = vmatpush1.msra.mxu0 0.0
    %5782 = vmatprep.subr.mxu0 0.0
    %5783 = vmatpush1.msra.mxu0 0.0
    %5784 = vmatprep.subr.mxu0 0.0
    %5785 = vmatpush1.msra.mxu0 0.0
    %5786 = vmatprep.subr.mxu0 0.0
    %5787 = vmatpush1.msra.mxu0 0.0
    %5788 = vmatprep.subr.mxu0 0.0
    %5789 = vmatpush1.msra.mxu0 0.0
    %5790 = vmatprep.subr.mxu0 0.0
    %5791 = vmatpush1.msra.mxu0 0.0
    %5792 = vmatprep.subr.mxu0 0.0
    %5793 = vmatpush1.msra.mxu0 0.0
    %5794 = vmatprep.subr.mxu0 0.0
    %5795 = vmatpush1.msra.mxu0 0.0
    %5796 = vmatprep.subr.mxu0 0.0
    %5797 = vmatpush1.msra.mxu0 0.0
    %5798 = vmatprep.subr.mxu0 0.0
    %5799 = vmatpush1.msra.mxu0 0.0
    %5800 = vmatprep.subr.mxu0 0.0
    %5801 = vmatpush1.msra.mxu0 0.0
    %5802 = vmatprep.subr.mxu0 0.0
    %5803 = vmatpush1.msra.mxu0 0.0
    %5804 = vmatprep.subr.mxu0 0.0
    %5805 = vmatpush1.msra.mxu0 0.0
    %5806 = vmatprep.subr.mxu0 0.0
    %5807 = vmatpush1.msra.mxu0 0.0
    %5808 = vmatprep.subr.mxu0 0.0
    %5809 = vmatpush1.msra.mxu0 0.0
    %5810 = vmatprep.subr.mxu0 0.0
    %5811 = vmatpush1.msra.mxu0 0.0
    %5812 = vmatprep.subr.mxu0 0.0
    %5813 = vmatpush1.msra.mxu0 0.0
    %5814 = vmatprep.subr.mxu0 0.0
    %5815 = vmatpush1.msra.mxu0 0.0
    %5816 = vmatprep.subr.mxu0 0.0
    %5817 = vmatpush1.msra.mxu0 0.0
    %5818 = vmatprep.subr.mxu0 0.0
    %5819 = vmatpush1.msra.mxu0 0.0
    %5820 = vmatprep.subr.mxu0 0.0
    %5821 = vmatpush1.msra.mxu0 0.0
    %5822 = vmatprep.subr.mxu0 0.0
    %5823 = vmatpush1.msra.mxu0 0.0
    %5824 = vmatprep.subr.mxu0 0.0
    %5825 = vmatpush1.msra.mxu0 0.0
    %5826 = vmatprep.subr.mxu0 0.0
    %5827 = vmatpush1.msra.mxu0 0.0
    %5828 = vmatprep.mubr.f32.mxu0 0.0
    %5829 = vmatmul.mubr.f32.gmra.mrb[0].mxu0 %v5762
    %v5830 = vpop.f32.mrb[0].mxu0
    %v5831 = vadd.f32 0.0, %v5830
    %v5832 = vpop.f32.mrb[0].mxu0
    %5833 = vdwg.mxu0
    %v5835 = vsel %vm533, %v5441, 0
    %v5838 = vsel %vm533, %v5555, 0
    %5840 = vmatprep.subr.mxu0 0.0
    %5841 = vmatpush1.xpose.msra.mxu0 %v5838
    %5842 = vmatprep.subr.mxu0 0.0
    %5843 = vmatpush1.xpose.msra.mxu0 0.0
    %5844 = vmatprep.subr.mxu0 0.0
    %5845 = vmatpush1.xpose.msra.mxu0 0.0
    %5846 = vmatprep.subr.mxu0 0.0
    %5847 = vmatpush1.xpose.msra.mxu0 0.0
    %5848 = vmatprep.subr.mxu0 0.0
    %5849 = vmatpush1.xpose.msra.mxu0 0.0
    %5850 = vmatprep.subr.mxu0 0.0
    %5851 = vmatpush1.xpose.msra.mxu0 0.0
    %5852 = vmatprep.subr.mxu0 0.0
    %5853 = vmatpush1.xpose.msra.mxu0 0.0
    %5854 = vmatprep.subr.mxu0 0.0
    %5855 = vmatpush1.xpose.msra.mxu0 0.0
    %5856 = vmatprep.subr.mxu0 0.0
    %5857 = vmatpush1.xpose.msra.mxu0 0.0
    %5858 = vmatprep.subr.mxu0 0.0
    %5859 = vmatpush1.xpose.msra.mxu0 0.0
    %5860 = vmatprep.subr.mxu0 0.0
    %5861 = vmatpush1.xpose.msra.mxu0 0.0
    %5862 = vmatprep.subr.mxu0 0.0
    %5863 = vmatpush1.xpose.msra.mxu0 0.0
    %5864 = vmatprep.subr.mxu0 0.0
    %5865 = vmatpush1.xpose.msra.mxu0 0.0
    %5866 = vmatprep.subr.mxu0 0.0
    %5867 = vmatpush1.xpose.msra.mxu0 0.0
    %5868 = vmatprep.subr.mxu0 0.0
    %5869 = vmatpush1.xpose.msra.mxu0 0.0
    %5870 = vmatprep.subr.mxu0 0.0
    %5871 = vmatpush1.xpose.msra.mxu0 0.0
    %5872 = vmatprep.subr.mxu0 0.0
    %5873 = vmatpush1.xpose.msra.mxu0 0.0
    %5874 = vmatprep.subr.mxu0 0.0
    %5875 = vmatpush1.xpose.msra.mxu0 0.0
    %5876 = vmatprep.subr.mxu0 0.0
    %5877 = vmatpush1.xpose.msra.mxu0 0.0
    %5878 = vmatprep.subr.mxu0 0.0
    %5879 = vmatpush1.xpose.msra.mxu0 0.0
    %5880 = vmatprep.subr.mxu0 0.0
    %5881 = vmatpush1.xpose.msra.mxu0 0.0
    %5882 = vmatprep.subr.mxu0 0.0
    %5883 = vmatpush1.xpose.msra.mxu0 0.0
    %5884 = vmatprep.subr.mxu0 0.0
    %5885 = vmatpush1.xpose.msra.mxu0 0.0
    %5886 = vmatprep.subr.mxu0 0.0
    %5887 = vmatpush1.xpose.msra.mxu0 0.0
    %5888 = vmatprep.subr.mxu0 0.0
    %5889 = vmatpush1.xpose.msra.mxu0 0.0
    %5890 = vmatprep.subr.mxu0 0.0
    %5891 = vmatpush1.xpose.msra.mxu0 0.0
    %5892 = vmatprep.subr.mxu0 0.0
    %5893 = vmatpush1.xpose.msra.mxu0 0.0
    %5894 = vmatprep.subr.mxu0 0.0
    %5895 = vmatpush1.xpose.msra.mxu0 0.0
    %5896 = vmatprep.subr.mxu0 0.0
    %5897 = vmatpush1.xpose.msra.mxu0 0.0
    %5898 = vmatprep.subr.mxu0 0.0
    %5899 = vmatpush1.xpose.msra.mxu0 0.0
    %5900 = vmatprep.subr.mxu0 0.0
    %5901 = vmatpush1.xpose.msra.mxu0 0.0
    %5902 = vmatprep.subr.mxu0 0.0
    %5903 = vmatpush1.xpose.msra.mxu0 0.0
    %5904 = vmatprep.mubr.f32.mxu0 0.0
    %5905 = vmatmul.mubr.f32.gmra.mrb[0].mxu0 %v5835
    %v5906 = vpop.f32.mrb[0].mxu0
    %v5907 = vadd.f32 0.0, %v5906
    %v5908 = vpop.f32.mrb[0].mxu0
    %5909 = vdwg.mxu0
    %v5910 = vmul.f32 %v5907, 0.17677669
    %v5911 = vadd.f32 %v5910, %v787
    %v5912 = vsel %vm619, %v5911, -inf
    %5913 = vmax.xlane.f32.xlu0 %v5912
    %v5914 = vpop.xlane.xlu0 %5913
    %v5915 = vsub.f32 %v5911, %v5914
    %v5916 = vmul.f32 %v5915, 1.442695
    %v5917 = vpow.pop %v5916
    %v5918 = vsel %vm619, %v5917, 0.0
    %5919 = vadd.xlane.f32.xlu0 %v5918
    %v5920 = vpop.xlane.xlu0 %5919
    %v5921 = vrcp.pop %v5920
    %v5922 = vmul.f32 %v5917, %v5921
    %v5924 = vsel %vm619, %v5922, 0
    %5926 = vmatprep.subr.mxu0 0.0
    %5927 = vmatpush1.msra.mxu0 %v5669
    %5928 = vmatprep.subr.mxu0 0.0
    %5929 = vmatpush1.msra.mxu0 0.0
    %5930 = vmatprep.subr.mxu0 0.0
    %5931 = vmatpush1.msra.mxu0 0.0
    %5932 = vmatprep.subr.mxu0 0.0
    %5933 = vmatpush1.msra.mxu0 0.0
    %5934 = vmatprep.subr.mxu0 0.0
    %5935 = vmatpush1.msra.mxu0 0.0
    %5936 = vmatprep.subr.mxu0 0.0
    %5937 = vmatpush1.msra.mxu0 0.0
    %5938 = vmatprep.subr.mxu0 0.0
    %5939 = vmatpush1.msra.mxu0 0.0
    %5940 = vmatprep.subr.mxu0 0.0
    %5941 = vmatpush1.msra.mxu0 0.0
    %5942 = vmatprep.subr.mxu0 0.0
    %5943 = vmatpush1.msra.mxu0 0.0
    %5944 = vmatprep.subr.mxu0 0.0
    %5945 = vmatpush1.msra.mxu0 0.0
    %5946 = vmatprep.subr.mxu0 0.0
    %5947 = vmatpush1.msra.mxu0 0.0
    %5948 = vmatprep.subr.mxu0 0.0
    %5949 = vmatpush1.msra.mxu0 0.0
    %5950 = vmatprep.subr.mxu0 0.0
    %5951 = vmatpush1.msra.mxu0 0.0
    %5952 = vmatprep.subr.mxu0 0.0
    %5953 = vmatpush1.msra.mxu0 0.0
    %5954 = vmatprep.subr.mxu0 0.0
    %5955 = vmatpush1.msra.mxu0 0.0
    %5956 = vmatprep.subr.mxu0 0.0
    %5957 = vmatpush1.msra.mxu0 0.0
    %5958 = vmatprep.subr.mxu0 0.0
    %5959 = vmatpush1.msra.mxu0 0.0
    %5960 = vmatprep.subr.mxu0 0.0
    %5961 = vmatpush1.msra.mxu0 0.0
    %5962 = vmatprep.subr.mxu0 0.0
    %5963 = vmatpush1.msra.mxu0 0.0
    %5964 = vmatprep.subr.mxu0 0.0
    %5965 = vmatpush1.msra.mxu0 0.0
    %5966 = vmatprep.subr.mxu0 0.0
    %5967 = vmatpush1.msra.mxu0 0.0
    %5968 = vmatprep.subr.mxu0 0.0
    %5969 = vmatpush1.msra.mxu0 0.0
    %5970 = vmatprep.subr.mxu0 0.0
    %5971 = vmatpush1.msra.mxu0 0.0
    %5972 = vmatprep.subr.mxu0 0.0
    %5973 = vmatpush1.msra.mxu0 0.0
    %5974 = vmatprep.subr.mxu0 0.0
    %5975 = vmatpush1.msra.mxu0 0.0
    %5976 = vmatprep.subr.mxu0 0.0
    %5977 = vmatpush1.msra.mxu0 0.0
    %5978 = vmatprep.subr.mxu0 0.0
    %5979 = vmatpush1.msra.mxu0 0.0
    %5980 = vmatprep.subr.mxu0 0.0
    %5981 = vmatpush1.msra.mxu0 0.0
    %5982 = vmatprep.subr.mxu0 0.0
    %5983 = vmatpush1.msra.mxu0 0.0
    %5984 = vmatprep.subr.mxu0 0.0
    %5985 = vmatpush1.msra.mxu0 0.0
    %5986 = vmatprep.subr.mxu0 0.0
    %5987 = vmatpush1.msra.mxu0 0.0
    %5988 = vmatprep.subr.mxu0 0.0
    %5989 = vmatpush1.msra.mxu0 0.0
    %5990 = vmatprep.mubr.f32.mxu0 0.0
    %5991 = vmatmul.mubr.f32.gmra.mrb[0].mxu0 %v5924
    %v5992 = vpop.f32.mrb[0].mxu0
    %v5993 = vadd.f32 0.0, %v5992
    %v5994 = vpop.f32.mrb[0].mxu0
    %5995 = vdwg.mxu0
    %s5996 = scalar_lea.vmem [#allocation6], 448
    %v5997 = vld [vmem:[%s5996] sm:$0xf]
    %v5998 = vld [vmem:[%s5996 + $0x4] sm:$0xf]
    %v5999 = vld [vmem:[%s5996 + $0x8] sm:$0xf]
    %v6000 = vld [vmem:[%s5996 + $0xc] sm:$0xf]
    %v6001 = vld [vmem:[%s5996 + $0x10] sm:$0xf]
    %v6002 = vld [vmem:[%s5996 + $0x14] sm:$0xf]
    %v6003 = vld [vmem:[%s5996 + $0x18] sm:$0xf]
    %v6004 = vld [vmem:[%s5996 + $0x1c] sm:$0xf]
    %v6005 = vld [vmem:[%s5996 + $0x20] sm:$0xf]
    %v6006 = vld [vmem:[%s5996 + $0x24] sm:$0xf]
    %v6007 = vld [vmem:[%s5996 + $0x28] sm:$0xf]
    %v6008 = vld [vmem:[%s5996 + $0x2c] sm:$0xf]
    %v6009 = vld [vmem:[%s5996 + $0x30] sm:$0xf]
    %v6010 = vld [vmem:[%s5996 + $0x34] sm:$0xf]
    %v6011 = vld [vmem:[%s5996 + $0x38] sm:$0xf]
    %v6012 = vld [vmem:[%s5996 + $0x3c] sm:$0xf]
    %s6013 = scalar_lea.vmem %s7, 7
    %v6014 = vld [vmem:[%s6013] sm:$0x1]
    %v6016 = vlaneseq
    %v6017 = vshrl.u32 %v6016, 7
    %v6018 = vsub.s32 0, %v6017
    %v6019 = vrot.slane %v6014, %v6018
    %v6037 = vunpack.c.l.b16 %v5997
    %v6038 = vunpack.c.l.b16 %v5998
    %v6039 = vunpack.c.l.b16 %v5999
    %v6040 = vunpack.c.l.b16 %v6000
    %v6041 = vunpack.c.l.b16 %v6001
    %v6042 = vunpack.c.l.b16 %v6002
    %v6043 = vunpack.c.l.b16 %v6003
    %v6044 = vunpack.c.l.b16 %v6004
    %v6045 = vunpack.c.l.b16 %v6005
    %v6046 = vunpack.c.l.b16 %v6006
    %v6047 = vunpack.c.l.b16 %v6007
    %v6048 = vunpack.c.l.b16 %v6008
    %v6049 = vunpack.c.l.b16 %v6009
    %v6050 = vunpack.c.l.b16 %v6010
    %v6051 = vunpack.c.l.b16 %v6011
    %v6052 = vunpack.c.l.b16 %v6012
    %v6053 = vpack.c.b16 %v6038, %v6037
    %v6054 = vpack.c.b16 %v6040, %v6039
    %v6055 = vpack.c.b16 %v6042, %v6041
    %v6056 = vpack.c.b16 %v6044, %v6043
    %v6057 = vpack.c.b16 %v6046, %v6045
    %v6058 = vpack.c.b16 %v6048, %v6047
    %v6059 = vpack.c.b16 %v6050, %v6049
    %v6060 = vpack.c.b16 %v6052, %v6051
    %6069 = vmatprep.subr.bf16.mxu0 0
    %6070 = vmatpush1.bf16.msra.mxu0 %v6053
    %6071 = vmatprep.subr.bf16.mxu0 0
    %6072 = vmatpush1.bf16.msra.mxu0 %v6054
    %6073 = vmatprep.subr.bf16.mxu0 0
    %6074 = vmatpush1.bf16.msra.mxu0 %v6055
    %6075 = vmatprep.subr.bf16.mxu0 0
    %6076 = vmatpush1.bf16.msra.mxu0 %v6056
    %6077 = vmatprep.subr.bf16.mxu0 0
    %6078 = vmatpush1.bf16.msra.mxu0 %v6057
    %6079 = vmatprep.subr.bf16.mxu0 0
    %6080 = vmatpush1.bf16.msra.mxu0 %v6058
    %6081 = vmatprep.subr.bf16.mxu0 0
    %6082 = vmatpush1.bf16.msra.mxu0 %v6059
    %6083 = vmatprep.subr.bf16.mxu0 0
    %6084 = vmatpush1.bf16.msra.mxu0 %v6060
    %6085 = vmatprep.subr.bf16.mxu0 0
    %6086 = vmatpush1.bf16.msra.mxu0 0
    %6087 = vmatprep.subr.bf16.mxu0 0
    %6088 = vmatpush1.bf16.msra.mxu0 0
    %6089 = vmatprep.subr.bf16.mxu0 0
    %6090 = vmatpush1.bf16.msra.mxu0 0
    %6091 = vmatprep.subr.bf16.mxu0 0
    %6092 = vmatpush1.bf16.msra.mxu0 0
    %6093 = vmatprep.subr.bf16.mxu0 0
    %6094 = vmatpush1.bf16.msra.mxu0 0
    %6095 = vmatprep.subr.bf16.mxu0 0
    %6096 = vmatpush1.bf16.msra.mxu0 0
    %6097 = vmatprep.subr.bf16.mxu0 0
    %6098 = vmatpush1.bf16.msra.mxu0 0
    %6099 = vmatprep.subr.bf16.mxu0 0
    %6100 = vmatpush1.bf16.msra.mxu0 0
    %6101 = vmatprep.mubr.bf16.mxu0 0
    %6102 = vmatmul.mubr.bf16.gmra.mrb[0].mxu0 %v3997
    %v6103 = vpop.f32.mrb[0].mxu0
    %v6104 = vadd.f32 %v6019, %v6103
    %v6105 = vpop.f32.mrb[0].mxu0
    %v6106 = vpop.f32.mrb[0].mxu0
    %v6107 = vadd.f32 %v6019, %v6106
    %v6108 = vpop.f32.mrb[0].mxu0
    %6109 = vdwg.mxu0
    %s6110 = scalar_lea.vmem [#allocation7], 448
    %v6111 = vld [vmem:[%s6110] sm:$0xf]
    %v6112 = vld [vmem:[%s6110 + $0x4] sm:$0xf]
    %v6113 = vld [vmem:[%s6110 + $0x8] sm:$0xf]
    %v6114 = vld [vmem:[%s6110 + $0xc] sm:$0xf]
    %v6115 = vld [vmem:[%s6110 + $0x10] sm:$0xf]
    %v6116 = vld [vmem:[%s6110 + $0x14] sm:$0xf]
    %v6117 = vld [vmem:[%s6110 + $0x18] sm:$0xf]
    %v6118 = vld [vmem:[%s6110 + $0x1c] sm:$0xf]
    %v6119 = vld [vmem:[%s6110 + $0x20] sm:$0xf]
    %v6120 = vld [vmem:[%s6110 + $0x24] sm:$0xf]
    %v6121 = vld [vmem:[%s6110 + $0x28] sm:$0xf]
    %v6122 = vld [vmem:[%s6110 + $0x2c] sm:$0xf]
    %v6123 = vld [vmem:[%s6110 + $0x30] sm:$0xf]
    %v6124 = vld [vmem:[%s6110 + $0x34] sm:$0xf]
    %v6125 = vld [vmem:[%s6110 + $0x38] sm:$0xf]
    %v6126 = vld [vmem:[%s6110 + $0x3c] sm:$0xf]
    %s6127 = scalar_lea.vmem %s9, 7
    %v6128 = vld [vmem:[%s6127] sm:$0x1]
    %v6130 = vlaneseq
    %v6131 = vshrl.u32 %v6130, 7
    %v6132 = vsub.s32 0, %v6131
    %v6133 = vrot.slane %v6128, %v6132
    %v6151 = vunpack.c.l.b16 %v6111
    %v6152 = vunpack.c.l.b16 %v6112
    %v6153 = vunpack.c.l.b16 %v6113
    %v6154 = vunpack.c.l.b16 %v6114
    %v6155 = vunpack.c.l.b16 %v6115
    %v6156 = vunpack.c.l.b16 %v6116
    %v6157 = vunpack.c.l.b16 %v6117
    %v6158 = vunpack.c.l.b16 %v6118
    %v6159 = vunpack.c.l.b16 %v6119
    %v6160 = vunpack.c.l.b16 %v6120
    %v6161 = vunpack.c.l.b16 %v6121
    %v6162 = vunpack.c.l.b16 %v6122
    %v6163 = vunpack.c.l.b16 %v6123
    %v6164 = vunpack.c.l.b16 %v6124
    %v6165 = vunpack.c.l.b16 %v6125
    %v6166 = vunpack.c.l.b16 %v6126
    %v6167 = vpack.c.b16 %v6152, %v6151
    %v6168 = vpack.c.b16 %v6154, %v6153
    %v6169 = vpack.c.b16 %v6156, %v6155
    %v6170 = vpack.c.b16 %v6158, %v6157
    %v6171 = vpack.c.b16 %v6160, %v6159
    %v6172 = vpack.c.b16 %v6162, %v6161
    %v6173 = vpack.c.b16 %v6164, %v6163
    %v6174 = vpack.c.b16 %v6166, %v6165
    %6183 = vmatprep.subr.bf16.mxu0 0
    %6184 = vmatpush1.bf16.msra.mxu0 %v6167
    %6185 = vmatprep.subr.bf16.mxu0 0
    %6186 = vmatpush1.bf16.msra.mxu0 %v6168
    %6187 = vmatprep.subr.bf16.mxu0 0
    %6188 = vmatpush1.bf16.msra.mxu0 %v6169
    %6189 = vmatprep.subr.bf16.mxu0 0
    %6190 = vmatpush1.bf16.msra.mxu0 %v6170
    %6191 = vmatprep.subr.bf16.mxu0 0
    %6192 = vmatpush1.bf16.msra.mxu0 %v6171
    %6193 = vmatprep.subr.bf16.mxu0 0
    %6194 = vmatpush1.bf16.msra.mxu0 %v6172
    %6195 = vmatprep.subr.bf16.mxu0 0
    %6196 = vmatpush1.bf16.msra.mxu0 %v6173
    %6197 = vmatprep.subr.bf16.mxu0 0
    %6198 = vmatpush1.bf16.msra.mxu0 %v6174
    %6199 = vmatprep.subr.bf16.mxu0 0
    %6200 = vmatpush1.bf16.msra.mxu0 0
    %6201 = vmatprep.subr.bf16.mxu0 0
    %6202 = vmatpush1.bf16.msra.mxu0 0
    %6203 = vmatprep.subr.bf16.mxu0 0
    %6204 = vmatpush1.bf16.msra.mxu0 0
    %6205 = vmatprep.subr.bf16.mxu0 0
    %6206 = vmatpush1.bf16.msra.mxu0 0
    %6207 = vmatprep.subr.bf16.mxu0 0
    %6208 = vmatpush1.bf16.msra.mxu0 0
    %6209 = vmatprep.subr.bf16.mxu0 0
    %6210 = vmatpush1.bf16.msra.mxu0 0
    %6211 = vmatprep.subr.bf16.mxu0 0
    %6212 = vmatpush1.bf16.msra.mxu0 0
    %6213 = vmatprep.subr.bf16.mxu0 0
    %6214 = vmatpush1.bf16.msra.mxu0 0
    %6215 = vmatprep.mubr.bf16.mxu0 0
    %6216 = vmatmul.mubr.bf16.gmra.mrb[0].mxu0 %v3997
    %v6217 = vpop.f32.mrb[0].mxu0
    %v6218 = vadd.f32 %v6133, %v6217
    %v6219 = vpop.f32.mrb[0].mxu0
    %v6220 = vpop.f32.mrb[0].mxu0
    %v6221 = vadd.f32 %v6133, %v6220
    %v6222 = vpop.f32.mrb[0].mxu0
    %6223 = vdwg.mxu0
    %s6224 = scalar_lea.vmem %s10, 448
    %v6225 = vld [vmem:[%s6224] sm:$0xf]
    %v6226 = vld [vmem:[%s6224 + $0x4] sm:$0xf]
    %v6227 = vld [vmem:[%s6224 + $0x8] sm:$0xf]
    %v6228 = vld [vmem:[%s6224 + $0xc] sm:$0xf]
    %v6229 = vld [vmem:[%s6224 + $0x10] sm:$0xf]
    %v6230 = vld [vmem:[%s6224 + $0x14] sm:$0xf]
    %v6231 = vld [vmem:[%s6224 + $0x18] sm:$0xf]
    %v6232 = vld [vmem:[%s6224 + $0x1c] sm:$0xf]
    %v6233 = vld [vmem:[%s6224 + $0x20] sm:$0xf]
    %v6234 = vld [vmem:[%s6224 + $0x24] sm:$0xf]
    %v6235 = vld [vmem:[%s6224 + $0x28] sm:$0xf]
    %v6236 = vld [vmem:[%s6224 + $0x2c] sm:$0xf]
    %v6237 = vld [vmem:[%s6224 + $0x30] sm:$0xf]
    %v6238 = vld [vmem:[%s6224 + $0x34] sm:$0xf]
    %v6239 = vld [vmem:[%s6224 + $0x38] sm:$0xf]
    %v6240 = vld [vmem:[%s6224 + $0x3c] sm:$0xf]
    %s6241 = scalar_lea.vmem %s11, 7
    %v6242 = vld [vmem:[%s6241] sm:$0x1]
    %v6244 = vlaneseq
    %v6245 = vshrl.u32 %v6244, 7
    %v6246 = vsub.s32 0, %v6245
    %v6247 = vrot.slane %v6242, %v6246
    %v6265 = vunpack.c.l.b16 %v6225
    %v6266 = vunpack.c.l.b16 %v6226
    %v6267 = vunpack.c.l.b16 %v6227
    %v6268 = vunpack.c.l.b16 %v6228
    %v6269 = vunpack.c.l.b16 %v6229
    %v6270 = vunpack.c.l.b16 %v6230
    %v6271 = vunpack.c.l.b16 %v6231
    %v6272 = vunpack.c.l.b16 %v6232
    %v6273 = vunpack.c.l.b16 %v6233
    %v6274 = vunpack.c.l.b16 %v6234
    %v6275 = vunpack.c.l.b16 %v6235
    %v6276 = vunpack.c.l.b16 %v6236
    %v6277 = vunpack.c.l.b16 %v6237
    %v6278 = vunpack.c.l.b16 %v6238
    %v6279 = vunpack.c.l.b16 %v6239
    %v6280 = vunpack.c.l.b16 %v6240
    %v6281 = vpack.c.b16 %v6266, %v6265
    %v6282 = vpack.c.b16 %v6268, %v6267
    %v6283 = vpack.c.b16 %v6270, %v6269
    %v6284 = vpack.c.b16 %v6272, %v6271
    %v6285 = vpack.c.b16 %v6274, %v6273
    %v6286 = vpack.c.b16 %v6276, %v6275
    %v6287 = vpack.c.b16 %v6278, %v6277
    %v6288 = vpack.c.b16 %v6280, %v6279
    %6297 = vmatprep.subr.bf16.mxu0 0
    %6298 = vmatpush1.bf16.msra.mxu0 %v6281
    %6299 = vmatprep.subr.bf16.mxu0 0
    %6300 = vmatpush1.bf16.msra.mxu0 %v6282
    %6301 = vmatprep.subr.bf16.mxu0 0
    %6302 = vmatpush1.bf16.msra.mxu0 %v6283
    %6303 = vmatprep.subr.bf16.mxu0 0
    %6304 = vmatpush1.bf16.msra.mxu0 %v6284
    %6305 = vmatprep.subr.bf16.mxu0 0
    %6306 = vmatpush1.bf16.msra.mxu0 %v6285
    %6307 = vmatprep.subr.bf16.mxu0 0
    %6308 = vmatpush1.bf16.msra.mxu0 %v6286
    %6309 = vmatprep.subr.bf16.mxu0 0
    %6310 = vmatpush1.bf16.msra.mxu0 %v6287
    %6311 = vmatprep.subr.bf16.mxu0 0
    %6312 = vmatpush1.bf16.msra.mxu0 %v6288
    %6313 = vmatprep.subr.bf16.mxu0 0
    %6314 = vmatpush1.bf16.msra.mxu0 0
    %6315 = vmatprep.subr.bf16.mxu0 0
    %6316 = vmatpush1.bf16.msra.mxu0 0
    %6317 = vmatprep.subr.bf16.mxu0 0
    %6318 = vmatpush1.bf16.msra.mxu0 0
    %6319 = vmatprep.subr.bf16.mxu0 0
    %6320 = vmatpush1.bf16.msra.mxu0 0
    %6321 = vmatprep.subr.bf16.mxu0 0
    %6322 = vmatpush1.bf16.msra.mxu0 0
    %6323 = vmatprep.subr.bf16.mxu0 0
    %6324 = vmatpush1.bf16.msra.mxu0 0
    %6325 = vmatprep.subr.bf16.mxu0 0
    %6326 = vmatpush1.bf16.msra.mxu0 0
    %6327 = vmatprep.subr.bf16.mxu0 0
    %6328 = vmatpush1.bf16.msra.mxu0 0
    %6329 = vmatprep.mubr.bf16.mxu0 0
    %6330 = vmatmul.mubr.bf16.gmra.mrb[0].mxu0 %v3997
    %v6331 = vpop.f32.mrb[0].mxu0
    %v6332 = vadd.f32 %v6247, %v6331
    %v6333 = vpop.f32.mrb[0].mxu0
    %v6334 = vpop.f32.mrb[0].mxu0
    %v6335 = vadd.f32 %v6247, %v6334
    %v6336 = vpop.f32.mrb[0].mxu0
    %6337 = vdwg.mxu0
    %v6339 = vsel %vm533, %v6104, 0
    %v6342 = vsel %vm533, %v6218, 0
    %6344 = vmatprep.subr.mxu0 0.0
    %6345 = vmatpush1.xpose.msra.mxu0 %v6342
    %6346 = vmatprep.subr.mxu0 0.0
    %6347 = vmatpush1.xpose.msra.mxu0 0.0
    %6348 = vmatprep.subr.mxu0 0.0
    %6349 = vmatpush1.xpose.msra.mxu0 0.0
    %6350 = vmatprep.subr.mxu0 0.0
    %6351 = vmatpush1.xpose.msra.mxu0 0.0
    %6352 = vmatprep.subr.mxu0 0.0
    %6353 = vmatpush1.xpose.msra.mxu0 0.0
    %6354 = vmatprep.subr.mxu0 0.0
    %6355 = vmatpush1.xpose.msra.mxu0 0.0
    %6356 = vmatprep.subr.mxu0 0.0
    %6357 = vmatpush1.xpose.msra.mxu0 0.0
    %6358 = vmatprep.subr.mxu0 0.0
    %6359 = vmatpush1.xpose.msra.mxu0 0.0
    %6360 = vmatprep.subr.mxu0 0.0
    %6361 = vmatpush1.xpose.msra.mxu0 0.0
    %6362 = vmatprep.subr.mxu0 0.0
    %6363 = vmatpush1.xpose.msra.mxu0 0.0
    %6364 = vmatprep.subr.mxu0 0.0
    %6365 = vmatpush1.xpose.msra.mxu0 0.0
    %6366 = vmatprep.subr.mxu0 0.0
    %6367 = vmatpush1.xpose.msra.mxu0 0.0
    %6368 = vmatprep.subr.mxu0 0.0
    %6369 = vmatpush1.xpose.msra.mxu0 0.0
    %6370 = vmatprep.subr.mxu0 0.0
    %6371 = vmatpush1.xpose.msra.mxu0 0.0
    %6372 = vmatprep.subr.mxu0 0.0
    %6373 = vmatpush1.xpose.msra.mxu0 0.0
    %6374 = vmatprep.subr.mxu0 0.0
    %6375 = vmatpush1.xpose.msra.mxu0 0.0
    %6376 = vmatprep.subr.mxu0 0.0
    %6377 = vmatpush1.xpose.msra.mxu0 0.0
    %6378 = vmatprep.subr.mxu0 0.0
    %6379 = vmatpush1.xpose.msra.mxu0 0.0
    %6380 = vmatprep.subr.mxu0 0.0
    %6381 = vmatpush1.xpose.msra.mxu0 0.0
    %6382 = vmatprep.subr.mxu0 0.0
    %6383 = vmatpush1.xpose.msra.mxu0 0.0
    %6384 = vmatprep.subr.mxu0 0.0
    %6385 = vmatpush1.xpose.msra.mxu0 0.0
    %6386 = vmatprep.subr.mxu0 0.0
    %6387 = vmatpush1.xpose.msra.mxu0 0.0
    %6388 = vmatprep.subr.mxu0 0.0
    %6389 = vmatpush1.xpose.msra.mxu0 0.0
    %6390 = vmatprep.subr.mxu0 0.0
    %6391 = vmatpush1.xpose.msra.mxu0 0.0
    %6392 = vmatprep.subr.mxu0 0.0
    %6393 = vmatpush1.xpose.msra.mxu0 0.0
    %6394 = vmatprep.subr.mxu0 0.0
    %6395 = vmatpush1.xpose.msra.mxu0 0.0
    %6396 = vmatprep.subr.mxu0 0.0
    %6397 = vmatpush1.xpose.msra.mxu0 0.0
    %6398 = vmatprep.subr.mxu0 0.0
    %6399 = vmatpush1.xpose.msra.mxu0 0.0
    %6400 = vmatprep.subr.mxu0 0.0
    %6401 = vmatpush1.xpose.msra.mxu0 0.0
    %6402 = vmatprep.subr.mxu0 0.0
    %6403 = vmatpush1.xpose.msra.mxu0 0.0
    %6404 = vmatprep.subr.mxu0 0.0
    %6405 = vmatpush1.xpose.msra.mxu0 0.0
    %6406 = vmatprep.subr.mxu0 0.0
    %6407 = vmatpush1.xpose.msra.mxu0 0.0
    %6408 = vmatprep.mubr.f32.mxu0 0.0
    %6409 = vmatmul.mubr.f32.gmra.mrb[0].mxu0 %v6339
    %v6410 = vpop.f32.mrb[0].mxu0
    %v6411 = vadd.f32 0.0, %v6410
    %v6412 = vpop.f32.mrb[0].mxu0
    %6413 = vdwg.mxu0
    %v6414 = vmul.f32 %v6411, 0.17677669
    %v6415 = vadd.f32 %v6414, %v616
    %v6416 = vsel %vm619, %v6415, -inf
    %6417 = vmax.xlane.f32.xlu0 %v6416
    %v6418 = vpop.xlane.xlu0 %6417
    %v6419 = vsub.f32 %v6415, %v6418
    %v6420 = vmul.f32 %v6419, 1.442695
    %v6421 = vpow.pop %v6420
    %v6422 = vsel %vm619, %v6421, 0.0
    %6423 = vadd.xlane.f32.xlu0 %v6422
    %v6424 = vpop.xlane.xlu0 %6423
    %v6425 = vrcp.pop %v6424
    %v6426 = vmul.f32 %v6421, %v6425
    %v6428 = vsel %vm619, %v6426, 0
    %6430 = vmatprep.subr.mxu0 0.0
    %6431 = vmatpush1.msra.mxu0 %v6332
    %6432 = vmatprep.subr.mxu0 0.0
    %6433 = vmatpush1.msra.mxu0 0.0
    %6434 = vmatprep.subr.mxu0 0.0
    %6435 = vmatpush1.msra.mxu0 0.0
    %6436 = vmatprep.subr.mxu0 0.0
    %6437 = vmatpush1.msra.mxu0 0.0
    %6438 = vmatprep.subr.mxu0 0.0
    %6439 = vmatpush1.msra.mxu0 0.0
    %6440 = vmatprep.subr.mxu0 0.0
    %6441 = vmatpush1.msra.mxu0 0.0
    %6442 = vmatprep.subr.mxu0 0.0
    %6443 = vmatpush1.msra.mxu0 0.0
    %6444 = vmatprep.subr.mxu0 0.0
    %6445 = vmatpush1.msra.mxu0 0.0
    %6446 = vmatprep.subr.mxu0 0.0
    %6447 = vmatpush1.msra.mxu0 0.0
    %6448 = vmatprep.subr.mxu0 0.0
    %6449 = vmatpush1.msra.mxu0 0.0
    %6450 = vmatprep.subr.mxu0 0.0
    %6451 = vmatpush1.msra.mxu0 0.0
    %6452 = vmatprep.subr.mxu0 0.0
    %6453 = vmatpush1.msra.mxu0 0.0
    %6454 = vmatprep.subr.mxu0 0.0
    %6455 = vmatpush1.msra.mxu0 0.0
    %6456 = vmatprep.subr.mxu0 0.0
    %6457 = vmatpush1.msra.mxu0 0.0
    %6458 = vmatprep.subr.mxu0 0.0
    %6459 = vmatpush1.msra.mxu0 0.0
    %6460 = vmatprep.subr.mxu0 0.0
    %6461 = vmatpush1.msra.mxu0 0.0
    %6462 = vmatprep.subr.mxu0 0.0
    %6463 = vmatpush1.msra.mxu0 0.0
    %6464 = vmatprep.subr.mxu0 0.0
    %6465 = vmatpush1.msra.mxu0 0.0
    %6466 = vmatprep.subr.mxu0 0.0
    %6467 = vmatpush1.msra.mxu0 0.0
    %6468 = vmatprep.subr.mxu0 0.0
    %6469 = vmatpush1.msra.mxu0 0.0
    %6470 = vmatprep.subr.mxu0 0.0
    %6471 = vmatpush1.msra.mxu0 0.0
    %6472 = vmatprep.subr.mxu0 0.0
    %6473 = vmatpush1.msra.mxu0 0.0
    %6474 = vmatprep.subr.mxu0 0.0
    %6475 = vmatpush1.msra.mxu0 0.0
    %6476 = vmatprep.subr.mxu0 0.0
    %6477 = vmatpush1.msra.mxu0 0.0
    %6478 = vmatprep.subr.mxu0 0.0
    %6479 = vmatpush1.msra.mxu0 0.0
    %6480 = vmatprep.subr.mxu0 0.0
    %6481 = vmatpush1.msra.mxu0 0.0
    %6482 = vmatprep.subr.mxu0 0.0
    %6483 = vmatpush1.msra.mxu0 0.0
    %6484 = vmatprep.subr.mxu0 0.0
    %6485 = vmatpush1.msra.mxu0 0.0
    %6486 = vmatprep.subr.mxu0 0.0
    %6487 = vmatpush1.msra.mxu0 0.0
    %6488 = vmatprep.subr.mxu0 0.0
    %6489 = vmatpush1.msra.mxu0 0.0
    %6490 = vmatprep.subr.mxu0 0.0
    %6491 = vmatpush1.msra.mxu0 0.0
    %6492 = vmatprep.subr.mxu0 0.0
    %6493 = vmatpush1.msra.mxu0 0.0
    %6494 = vmatprep.mubr.f32.mxu0 0.0
    %6495 = vmatmul.mubr.f32.gmra.mrb[0].mxu0 %v6428
    %v6496 = vpop.f32.mrb[0].mxu0
    %v6497 = vadd.f32 0.0, %v6496
    %v6498 = vpop.f32.mrb[0].mxu0
    %6499 = vdwg.mxu0
    %v6501 = vsel %vm533, %v6107, 0
    %v6504 = vsel %vm533, %v6221, 0
    %6506 = vmatprep.subr.mxu0 0.0
    %6507 = vmatpush1.xpose.msra.mxu0 %v6504
    %6508 = vmatprep.subr.mxu0 0.0
    %6509 = vmatpush1.xpose.msra.mxu0 0.0
    %6510 = vmatprep.subr.mxu0 0.0
    %6511 = vmatpush1.xpose.msra.mxu0 0.0
    %6512 = vmatprep.subr.mxu0 0.0
    %6513 = vmatpush1.xpose.msra.mxu0 0.0
    %6514 = vmatprep.subr.mxu0 0.0
    %6515 = vmatpush1.xpose.msra.mxu0 0.0
    %6516 = vmatprep.subr.mxu0 0.0
    %6517 = vmatpush1.xpose.msra.mxu0 0.0
    %6518 = vmatprep.subr.mxu0 0.0
    %6519 = vmatpush1.xpose.msra.mxu0 0.0
    %6520 = vmatprep.subr.mxu0 0.0
    %6521 = vmatpush1.xpose.msra.mxu0 0.0
    %6522 = vmatprep.subr.mxu0 0.0
    %6523 = vmatpush1.xpose.msra.mxu0 0.0
    %6524 = vmatprep.subr.mxu0 0.0
    %6525 = vmatpush1.xpose.msra.mxu0 0.0
    %6526 = vmatprep.subr.mxu0 0.0
    %6527 = vmatpush1.xpose.msra.mxu0 0.0
    %6528 = vmatprep.subr.mxu0 0.0
    %6529 = vmatpush1.xpose.msra.mxu0 0.0
    %6530 = vmatprep.subr.mxu0 0.0
    %6531 = vmatpush1.xpose.msra.mxu0 0.0
    %6532 = vmatprep.subr.mxu0 0.0
    %6533 = vmatpush1.xpose.msra.mxu0 0.0
    %6534 = vmatprep.subr.mxu0 0.0
    %6535 = vmatpush1.xpose.msra.mxu0 0.0
    %6536 = vmatprep.subr.mxu0 0.0
    %6537 = vmatpush1.xpose.msra.mxu0 0.0
    %6538 = vmatprep.subr.mxu0 0.0
    %6539 = vmatpush1.xpose.msra.mxu0 0.0
    %6540 = vmatprep.subr.mxu0 0.0
    %6541 = vmatpush1.xpose.msra.mxu0 0.0
    %6542 = vmatprep.subr.mxu0 0.0
    %6543 = vmatpush1.xpose.msra.mxu0 0.0
    %6544 = vmatprep.subr.mxu0 0.0
    %6545 = vmatpush1.xpose.msra.mxu0 0.0
    %6546 = vmatprep.subr.mxu0 0.0
    %6547 = vmatpush1.xpose.msra.mxu0 0.0
    %6548 = vmatprep.subr.mxu0 0.0
    %6549 = vmatpush1.xpose.msra.mxu0 0.0
    %6550 = vmatprep.subr.mxu0 0.0
    %6551 = vmatpush1.xpose.msra.mxu0 0.0
    %6552 = vmatprep.subr.mxu0 0.0
    %6553 = vmatpush1.xpose.msra.mxu0 0.0
    %6554 = vmatprep.subr.mxu0 0.0
    %6555 = vmatpush1.xpose.msra.mxu0 0.0
    %6556 = vmatprep.subr.mxu0 0.0
    %6557 = vmatpush1.xpose.msra.mxu0 0.0
    %6558 = vmatprep.subr.mxu0 0.0
    %6559 = vmatpush1.xpose.msra.mxu0 0.0
    %6560 = vmatprep.subr.mxu0 0.0
    %6561 = vmatpush1.xpose.msra.mxu0 0.0
    %6562 = vmatprep.subr.mxu0 0.0
    %6563 = vmatpush1.xpose.msra.mxu0 0.0
    %6564 = vmatprep.subr.mxu0 0.0
    %6565 = vmatpush1.xpose.msra.mxu0 0.0
    %6566 = vmatprep.subr.mxu0 0.0
    %6567 = vmatpush1.xpose.msra.mxu0 0.0
    %6568 = vmatprep.subr.mxu0 0.0
    %6569 = vmatpush1.xpose.msra.mxu0 0.0
    %6570 = vmatprep.mubr.f32.mxu0 0.0
    %6571 = vmatmul.mubr.f32.gmra.mrb[0].mxu0 %v6501
    %v6572 = vpop.f32.mrb[0].mxu0
    %v6573 = vadd.f32 0.0, %v6572
    %v6574 = vpop.f32.mrb[0].mxu0
    %6575 = vdwg.mxu0
    %v6576 = vmul.f32 %v6573, 0.17677669
    %v6577 = vadd.f32 %v6576, %v787
    %v6578 = vsel %vm619, %v6577, -inf
    %6579 = vmax.xlane.f32.xlu0 %v6578
    %v6580 = vpop.xlane.xlu0 %6579
    %v6581 = vsub.f32 %v6577, %v6580
    %v6582 = vmul.f32 %v6581, 1.442695
    %v6583 = vpow.pop %v6582
    %v6584 = vsel %vm619, %v6583, 0.0
    %6585 = vadd.xlane.f32.xlu0 %v6584
    %v6586 = vpop.xlane.xlu0 %6585
    %v6587 = vrcp.pop %v6586
    %v6588 = vmul.f32 %v6583, %v6587
    %v6590 = vsel %vm619, %v6588, 0
    %6592 = vmatprep.subr.mxu0 0.0
    %6593 = vmatpush1.msra.mxu0 %v6335
    %6594 = vmatprep.subr.mxu0 0.0
    %6595 = vmatpush1.msra.mxu0 0.0
    %6596 = vmatprep.subr.mxu0 0.0
    %6597 = vmatpush1.msra.mxu0 0.0
    %6598 = vmatprep.subr.mxu0 0.0
    %6599 = vmatpush1.msra.mxu0 0.0
    %6600 = vmatprep.subr.mxu0 0.0
    %6601 = vmatpush1.msra.mxu0 0.0
    %6602 = vmatprep.subr.mxu0 0.0
    %6603 = vmatpush1.msra.mxu0 0.0
    %6604 = vmatprep.subr.mxu0 0.0
    %6605 = vmatpush1.msra.mxu0 0.0
    %6606 = vmatprep.subr.mxu0 0.0
    %6607 = vmatpush1.msra.mxu0 0.0
    %6608 = vmatprep.subr.mxu0 0.0
    %6609 = vmatpush1.msra.mxu0 0.0
    %6610 = vmatprep.subr.mxu0 0.0
    %6611 = vmatpush1.msra.mxu0 0.0
    %6612 = vmatprep.subr.mxu0 0.0
    %6613 = vmatpush1.msra.mxu0 0.0
    %6614 = vmatprep.subr.mxu0 0.0
    %6615 = vmatpush1.msra.mxu0 0.0
    %6616 = vmatprep.subr.mxu0 0.0
    %6617 = vmatpush1.msra.mxu0 0.0
    %6618 = vmatprep.subr.mxu0 0.0
    %6619 = vmatpush1.msra.mxu0 0.0
    %6620 = vmatprep.subr.mxu0 0.0
    %6621 = vmatpush1.msra.mxu0 0.0
    %6622 = vmatprep.subr.mxu0 0.0
    %6623 = vmatpush1.msra.mxu0 0.0
    %6624 = vmatprep.subr.mxu0 0.0
    %6625 = vmatpush1.msra.mxu0 0.0
    %6626 = vmatprep.subr.mxu0 0.0
    %6627 = vmatpush1.msra.mxu0 0.0
    %6628 = vmatprep.subr.mxu0 0.0
    %6629 = vmatpush1.msra.mxu0 0.0
    %6630 = vmatprep.subr.mxu0 0.0
    %6631 = vmatpush1.msra.mxu0 0.0
    %6632 = vmatprep.subr.mxu0 0.0
    %6633 = vmatpush1.msra.mxu0 0.0
    %6634 = vmatprep.subr.mxu0 0.0
    %6635 = vmatpush1.msra.mxu0 0.0
    %6636 = vmatprep.subr.mxu0 0.0
    %6637 = vmatpush1.msra.mxu0 0.0
    %6638 = vmatprep.subr.mxu0 0.0
    %6639 = vmatpush1.msra.mxu0 0.0
    %6640 = vmatprep.subr.mxu0 0.0
    %6641 = vmatpush1.msra.mxu0 0.0
    %6642 = vmatprep.subr.mxu0 0.0
    %6643 = vmatpush1.msra.mxu0 0.0
    %6644 = vmatprep.subr.mxu0 0.0
    %6645 = vmatpush1.msra.mxu0 0.0
    %6646 = vmatprep.subr.mxu0 0.0
    %6647 = vmatpush1.msra.mxu0 0.0
    %6648 = vmatprep.subr.mxu0 0.0
    %6649 = vmatpush1.msra.mxu0 0.0
    %6650 = vmatprep.subr.mxu0 0.0
    %6651 = vmatpush1.msra.mxu0 0.0
    %6652 = vmatprep.subr.mxu0 0.0
    %6653 = vmatpush1.msra.mxu0 0.0
    %6654 = vmatprep.subr.mxu0 0.0
    %6655 = vmatpush1.msra.mxu0 0.0
    %6656 = vmatprep.mubr.f32.mxu0 0.0
    %6657 = vmatmul.mubr.f32.gmra.mrb[0].mxu0 %v6590
    %v6658 = vpop.f32.mrb[0].mxu0
    %v6659 = vadd.f32 0.0, %v6658
    %v6660 = vpop.f32.mrb[0].mxu0
    %6661 = vdwg.mxu0
    %6664 = vrot.lane.b32.xlu0 %v5165, 32
    %v6665 = vpop.permute.xlu0 %6664
    %6666 = vrot.lane.b32.xlu0 %v5327, 32
    %v6667 = vpop.permute.xlu0 %6666
    %6672 = vrot.lane.b32.xlu0 %v5831, 64
    %v6673 = vpop.permute.xlu0 %6672
    %6674 = vrot.lane.b32.xlu0 %v5993, 64
    %v6675 = vpop.permute.xlu0 %6674
    %6680 = vrot.lane.b32.xlu0 %v6497, 96
    %v6681 = vpop.permute.xlu0 %6680
    %6682 = vrot.lane.b32.xlu0 %v6659, 96
    %v6683 = vpop.permute.xlu0 %6682
    %v6686 = vsel %vm533, %v4499, %v6665
    %v6687 = vsel %vm533, %v4661, %v6667
    %v6688 = vsel %vm2898, %v6686, %v6673
    %v6689 = vsel %vm2898, %v6687, %v6675
    %v6690 = vsel %vm2901, %v6688, %v6681
    %v6691 = vsel %vm2901, %v6689, %v6683
    %v6692 = vpack.c.bf16 %v6691, %v6690
    %s6693 = scalar_lea.vmem %s12, 64
    %v6694 = vld [vmem:[%s6693] sm:$0xf]
    %v6695 = vld [vmem:[%s6693 + $0x4] sm:$0xf]
    %v6696 = vld [vmem:[%s6693 + $0x8] sm:$0xf]
    %v6697 = vld [vmem:[%s6693 + $0xc] sm:$0xf]
    %v6698 = vld [vmem:[%s6693 + $0x10] sm:$0xf]
    %v6699 = vld [vmem:[%s6693 + $0x14] sm:$0xf]
    %v6700 = vld [vmem:[%s6693 + $0x18] sm:$0xf]
    %v6701 = vld [vmem:[%s6693 + $0x1c] sm:$0xf]
    %v6702 = vld [vmem:[%s6693 + $0x20] sm:$0xf]
    %v6703 = vld [vmem:[%s6693 + $0x24] sm:$0xf]
    %v6704 = vld [vmem:[%s6693 + $0x28] sm:$0xf]
    %v6705 = vld [vmem:[%s6693 + $0x2c] sm:$0xf]
    %v6706 = vld [vmem:[%s6693 + $0x30] sm:$0xf]
    %v6707 = vld [vmem:[%s6693 + $0x34] sm:$0xf]
    %v6708 = vld [vmem:[%s6693 + $0x38] sm:$0xf]
    %v6709 = vld [vmem:[%s6693 + $0x3c] sm:$0xf]
    %s6710 = scalar_lea.vmem %s13, 1
    %v6711 = vld [vmem:[%s6710] sm:$0x1]
    %v6713 = vlaneseq
    %v6714 = vshrl.u32 %v6713, 7
    %v6715 = vsub.s32 0, %v6714
    %v6716 = vrot.slane %v6711, %v6715
    %v6734 = vunpack.c.l.b16 %v6694
    %v6735 = vunpack.c.l.b16 %v6695
    %v6736 = vunpack.c.l.b16 %v6696
    %v6737 = vunpack.c.l.b16 %v6697
    %v6738 = vunpack.c.l.b16 %v6698
    %v6739 = vunpack.c.l.b16 %v6699
    %v6740 = vunpack.c.l.b16 %v6700
    %v6741 = vunpack.c.l.b16 %v6701
    %v6742 = vunpack.c.l.b16 %v6702
    %v6743 = vunpack.c.l.b16 %v6703
    %v6744 = vunpack.c.l.b16 %v6704
    %v6745 = vunpack.c.l.b16 %v6705
    %v6746 = vunpack.c.l.b16 %v6706
    %v6747 = vunpack.c.l.b16 %v6707
    %v6748 = vunpack.c.l.b16 %v6708
    %v6749 = vunpack.c.l.b16 %v6709
    %v6750 = vpack.c.b16 %v6735, %v6734
    %v6751 = vpack.c.b16 %v6737, %v6736
    %v6752 = vpack.c.b16 %v6739, %v6738
    %v6753 = vpack.c.b16 %v6741, %v6740
    %v6754 = vpack.c.b16 %v6743, %v6742
    %v6755 = vpack.c.b16 %v6745, %v6744
    %v6756 = vpack.c.b16 %v6747, %v6746
    %v6757 = vpack.c.b16 %v6749, %v6748
    %6766 = vmatprep.subr.bf16.mxu0 0
    %6767 = vmatpush1.bf16.msra.mxu0 %v6750
    %6768 = vmatprep.subr.bf16.mxu0 0
    %6769 = vmatpush1.bf16.msra.mxu0 %v6751
    %6770 = vmatprep.subr.bf16.mxu0 0
    %6771 = vmatpush1.bf16.msra.mxu0 %v6752
    %6772 = vmatprep.subr.bf16.mxu0 0
    %6773 = vmatpush1.bf16.msra.mxu0 %v6753
    %6774 = vmatprep.subr.bf16.mxu0 0
    %6775 = vmatpush1.bf16.msra.mxu0 %v6754
    %6776 = vmatprep.subr.bf16.mxu0 0
    %6777 = vmatpush1.bf16.msra.mxu0 %v6755
    %6778 = vmatprep.subr.bf16.mxu0 0
    %6779 = vmatpush1.bf16.msra.mxu0 %v6756
    %6780 = vmatprep.subr.bf16.mxu0 0
    %6781 = vmatpush1.bf16.msra.mxu0 %v6757
    %6782 = vmatprep.subr.bf16.mxu0 0
    %6783 = vmatpush1.bf16.msra.mxu0 0
    %6784 = vmatprep.subr.bf16.mxu0 0
    %6785 = vmatpush1.bf16.msra.mxu0 0
    %6786 = vmatprep.subr.bf16.mxu0 0
    %6787 = vmatpush1.bf16.msra.mxu0 0
    %6788 = vmatprep.subr.bf16.mxu0 0
    %6789 = vmatpush1.bf16.msra.mxu0 0
    %6790 = vmatprep.subr.bf16.mxu0 0
    %6791 = vmatpush1.bf16.msra.mxu0 0
    %6792 = vmatprep.subr.bf16.mxu0 0
    %6793 = vmatpush1.bf16.msra.mxu0 0
    %6794 = vmatprep.subr.bf16.mxu0 0
    %6795 = vmatpush1.bf16.msra.mxu0 0
    %6796 = vmatprep.subr.bf16.mxu0 0
    %6797 = vmatpush1.bf16.msra.mxu0 0
    %6798 = vmatprep.mubr.bf16.mxu0 0
    %6799 = vmatmul.mubr.bf16.gmra.mrb[0].mxu0 %v6692
    %v6800 = vpop.f32.mrb[0].mxu0
    %v6801 = vadd.f32 %v6716, %v6800
    %v6802 = vpop.f32.mrb[0].mxu0
    %v6803 = vpop.f32.mrb[0].mxu0
    %v6804 = vadd.f32 %v6716, %v6803
    %v6805 = vpop.f32.mrb[0].mxu0
    %6806 = vdwg.mxu0
    %v6807 = vadd.f32 %v6801, %v3995
    %v6808 = vadd.f32 %v6804, %v3996
    %s6809 = scalar_lea.vmem %s14, 1
    %v6810 = vld [vmem:[%s6809] sm:$0x1]
    %s6811 = scalar_lea.vmem %s15, 1
    %v6812 = vld [vmem:[%s6811] sm:$0x1]
    %6813 = vadd.xlane.f32.xlu0 %v6807
    %v6814 = vpop.xlane.xlu0 %6813
    %6815 = vadd.xlane.f32.xlu0 %v6808
    %v6816 = vpop.xlane.xlu0 %6815
    %v6817 = vmul.f32 %v6814, %v161
    %v6818 = vmul.f32 %v6816, %v161
    %v6819 = vsub.f32 %v6807, %v6817
    %v6820 = vsub.f32 %v6808, %v6818
    %v6821 = vmul.f32 %v6819, %v6819
    %v6822 = vmul.f32 %v6820, %v6820
    %6823 = vadd.xlane.f32.xlu0 %v6821
    %v6824 = vpop.xlane.xlu0 %6823
    %6825 = vadd.xlane.f32.xlu0 %v6822
    %v6826 = vpop.xlane.xlu0 %6825
    %v6827 = vmul.f32 %v6824, %v161
    %v6828 = vmul.f32 %v6826, %v161
    %v6829 = vadd.f32 %v6827, 1e-12
    %v6830 = vadd.f32 %v6828, 1e-12
    %v6831 = vrsqrt.pop %v6829
    %v6832 = vrsqrt.pop %v6830
    %v6833 = vmul.f32 %v6819, %v6831
    %v6834 = vmul.f32 %v6820, %v6832
    %v6836 = vlaneseq
    %v6837 = vshrl.u32 %v6836, 7
    %v6838 = vsub.s32 0, %v6837
    %v6839 = vrot.slane %v6810, %v6838
    %v6841 = vmul.f32 %v6833, %v6839
    %v6842 = vmul.f32 %v6834, %v6839
    %v6844 = vlaneseq
    %v6845 = vshrl.u32 %v6844, 7
    %v6846 = vsub.s32 0, %v6845
    %v6847 = vrot.slane %v6812, %v6846
    %v6849 = vadd.f32 %v6841, %v6847
    %v6850 = vadd.f32 %v6842, %v6847
    %v6851 = vpack.c.bf16 %v6850, %v6849
    %s6852 = scalar_lea.vmem %s16, 256
    %v6853 = vld [vmem:[%s6852] sm:$0xff]
    %v6854 = vld [vmem:[%s6852 + $0x8] sm:$0xff]
    %v6855 = vld [vmem:[%s6852 + $0x10] sm:$0xff]
    %v6856 = vld [vmem:[%s6852 + $0x18] sm:$0xff]
    %v6857 = vld [vmem:[%s6852 + $0x20] sm:$0xff]
    %v6858 = vld [vmem:[%s6852 + $0x28] sm:$0xff]
    %v6859 = vld [vmem:[%s6852 + $0x30] sm:$0xff]
    %v6860 = vld [vmem:[%s6852 + $0x38] sm:$0xff]
    %v6861 = vld [vmem:[%s6852 + $0x40] sm:$0xff]
    %v6862 = vld [vmem:[%s6852 + $0x48] sm:$0xff]
    %v6863 = vld [vmem:[%s6852 + $0x50] sm:$0xff]
    %v6864 = vld [vmem:[%s6852 + $0x58] sm:$0xff]
    %v6865 = vld [vmem:[%s6852 + $0x60] sm:$0xff]
    %v6866 = vld [vmem:[%s6852 + $0x68] sm:$0xff]
    %v6867 = vld [vmem:[%s6852 + $0x70] sm:$0xff]
    %v6868 = vld [vmem:[%s6852 + $0x78] sm:$0xff]
    %v6869 = vld [vmem:[%s6852 + $0x80] sm:$0xff]
    %v6870 = vld [vmem:[%s6852 + $0x88] sm:$0xff]
    %v6871 = vld [vmem:[%s6852 + $0x90] sm:$0xff]
    %v6872 = vld [vmem:[%s6852 + $0x98] sm:$0xff]
    %v6873 = vld [vmem:[%s6852 + $0xa0] sm:$0xff]
    %v6874 = vld [vmem:[%s6852 + $0xa8] sm:$0xff]
    %v6875 = vld [vmem:[%s6852 + $0xb0] sm:$0xff]
    %v6876 = vld [vmem:[%s6852 + $0xb8] sm:$0xff]
    %v6877 = vld [vmem:[%s6852 + $0xc0] sm:$0xff]
    %v6878 = vld [vmem:[%s6852 + $0xc8] sm:$0xff]
    %v6879 = vld [vmem:[%s6852 + $0xd0] sm:$0xff]
    %v6880 = vld [vmem:[%s6852 + $0xd8] sm:$0xff]
    %v6881 = vld [vmem:[%s6852 + $0xe0] sm:$0xff]
    %v6882 = vld [vmem:[%s6852 + $0xe8] sm:$0xff]
    %v6883 = vld [vmem:[%s6852 + $0xf0] sm:$0xff]
    %v6884 = vld [vmem:[%s6852 + $0xf8] sm:$0xff]
    %s6885 = scalar_lea.vmem %s17, 4
    %v6886 = vld [vmem:[%s6885] sm:$0xf]
    %v6888 = vlaneseq
    %v6889 = vshrl.u32 %v6888, 7
    %v6890 = vsub.s32 0, %v6889
    %v6891 = vrot.slane %v6886, %v6890
    %v6892 = vlaneseq
    %v6893 = vshrl.u32 %v6892, 7
    %v6894 = vsub.s32 1, %v6893
    %v6895 = vrot.slane %v6886, %v6894
    %v6896 = vlaneseq
    %v6897 = vshrl.u32 %v6896, 7
    %v6898 = vsub.s32 2, %v6897
    %v6899 = vrot.slane %v6886, %v6898
    %v6900 = vlaneseq
    %v6901 = vshrl.u32 %v6900, 7
    %v6902 = vsub.s32 3, %v6901
    %v6903 = vrot.slane %v6886, %v6902
    %v6940 = vunpack.c.l.b16 %v6853
    %v6941 = vunpack.c.h.b16 %v6853
    %v6942 = vunpack.c.l.b16 %v6854
    %v6943 = vunpack.c.h.b16 %v6854
    %v6944 = vunpack.c.l.b16 %v6855
    %v6945 = vunpack.c.h.b16 %v6855
    %v6946 = vunpack.c.l.b16 %v6856
    %v6947 = vunpack.c.h.b16 %v6856
    %v6948 = vunpack.c.l.b16 %v6857
    %v6949 = vunpack.c.h.b16 %v6857
    %v6950 = vunpack.c.l.b16 %v6858
    %v6951 = vunpack.c.h.b16 %v6858
    %v6952 = vunpack.c.l.b16 %v6859
    %v6953 = vunpack.c.h.b16 %v6859
    %v6954 = vunpack.c.l.b16 %v6860
    %v6955 = vunpack.c.h.b16 %v6860
    %v6956 = vunpack.c.l.b16 %v6861
    %v6957 = vunpack.c.h.b16 %v6861
    %v6958 = vunpack.c.l.b16 %v6862
    %v6959 = vunpack.c.h.b16 %v6862
    %v6960 = vunpack.c.l.b16 %v6863
    %v6961 = vunpack.c.h.b16 %v6863
    %v6962 = vunpack.c.l.b16 %v6864
    %v6963 = vunpack.c.h.b16 %v6864
    %v6964 = vunpack.c.l.b16 %v6865
    %v6965 = vunpack.c.h.b16 %v6865
    %v6966 = vunpack.c.l.b16 %v6866
    %v6967 = vunpack.c.h.b16 %v6866
    %v6968 = vunpack.c.l.b16 %v6867
    %v6969 = vunpack.c.h.b16 %v6867
    %v6970 = vunpack.c.l.b16 %v6868
    %v6971 = vunpack.c.h.b16 %v6868
    %v6972 = vunpack.c.l.b16 %v6869
    %v6973 = vunpack.c.h.b16 %v6869
    %v6974 = vunpack.c.l.b16 %v6870
    %v6975 = vunpack.c.h.b16 %v6870
    %v6976 = vunpack.c.l.b16 %v6871
    %v6977 = vunpack.c.h.b16 %v6871
    %v6978 = vunpack.c.l.b16 %v6872
    %v6979 = vunpack.c.h.b16 %v6872
    %v6980 = vunpack.c.l.b16 %v6873
    %v6981 = vunpack.c.h.b16 %v6873
    %v6982 = vunpack.c.l.b16 %v6874
    %v6983 = vunpack.c.h.b16 %v6874
    %v6984 = vunpack.c.l.b16 %v6875
    %v6985 = vunpack.c.h.b16 %v6875
    %v6986 = vunpack.c.l.b16 %v6876
    %v6987 = vunpack.c.h.b16 %v6876
    %v6988 = vunpack.c.l.b16 %v6877
    %v6989 = vunpack.c.h.b16 %v6877
    %v6990 = vunpack.c.l.b16 %v6878
    %v6991 = vunpack.c.h.b16 %v6878
    %v6992 = vunpack.c.l.b16 %v6879
    %v6993 = vunpack.c.h.b16 %v6879
    %v6994 = vunpack.c.l.b16 %v6880
    %v6995 = vunpack.c.h.b16 %v6880
    %v6996 = vunpack.c.l.b16 %v6881
    %v6997 = vunpack.c.h.b16 %v6881
    %v6998 = vunpack.c.l.b16 %v6882
    %v6999 = vunpack.c.h.b16 %v6882
    %v7000 = vunpack.c.l.b16 %v6883
    %v7001 = vunpack.c.h.b16 %v6883
    %v7002 = vunpack.c.l.b16 %v6884
    %v7003 = vunpack.c.h.b16 %v6884
    %v7004 = vpack.c.b16 %v6944, %v6940
    %v7005 = vpack.c.b16 %v6945, %v6941
    %v7006 = vpack.c.b16 %v6946, %v6942
    %v7007 = vpack.c.b16 %v6947, %v6943
    %v7008 = vpack.c.b16 %v6952, %v6948
    %v7009 = vpack.c.b16 %v6953, %v6949
    %v7010 = vpack.c.b16 %v6954, %v6950
    %v7011 = vpack.c.b16 %v6955, %v6951
    %v7012 = vpack.c.b16 %v6960, %v6956
    %v7013 = vpack.c.b16 %v6961, %v6957
    %v7014 = vpack.c.b16 %v6962, %v6958
    %v7015 = vpack.c.b16 %v6963, %v6959
    %v7016 = vpack.c.b16 %v6968, %v6964
    %v7017 = vpack.c.b16 %v6969, %v6965
    %v7018 = vpack.c.b16 %v6970, %v6966
    %v7019 = vpack.c.b16 %v6971, %v6967
    %v7020 = vpack.c.b16 %v6976, %v6972
    %v7021 = vpack.c.b16 %v6977, %v6973
    %v7022 = vpack.c.b16 %v6978, %v6974
    %v7023 = vpack.c.b16 %v6979, %v6975
    %v7024 = vpack.c.b16 %v6984, %v6980
    %v7025 = vpack.c.b16 %v6985, %v6981
    %v7026 = vpack.c.b16 %v6986, %v6982
    %v7027 = vpack.c.b16 %v6987, %v6983
    %v7028 = vpack.c.b16 %v6992, %v6988
    %v7029 = vpack.c.b16 %v6993, %v6989
    %v7030 = vpack.c.b16 %v6994, %v6990
    %v7031 = vpack.c.b16 %v6995, %v6991
    %v7032 = vpack.c.b16 %v7000, %v6996
    %v7033 = vpack.c.b16 %v7001, %v6997
    %v7034 = vpack.c.b16 %v7002, %v6998
    %v7035 = vpack.c.b16 %v7003, %v6999
    %7068 = vmatprep.subr.bf16.mxu0 %v7005
    %7069 = vmatpush1.bf16.msra.mxu0 %v7004
    %7070 = vmatprep.subr.bf16.mxu0 %v7009
    %7071 = vmatpush1.bf16.msra.mxu0 %v7008
    %7072 = vmatprep.subr.bf16.mxu0 %v7013
    %7073 = vmatpush1.bf16.msra.mxu0 %v7012
    %7074 = vmatprep.subr.bf16.mxu0 %v7017
    %7075 = vmatpush1.bf16.msra.mxu0 %v7016
    %7076 = vmatprep.subr.bf16.mxu0 %v7021
    %7077 = vmatpush1.bf16.msra.mxu0 %v7020
    %7078 = vmatprep.subr.bf16.mxu0 %v7025
    %7079 = vmatpush1.bf16.msra.mxu0 %v7024
    %7080 = vmatprep.subr.bf16.mxu0 %v7029
    %7081 = vmatpush1.bf16.msra.mxu0 %v7028
    %7082 = vmatprep.subr.bf16.mxu0 %v7033
    %7083 = vmatpush1.bf16.msra.mxu0 %v7032
    %7084 = vmatprep.subr.bf16.mxu0 0
    %7085 = vmatpush1.bf16.msra.mxu0 0
    %7086 = vmatprep.subr.bf16.mxu0 0
    %7087 = vmatpush1.bf16.msra.mxu0 0
    %7088 = vmatprep.subr.bf16.mxu0 0
    %7089 = vmatpush1.bf16.msra.mxu0 0
    %7090 = vmatprep.subr.bf16.mxu0 0
    %7091 = vmatpush1.bf16.msra.mxu0 0
    %7092 = vmatprep.subr.bf16.mxu0 0
    %7093 = vmatpush1.bf16.msra.mxu0 0
    %7094 = vmatprep.subr.bf16.mxu0 0
    %7095 = vmatpush1.bf16.msra.mxu0 0
    %7096 = vmatprep.subr.bf16.mxu0 0
    %7097 = vmatpush1.bf16.msra.mxu0 0
    %7098 = vmatprep.subr.bf16.mxu0 0
    %7099 = vmatpush1.bf16.msra.mxu0 0
    %7100 = vmatprep.mubr.bf16.mxu0 0
    %7101 = vmatmul.mubr.bf16.gmra.mrb[0].mxu0 %v6851
    %v7102 = vpop.f32.mrb[0].mxu0
    %v7103 = vadd.f32 %v6891, %v7102
    %v7104 = vpop.f32.mrb[0].mxu0
    %v7105 = vadd.f32 %v6895, %v7104
    %v7106 = vpop.f32.mrb[0].mxu0
    %v7107 = vadd.f32 %v6891, %v7106
    %v7108 = vpop.f32.mrb[0].mxu0
    %v7109 = vadd.f32 %v6895, %v7108
    %7110 = vdwg.mxu0
    %7111 = vmatprep.subr.bf16.mxu0 %v7007
    %7112 = vmatpush1.bf16.msra.mxu0 %v7006
    %7113 = vmatprep.subr.bf16.mxu0 %v7011
    %7114 = vmatpush1.bf16.msra.mxu0 %v7010
    %7115 = vmatprep.subr.bf16.mxu0 %v7015
    %7116 = vmatpush1.bf16.msra.mxu0 %v7014
    %7117 = vmatprep.subr.bf16.mxu0 %v7019
    %7118 = vmatpush1.bf16.msra.mxu0 %v7018
    %7119 = vmatprep.subr.bf16.mxu0 %v7023
    %7120 = vmatpush1.bf16.msra.mxu0 %v7022
    %7121 = vmatprep.subr.bf16.mxu0 %v7027
    %7122 = vmatpush1.bf16.msra.mxu0 %v7026
    %7123 = vmatprep.subr.bf16.mxu0 %v7031
    %7124 = vmatpush1.bf16.msra.mxu0 %v7030
    %7125 = vmatprep.subr.bf16.mxu0 %v7035
    %7126 = vmatpush1.bf16.msra.mxu0 %v7034
    %7127 = vmatprep.subr.bf16.mxu0 0
    %7128 = vmatpush1.bf16.msra.mxu0 0
    %7129 = vmatprep.subr.bf16.mxu0 0
    %7130 = vmatpush1.bf16.msra.mxu0 0
    %7131 = vmatprep.subr.bf16.mxu0 0
    %7132 = vmatpush1.bf16.msra.mxu0 0
    %7133 = vmatprep.subr.bf16.mxu0 0
    %7134 = vmatpush1.bf16.msra.mxu0 0
    %7135 = vmatprep.subr.bf16.mxu0 0
    %7136 = vmatpush1.bf16.msra.mxu0 0
    %7137 = vmatprep.subr.bf16.mxu0 0
    %7138 = vmatpush1.bf16.msra.mxu0 0
    %7139 = vmatprep.subr.bf16.mxu0 0
    %7140 = vmatpush1.bf16.msra.mxu0 0
    %7141 = vmatprep.subr.bf16.mxu0 0
    %7142 = vmatpush1.bf16.msra.mxu0 0
    %7143 = vmatprep.mubr.bf16.mxu0 0
    %7144 = vmatmul.mubr.bf16.gmra.mrb[0].mxu0 %v6851
    %v7145 = vpop.f32.mrb[0].mxu0
    %v7146 = vadd.f32 %v6899, %v7145
    %v7147 = vpop.f32.mrb[0].mxu0
    %v7148 = vadd.f32 %v6903, %v7147
    %v7149 = vpop.f32.mrb[0].mxu0
    %v7150 = vadd.f32 %v6899, %v7149
    %v7151 = vpop.f32.mrb[0].mxu0
    %v7152 = vadd.f32 %v6903, %v7151
    %7153 = vdwg.mxu0
    %v7154 = vmul.f32 %v7103, 0.5
    %v7155 = vmul.f32 %v7105, 0.5
    %v7156 = vmul.f32 %v7146, 0.5
    %v7157 = vmul.f32 %v7148, 0.5
    %v7158 = vmul.f32 %v7107, 0.5
    %v7159 = vmul.f32 %v7109, 0.5
    %v7160 = vmul.f32 %v7150, 0.5
    %v7161 = vmul.f32 %v7152, 0.5
    %v7162 = vmul.f32 %v7103, 0.044715
    %v7163 = vmul.f32 %v7105, 0.044715
    %v7164 = vmul.f32 %v7146, 0.044715
    %v7165 = vmul.f32 %v7148, 0.044715
    %v7166 = vmul.f32 %v7107, 0.044715
    %v7167 = vmul.f32 %v7109, 0.044715
    %v7168 = vmul.f32 %v7150, 0.044715
    %v7169 = vmul.f32 %v7152, 0.044715
    %v7170 = vmul.f32 %v7162, %v7103
    %v7171 = vmul.f32 %v7163, %v7105
    %v7172 = vmul.f32 %v7164, %v7146
    %v7173 = vmul.f32 %v7165, %v7148
    %v7174 = vmul.f32 %v7166, %v7107
    %v7175 = vmul.f32 %v7167, %v7109
    %v7176 = vmul.f32 %v7168, %v7150
    %v7177 = vmul.f32 %v7169, %v7152
    %v7178 = vmul.f32 %v7170, %v7103
    %v7179 = vmul.f32 %v7171, %v7105
    %v7180 = vmul.f32 %v7172, %v7146
    %v7181 = vmul.f32 %v7173, %v7148
    %v7182 = vmul.f32 %v7174, %v7107
    %v7183 = vmul.f32 %v7175, %v7109
    %v7184 = vmul.f32 %v7176, %v7150
    %v7185 = vmul.f32 %v7177, %v7152
    %v7186 = vadd.f32 %v7103, %v7178
    %v7187 = vadd.f32 %v7105, %v7179
    %v7188 = vadd.f32 %v7146, %v7180
    %v7189 = vadd.f32 %v7148, %v7181
    %v7190 = vadd.f32 %v7107, %v7182
    %v7191 = vadd.f32 %v7109, %v7183
    %v7192 = vadd.f32 %v7150, %v7184
    %v7193 = vadd.f32 %v7152, %v7185
    %v7194 = vmul.f32 %v7186, 0.7978846
    %v7195 = vmul.f32 %v7187, 0.7978846
    %v7196 = vmul.f32 %v7188, 0.7978846
    %v7197 = vmul.f32 %v7189, 0.7978846
    %v7198 = vmul.f32 %v7190, 0.7978846
    %v7199 = vmul.f32 %v7191, 0.7978846
    %v7200 = vmul.f32 %v7192, 0.7978846
    %v7201 = vmul.f32 %v7193, 0.7978846
    %v7202 = vtanh.pop %v7194
    %v7203 = vtanh.pop %v7195
    %v7204 = vtanh.pop %v7196
    %v7205 = vtanh.pop %v7197
    %v7206 = vtanh.pop %v7198
    %v7207 = vtanh.pop %v7199
    %v7208 = vtanh.pop %v7200
    %v7209 = vtanh.pop %v7201
    %v7210 = vadd.f32 %v7202, 1.0
    %v7211 = vadd.f32 %v7203, 1.0
    %v7212 = vadd.f32 %v7204, 1.0
    %v7213 = vadd.f32 %v7205, 1.0
    %v7214 = vadd.f32 %v7206, 1.0
    %v7215 = vadd.f32 %v7207, 1.0
    %v7216 = vadd.f32 %v7208, 1.0
    %v7217 = vadd.f32 %v7209, 1.0
    %v7218 = vmul.f32 %v7154, %v7210
    %v7219 = vmul.f32 %v7155, %v7211
    %v7220 = vmul.f32 %v7156, %v7212
    %v7221 = vmul.f32 %v7157, %v7213
    %v7222 = vmul.f32 %v7158, %v7214
    %v7223 = vmul.f32 %v7159, %v7215
    %v7224 = vmul.f32 %v7160, %v7216
    %v7225 = vmul.f32 %v7161, %v7217
    %v7226 = vpack.c.bf16 %v7222, %v7218
    %v7227 = vpack.c.bf16 %v7223, %v7219
    %v7228 = vpack.c.bf16 %v7224, %v7220
    %v7229 = vpack.c.bf16 %v7225, %v7221
    %s7230 = scalar_lea.vmem %s18, 256
    %v7231 = vld [vmem:[%s7230] sm:$0xf]
    %v7232 = vld [vmem:[%s7230 + $0x4] sm:$0xf]
    %v7233 = vld [vmem:[%s7230 + $0x8] sm:$0xf]
    %v7234 = vld [vmem:[%s7230 + $0xc] sm:$0xf]
    %v7235 = vld [vmem:[%s7230 + $0x10] sm:$0xf]
    %v7236 = vld [vmem:[%s7230 + $0x14] sm:$0xf]
    %v7237 = vld [vmem:[%s7230 + $0x18] sm:$0xf]
    %v7238 = vld [vmem:[%s7230 + $0x1c] sm:$0xf]
    %v7239 = vld [vmem:[%s7230 + $0x20] sm:$0xf]
    %v7240 = vld [vmem:[%s7230 + $0x24] sm:$0xf]
    %v7241 = vld [vmem:[%s7230 + $0x28] sm:$0xf]
    %v7242 = vld [vmem:[%s7230 + $0x2c] sm:$0xf]
    %v7243 = vld [vmem:[%s7230 + $0x30] sm:$0xf]
    %v7244 = vld [vmem:[%s7230 + $0x34] sm:$0xf]
    %v7245 = vld [vmem:[%s7230 + $0x38] sm:$0xf]
    %v7246 = vld [vmem:[%s7230 + $0x3c] sm:$0xf]
    %v7247 = vld [vmem:[%s7230 + $0x40] sm:$0xf]
    %v7248 = vld [vmem:[%s7230 + $0x44] sm:$0xf]
    %v7249 = vld [vmem:[%s7230 + $0x48] sm:$0xf]
    %v7250 = vld [vmem:[%s7230 + $0x4c] sm:$0xf]
    %v7251 = vld [vmem:[%s7230 + $0x50] sm:$0xf]
    %v7252 = vld [vmem:[%s7230 + $0x54] sm:$0xf]
    %v7253 = vld [vmem:[%s7230 + $0x58] sm:$0xf]
    %v7254 = vld [vmem:[%s7230 + $0x5c] sm:$0xf]
    %v7255 = vld [vmem:[%s7230 + $0x60] sm:$0xf]
    %v7256 = vld [vmem:[%s7230 + $0x64] sm:$0xf]
    %v7257 = vld [vmem:[%s7230 + $0x68] sm:$0xf]
    %v7258 = vld [vmem:[%s7230 + $0x6c] sm:$0xf]
    %v7259 = vld [vmem:[%s7230 + $0x70] sm:$0xf]
    %v7260 = vld [vmem:[%s7230 + $0x74] sm:$0xf]
    %v7261 = vld [vmem:[%s7230 + $0x78] sm:$0xf]
    %v7262 = vld [vmem:[%s7230 + $0x7c] sm:$0xf]
    %v7263 = vld [vmem:[%s7230 + $0x80] sm:$0xf]
    %v7264 = vld [vmem:[%s7230 + $0x84] sm:$0xf]
    %v7265 = vld [vmem:[%s7230 + $0x88] sm:$0xf]
    %v7266 = vld [vmem:[%s7230 + $0x8c] sm:$0xf]
    %v7267 = vld [vmem:[%s7230 + $0x90] sm:$0xf]
    %v7268 = vld [vmem:[%s7230 + $0x94] sm:$0xf]
    %v7269 = vld [vmem:[%s7230 + $0x98] sm:$0xf]
    %v7270 = vld [vmem:[%s7230 + $0x9c] sm:$0xf]
    %v7271 = vld [vmem:[%s7230 + $0xa0] sm:$0xf]
    %v7272 = vld [vmem:[%s7230 + $0xa4] sm:$0xf]
    %v7273 = vld [vmem:[%s7230 + $0xa8] sm:$0xf]
    %v7274 = vld [vmem:[%s7230 + $0xac] sm:$0xf]
    %v7275 = vld [vmem:[%s7230 + $0xb0] sm:$0xf]
    %v7276 = vld [vmem:[%s7230 + $0xb4] sm:$0xf]
    %v7277 = vld [vmem:[%s7230 + $0xb8] sm:$0xf]
    %v7278 = vld [vmem:[%s7230 + $0xbc] sm:$0xf]
    %v7279 = vld [vmem:[%s7230 + $0xc0] sm:$0xf]
    %v7280 = vld [vmem:[%s7230 + $0xc4] sm:$0xf]
    %v7281 = vld [vmem:[%s7230 + $0xc8] sm:$0xf]
    %v7282 = vld [vmem:[%s7230 + $0xcc] sm:$0xf]
    %v7283 = vld [vmem:[%s7230 + $0xd0] sm:$0xf]
    %v7284 = vld [vmem:[%s7230 + $0xd4] sm:$0xf]
    %v7285 = vld [vmem:[%s7230 + $0xd8] sm:$0xf]
    %v7286 = vld [vmem:[%s7230 + $0xdc] sm:$0xf]
    %v7287 = vld [vmem:[%s7230 + $0xe0] sm:$0xf]
    %v7288 = vld [vmem:[%s7230 + $0xe4] sm:$0xf]
    %v7289 = vld [vmem:[%s7230 + $0xe8] sm:$0xf]
    %v7290 = vld [vmem:[%s7230 + $0xec] sm:$0xf]
    %v7291 = vld [vmem:[%s7230 + $0xf0] sm:$0xf]
    %v7292 = vld [vmem:[%s7230 + $0xf4] sm:$0xf]
    %v7293 = vld [vmem:[%s7230 + $0xf8] sm:$0xf]
    %v7294 = vld [vmem:[%s7230 + $0xfc] sm:$0xf]
    %s7295 = scalar_lea.vmem %s19, 1
    %v7296 = vld [vmem:[%s7295] sm:$0x1]
    %v7298 = vlaneseq
    %v7299 = vshrl.u32 %v7298, 7
    %v7300 = vsub.s32 0, %v7299
    %v7301 = vrot.slane %v7296, %v7300
    %v7367 = vunpack.c.l.b16 %v7231
    %v7368 = vunpack.c.l.b16 %v7232
    %v7369 = vunpack.c.l.b16 %v7233
    %v7370 = vunpack.c.l.b16 %v7234
    %v7371 = vunpack.c.l.b16 %v7235
    %v7372 = vunpack.c.l.b16 %v7236
    %v7373 = vunpack.c.l.b16 %v7237
    %v7374 = vunpack.c.l.b16 %v7238
    %v7375 = vunpack.c.l.b16 %v7239
    %v7376 = vunpack.c.l.b16 %v7240
    %v7377 = vunpack.c.l.b16 %v7241
    %v7378 = vunpack.c.l.b16 %v7242
    %v7379 = vunpack.c.l.b16 %v7243
    %v7380 = vunpack.c.l.b16 %v7244
    %v7381 = vunpack.c.l.b16 %v7245
    %v7382 = vunpack.c.l.b16 %v7246
    %v7383 = vunpack.c.l.b16 %v7247
    %v7384 = vunpack.c.l.b16 %v7248
    %v7385 = vunpack.c.l.b16 %v7249
    %v7386 = vunpack.c.l.b16 %v7250
    %v7387 = vunpack.c.l.b16 %v7251
    %v7388 = vunpack.c.l.b16 %v7252
    %v7389 = vunpack.c.l.b16 %v7253
    %v7390 = vunpack.c.l.b16 %v7254
    %v7391 = vunpack.c.l.b16 %v7255
    %v7392 = vunpack.c.l.b16 %v7256
    %v7393 = vunpack.c.l.b16 %v7257
    %v7394 = vunpack.c.l.b16 %v7258
    %v7395 = vunpack.c.l.b16 %v7259
    %v7396 = vunpack.c.l.b16 %v7260
    %v7397 = vunpack.c.l.b16 %v7261
    %v7398 = vunpack.c.l.b16 %v7262
    %v7399 = vunpack.c.l.b16 %v7263
    %v7400 = vunpack.c.l.b16 %v7264
    %v7401 = vunpack.c.l.b16 %v7265
    %v7402 = vunpack.c.l.b16 %v7266
    %v7403 = vunpack.c.l.b16 %v7267
    %v7404 = vunpack.c.l.b16 %v7268
    %v7405 = vunpack.c.l.b16 %v7269
    %v7406 = vunpack.c.l.b16 %v7270
    %v7407 = vunpack.c.l.b16 %v7271
    %v7408 = vunpack.c.l.b16 %v7272
    %v7409 = vunpack.c.l.b16 %v7273
    %v7410 = vunpack.c.l.b16 %v7274
    %v7411 = vunpack.c.l.b16 %v7275
    %v7412 = vunpack.c.l.b16 %v7276
    %v7413 = vunpack.c.l.b16 %v7277
    %v7414 = vunpack.c.l.b16 %v7278
    %v7415 = vunpack.c.l.b16 %v7279
    %v7416 = vunpack.c.l.b16 %v7280
    %v7417 = vunpack.c.l.b16 %v7281
    %v7418 = vunpack.c.l.b16 %v7282
    %v7419 = vunpack.c.l.b16 %v7283
    %v7420 = vunpack.c.l.b16 %v7284
    %v7421 = vunpack.c.l.b16 %v7285
    %v7422 = vunpack.c.l.b16 %v7286
    %v7423 = vunpack.c.l.b16 %v7287
    %v7424 = vunpack.c.l.b16 %v7288
    %v7425 = vunpack.c.l.b16 %v7289
    %v7426 = vunpack.c.l.b16 %v7290
    %v7427 = vunpack.c.l.b16 %v7291
    %v7428 = vunpack.c.l.b16 %v7292
    %v7429 = vunpack.c.l.b16 %v7293
    %v7430 = vunpack.c.l.b16 %v7294
    %v7431 = vpack.c.b16 %v7368, %v7367
    %v7432 = vpack.c.b16 %v7370, %v7369
    %v7433 = vpack.c.b16 %v7372, %v7371
    %v7434 = vpack.c.b16 %v7374, %v7373
    %v7435 = vpack.c.b16 %v7376, %v7375
    %v7436 = vpack.c.b16 %v7378, %v7377
    %v7437 = vpack.c.b16 %v7380, %v7379
    %v7438 = vpack.c.b16 %v7382, %v7381
    %v7439 = vpack.c.b16 %v7384, %v7383
    %v7440 = vpack.c.b16 %v7386, %v7385
    %v7441 = vpack.c.b16 %v7388, %v7387
    %v7442 = vpack.c.b16 %v7390, %v7389
    %v7443 = vpack.c.b16 %v7392, %v7391
    %v7444 = vpack.c.b16 %v7394, %v7393
    %v7445 = vpack.c.b16 %v7396, %v7395
    %v7446 = vpack.c.b16 %v7398, %v7397
    %v7447 = vpack.c.b16 %v7400, %v7399
    %v7448 = vpack.c.b16 %v7402, %v7401
    %v7449 = vpack.c.b16 %v7404, %v7403
    %v7450 = vpack.c.b16 %v7406, %v7405
    %v7451 = vpack.c.b16 %v7408, %v7407
    %v7452 = vpack.c.b16 %v7410, %v7409
    %v7453 = vpack.c.b16 %v7412, %v7411
    %v7454 = vpack.c.b16 %v7414, %v7413
    %v7455 = vpack.c.b16 %v7416, %v7415
    %v7456 = vpack.c.b16 %v7418, %v7417
    %v7457 = vpack.c.b16 %v7420, %v7419
    %v7458 = vpack.c.b16 %v7422, %v7421
    %v7459 = vpack.c.b16 %v7424, %v7423
    %v7460 = vpack.c.b16 %v7426, %v7425
    %v7461 = vpack.c.b16 %v7428, %v7427
    %v7462 = vpack.c.b16 %v7430, %v7429
    %7495 = vmatprep.subr.bf16.mxu0 0
    %7496 = vmatpush1.bf16.msra.mxu0 %v7431
    %7497 = vmatprep.subr.bf16.mxu0 0
    %7498 = vmatpush1.bf16.msra.mxu0 %v7432
    %7499 = vmatprep.subr.bf16.mxu0 0
    %7500 = vmatpush1.bf16.msra.mxu0 %v7433
    %7501 = vmatprep.subr.bf16.mxu0 0
    %7502 = vmatpush1.bf16.msra.mxu0 %v7434
    %7503 = vmatprep.subr.bf16.mxu0 0
    %7504 = vmatpush1.bf16.msra.mxu0 %v7435
    %7505 = vmatprep.subr.bf16.mxu0 0
    %7506 = vmatpush1.bf16.msra.mxu0 %v7436
    %7507 = vmatprep.subr.bf16.mxu0 0
    %7508 = vmatpush1.bf16.msra.mxu0 %v7437
    %7509 = vmatprep.subr.bf16.mxu0 0
    %7510 = vmatpush1.bf16.msra.mxu0 %v7438
    %7511 = vmatprep.subr.bf16.mxu0 0
    %7512 = vmatpush1.bf16.msra.mxu0 %v7439
    %7513 = vmatprep.subr.bf16.mxu0 0
    %7514 = vmatpush1.bf16.msra.mxu0 %v7440
    %7515 = vmatprep.subr.bf16.mxu0 0
    %7516 = vmatpush1.bf16.msra.mxu0 %v7441
    %7517 = vmatprep.subr.bf16.mxu0 0
    %7518 = vmatpush1.bf16.msra.mxu0 %v7442
    %7519 = vmatprep.subr.bf16.mxu0 0
    %7520 = vmatpush1.bf16.msra.mxu0 %v7443
    %7521 = vmatprep.subr.bf16.mxu0 0
    %7522 = vmatpush1.bf16.msra.mxu0 %v7444
    %7523 = vmatprep.subr.bf16.mxu0 0
    %7524 = vmatpush1.bf16.msra.mxu0 %v7445
    %7525 = vmatprep.subr.bf16.mxu0 0
    %7526 = vmatpush1.bf16.msra.mxu0 %v7446
    %7527 = vmatprep.mubr.bf16.mxu0 %v7227
    %7528 = vmatmul.mubr.bf16.gmra.mrb[0].mxu0 %v7226
    %v7529 = vpop.f32.mrb[0].mxu0
    %v7530 = vadd.f32 %v7301, %v7529
    %v7531 = vpop.f32.mrb[0].mxu0
    %v7532 = vpop.f32.mrb[0].mxu0
    %v7533 = vadd.f32 %v7301, %v7532
    %v7534 = vpop.f32.mrb[0].mxu0
    %7535 = vdwg.mxu0
    %7536 = vmatprep.subr.bf16.mxu0 0
    %7537 = vmatpush1.bf16.msra.mxu0 %v7447
    %7538 = vmatprep.subr.bf16.mxu0 0
    %7539 = vmatpush1.bf16.msra.mxu0 %v7448
    %7540 = vmatprep.subr.bf16.mxu0 0
    %7541 = vmatpush1.bf16.msra.mxu0 %v7449
    %7542 = vmatprep.subr.bf16.mxu0 0
    %7543 = vmatpush1.bf16.msra.mxu0 %v7450
    %7544 = vmatprep.subr.bf16.mxu0 0
    %7545 = vmatpush1.bf16.msra.mxu0 %v7451
    %7546 = vmatprep.subr.bf16.mxu0 0
    %7547 = vmatpush1.bf16.msra.mxu0 %v7452
    %7548 = vmatprep.subr.bf16.mxu0 0
    %7549 = vmatpush1.bf16.msra.mxu0 %v7453
    %7550 = vmatprep.subr.bf16.mxu0 0
    %7551 = vmatpush1.bf16.msra.mxu0 %v7454
    %7552 = vmatprep.subr.bf16.mxu0 0
    %7553 = vmatpush1.bf16.msra.mxu0 %v7455
    %7554 = vmatprep.subr.bf16.mxu0 0
    %7555 = vmatpush1.bf16.msra.mxu0 %v7456
    %7556 = vmatprep.subr.bf16.mxu0 0
    %7557 = vmatpush1.bf16.msra.mxu0 %v7457
    %7558 = vmatprep.subr.bf16.mxu0 0
    %7559 = vmatpush1.bf16.msra.mxu0 %v7458
    %7560 = vmatprep.subr.bf16.mxu0 0
    %7561 = vmatpush1.bf16.msra.mxu0 %v7459
    %7562 = vmatprep.subr.bf16.mxu0 0
    %7563 = vmatpush1.bf16.msra.mxu0 %v7460
    %7564 = vmatprep.subr.bf16.mxu0 0
    %7565 = vmatpush1.bf16.msra.mxu0 %v7461
    %7566 = vmatprep.subr.bf16.mxu0 0
    %7567 = vmatpush1.bf16.msra.mxu0 %v7462
    %7568 = vmatprep.mubr.bf16.mxu0 %v7229
    %7569 = vmatmul.mubr.bf16.gmra.mrb[0].mxu0 %v7228
    %v7570 = vpop.f32.mrb[0].mxu0
    %v7571 = vadd.f32 %v7530, %v7570
    %v7572 = vpop.f32.mrb[0].mxu0
    %v7573 = vpop.f32.mrb[0].mxu0
    %v7574 = vadd.f32 %v7533, %v7573
    %v7575 = vpop.f32.mrb[0].mxu0
    %7576 = vdwg.mxu0
    %v7577 = vpack.c.bf16 %v7574, %v7571
    %s7578 = scalar_lea.vmem %s20, 64
    %v7579 = vld [vmem:[%s7578] sm:$0xf]
    %v7580 = vld [vmem:[%s7578 + $0x4] sm:$0xf]
    %v7581 = vld [vmem:[%s7578 + $0x8] sm:$0xf]
    %v7582 = vld [vmem:[%s7578 + $0xc] sm:$0xf]
    %v7583 = vld [vmem:[%s7578 + $0x10] sm:$0xf]
    %v7584 = vld [vmem:[%s7578 + $0x14] sm:$0xf]
    %v7585 = vld [vmem:[%s7578 + $0x18] sm:$0xf]
    %v7586 = vld [vmem:[%s7578 + $0x1c] sm:$0xf]
    %v7587 = vld [vmem:[%s7578 + $0x20] sm:$0xf]
    %v7588 = vld [vmem:[%s7578 + $0x24] sm:$0xf]
    %v7589 = vld [vmem:[%s7578 + $0x28] sm:$0xf]
    %v7590 = vld [vmem:[%s7578 + $0x2c] sm:$0xf]
    %v7591 = vld [vmem:[%s7578 + $0x30] sm:$0xf]
    %v7592 = vld [vmem:[%s7578 + $0x34] sm:$0xf]
    %v7593 = vld [vmem:[%s7578 + $0x38] sm:$0xf]
    %v7594 = vld [vmem:[%s7578 + $0x3c] sm:$0xf]
    %s7595 = scalar_lea.vmem %s21, 1
    %v7596 = vld [vmem:[%s7595] sm:$0x1]
    %v7598 = vlaneseq
    %v7599 = vshrl.u32 %v7598, 7
    %v7600 = vsub.s32 0, %v7599
    %v7601 = vrot.slane %v7596, %v7600
    %v7619 = vunpack.c.l.b16 %v7579
    %v7620 = vunpack.c.l.b16 %v7580
    %v7621 = vunpack.c.l.b16 %v7581
    %v7622 = vunpack.c.l.b16 %v7582
    %v7623 = vunpack.c.l.b16 %v7583
    %v7624 = vunpack.c.l.b16 %v7584
    %v7625 = vunpack.c.l.b16 %v7585
    %v7626 = vunpack.c.l.b16 %v7586
    %v7627 = vunpack.c.l.b16 %v7587
    %v7628 = vunpack.c.l.b16 %v7588
    %v7629 = vunpack.c.l.b16 %v7589
    %v7630 = vunpack.c.l.b16 %v7590
    %v7631 = vunpack.c.l.b16 %v7591
    %v7632 = vunpack.c.l.b16 %v7592
    %v7633 = vunpack.c.l.b16 %v7593
    %v7634 = vunpack.c.l.b16 %v7594
    %v7635 = vpack.c.b16 %v7620, %v7619
    %v7636 = vpack.c.b16 %v7622, %v7621
    %v7637 = vpack.c.b16 %v7624, %v7623
    %v7638 = vpack.c.b16 %v7626, %v7625
    %v7639 = vpack.c.b16 %v7628, %v7627
    %v7640 = vpack.c.b16 %v7630, %v7629
    %v7641 = vpack.c.b16 %v7632, %v7631
    %v7642 = vpack.c.b16 %v7634, %v7633
    %7651 = vmatprep.subr.bf16.mxu0 0
    %7652 = vmatpush1.bf16.msra.mxu0 %v7635
    %7653 = vmatprep.subr.bf16.mxu0 0
    %7654 = vmatpush1.bf16.msra.mxu0 %v7636
    %7655 = vmatprep.subr.bf16.mxu0 0
    %7656 = vmatpush1.bf16.msra.mxu0 %v7637
    %7657 = vmatprep.subr.bf16.mxu0 0
    %7658 = vmatpush1.bf16.msra.mxu0 %v7638
    %7659 = vmatprep.subr.bf16.mxu0 0
    %7660 = vmatpush1.bf16.msra.mxu0 %v7639
    %7661 = vmatprep.subr.bf16.mxu0 0
    %7662 = vmatpush1.bf16.msra.mxu0 %v7640
    %7663 = vmatprep.subr.bf16.mxu0 0
    %7664 = vmatpush1.bf16.msra.mxu0 %v7641
    %7665 = vmatprep.subr.bf16.mxu0 0
    %7666 = vmatpush1.bf16.msra.mxu0 %v7642
    %7667 = vmatprep.subr.bf16.mxu0 0
    %7668 = vmatpush1.bf16.msra.mxu0 0
    %7669 = vmatprep.subr.bf16.mxu0 0
    %7670 = vmatpush1.bf16.msra.mxu0 0
    %7671 = vmatprep.subr.bf16.mxu0 0
    %7672 = vmatpush1.bf16.msra.mxu0 0
    %7673 = vmatprep.subr.bf16.mxu0 0
    %7674 = vmatpush1.bf16.msra.mxu0 0
    %7675 = vmatprep.subr.bf16.mxu0 0
    %7676 = vmatpush1.bf16.msra.mxu0 0
    %7677 = vmatprep.subr.bf16.mxu0 0
    %7678 = vmatpush1.bf16.msra.mxu0 0
    %7679 = vmatprep.subr.bf16.mxu0 0
    %7680 = vmatpush1.bf16.msra.mxu0 0
    %7681 = vmatprep.subr.bf16.mxu0 0
    %7682 = vmatpush1.bf16.msra.mxu0 0
    %7683 = vmatprep.mubr.bf16.mxu0 0
    %7684 = vmatmul.mubr.bf16.gmra.mrb[0].mxu0 %v7577
    %v7685 = vpop.f32.mrb[0].mxu0
    %v7686 = vadd.f32 %v7601, %v7685
    %v7687 = vpop.f32.mrb[0].mxu0
    %v7688 = vpop.f32.mrb[0].mxu0
    %v7689 = vadd.f32 %v7601, %v7688
    %v7690 = vpop.f32.mrb[0].mxu0
    %7691 = vdwg.mxu0
    %v7692 = vmax.f32 %v7686, 0.0
    %v7693 = vmax.f32 %v7689, 0.0
    %v7694 = vpack.c.bf16 %v7693, %v7692
    %s7695 = scalar_lea.vmem %s22, 4
    %v7696 = vld [vmem:[%s7695] sm:$0xf]
    %s7697 = scalar_lea.vmem %s23, 1
    %v7698 = vld [vmem:[%s7697] sm:$0x1]
    %v7700 = vlaneseq
    %v7701 = vshrl.u32 %v7700, 7
    %v7702 = vsub.s32 0, %v7701
    %v7703 = vrot.slane %v7698, %v7702
    %v7706 = vsel %vm619, %v7694, 0
    %v7709 = vsel %vm3908, %v7696, 0
    %7711 = vmatprep.subr.bf16.mxu0 0
    %7712 = vmatpush1.bf16.msra.mxu0 %v7709
    %7713 = vmatprep.subr.bf16.mxu0 0
    %7714 = vmatpush1.bf16.msra.mxu0 0
    %7715 = vmatprep.subr.bf16.mxu0 0
    %7716 = vmatpush1.bf16.msra.mxu0 0
    %7717 = vmatprep.subr.bf16.mxu0 0
    %7718 = vmatpush1.bf16.msra.mxu0 0
    %7719 = vmatprep.subr.bf16.mxu0 0
    %7720 = vmatpush1.bf16.msra.mxu0 0
    %7721 = vmatprep.subr.bf16.mxu0 0
    %7722 = vmatpush1.bf16.msra.mxu0 0
    %7723 = vmatprep.subr.bf16.mxu0 0
    %7724 = vmatpush1.bf16.msra.mxu0 0
    %7725 = vmatprep.subr.bf16.mxu0 0
    %7726 = vmatpush1.bf16.msra.mxu0 0
    %7727 = vmatprep.subr.bf16.mxu0 0
    %7728 = vmatpush1.bf16.msra.mxu0 0
    %7729 = vmatprep.subr.bf16.mxu0 0
    %7730 = vmatpush1.bf16.msra.mxu0 0
    %7731 = vmatprep.subr.bf16.mxu0 0
    %7732 = vmatpush1.bf16.msra.mxu0 0
    %7733 = vmatprep.subr.bf16.mxu0 0
    %7734 = vmatpush1.bf16.msra.mxu0 0
    %7735 = vmatprep.subr.bf16.mxu0 0
    %7736 = vmatpush1.bf16.msra.mxu0 0
    %7737 = vmatprep.subr.bf16.mxu0 0
    %7738 = vmatpush1.bf16.msra.mxu0 0
    %7739 = vmatprep.subr.bf16.mxu0 0
    %7740 = vmatpush1.bf16.msra.mxu0 0
    %7741 = vmatprep.subr.bf16.mxu0 0
    %7742 = vmatpush1.bf16.msra.mxu0 0
    %7743 = vmatprep.mubr.bf16.mxu0 0
    %7744 = vmatmul.mubr.bf16.gmra.mrb[0].mxu0 %v7706
    %v7745 = vpop.f32.mrb[0].mxu0
    %v7746 = vadd.f32 %v7703, %v7745
    %v7747 = vpop.f32.mrb[0].mxu0
    %v7748 = vpop.f32.mrb[0].mxu0
    %v7749 = vadd.f32 %v7703, %v7748
    %v7750 = vpop.f32.mrb[0].mxu0
    %7751 = vdwg.mxu0
    %v7752 = vadd.f32 %v7571, %v7746
    %v7753 = vadd.f32 %v7574, %v7749
    %v7754 = vadd.f32 %v7752, %v6849
    %v7755 = vadd.f32 %v7753, %v6850
    %s7756 = scalar_lea.vmem %s24, 1
    %v7757 = vld [vmem:[%s7756] sm:$0x1]
    %s7758 = scalar_lea.vmem %s25, 1
    %v7759 = vld [vmem:[%s7758] sm:$0x1]
    %7760 = vadd.xlane.f32.xlu0 %v7754
    %v7761 = vpop.xlane.xlu0 %7760
    %7762 = vadd.xlane.f32.xlu0 %v7755
    %v7763 = vpop.xlane.xlu0 %7762
    %v7764 = vmul.f32 %v7761, %v161
    %v7765 = vmul.f32 %v7763, %v161
    %v7766 = vsub.f32 %v7754, %v7764
    %v7767 = vsub.f32 %v7755, %v7765
    %v7768 = vmul.f32 %v7766, %v7766
    %v7769 = vmul.f32 %v7767, %v7767
    %7770 = vadd.xlane.f32.xlu0 %v7768
    %v7771 = vpop.xlane.xlu0 %7770
    %7772 = vadd.xlane.f32.xlu0 %v7769
    %v7773 = vpop.xlane.xlu0 %7772
    %v7774 = vmul.f32 %v7771, %v161
    %v7775 = vmul.f32 %v7773, %v161
    %v7776 = vadd.f32 %v7774, 1e-12
    %v7777 = vadd.f32 %v7775, 1e-12
    %v7778 = vrsqrt.pop %v7776
    %v7779 = vrsqrt.pop %v7777
    %v7780 = vmul.f32 %v7766, %v7778
    %v7781 = vmul.f32 %v7767, %v7779
    %v7783 = vlaneseq
    %v7784 = vshrl.u32 %v7783, 7
    %v7785 = vsub.s32 0, %v7784
    %v7786 = vrot.slane %v7757, %v7785
    %v7788 = vmul.f32 %v7780, %v7786
    %v7789 = vmul.f32 %v7781, %v7786
    %v7791 = vlaneseq
    %v7792 = vshrl.u32 %v7791, 7
    %v7793 = vsub.s32 0, %v7792
    %v7794 = vrot.slane %v7759, %v7793
    %v7796 = vadd.f32 %v7788, %v7794
    %v7797 = vadd.f32 %v7789, %v7794
    %v7799 = vrot.slane %v7797, 7
    %vm7801 = vcmask 1040384
    %v7802 = vsel %vm7801, %v7796, %v7799
    %vm7803 = vcmask 1041408
    %v7804 = vsel %vm7803, %v7802, 0.0
    %v7805 = vpack.c.bf16 %v7804, %v7804
    %v7806 = vld [vmem:[%s26] sm:$0xf]
    %v7807 = vld [vmem:[%s26 + $0x4] sm:$0xf]
    %v7808 = vld [vmem:[%s26 + $0x8] sm:$0xf]
    %v7809 = vld [vmem:[%s26 + $0xc] sm:$0xf]
    %v7810 = vld [vmem:[%s26 + $0x10] sm:$0xf]
    %v7811 = vld [vmem:[%s26 + $0x14] sm:$0xf]
    %v7812 = vld [vmem:[%s26 + $0x18] sm:$0xf]
    %v7813 = vld [vmem:[%s26 + $0x1c] sm:$0xf]
    %v7814 = vld [vmem:[%s26 + $0x20] sm:$0xf]
    %v7815 = vld [vmem:[%s26 + $0x24] sm:$0xf]
    %v7816 = vld [vmem:[%s26 + $0x28] sm:$0xf]
    %v7817 = vld [vmem:[%s26 + $0x2c] sm:$0xf]
    %v7818 = vld [vmem:[%s26 + $0x30] sm:$0xf]
    %v7819 = vld [vmem:[%s26 + $0x34] sm:$0xf]
    %v7820 = vld [vmem:[%s26 + $0x38] sm:$0xf]
    %v7821 = vld [vmem:[%s26 + $0x3c] sm:$0xf]
    %v7822 = vld [vmem:[%s27] sm:$0x1]
    %v7824 = vlaneseq
    %v7825 = vshrl.u32 %v7824, 7
    %v7826 = vsub.s32 0, %v7825
    %v7827 = vrot.slane %v7822, %v7826
    %v7845 = vunpack.c.l.b16 %v7806
    %v7846 = vunpack.c.l.b16 %v7807
    %v7847 = vunpack.c.l.b16 %v7808
    %v7848 = vunpack.c.l.b16 %v7809
    %v7849 = vunpack.c.l.b16 %v7810
    %v7850 = vunpack.c.l.b16 %v7811
    %v7851 = vunpack.c.l.b16 %v7812
    %v7852 = vunpack.c.l.b16 %v7813
    %v7853 = vunpack.c.l.b16 %v7814
    %v7854 = vunpack.c.l.b16 %v7815
    %v7855 = vunpack.c.l.b16 %v7816
    %v7856 = vunpack.c.l.b16 %v7817
    %v7857 = vunpack.c.l.b16 %v7818
    %v7858 = vunpack.c.l.b16 %v7819
    %v7859 = vunpack.c.l.b16 %v7820
    %v7860 = vunpack.c.l.b16 %v7821
    %v7861 = vpack.c.b16 %v7846, %v7845
    %v7862 = vpack.c.b16 %v7848, %v7847
    %v7863 = vpack.c.b16 %v7850, %v7849
    %v7864 = vpack.c.b16 %v7852, %v7851
    %v7865 = vpack.c.b16 %v7854, %v7853
    %v7866 = vpack.c.b16 %v7856, %v7855
    %v7867 = vpack.c.b16 %v7858, %v7857
    %v7868 = vpack.c.b16 %v7860, %v7859
    %7877 = vmatprep.subr.bf16.mxu0 0
    %7878 = vmatpush1.bf16.msra.mxu0 %v7861
    %7879 = vmatprep.subr.bf16.mxu0 0
    %7880 = vmatpush1.bf16.msra.mxu0 %v7862
    %7881 = vmatprep.subr.bf16.mxu0 0
    %7882 = vmatpush1.bf16.msra.mxu0 %v7863
    %7883 = vmatprep.subr.bf16.mxu0 0
    %7884 = vmatpush1.bf16.msra.mxu0 %v7864
    %7885 = vmatprep.subr.bf16.mxu0 0
    %7886 = vmatpush1.bf16.msra.mxu0 %v7865
    %7887 = vmatprep.subr.bf16.mxu0 0
    %7888 = vmatpush1.bf16.msra.mxu0 %v7866
    %7889 = vmatprep.subr.bf16.mxu0 0
    %7890 = vmatpush1.bf16.msra.mxu0 %v7867
    %7891 = vmatprep.subr.bf16.mxu0 0
    %7892 = vmatpush1.bf16.msra.mxu0 %v7868
    %7893 = vmatprep.subr.bf16.mxu0 0
    %7894 = vmatpush1.bf16.msra.mxu0 0
    %7895 = vmatprep.subr.bf16.mxu0 0
    %7896 = vmatpush1.bf16.msra.mxu0 0
    %7897 = vmatprep.subr.bf16.mxu0 0
    %7898 = vmatpush1.bf16.msra.mxu0 0
    %7899 = vmatprep.subr.bf16.mxu0 0
    %7900 = vmatpush1.bf16.msra.mxu0 0
    %7901 = vmatprep.subr.bf16.mxu0 0
    %7902 = vmatpush1.bf16.msra.mxu0 0
    %7903 = vmatprep.subr.bf16.mxu0 0
    %7904 = vmatpush1.bf16.msra.mxu0 0
    %7905 = vmatprep.subr.bf16.mxu0 0
    %7906 = vmatpush1.bf16.msra.mxu0 0
    %7907 = vmatprep.subr.bf16.mxu0 0
    %7908 = vmatpush1.bf16.msra.mxu0 0
    %7909 = vmatprep.mubr.bf16.mxu0 0
    %7910 = vmatmul.mubr.bf16.gmra.mrb[0].mxu0 %v7805
    %v7911 = vpop.f32.mrb[0].mxu0
    %v7912 = vadd.f32 %v7827, %v7911
    %v7913 = vpop.f32.mrb[0].mxu0
    %v7914 = vpop.f32.mrb[0].mxu0
    %v7915 = vpop.f32.mrb[0].mxu0
    %7916 = vdwg.mxu0
    %7917 = vst [vmem:[%s28] sm:$0xff] %v7912
    // Predicated region
    $region130: #{adapter_bert_forward.1} parent=1 // pred_check
      _
    $region131: #{adapter_bert_forward.1} parent=1 // pred_check_branch
      %7919 = sbr.rel (0) target = $region133
    $region132: #{adapter_bert_forward.1} parent=1 // pred_region
      _
    $region133: #{adapter_bert_forward.1} parent=1 // pred_fallthru
      _
    // Predicated region
    $region134: #{adapter_bert_forward.1} parent=1 // pred_check
      _
    $region135: #{adapter_bert_forward.1} parent=1 // pred_check_branch
      %7921 = sbr.rel (0) target = $region137
    $region136: #{adapter_bert_forward.1} parent=1 // pred_region
      _
    $region137: #{adapter_bert_forward.1} parent=1 // pred_fallthru
      _
    %7922 = vsyncpa [#allocation3], 1
    %7923 = vsyncpa [#allocation5], 1
    %7924 = vsyncpa [#allocation8], 1

</llo_original>
